<compile_context>
chip_gen: v6e
topology: v6e:2x2x1
jax: 0.10.0
libtpu: 0.0.40
codegen_flags: <defaults>
</compile_context>

<pallas_src>
import math
import functools

import jax
import jax.numpy as jnp
from jax.experimental import pallas as pl
from jax.experimental.pallas import tpu as pltpu


def _layernorm(v, g, b, eps=1e-5):
    mu = jnp.mean(v, axis=-1, keepdims=True)
    var = jnp.mean((v - mu) ** 2, axis=-1, keepdims=True)
    return (v - mu) * jax.lax.rsqrt(var + eps) * g + b


def _gelu_exact(v):
    # PyTorch nn.GELU default = exact (erf-based) GELU.
    return 0.5 * v * (1.0 + jax.lax.erf(v * (1.0 / math.sqrt(2.0))))


def block_self_kernel(
    x_ref, xw_ref,
    wqkv_ref, wproj_ref, bproj_ref,
    g1_ref, b1_ref, g2_ref, b2_ref,
    wfc1_ref, bfc1_ref, wfc2_ref, bfc2_ref,
    out_ref,
    q_scr, k_scr, v_scr,
    *, num_heads: int, tq: int, scale: float,
):
    qi = pl.program_id(1)
    N, C = x_ref.shape[1], x_ref.shape[2]
    H = num_heads
    Ch = C // H

    # -------- per-batch phase (first query tile only) -------------------------
    # LN1 + ONE fused lane-dense (N, C) x (C, 3C) bf16 QKV matmul for the whole
    # sequence; stored head-major in bf16 scratch, reused by every query tile.
    @pl.when(qi == 0)
    def _():
        xn = _layernorm(x_ref[0], g1_ref[...], b1_ref[...])               # (N, C) f32
        qkv = jnp.dot(xn.astype(jnp.bfloat16), wqkv_ref[...],
                      preferred_element_type=jnp.float32)                 # (N, 3C) f32

        def head_major(m):                                                # (N, C) -> (H, N, Ch)
            return jnp.transpose(m.reshape(N, H, Ch), (1, 0, 2))

        # softmax scale applied on the f32 accumulator, then cast once to bf16.
        q_scr[...] = (head_major(qkv[:, 0 * C:1 * C]) * scale).astype(jnp.bfloat16)
        k_scr[...] = head_major(qkv[:, 1 * C:2 * C]).astype(jnp.bfloat16)
        v_scr[...] = head_major(qkv[:, 2 * C:3 * C]).astype(jnp.bfloat16)

    # -------- per-query-tile phase --------------------------------------------
    row0 = pl.multiple_of(qi * tq, tq)
    x_t = x_ref[0, pl.ds(row0, tq), :]                                    # (Tq, C) f32
    q_t = q_scr[:, pl.ds(row0, tq), :]                                    # (H, Tq, Ch) bf16

    # scores; the xw bias on K is folded in as a rank-1 term:
    #   q . (k + xw) == q . k + xw[k] * sum_d q[:, d]
    s = jnp.einsum("hqd,hkd->hqk", q_t, k_scr[...],
                   preferred_element_type=jnp.float32)                    # (H, Tq, N)
    qsum = jnp.sum(q_t.astype(jnp.float32), axis=-1, keepdims=True)       # (H, Tq, 1)
    s = s + qsum * xw_ref[0]                                              # (1, N) lane-dense

    # softmax in f32 (portable across v5e/v6e/v7x); EUP approx reciprocal.
    # TODO(synk): a bf16 exp would roughly double EUP throughput on v6e/v7x.
    s = s - jnp.max(s, axis=-1, keepdims=True)
    p = jnp.exp(s)
    p = p * pl.reciprocal(jnp.sum(p, axis=-1, keepdims=True), approx=True)

    o = jnp.einsum("hqk,hkd->hqd", p.astype(jnp.bfloat16), v_scr[...],
                   preferred_element_type=jnp.float32)                    # (H, Tq, Ch)

    # fused output projection: one lane-dense (Tq, C) x (C, C) MXU matmul
    # (no per-head proj matmuls, no (H, N, C) intermediate, no head reduction).
    o_flat = jnp.transpose(o, (1, 0, 2)).reshape(tq, C)
    attn_out = jnp.dot(o_flat.astype(jnp.bfloat16), wproj_ref[...],
                       preferred_element_type=jnp.float32) + bproj_ref[...]
    x1 = x_t + attn_out                                                   # residual 1

    # MLP branch (row-local -> tiles over query rows too).
    xn2 = _layernorm(x1, g2_ref[...], b2_ref[...])
    hid = jnp.dot(xn2.astype(jnp.bfloat16), wfc1_ref[...],
                  preferred_element_type=jnp.float32) + bfc1_ref[...]
    hid = _gelu_exact(hid)
    y = jnp.dot(hid.astype(jnp.bfloat16), wfc2_ref[...],
                preferred_element_type=jnp.float32) + bfc2_ref[...]

    out_ref[0] = x1 + y                                                   # residual 2


def _pick_tq(n):
    for t in (128, 64, 32, 16, 8):
        if n % t == 0:
            return t
    return n


def block_self(x, xw, params, num_heads, tq=None):
    """x: (B, N, C) f32; xw: (B, N) f32."""
    B, N, C = x.shape
    Hm = int(C * params["mlp_ratio"])
    H = num_heads
    Ch = C // H
    scale = Ch ** (-0.5)

    if tq is None:
        tq = _pick_tq(N)
    assert N % tq == 0, (N, tq)
    nq = N // tq

    x = x.astype(jnp.float32)
    xw3 = xw.reshape(B, 1, N).astype(jnp.float32)            # lane-dense

    # ---- wrapper-side weight layout (pure plumbing, one-time bf16 cast) ------
    wqkv_t = params["wqkv"].T.astype(jnp.bfloat16)           # (C, 3C) fused
    wproj_t = params["wproj"].T.astype(jnp.bfloat16)         # (C, C)
    bproj = params["bproj"].reshape(1, C).astype(jnp.float32)
    g1 = params["g1"].reshape(1, C).astype(jnp.float32)
    b1 = params["b1"].reshape(1, C).astype(jnp.float32)
    g2 = params["g2"].reshape(1, C).astype(jnp.float32)
    b2 = params["b2"].reshape(1, C).astype(jnp.float32)
    wfc1_t = params["wfc1"].T.astype(jnp.bfloat16)           # (C, Hm)
    bfc1 = params["bfc1"].reshape(1, Hm).astype(jnp.float32)
    wfc2_t = params["wfc2"].T.astype(jnp.bfloat16)           # (Hm, C)
    bfc2 = params["bfc2"].reshape(1, C).astype(jnp.float32)

    # ---- generation-aware VMEM budget ----------------------------------------
    try:
        info = pltpu.get_tpu_info()
        vmem_cap = int(getattr(info, "vmem_capacity_bytes", 128 * 1024 * 1024))
    except Exception:
        vmem_cap = 128 * 1024 * 1024
    w_bytes = 2 * (3 * C * C + C * C + 2 * C * Hm)           # bf16 weights (one copy)
    scr_bytes = 3 * 2 * N * C                                # head-major q/k/v bf16 scratch
    io_bytes = 4 * (2 * N * C + 2 * N + 4 * tq * C)          # x, xw, out (buffered)
    act_batch = 4 * 7 * N * C                                # xn + qkv f32 + head-major copies
    act_tile = 4 * (2 * H * tq * N + 2 * H * tq * Ch
                    + 6 * tq * C + 2 * tq * Hm)              # scores, o, row-local f32 temps
    est = 2 * w_bytes + scr_bytes + io_bytes + max(act_batch, act_tile)
    vmem_limit = int(min(max(int(1.25 * est), 32 * 1024 * 1024),
                         int(0.75 * vmem_cap)))

    kernel = functools.partial(block_self_kernel, num_heads=H, tq=tq, scale=scale)
    operands = (x, xw3, wqkv_t, wproj_t, bproj, g1, b1, g2, b2,
                wfc1_t, bfc1, wfc2_t, bfc2)

    def run(single_buffer_weights):
        # Constant-index weights/biases never change block -> one buffer is
        # enough; halves resident weight VMEM.
        kw = dict(pipeline_mode=pl.Buffered(1)) if single_buffer_weights else {}

        def const(shape):
            return pl.BlockSpec(shape, lambda b, q: (0, 0), **kw)

        grid_spec = pltpu.PrefetchScalarGridSpec(
            num_scalar_prefetch=0,
            grid=(B, nq),
            in_specs=[
                # full sequence; block index only depends on b -> DMA'd once per b
                pl.BlockSpec((1, N, C), lambda b, q: (b, 0, 0)),   # x
                pl.BlockSpec((1, 1, N), lambda b, q: (b, 0, 0)),   # xw (lane-dense)
                const((C, 3 * C)),                                 # fused wqkv^T
                const((C, C)),                                     # wproj^T
                const((1, C)),                                     # bproj
                const((1, C)), const((1, C)),                      # g1, b1
                const((1, C)), const((1, C)),                      # g2, b2
                const((C, Hm)),                                    # wfc1^T
                const((1, Hm)),                                    # bfc1
                const((Hm, C)),                                    # wfc2^T
                const((1, C)),                                     # bfc2
            ],
            out_specs=pl.BlockSpec((1, tq, C), lambda b, q: (b, q, 0)),
            scratch_shapes=[
                pltpu.VMEM((H, N, Ch), jnp.bfloat16),              # q (pre-scaled)
                pltpu.VMEM((H, N, Ch), jnp.bfloat16),              # k (without xw)
                pltpu.VMEM((H, N, Ch), jnp.bfloat16),              # v
            ],
        )
        return pl.pallas_call(
            kernel,
            out_shape=jax.ShapeDtypeStruct((B, N, C), jnp.float32),
            grid_spec=grid_spec,
            compiler_params=pltpu.CompilerParams(
                # qi axis carries K/V scratch state -> must stay "arbitrary".
                dimension_semantics=("parallel", "arbitrary"),
                vmem_limit_bytes=vmem_limit,
            ),
        )(*operands)

    try:
        return run(single_buffer_weights=True)
    except Exception:
        # pl.Buffered(1) not accepted by this jax version -> default buffering.
        return run(single_buffer_weights=False)


# ---------------- pure-JAX reference for verification ----------------
def block_self_ref(x, xw, params, num_heads):
    B, N, C = x.shape
    Ch = C // num_heads
    scale = Ch ** (-0.5)

    def ln(v, g, b):
        mu = jnp.mean(v, -1, keepdims=True)
        var = jnp.mean((v - mu) ** 2, -1, keepdims=True)
        return (v - mu) / jnp.sqrt(var + 1e-5) * g + b

    xn = ln(x, params["g1"], params["b1"])
    qkv = xn @ params["wqkv"].T                                  # (B, N, 3C)
    qkv = qkv.reshape(B, N, 3, num_heads, Ch).transpose(2, 0, 3, 1, 4)
    q, k, v = qkv[0], qkv[1] + xw[:, None, :, None], qkv[2]
    attn = jnp.einsum("bhnd,bhmd->bhnm", q, k) * scale
    attn = jax.nn.softmax(attn, axis=-1)
    o = jnp.einsum("bhnm,bhmd->bhnd", attn, v).transpose(0, 2, 1, 3).reshape(B, N, C)
    o = o @ params["wproj"].T + params["bproj"]
    x1 = x + o
    xn2 = ln(x1, params["g2"], params["b2"])
    h = xn2 @ params["wfc1"].T + params["bfc1"]
    h = 0.5 * h * (1.0 + jax.lax.erf(h / math.sqrt(2.0)))
    y = h @ params["wfc2"].T + params["bfc2"]
    return x1 + y


if __name__ == "__main__":
    B, N, C = 2, 16, 256
    num_heads = 2                      # head_dim = 128 (lane-aligned)
    mlp_ratio = 2.0
    Hm = int(C * mlp_ratio)

    key = jax.random.PRNGKey(0)
    ks = jax.random.split(key, 13)

    params = {
        "mlp_ratio": mlp_ratio,
        "wqkv": 0.05 * jax.random.normal(ks[0], (3 * C, C), jnp.float32),
        "wproj": 0.05 * jax.random.normal(ks[1], (C, C), jnp.float32),
        "bproj": 0.05 * jax.random.normal(ks[2], (C,), jnp.float32),
        "g1": 1.0 + 0.1 * jax.random.normal(ks[3], (C,), jnp.float32),
        "b1": 0.05 * jax.random.normal(ks[4], (C,), jnp.float32),
        "g2": 1.0 + 0.1 * jax.random.normal(ks[5], (C,), jnp.float32),
        "b2": 0.05 * jax.random.normal(ks[6], (C,), jnp.float32),
        "wfc1": 0.05 * jax.random.normal(ks[7], (Hm, C), jnp.float32),
        "bfc1": 0.05 * jax.random.normal(ks[8], (Hm,), jnp.float32),
        "wfc2": 0.05 * jax.random.normal(ks[9], (C, Hm), jnp.float32),
        "bfc2": 0.05 * jax.random.normal(ks[10], (C,), jnp.float32),
    }

    x = jax.random.normal(ks[11], (B, N, C), jnp.float32)
    xw = jax.random.normal(ks[12], (B, N), jnp.float32)

    # tq=8 -> 2 query tiles per batch element, exercising the tiled path.
    out = block_self(x, xw, params, num_heads, tq=8)
    out = jax.block_until_ready(out)

    ref = block_self_ref(x, xw, params, num_heads)
    assert out.shape == (B, N, C)
    err = float(jnp.max(jnp.abs(out - ref)))
    # bf16 MXU operands + approx reciprocal across a 5-matmul chain.
    assert jnp.allclose(out, ref, atol=7e-2, rtol=3e-2), err

    print("KERNEL_OK")
</pallas_src>

<mosaic_0001>
module attributes {stable_mosaic.version = 11 : i64} {
  func.func @block_self_kernel(%arg0: i32, %arg1: i32, %arg2: memref<1x16x256xf32, #tpu.memory_space<vmem>>, %arg3: memref<1x1x16xf32, #tpu.memory_space<vmem>>, %arg4: memref<256x768xbf16, #tpu.memory_space<vmem>>, %arg5: memref<256x256xbf16, #tpu.memory_space<vmem>>, %arg6: memref<1x256xf32, #tpu.memory_space<vmem>>, %arg7: memref<1x256xf32, #tpu.memory_space<vmem>>, %arg8: memref<1x256xf32, #tpu.memory_space<vmem>>, %arg9: memref<1x256xf32, #tpu.memory_space<vmem>>, %arg10: memref<1x256xf32, #tpu.memory_space<vmem>>, %arg11: memref<256x512xbf16, #tpu.memory_space<vmem>>, %arg12: memref<1x512xf32, #tpu.memory_space<vmem>>, %arg13: memref<512x256xbf16, #tpu.memory_space<vmem>>, %arg14: memref<1x256xf32, #tpu.memory_space<vmem>>, %arg15: memref<1x8x256xf32, #tpu.memory_space<vmem>>, %arg16: memref<2x16x128xbf16, #tpu.memory_space<vmem>>, %arg17: memref<2x16x128xbf16, #tpu.memory_space<vmem>>, %arg18: memref<2x16x128xbf16, #tpu.memory_space<vmem>>) attributes {dimension_semantics = [#tpu.dimension_semantics<parallel>, #tpu.dimension_semantics<arbitrary>], iteration_bounds = array<i64: 2, 2>, scalar_prefetch = 0 : i64, scratch_operands = 3 : i64, tpu.core_type = #tpu.core_type<tc>, window_params = [{transform_indices = @transform_0, window_bounds = array<i64: 1, 16, 256>}, {transform_indices = @transform_1, window_bounds = array<i64: 1, 1, 16>}, {pipeline_mode = #tpu.pipeline_mode<synchronous>, transform_indices = @transform_2, window_bounds = array<i64: 256, 768>}, {pipeline_mode = #tpu.pipeline_mode<synchronous>, transform_indices = @transform_3, window_bounds = array<i64: 256, 256>}, {pipeline_mode = #tpu.pipeline_mode<synchronous>, transform_indices = @transform_4, window_bounds = array<i64: 1, 256>}, {pipeline_mode = #tpu.pipeline_mode<synchronous>, transform_indices = @transform_5, window_bounds = array<i64: 1, 256>}, {pipeline_mode = #tpu.pipeline_mode<synchronous>, transform_indices = @transform_6, window_bounds = array<i64: 1, 256>}, {pipeline_mode = #tpu.pipeline_mode<synchronous>, transform_indices = @transform_7, window_bounds = array<i64: 1, 256>}, {pipeline_mode = #tpu.pipeline_mode<synchronous>, transform_indices = @transform_8, window_bounds = array<i64: 1, 256>}, {pipeline_mode = #tpu.pipeline_mode<synchronous>, transform_indices = @transform_9, window_bounds = array<i64: 256, 512>}, {pipeline_mode = #tpu.pipeline_mode<synchronous>, transform_indices = @transform_10, window_bounds = array<i64: 1, 512>}, {pipeline_mode = #tpu.pipeline_mode<synchronous>, transform_indices = @transform_11, window_bounds = array<i64: 512, 256>}, {pipeline_mode = #tpu.pipeline_mode<synchronous>, transform_indices = @transform_12, window_bounds = array<i64: 1, 256>}, {transform_indices = @transform_13, window_bounds = array<i64: 1, 8, 256>}]} {
    %c0_i32 = arith.constant 0 : i32
    %0 = arith.cmpi eq, %arg1, %c0_i32 : i32
    %1 = arith.extui %0 : i1 to i32
    %c0_i32_0 = arith.constant 0 : i32
    %2 = arith.cmpi ne, %1, %c0_i32_0 : i32
    scf.if %2 {
      %c0_47 = arith.constant 0 : index
      %c0_48 = arith.constant 0 : index
      %c0_49 = arith.constant 0 : index
      %92 = vector.load %arg2[%c0_47, %c0_48, %c0_49] : memref<1x16x256xf32, #tpu.memory_space<vmem>>, vector<1x16x256xf32>
      %93 = vector.shape_cast %92 : vector<1x16x256xf32> to vector<16x256xf32>
      %c0_50 = arith.constant 0 : index
      %c0_51 = arith.constant 0 : index
      %94 = vector.load %arg7[%c0_50, %c0_51] : memref<1x256xf32, #tpu.memory_space<vmem>>, vector<1x256xf32>
      %c0_52 = arith.constant 0 : index
      %c0_53 = arith.constant 0 : index
      %95 = vector.load %arg8[%c0_52, %c0_53] : memref<1x256xf32, #tpu.memory_space<vmem>>, vector<1x256xf32>
      %cst_54 = arith.constant dense<0.000000e+00> : vector<16xf32>
      %96 = vector.multi_reduction <add>, %93, %cst_54 [1] : vector<16x256xf32> to vector<16xf32>
      %97 = vector.shape_cast %96 : vector<16xf32> to vector<16x1xf32>
      %cst_55 = arith.constant 2.560000e+02 : f32
      %98 = vector.broadcast %cst_55 : f32 to vector<16x1xf32>
      %99 = arith.divf %97, %98 : vector<16x1xf32>
      %100 = vector.broadcast %99 : vector<16x1xf32> to vector<16x256xf32>
      %101 = arith.subf %93, %100 : vector<16x256xf32>
      %102 = arith.mulf %101, %101 : vector<16x256xf32>
      %cst_56 = arith.constant dense<0.000000e+00> : vector<16xf32>
      %103 = vector.multi_reduction <add>, %102, %cst_56 [1] : vector<16x256xf32> to vector<16xf32>
      %104 = vector.shape_cast %103 : vector<16xf32> to vector<16x1xf32>
      %cst_57 = arith.constant 2.560000e+02 : f32
      %105 = vector.broadcast %cst_57 : f32 to vector<16x1xf32>
      %106 = arith.divf %104, %105 : vector<16x1xf32>
      %107 = vector.broadcast %99 : vector<16x1xf32> to vector<16x256xf32>
      %108 = arith.subf %93, %107 : vector<16x256xf32>
      %cst_58 = arith.constant 9.99999974E-6 : f32
      %109 = vector.broadcast %cst_58 : f32 to vector<16x1xf32>
      %110 = arith.addf %106, %109 : vector<16x1xf32>
      %111 = math.rsqrt %110 : vector<16x1xf32>
      %112 = vector.broadcast %111 : vector<16x1xf32> to vector<16x256xf32>
      %113 = arith.mulf %108, %112 : vector<16x256xf32>
      %114 = vector.broadcast %94 : vector<1x256xf32> to vector<16x256xf32>
      %115 = arith.mulf %113, %114 : vector<16x256xf32>
      %116 = vector.broadcast %95 : vector<1x256xf32> to vector<16x256xf32>
      %117 = arith.addf %115, %116 : vector<16x256xf32>
      %118 = arith.truncf %117 : vector<16x256xf32> to vector<16x256xbf16>
      %c0_59 = arith.constant 0 : index
      %c0_60 = arith.constant 0 : index
      %119 = vector.load %arg4[%c0_59, %c0_60] : memref<256x768xbf16, #tpu.memory_space<vmem>>, vector<256x768xbf16>
      %cst_61 = arith.constant dense<0.000000e+00> : vector<16x768xf32>
      %120 = tpu.matmul %118, %119, %cst_61 {dimension_numbers = #tpu.dot_dimension_numbers<[1], [0], [0], [1], [0, 0, 1, 1], [], []>} : vector<16x256xbf16>, vector<256x768xbf16>, vector<16x768xf32> -> vector<16x768xf32>
      %121 = vector.extract_strided_slice %120 {offsets = [0, 0], sizes = [16, 256], strides = [1, 1]} : vector<16x768xf32> to vector<16x256xf32>
      %122 = vector.shape_cast %121 : vector<16x256xf32> to vector<16x2x128xf32>
      %123 = tpu.transpose %122, [1, 0, 2] : vector<16x2x128xf32> -> vector<2x16x128xf32>
      %cst_62 = arith.constant 0.0883883461 : f32
      %124 = vector.broadcast %cst_62 : f32 to vector<2x16x128xf32>
      %125 = arith.mulf %123, %124 : vector<2x16x128xf32>
      %126 = arith.truncf %125 : vector<2x16x128xf32> to vector<2x16x128xbf16>
      %c0_63 = arith.constant 0 : index
      %c0_64 = arith.constant 0 : index
      %c0_65 = arith.constant 0 : index
      %127 = vector.load %arg16[%c0_63, %c0_64, %c0_65] : memref<2x16x128xbf16, #tpu.memory_space<vmem>>, vector<2x16x128xbf16>
      tpu.vector_store %arg16[%c0_63, %c0_64, %c0_65], %126 {strides = array<i32>} : memref<2x16x128xbf16, #tpu.memory_space<vmem>>, vector<2x16x128xbf16>,
      %128 = vector.extract_strided_slice %120 {offsets = [0, 256], sizes = [16, 256], strides = [1, 1]} : vector<16x768xf32> to vector<16x256xf32>
      %129 = vector.shape_cast %128 : vector<16x256xf32> to vector<16x2x128xf32>
      %130 = tpu.transpose %129, [1, 0, 2] : vector<16x2x128xf32> -> vector<2x16x128xf32>
      %131 = arith.truncf %130 : vector<2x16x128xf32> to vector<2x16x128xbf16>
      %c0_66 = arith.constant 0 : index
      %c0_67 = arith.constant 0 : index
      %c0_68 = arith.constant 0 : index
      %132 = vector.load %arg17[%c0_66, %c0_67, %c0_68] : memref<2x16x128xbf16, #tpu.memory_space<vmem>>, vector<2x16x128xbf16>
      tpu.vector_store %arg17[%c0_66, %c0_67, %c0_68], %131 {strides = array<i32>} : memref<2x16x128xbf16, #tpu.memory_space<vmem>>, vector<2x16x128xbf16>,
      %133 = vector.extract_strided_slice %120 {offsets = [0, 512], sizes = [16, 256], strides = [1, 1]} : vector<16x768xf32> to vector<16x256xf32>
      %134 = vector.shape_cast %133 : vector<16x256xf32> to vector<16x2x128xf32>
      %135 = tpu.transpose %134, [1, 0, 2] : vector<16x2x128xf32> -> vector<2x16x128xf32>
      %136 = arith.truncf %135 : vector<2x16x128xf32> to vector<2x16x128xbf16>
      %c0_69 = arith.constant 0 : index
      %c0_70 = arith.constant 0 : index
      %c0_71 = arith.constant 0 : index
      %137 = vector.load %arg18[%c0_69, %c0_70, %c0_71] : memref<2x16x128xbf16, #tpu.memory_space<vmem>>, vector<2x16x128xbf16>
      tpu.vector_store %arg18[%c0_69, %c0_70, %c0_71], %136 {strides = array<i32>} : memref<2x16x128xbf16, #tpu.memory_space<vmem>>, vector<2x16x128xbf16>,
    } else {
    }
    %c8_i32 = arith.constant 8 : i32
    %3 = arith.muli %arg1, %c8_i32 : i32
    %4 = tpu.assume_multiple %3, 8 : i32
    %c0 = arith.constant 0 : index
    %5 = arith.index_cast %4 : i32 to index
    %c0_1 = arith.constant 0 : index
    %6 = vector.load %arg2[%c0, %5, %c0_1] : memref<1x16x256xf32, #tpu.memory_space<vmem>>, vector<1x8x256xf32>
    %7 = vector.shape_cast %6 : vector<1x8x256xf32> to vector<8x256xf32>
    %c0_2 = arith.constant 0 : index
    %8 = arith.index_cast %4 : i32 to index
    %c0_3 = arith.constant 0 : index
    %9 = vector.load %arg16[%c0_2, %8, %c0_3] : memref<2x16x128xbf16, #tpu.memory_space<vmem>>, vector<2x8x128xbf16>
    %c0_4 = arith.constant 0 : index
    %c0_5 = arith.constant 0 : index
    %c0_6 = arith.constant 0 : index
    %10 = vector.load %arg17[%c0_4, %c0_5, %c0_6] : memref<2x16x128xbf16, #tpu.memory_space<vmem>>, vector<2x16x128xbf16>
    "tpu.trace_start"() <{level = 10 : i32, message = "hqd,hkd->hqk"}> : () -> ()
    %cst = arith.constant dense<0.000000e+00> : vector<2x8x16xf32>
    %11 = tpu.matmul %9, %10, %cst {dimension_numbers = #tpu.dot_dimension_numbers<[2], [2], [1], [1], [0, 0, 0, 1, 1, 1], [0], [0]>} : vector<2x8x128xbf16>, vector<2x16x128xbf16>, vector<2x8x16xf32> -> vector<2x8x16xf32>
    "tpu.trace_stop"() : () -> ()
    %12 = arith.extf %9 : vector<2x8x128xbf16> to vector<2x8x128xf32>
    %cst_7 = arith.constant dense<0.000000e+00> : vector<2x8xf32>
    %13 = vector.multi_reduction <add>, %12, %cst_7 [2] : vector<2x8x128xf32> to vector<2x8xf32>
    %14 = vector.shape_cast %13 : vector<2x8xf32> to vector<2x8x1xf32>
    %c0_8 = arith.constant 0 : index
    %c0_9 = arith.constant 0 : index
    %c0_10 = arith.constant 0 : index
    %15 = vector.load %arg3[%c0_8, %c0_9, %c0_10] : memref<1x1x16xf32, #tpu.memory_space<vmem>>, vector<1x1x16xf32>
    %16 = vector.shape_cast %15 : vector<1x1x16xf32> to vector<1x16xf32>
    %17 = vector.shape_cast %16 : vector<1x16xf32> to vector<1x1x16xf32>
    %18 = vector.broadcast %14 : vector<2x8x1xf32> to vector<2x8x16xf32>
    %19 = vector.broadcast %17 : vector<1x1x16xf32> to vector<2x8x16xf32>
    %20 = arith.mulf %18, %19 : vector<2x8x16xf32>
    %21 = arith.addf %11, %20 : vector<2x8x16xf32>
    %cst_11 = arith.constant dense<0xFF800000> : vector<2x8xf32>
    %22 = vector.multi_reduction <maximumf>, %21, %cst_11 [2] : vector<2x8x16xf32> to vector<2x8xf32>
    %23 = vector.shape_cast %22 : vector<2x8xf32> to vector<2x8x1xf32>
    %24 = vector.broadcast %23 : vector<2x8x1xf32> to vector<2x8x16xf32>
    %25 = arith.subf %21, %24 : vector<2x8x16xf32>
    %26 = math.exp %25 : vector<2x8x16xf32>
    %cst_12 = arith.constant dense<0.000000e+00> : vector<2x8xf32>
    %27 = vector.multi_reduction <add>, %26, %cst_12 [2] : vector<2x8x16xf32> to vector<2x8xf32>
    %28 = vector.shape_cast %27 : vector<2x8xf32> to vector<2x8x1xf32>
    %29 = tpu.reciprocal %28 {approx = true} : vector<2x8x1xf32> -> vector<2x8x1xf32>
    %30 = vector.broadcast %29 : vector<2x8x1xf32> to vector<2x8x16xf32>
    %31 = arith.mulf %26, %30 : vector<2x8x16xf32>
    %32 = arith.truncf %31 : vector<2x8x16xf32> to vector<2x8x16xbf16>
    %c0_13 = arith.constant 0 : index
    %c0_14 = arith.constant 0 : index
    %c0_15 = arith.constant 0 : index
    %33 = vector.load %arg18[%c0_13, %c0_14, %c0_15] : memref<2x16x128xbf16, #tpu.memory_space<vmem>>, vector<2x16x128xbf16>
    "tpu.trace_start"() <{level = 10 : i32, message = "hqk,hkd->hqd"}> : () -> ()
    %cst_16 = arith.constant dense<0.000000e+00> : vector<2x8x128xf32>
    %34 = tpu.matmul %32, %33, %cst_16 {dimension_numbers = #tpu.dot_dimension_numbers<[2], [1], [1], [2], [0, 0, 0, 1, 1, 2], [0], [0]>} : vector<2x8x16xbf16>, vector<2x16x128xbf16>, vector<2x8x128xf32> -> vector<2x8x128xf32>
    "tpu.trace_stop"() : () -> ()
    %35 = tpu.transpose %34, [1, 0, 2] : vector<2x8x128xf32> -> vector<8x2x128xf32>
    %36 = vector.shape_cast %35 : vector<8x2x128xf32> to vector<8x256xf32>
    %37 = arith.truncf %36 : vector<8x256xf32> to vector<8x256xbf16>
    %c0_17 = arith.constant 0 : index
    %c0_18 = arith.constant 0 : index
    %38 = vector.load %arg5[%c0_17, %c0_18] : memref<256x256xbf16, #tpu.memory_space<vmem>>, vector<256x256xbf16>
    %cst_19 = arith.constant dense<0.000000e+00> : vector<8x256xf32>
    %39 = tpu.matmul %37, %38, %cst_19 {dimension_numbers = #tpu.dot_dimension_numbers<[1], [0], [0], [1], [0, 0, 1, 1], [], []>} : vector<8x256xbf16>, vector<256x256xbf16>, vector<8x256xf32> -> vector<8x256xf32>
    %c0_20 = arith.constant 0 : index
    %c0_21 = arith.constant 0 : index
    %40 = vector.load %arg6[%c0_20, %c0_21] : memref<1x256xf32, #tpu.memory_space<vmem>>, vector<1x256xf32>
    %41 = vector.broadcast %40 : vector<1x256xf32> to vector<8x256xf32>
    %42 = arith.addf %39, %41 : vector<8x256xf32>
    %43 = arith.addf %7, %42 : vector<8x256xf32>
    %c0_22 = arith.constant 0 : index
    %c0_23 = arith.constant 0 : index
    %44 = vector.load %arg9[%c0_22, %c0_23] : memref<1x256xf32, #tpu.memory_space<vmem>>, vector<1x256xf32>
    %c0_24 = arith.constant 0 : index
    %c0_25 = arith.constant 0 : index
    %45 = vector.load %arg10[%c0_24, %c0_25] : memref<1x256xf32, #tpu.memory_space<vmem>>, vector<1x256xf32>
    %cst_26 = arith.constant dense<0.000000e+00> : vector<8xf32>
    %46 = vector.multi_reduction <add>, %43, %cst_26 [1] : vector<8x256xf32> to vector<8xf32>
    %47 = vector.shape_cast %46 : vector<8xf32> to vector<8x1xf32>
    %cst_27 = arith.constant 2.560000e+02 : f32
    %48 = vector.broadcast %cst_27 : f32 to vector<8x1xf32>
    %49 = arith.divf %47, %48 : vector<8x1xf32>
    %50 = vector.broadcast %49 : vector<8x1xf32> to vector<8x256xf32>
    %51 = arith.subf %43, %50 : vector<8x256xf32>
    %52 = arith.mulf %51, %51 : vector<8x256xf32>
    %cst_28 = arith.constant dense<0.000000e+00> : vector<8xf32>
    %53 = vector.multi_reduction <add>, %52, %cst_28 [1] : vector<8x256xf32> to vector<8xf32>
    %54 = vector.shape_cast %53 : vector<8xf32> to vector<8x1xf32>
    %cst_29 = arith.constant 2.560000e+02 : f32
    %55 = vector.broadcast %cst_29 : f32 to vector<8x1xf32>
    %56 = arith.divf %54, %55 : vector<8x1xf32>
    %57 = vector.broadcast %49 : vector<8x1xf32> to vector<8x256xf32>
    %58 = arith.subf %43, %57 : vector<8x256xf32>
    %cst_30 = arith.constant 9.99999974E-6 : f32
    %59 = vector.broadcast %cst_30 : f32 to vector<8x1xf32>
    %60 = arith.addf %56, %59 : vector<8x1xf32>
    %61 = math.rsqrt %60 : vector<8x1xf32>
    %62 = vector.broadcast %61 : vector<8x1xf32> to vector<8x256xf32>
    %63 = arith.mulf %58, %62 : vector<8x256xf32>
    %64 = vector.broadcast %44 : vector<1x256xf32> to vector<8x256xf32>
    %65 = arith.mulf %63, %64 : vector<8x256xf32>
    %66 = vector.broadcast %45 : vector<1x256xf32> to vector<8x256xf32>
    %67 = arith.addf %65, %66 : vector<8x256xf32>
    %68 = arith.truncf %67 : vector<8x256xf32> to vector<8x256xbf16>
    %c0_31 = arith.constant 0 : index
    %c0_32 = arith.constant 0 : index
    %69 = vector.load %arg11[%c0_31, %c0_32] : memref<256x512xbf16, #tpu.memory_space<vmem>>, vector<256x512xbf16>
    %cst_33 = arith.constant dense<0.000000e+00> : vector<8x512xf32>
    %70 = tpu.matmul %68, %69, %cst_33 {dimension_numbers = #tpu.dot_dimension_numbers<[1], [0], [0], [1], [0, 0, 1, 1], [], []>} : vector<8x256xbf16>, vector<256x512xbf16>, vector<8x512xf32> -> vector<8x512xf32>
    %c0_34 = arith.constant 0 : index
    %c0_35 = arith.constant 0 : index
    %71 = vector.load %arg12[%c0_34, %c0_35] : memref<1x512xf32, #tpu.memory_space<vmem>>, vector<1x512xf32>
    %72 = vector.broadcast %71 : vector<1x512xf32> to vector<8x512xf32>
    %73 = arith.addf %70, %72 : vector<8x512xf32>
    %cst_36 = arith.constant 5.000000e-01 : f32
    %74 = vector.broadcast %cst_36 : f32 to vector<8x512xf32>
    %75 = arith.mulf %74, %73 : vector<8x512xf32>
    %cst_37 = arith.constant 0.707106769 : f32
    %76 = vector.broadcast %cst_37 : f32 to vector<8x512xf32>
    %77 = arith.mulf %73, %76 : vector<8x512xf32>
    %78 = math.erf %77 : vector<8x512xf32>
    %cst_38 = arith.constant 1.000000e+00 : f32
    %79 = vector.broadcast %cst_38 : f32 to vector<8x512xf32>
    %80 = arith.addf %79, %78 : vector<8x512xf32>
    %81 = arith.mulf %75, %80 : vector<8x512xf32>
    %82 = arith.truncf %81 : vector<8x512xf32> to vector<8x512xbf16>
    %c0_39 = arith.constant 0 : index
    %c0_40 = arith.constant 0 : index
    %83 = vector.load %arg13[%c0_39, %c0_40] : memref<512x256xbf16, #tpu.memory_space<vmem>>, vector<512x256xbf16>
    %cst_41 = arith.constant dense<0.000000e+00> : vector<8x256xf32>
    %84 = tpu.matmul %82, %83, %cst_41 {dimension_numbers = #tpu.dot_dimension_numbers<[1], [0], [0], [1], [0, 0, 1, 1], [], []>} : vector<8x512xbf16>, vector<512x256xbf16>, vector<8x256xf32> -> vector<8x256xf32>
    %c0_42 = arith.constant 0 : index
    %c0_43 = arith.constant 0 : index
    %85 = vector.load %arg14[%c0_42, %c0_43] : memref<1x256xf32, #tpu.memory_space<vmem>>, vector<1x256xf32>
    %86 = vector.broadcast %85 : vector<1x256xf32> to vector<8x256xf32>
    %87 = arith.addf %84, %86 : vector<8x256xf32>
    %88 = arith.addf %43, %87 : vector<8x256xf32>
    %c0_44 = arith.constant 0 : index
    %c0_45 = arith.constant 0 : index
    %c0_46 = arith.constant 0 : index
    %89 = vector.load %arg15[%c0_44, %c0_45, %c0_46] : memref<1x8x256xf32, #tpu.memory_space<vmem>>, vector<1x8x256xf32>
    %90 = vector.shape_cast %89 : vector<1x8x256xf32> to vector<8x256xf32>
    %91 = vector.shape_cast %88 : vector<8x256xf32> to vector<1x8x256xf32>
    tpu.vector_store %arg15[%c0_44, %c0_45, %c0_46], %91 {strides = array<i32>} : memref<1x8x256xf32, #tpu.memory_space<vmem>>, vector<1x8x256xf32>,
    return
  }
  func.func @transform_0(%arg0: i32, %arg1: i32) -> (i32, i32, i32) {
    %c0_i32 = arith.constant 0 : i32
    %c0_i32_0 = arith.constant 0 : i32
    %c0_i32_1 = arith.constant 0 : i32
    return %arg0, %c0_i32, %c0_i32_0 : i32, i32, i32
  }
  func.func @transform_1(%arg0: i32, %arg1: i32) -> (i32, i32, i32) {
    %c0_i32 = arith.constant 0 : i32
    %c0_i32_0 = arith.constant 0 : i32
    %c0_i32_1 = arith.constant 0 : i32
    return %arg0, %c0_i32, %c0_i32_0 : i32, i32, i32
  }
  func.func @transform_2(%arg0: i32, %arg1: i32) -> (i32, i32) {
    %c0_i32 = arith.constant 0 : i32
    %c0_i32_0 = arith.constant 0 : i32
    %c0_i32_1 = arith.constant 0 : i32
    return %c0_i32, %c0_i32_0 : i32, i32
  }
  func.func @transform_3(%arg0: i32, %arg1: i32) -> (i32, i32) {
    %c0_i32 = arith.constant 0 : i32
    %c0_i32_0 = arith.constant 0 : i32
    %c0_i32_1 = arith.constant 0 : i32
    return %c0_i32, %c0_i32_0 : i32, i32
  }
  func.func @transform_4(%arg0: i32, %arg1: i32) -> (i32, i32) {
    %c0_i32 = arith.constant 0 : i32
    %c0_i32_0 = arith.constant 0 : i32
    %c0_i32_1 = arith.constant 0 : i32
    return %c0_i32, %c0_i32_0 : i32, i32
  }
  func.func @transform_5(%arg0: i32, %arg1: i32) -> (i32, i32) {
    %c0_i32 = arith.constant 0 : i32
    %c0_i32_0 = arith.constant 0 : i32
    %c0_i32_1 = arith.constant 0 : i32
    return %c0_i32, %c0_i32_0 : i32, i32
  }
  func.func @transform_6(%arg0: i32, %arg1: i32) -> (i32, i32) {
    %c0_i32 = arith.constant 0 : i32
    %c0_i32_0 = arith.constant 0 : i32
    %c0_i32_1 = arith.constant 0 : i32
    return %c0_i32, %c0_i32_0 : i32, i32
  }
  func.func @transform_7(%arg0: i32, %arg1: i32) -> (i32, i32) {
    %c0_i32 = arith.constant 0 : i32
    %c0_i32_0 = arith.constant 0 : i32
    %c0_i32_1 = arith.constant 0 : i32
    return %c0_i32, %c0_i32_0 : i32, i32
  }
  func.func @transform_8(%arg0: i32, %arg1: i32) -> (i32, i32) {
    %c0_i32 = arith.constant 0 : i32
    %c0_i32_0 = arith.constant 0 : i32
    %c0_i32_1 = arith.constant 0 : i32
    return %c0_i32, %c0_i32_0 : i32, i32
  }
  func.func @transform_9(%arg0: i32, %arg1: i32) -> (i32, i32) {
    %c0_i32 = arith.constant 0 : i32
    %c0_i32_0 = arith.constant 0 : i32
    %c0_i32_1 = arith.constant 0 : i32
    return %c0_i32, %c0_i32_0 : i32, i32
  }
  func.func @transform_10(%arg0: i32, %arg1: i32) -> (i32, i32) {
    %c0_i32 = arith.constant 0 : i32
    %c0_i32_0 = arith.constant 0 : i32
    %c0_i32_1 = arith.constant 0 : i32
    return %c0_i32, %c0_i32_0 : i32, i32
  }
  func.func @transform_11(%arg0: i32, %arg1: i32) -> (i32, i32) {
    %c0_i32 = arith.constant 0 : i32
    %c0_i32_0 = arith.constant 0 : i32
    %c0_i32_1 = arith.constant 0 : i32
    return %c0_i32, %c0_i32_0 : i32, i32
  }
  func.func @transform_12(%arg0: i32, %arg1: i32) -> (i32, i32) {
    %c0_i32 = arith.constant 0 : i32
    %c0_i32_0 = arith.constant 0 : i32
    %c0_i32_1 = arith.constant 0 : i32
    return %c0_i32, %c0_i32_0 : i32, i32
  }
  func.func @transform_13(%arg0: i32, %arg1: i32) -> (i32, i32, i32) {
    %c0_i32 = arith.constant 0 : i32
    %c0_i32_0 = arith.constant 0 : i32
    return %arg0, %arg1, %c0_i32 : i32, i32, i32
  }
}

module attributes {stable_mosaic.version = 11 : i64} {
  func.func @block_self_kernel(%arg0: i32, %arg1: i32, %arg2: memref<1x16x256xf32, #tpu.memory_space<vmem>>, %arg3: memref<1x1x16xf32, #tpu.memory_space<vmem>>, %arg4: memref<256x768xbf16, #tpu.memory_space<vmem>>, %arg5: memref<256x256xbf16, #tpu.memory_space<vmem>>, %arg6: memref<1x256xf32, #tpu.memory_space<vmem>>, %arg7: memref<1x256xf32, #tpu.memory_space<vmem>>, %arg8: memref<1x256xf32, #tpu.memory_space<vmem>>, %arg9: memref<1x256xf32, #tpu.memory_space<vmem>>, %arg10: memref<1x256xf32, #tpu.memory_space<vmem>>, %arg11: memref<256x512xbf16, #tpu.memory_space<vmem>>, %arg12: memref<1x512xf32, #tpu.memory_space<vmem>>, %arg13: memref<512x256xbf16, #tpu.memory_space<vmem>>, %arg14: memref<1x256xf32, #tpu.memory_space<vmem>>, %arg15: memref<1x8x256xf32, #tpu.memory_space<vmem>>, %arg16: memref<2x16x128xbf16, #tpu.memory_space<vmem>>, %arg17: memref<2x16x128xbf16, #tpu.memory_space<vmem>>, %arg18: memref<2x16x128xbf16, #tpu.memory_space<vmem>>) attributes {dimension_semantics = [#tpu.dimension_semantics<parallel>, #tpu.dimension_semantics<arbitrary>], iteration_bounds = array<i64: 2, 2>, scalar_prefetch = 0 : i64, scratch_operands = 3 : i64, tpu.core_type = #tpu.core_type<tc>, window_params = [{transform_indices = @transform_0, window_bounds = array<i64: 1, 16, 256>}, {transform_indices = @transform_1, window_bounds = array<i64: 1, 1, 16>}, {pipeline_mode = #tpu.pipeline_mode<synchronous>, transform_indices = @transform_2, window_bounds = array<i64: 256, 768>}, {pipeline_mode = #tpu.pipeline_mode<synchronous>, transform_indices = @transform_3, window_bounds = array<i64: 256, 256>}, {pipeline_mode = #tpu.pipeline_mode<synchronous>, transform_indices = @transform_4, window_bounds = array<i64: 1, 256>}, {pipeline_mode = #tpu.pipeline_mode<synchronous>, transform_indices = @transform_5, window_bounds = array<i64: 1, 256>}, {pipeline_mode = #tpu.pipeline_mode<synchronous>, transform_indices = @transform_6, window_bounds = array<i64: 1, 256>}, {pipeline_mode = #tpu.pipeline_mode<synchronous>, transform_indices = @transform_7, window_bounds = array<i64: 1, 256>}, {pipeline_mode = #tpu.pipeline_mode<synchronous>, transform_indices = @transform_8, window_bounds = array<i64: 1, 256>}, {pipeline_mode = #tpu.pipeline_mode<synchronous>, transform_indices = @transform_9, window_bounds = array<i64: 256, 512>}, {pipeline_mode = #tpu.pipeline_mode<synchronous>, transform_indices = @transform_10, window_bounds = array<i64: 1, 512>}, {pipeline_mode = #tpu.pipeline_mode<synchronous>, transform_indices = @transform_11, window_bounds = array<i64: 512, 256>}, {pipeline_mode = #tpu.pipeline_mode<synchronous>, transform_indices = @transform_12, window_bounds = array<i64: 1, 256>}, {transform_indices = @transform_13, window_bounds = array<i64: 1, 8, 256>}]} {
    %c0_i32 = arith.constant 0 : i32
    %0 = arith.cmpi eq, %arg1, %c0_i32 : i32
    %1 = arith.extui %0 : i1 to i32
    %c0_i32_0 = arith.constant 0 : i32
    %2 = arith.cmpi ne, %1, %c0_i32_0 : i32
    scf.if %2 {
      %c0_47 = arith.constant 0 : index
      %c0_48 = arith.constant 0 : index
      %c0_49 = arith.constant 0 : index
      %92 = vector.load %arg2[%c0_47, %c0_48, %c0_49] : memref<1x16x256xf32, #tpu.memory_space<vmem>>, vector<1x16x256xf32>
      %93 = vector.shape_cast %92 : vector<1x16x256xf32> to vector<16x256xf32>
      %c0_50 = arith.constant 0 : index
      %c0_51 = arith.constant 0 : index
      %94 = vector.load %arg7[%c0_50, %c0_51] : memref<1x256xf32, #tpu.memory_space<vmem>>, vector<1x256xf32>
      %c0_52 = arith.constant 0 : index
      %c0_53 = arith.constant 0 : index
      %95 = vector.load %arg8[%c0_52, %c0_53] : memref<1x256xf32, #tpu.memory_space<vmem>>, vector<1x256xf32>
      %cst_54 = arith.constant dense<0.000000e+00> : vector<16xf32>
      %96 = vector.multi_reduction <add>, %93, %cst_54 [1] : vector<16x256xf32> to vector<16xf32>
      %97 = vector.shape_cast %96 : vector<16xf32> to vector<16x1xf32>
      %cst_55 = arith.constant 2.560000e+02 : f32
      %98 = vector.broadcast %cst_55 : f32 to vector<16x1xf32>
      %99 = arith.divf %97, %98 : vector<16x1xf32>
      %100 = vector.broadcast %99 : vector<16x1xf32> to vector<16x256xf32>
      %101 = arith.subf %93, %100 : vector<16x256xf32>
      %102 = arith.mulf %101, %101 : vector<16x256xf32>
      %cst_56 = arith.constant dense<0.000000e+00> : vector<16xf32>
      %103 = vector.multi_reduction <add>, %102, %cst_56 [1] : vector<16x256xf32> to vector<16xf32>
      %104 = vector.shape_cast %103 : vector<16xf32> to vector<16x1xf32>
      %cst_57 = arith.constant 2.560000e+02 : f32
      %105 = vector.broadcast %cst_57 : f32 to vector<16x1xf32>
      %106 = arith.divf %104, %105 : vector<16x1xf32>
      %107 = vector.broadcast %99 : vector<16x1xf32> to vector<16x256xf32>
      %108 = arith.subf %93, %107 : vector<16x256xf32>
      %cst_58 = arith.constant 9.99999974E-6 : f32
      %109 = vector.broadcast %cst_58 : f32 to vector<16x1xf32>
      %110 = arith.addf %106, %109 : vector<16x1xf32>
      %111 = math.rsqrt %110 : vector<16x1xf32>
      %112 = vector.broadcast %111 : vector<16x1xf32> to vector<16x256xf32>
      %113 = arith.mulf %108, %112 : vector<16x256xf32>
      %114 = vector.broadcast %94 : vector<1x256xf32> to vector<16x256xf32>
      %115 = arith.mulf %113, %114 : vector<16x256xf32>
      %116 = vector.broadcast %95 : vector<1x256xf32> to vector<16x256xf32>
      %117 = arith.addf %115, %116 : vector<16x256xf32>
      %118 = arith.truncf %117 : vector<16x256xf32> to vector<16x256xbf16>
      %c0_59 = arith.constant 0 : index
      %c0_60 = arith.constant 0 : index
      %119 = vector.load %arg4[%c0_59, %c0_60] : memref<256x768xbf16, #tpu.memory_space<vmem>>, vector<256x768xbf16>
      %cst_61 = arith.constant dense<0.000000e+00> : vector<16x768xf32>
      %120 = tpu.matmul %118, %119, %cst_61 {dimension_numbers = #tpu.dot_dimension_numbers<[1], [0], [0], [1], [0, 0, 1, 1], [], []>} : vector<16x256xbf16>, vector<256x768xbf16>, vector<16x768xf32> -> vector<16x768xf32>
      %121 = vector.extract_strided_slice %120 {offsets = [0, 0], sizes = [16, 256], strides = [1, 1]} : vector<16x768xf32> to vector<16x256xf32>
      %122 = vector.shape_cast %121 : vector<16x256xf32> to vector<16x2x128xf32>
      %123 = tpu.transpose %122, [1, 0, 2] : vector<16x2x128xf32> -> vector<2x16x128xf32>
      %cst_62 = arith.constant 0.0883883461 : f32
      %124 = vector.broadcast %cst_62 : f32 to vector<2x16x128xf32>
      %125 = arith.mulf %123, %124 : vector<2x16x128xf32>
      %126 = arith.truncf %125 : vector<2x16x128xf32> to vector<2x16x128xbf16>
      %c0_63 = arith.constant 0 : index
      %c0_64 = arith.constant 0 : index
      %c0_65 = arith.constant 0 : index
      %127 = vector.load %arg16[%c0_63, %c0_64, %c0_65] : memref<2x16x128xbf16, #tpu.memory_space<vmem>>, vector<2x16x128xbf16>
      tpu.vector_store %arg16[%c0_63, %c0_64, %c0_65], %126 {strides = array<i32>} : memref<2x16x128xbf16, #tpu.memory_space<vmem>>, vector<2x16x128xbf16>,
      %128 = vector.extract_strided_slice %120 {offsets = [0, 256], sizes = [16, 256], strides = [1, 1]} : vector<16x768xf32> to vector<16x256xf32>
      %129 = vector.shape_cast %128 : vector<16x256xf32> to vector<16x2x128xf32>
      %130 = tpu.transpose %129, [1, 0, 2] : vector<16x2x128xf32> -> vector<2x16x128xf32>
      %131 = arith.truncf %130 : vector<2x16x128xf32> to vector<2x16x128xbf16>
      %c0_66 = arith.constant 0 : index
      %c0_67 = arith.constant 0 : index
      %c0_68 = arith.constant 0 : index
      %132 = vector.load %arg17[%c0_66, %c0_67, %c0_68] : memref<2x16x128xbf16, #tpu.memory_space<vmem>>, vector<2x16x128xbf16>
      tpu.vector_store %arg17[%c0_66, %c0_67, %c0_68], %131 {strides = array<i32>} : memref<2x16x128xbf16, #tpu.memory_space<vmem>>, vector<2x16x128xbf16>,
      %133 = vector.extract_strided_slice %120 {offsets = [0, 512], sizes = [16, 256], strides = [1, 1]} : vector<16x768xf32> to vector<16x256xf32>
      %134 = vector.shape_cast %133 : vector<16x256xf32> to vector<16x2x128xf32>
      %135 = tpu.transpose %134, [1, 0, 2] : vector<16x2x128xf32> -> vector<2x16x128xf32>
      %136 = arith.truncf %135 : vector<2x16x128xf32> to vector<2x16x128xbf16>
      %c0_69 = arith.constant 0 : index
      %c0_70 = arith.constant 0 : index
      %c0_71 = arith.constant 0 : index
      %137 = vector.load %arg18[%c0_69, %c0_70, %c0_71] : memref<2x16x128xbf16, #tpu.memory_space<vmem>>, vector<2x16x128xbf16>
      tpu.vector_store %arg18[%c0_69, %c0_70, %c0_71], %136 {strides = array<i32>} : memref<2x16x128xbf16, #tpu.memory_space<vmem>>, vector<2x16x128xbf16>,
    } else {
    }
    %c8_i32 = arith.constant 8 : i32
    %3 = arith.muli %arg1, %c8_i32 : i32
    %4 = tpu.assume_multiple %3, 8 : i32
    %c0 = arith.constant 0 : index
    %5 = arith.index_cast %4 : i32 to index
    %c0_1 = arith.constant 0 : index
    %6 = vector.load %arg2[%c0, %5, %c0_1] : memref<1x16x256xf32, #tpu.memory_space<vmem>>, vector<1x8x256xf32>
    %7 = vector.shape_cast %6 : vector<1x8x256xf32> to vector<8x256xf32>
    %c0_2 = arith.constant 0 : index
    %8 = arith.index_cast %4 : i32 to index
    %c0_3 = arith.constant 0 : index
    %9 = vector.load %arg16[%c0_2, %8, %c0_3] : memref<2x16x128xbf16, #tpu.memory_space<vmem>>, vector<2x8x128xbf16>
    %c0_4 = arith.constant 0 : index
    %c0_5 = arith.constant 0 : index
    %c0_6 = arith.constant 0 : index
    %10 = vector.load %arg17[%c0_4, %c0_5, %c0_6] : memref<2x16x128xbf16, #tpu.memory_space<vmem>>, vector<2x16x128xbf16>
    "tpu.trace_start"() <{level = 10 : i32, message = "hqd,hkd->hqk"}> : () -> ()
    %cst = arith.constant dense<0.000000e+00> : vector<2x8x16xf32>
    %11 = tpu.matmul %9, %10, %cst {dimension_numbers = #tpu.dot_dimension_numbers<[2], [2], [1], [1], [0, 0, 0, 1, 1, 1], [0], [0]>} : vector<2x8x128xbf16>, vector<2x16x128xbf16>, vector<2x8x16xf32> -> vector<2x8x16xf32>
    "tpu.trace_stop"() : () -> ()
    %12 = arith.extf %9 : vector<2x8x128xbf16> to vector<2x8x128xf32>
    %cst_7 = arith.constant dense<0.000000e+00> : vector<2x8xf32>
    %13 = vector.multi_reduction <add>, %12, %cst_7 [2] : vector<2x8x128xf32> to vector<2x8xf32>
    %14 = vector.shape_cast %13 : vector<2x8xf32> to vector<2x8x1xf32>
    %c0_8 = arith.constant 0 : index
    %c0_9 = arith.constant 0 : index
    %c0_10 = arith.constant 0 : index
    %15 = vector.load %arg3[%c0_8, %c0_9, %c0_10] : memref<1x1x16xf32, #tpu.memory_space<vmem>>, vector<1x1x16xf32>
    %16 = vector.shape_cast %15 : vector<1x1x16xf32> to vector<1x16xf32>
    %17 = vector.shape_cast %16 : vector<1x16xf32> to vector<1x1x16xf32>
    %18 = vector.broadcast %14 : vector<2x8x1xf32> to vector<2x8x16xf32>
    %19 = vector.broadcast %17 : vector<1x1x16xf32> to vector<2x8x16xf32>
    %20 = arith.mulf %18, %19 : vector<2x8x16xf32>
    %21 = arith.addf %11, %20 : vector<2x8x16xf32>
    %cst_11 = arith.constant dense<0xFF800000> : vector<2x8xf32>
    %22 = vector.multi_reduction <maximumf>, %21, %cst_11 [2] : vector<2x8x16xf32> to vector<2x8xf32>
    %23 = vector.shape_cast %22 : vector<2x8xf32> to vector<2x8x1xf32>
    %24 = vector.broadcast %23 : vector<2x8x1xf32> to vector<2x8x16xf32>
    %25 = arith.subf %21, %24 : vector<2x8x16xf32>
    %26 = math.exp %25 : vector<2x8x16xf32>
    %cst_12 = arith.constant dense<0.000000e+00> : vector<2x8xf32>
    %27 = vector.multi_reduction <add>, %26, %cst_12 [2] : vector<2x8x16xf32> to vector<2x8xf32>
    %28 = vector.shape_cast %27 : vector<2x8xf32> to vector<2x8x1xf32>
    %29 = tpu.reciprocal %28 {approx = true} : vector<2x8x1xf32> -> vector<2x8x1xf32>
    %30 = vector.broadcast %29 : vector<2x8x1xf32> to vector<2x8x16xf32>
    %31 = arith.mulf %26, %30 : vector<2x8x16xf32>
    %32 = arith.truncf %31 : vector<2x8x16xf32> to vector<2x8x16xbf16>
    %c0_13 = arith.constant 0 : index
    %c0_14 = arith.constant 0 : index
    %c0_15 = arith.constant 0 : index
    %33 = vector.load %arg18[%c0_13, %c0_14, %c0_15] : memref<2x16x128xbf16, #tpu.memory_space<vmem>>, vector<2x16x128xbf16>
    "tpu.trace_start"() <{level = 10 : i32, message = "hqk,hkd->hqd"}> : () -> ()
    %cst_16 = arith.constant dense<0.000000e+00> : vector<2x8x128xf32>
    %34 = tpu.matmul %32, %33, %cst_16 {dimension_numbers = #tpu.dot_dimension_numbers<[2], [1], [1], [2], [0, 0, 0, 1, 1, 2], [0], [0]>} : vector<2x8x16xbf16>, vector<2x16x128xbf16>, vector<2x8x128xf32> -> vector<2x8x128xf32>
    "tpu.trace_stop"() : () -> ()
    %35 = tpu.transpose %34, [1, 0, 2] : vector<2x8x128xf32> -> vector<8x2x128xf32>
    %36 = vector.shape_cast %35 : vector<8x2x128xf32> to vector<8x256xf32>
    %37 = arith.truncf %36 : vector<8x256xf32> to vector<8x256xbf16>
    %c0_17 = arith.constant 0 : index
    %c0_18 = arith.constant 0 : index
    %38 = vector.load %arg5[%c0_17, %c0_18] : memref<256x256xbf16, #tpu.memory_space<vmem>>, vector<256x256xbf16>
    %cst_19 = arith.constant dense<0.000000e+00> : vector<8x256xf32>
    %39 = tpu.matmul %37, %38, %cst_19 {dimension_numbers = #tpu.dot_dimension_numbers<[1], [0], [0], [1], [0, 0, 1, 1], [], []>} : vector<8x256xbf16>, vector<256x256xbf16>, vector<8x256xf32> -> vector<8x256xf32>
    %c0_20 = arith.constant 0 : index
    %c0_21 = arith.constant 0 : index
    %40 = vector.load %arg6[%c0_20, %c0_21] : memref<1x256xf32, #tpu.memory_space<vmem>>, vector<1x256xf32>
    %41 = vector.broadcast %40 : vector<1x256xf32> to vector<8x256xf32>
    %42 = arith.addf %39, %41 : vector<8x256xf32>
    %43 = arith.addf %7, %42 : vector<8x256xf32>
    %c0_22 = arith.constant 0 : index
    %c0_23 = arith.constant 0 : index
    %44 = vector.load %arg9[%c0_22, %c0_23] : memref<1x256xf32, #tpu.memory_space<vmem>>, vector<1x256xf32>
    %c0_24 = arith.constant 0 : index
    %c0_25 = arith.constant 0 : index
    %45 = vector.load %arg10[%c0_24, %c0_25] : memref<1x256xf32, #tpu.memory_space<vmem>>, vector<1x256xf32>
    %cst_26 = arith.constant dense<0.000000e+00> : vector<8xf32>
    %46 = vector.multi_reduction <add>, %43, %cst_26 [1] : vector<8x256xf32> to vector<8xf32>
    %47 = vector.shape_cast %46 : vector<8xf32> to vector<8x1xf32>
    %cst_27 = arith.constant 2.560000e+02 : f32
    %48 = vector.broadcast %cst_27 : f32 to vector<8x1xf32>
    %49 = arith.divf %47, %48 : vector<8x1xf32>
    %50 = vector.broadcast %49 : vector<8x1xf32> to vector<8x256xf32>
    %51 = arith.subf %43, %50 : vector<8x256xf32>
    %52 = arith.mulf %51, %51 : vector<8x256xf32>
    %cst_28 = arith.constant dense<0.000000e+00> : vector<8xf32>
    %53 = vector.multi_reduction <add>, %52, %cst_28 [1] : vector<8x256xf32> to vector<8xf32>
    %54 = vector.shape_cast %53 : vector<8xf32> to vector<8x1xf32>
    %cst_29 = arith.constant 2.560000e+02 : f32
    %55 = vector.broadcast %cst_29 : f32 to vector<8x1xf32>
    %56 = arith.divf %54, %55 : vector<8x1xf32>
    %57 = vector.broadcast %49 : vector<8x1xf32> to vector<8x256xf32>
    %58 = arith.subf %43, %57 : vector<8x256xf32>
    %cst_30 = arith.constant 9.99999974E-6 : f32
    %59 = vector.broadcast %cst_30 : f32 to vector<8x1xf32>
    %60 = arith.addf %56, %59 : vector<8x1xf32>
    %61 = math.rsqrt %60 : vector<8x1xf32>
    %62 = vector.broadcast %61 : vector<8x1xf32> to vector<8x256xf32>
    %63 = arith.mulf %58, %62 : vector<8x256xf32>
    %64 = vector.broadcast %44 : vector<1x256xf32> to vector<8x256xf32>
    %65 = arith.mulf %63, %64 : vector<8x256xf32>
    %66 = vector.broadcast %45 : vector<1x256xf32> to vector<8x256xf32>
    %67 = arith.addf %65, %66 : vector<8x256xf32>
    %68 = arith.truncf %67 : vector<8x256xf32> to vector<8x256xbf16>
    %c0_31 = arith.constant 0 : index
    %c0_32 = arith.constant 0 : index
    %69 = vector.load %arg11[%c0_31, %c0_32] : memref<256x512xbf16, #tpu.memory_space<vmem>>, vector<256x512xbf16>
    %cst_33 = arith.constant dense<0.000000e+00> : vector<8x512xf32>
    %70 = tpu.matmul %68, %69, %cst_33 {dimension_numbers = #tpu.dot_dimension_numbers<[1], [0], [0], [1], [0, 0, 1, 1], [], []>} : vector<8x256xbf16>, vector<256x512xbf16>, vector<8x512xf32> -> vector<8x512xf32>
    %c0_34 = arith.constant 0 : index
    %c0_35 = arith.constant 0 : index
    %71 = vector.load %arg12[%c0_34, %c0_35] : memref<1x512xf32, #tpu.memory_space<vmem>>, vector<1x512xf32>
    %72 = vector.broadcast %71 : vector<1x512xf32> to vector<8x512xf32>
    %73 = arith.addf %70, %72 : vector<8x512xf32>
    %cst_36 = arith.constant 5.000000e-01 : f32
    %74 = vector.broadcast %cst_36 : f32 to vector<8x512xf32>
    %75 = arith.mulf %74, %73 : vector<8x512xf32>
    %cst_37 = arith.constant 0.707106769 : f32
    %76 = vector.broadcast %cst_37 : f32 to vector<8x512xf32>
    %77 = arith.mulf %73, %76 : vector<8x512xf32>
    %78 = math.erf %77 : vector<8x512xf32>
    %cst_38 = arith.constant 1.000000e+00 : f32
    %79 = vector.broadcast %cst_38 : f32 to vector<8x512xf32>
    %80 = arith.addf %79, %78 : vector<8x512xf32>
    %81 = arith.mulf %75, %80 : vector<8x512xf32>
    %82 = arith.truncf %81 : vector<8x512xf32> to vector<8x512xbf16>
    %c0_39 = arith.constant 0 : index
    %c0_40 = arith.constant 0 : index
    %83 = vector.load %arg13[%c0_39, %c0_40] : memref<512x256xbf16, #tpu.memory_space<vmem>>, vector<512x256xbf16>
    %cst_41 = arith.constant dense<0.000000e+00> : vector<8x256xf32>
    %84 = tpu.matmul %82, %83, %cst_41 {dimension_numbers = #tpu.dot_dimension_numbers<[1], [0], [0], [1], [0, 0, 1, 1], [], []>} : vector<8x512xbf16>, vector<512x256xbf16>, vector<8x256xf32> -> vector<8x256xf32>
    %c0_42 = arith.constant 0 : index
    %c0_43 = arith.constant 0 : index
    %85 = vector.load %arg14[%c0_42, %c0_43] : memref<1x256xf32, #tpu.memory_space<vmem>>, vector<1x256xf32>
    %86 = vector.broadcast %85 : vector<1x256xf32> to vector<8x256xf32>
    %87 = arith.addf %84, %86 : vector<8x256xf32>
    %88 = arith.addf %43, %87 : vector<8x256xf32>
    %c0_44 = arith.constant 0 : index
    %c0_45 = arith.constant 0 : index
    %c0_46 = arith.constant 0 : index
    %89 = vector.load %arg15[%c0_44, %c0_45, %c0_46] : memref<1x8x256xf32, #tpu.memory_space<vmem>>, vector<1x8x256xf32>
    %90 = vector.shape_cast %89 : vector<1x8x256xf32> to vector<8x256xf32>
    %91 = vector.shape_cast %88 : vector<8x256xf32> to vector<1x8x256xf32>
    tpu.vector_store %arg15[%c0_44, %c0_45, %c0_46], %91 {strides = array<i32>} : memref<1x8x256xf32, #tpu.memory_space<vmem>>, vector<1x8x256xf32>,
    return
  }
  func.func @transform_0(%arg0: i32, %arg1: i32) -> (i32, i32, i32) {
    %c0_i32 = arith.constant 0 : i32
    %c0_i32_0 = arith.constant 0 : i32
    %c0_i32_1 = arith.constant 0 : i32
    return %arg0, %c0_i32, %c0_i32_0 : i32, i32, i32
  }
  func.func @transform_1(%arg0: i32, %arg1: i32) -> (i32, i32, i32) {
    %c0_i32 = arith.constant 0 : i32
    %c0_i32_0 = arith.constant 0 : i32
    %c0_i32_1 = arith.constant 0 : i32
    return %arg0, %c0_i32, %c0_i32_0 : i32, i32, i32
  }
  func.func @transform_2(%arg0: i32, %arg1: i32) -> (i32, i32) {
    %c0_i32 = arith.constant 0 : i32
    %c0_i32_0 = arith.constant 0 : i32
    %c0_i32_1 = arith.constant 0 : i32
    return %c0_i32, %c0_i32_0 : i32, i32
  }
  func.func @transform_3(%arg0: i32, %arg1: i32) -> (i32, i32) {
    %c0_i32 = arith.constant 0 : i32
    %c0_i32_0 = arith.constant 0 : i32
    %c0_i32_1 = arith.constant 0 : i32
    return %c0_i32, %c0_i32_0 : i32, i32
  }
  func.func @transform_4(%arg0: i32, %arg1: i32) -> (i32, i32) {
    %c0_i32 = arith.constant 0 : i32
    %c0_i32_0 = arith.constant 0 : i32
    %c0_i32_1 = arith.constant 0 : i32
    return %c0_i32, %c0_i32_0 : i32, i32
  }
  func.func @transform_5(%arg0: i32, %arg1: i32) -> (i32, i32) {
    %c0_i32 = arith.constant 0 : i32
    %c0_i32_0 = arith.constant 0 : i32
    %c0_i32_1 = arith.constant 0 : i32
    return %c0_i32, %c0_i32_0 : i32, i32
  }
  func.func @transform_6(%arg0: i32, %arg1: i32) -> (i32, i32) {
    %c0_i32 = arith.constant 0 : i32
    %c0_i32_0 = arith.constant 0 : i32
    %c0_i32_1 = arith.constant 0 : i32
    return %c0_i32, %c0_i32_0 : i32, i32
  }
  func.func @transform_7(%arg0: i32, %arg1: i32) -> (i32, i32) {
    %c0_i32 = arith.constant 0 : i32
    %c0_i32_0 = arith.constant 0 : i32
    %c0_i32_1 = arith.constant 0 : i32
    return %c0_i32, %c0_i32_0 : i32, i32
  }
  func.func @transform_8(%arg0: i32, %arg1: i32) -> (i32, i32) {
    %c0_i32 = arith.constant 0 : i32
    %c0_i32_0 = arith.constant 0 : i32
    %c0_i32_1 = arith.constant 0 : i32
    return %c0_i32, %c0_i32_0 : i32, i32
  }
  func.func @transform_9(%arg0: i32, %arg1: i32) -> (i32, i32) {
    %c0_i32 = arith.constant 0 : i32
    %c0_i32_0 = arith.constant 0 : i32
    %c0_i32_1 = arith.constant 0 : i32
    return %c0_i32, %c0_i32_0 : i32, i32
  }
  func.func @transform_10(%arg0: i32, %arg1: i32) -> (i32, i32) {
    %c0_i32 = arith.constant 0 : i32
    %c0_i32_0 = arith.constant 0 : i32
    %c0_i32_1 = arith.constant 0 : i32
    return %c0_i32, %c0_i32_0 : i32, i32
  }
  func.func @transform_11(%arg0: i32, %arg1: i32) -> (i32, i32) {
    %c0_i32 = arith.constant 0 : i32
    %c0_i32_0 = arith.constant 0 : i32
    %c0_i32_1 = arith.constant 0 : i32
    return %c0_i32, %c0_i32_0 : i32, i32
  }
  func.func @transform_12(%arg0: i32, %arg1: i32) -> (i32, i32) {
    %c0_i32 = arith.constant 0 : i32
    %c0_i32_0 = arith.constant 0 : i32
    %c0_i32_1 = arith.constant 0 : i32
    return %c0_i32, %c0_i32_0 : i32, i32
  }
  func.func @transform_13(%arg0: i32, %arg1: i32) -> (i32, i32, i32) {
    %c0_i32 = arith.constant 0 : i32
    %c0_i32_0 = arith.constant 0 : i32
    return %arg0, %arg1, %c0_i32 : i32, i32, i32
  }
}

</mosaic_0001>

<llo_original>
// kernel: tpu_custom_call.1
$region0: #{tpu_custom_call.1}
  #allocation0 [shape = 'u32[]', space=smem, size = 0x4, offset = 0x4, fixed_abs, tag = 'smem constant byte address 0x4 - core index']
  #allocation1 [shape = 'u32[144,128]{1,0:T(1,128)}', space=vmem, size = 0x12000, scoped, tag = 'internal scratch']
  #allocation2 [shape = 'bf16[2,16,128]{2,1,0:T(8,128)(2,1)}', space=vmem, size = 0x2000, scoped, tag = 'scratch operand']
  #allocation3 [shape = 'bf16[2,16,128]{2,1,0:T(8,128)(2,1)}', space=vmem, size = 0x2000, scoped, tag = 'scratch operand']
  #allocation4 [shape = 'bf16[2,16,128]{2,1,0:T(8,128)(2,1)}', space=vmem, size = 0x2000, scoped, tag = 'scratch operand']
  %s0 = inlined_call_operand.hbm [shape: f32[2,16,256], index: 0, kind: input, shape index: {}]
  %s1 = inlined_call_operand.hbm [shape: f32[2,1,16], index: 1, kind: input, shape index: {}]
  %s2 = inlined_call_operand.hbm [shape: bf16[256,768], index: 2, kind: input, shape index: {}]
  %s3 = inlined_call_operand.hbm [shape: bf16[256,256], index: 3, kind: input, shape index: {}]
  %s4 = inlined_call_operand.vmem [shape: f32[1,256], index: 4, kind: input, shape index: {}]
  %s5 = inlined_call_operand.vmem [shape: f32[1,256], index: 5, kind: input, shape index: {}]
  %s6 = inlined_call_operand.vmem [shape: f32[1,256], index: 6, kind: input, shape index: {}]
  %s7 = inlined_call_operand.vmem [shape: f32[1,256], index: 7, kind: input, shape index: {}]
  %s8 = inlined_call_operand.vmem [shape: f32[1,256], index: 8, kind: input, shape index: {}]
  %s9 = inlined_call_operand.hbm [shape: bf16[256,512], index: 9, kind: input, shape index: {}]
  %s10 = inlined_call_operand.vmem [shape: f32[1,512], index: 10, kind: input, shape index: {}]
  %s11 = inlined_call_operand.hbm [shape: bf16[512,256], index: 11, kind: input, shape index: {}]
  %s12 = inlined_call_operand.vmem [shape: f32[1,256], index: 12, kind: input, shape index: {}]
  %s13 = inlined_call_operand.hbm [shape: f32[2,16,256], index: 13, kind: output, shape index: {}]
  %s14 = sld [smem:[#allocation0]]
  $region113: #{tpu_custom_call.1} parent=0
    _
  %s16 = ssub.s32 1, %s14
  %s17 = scalar_select 0, %s16, %s14
  $region1: #{tpu_custom_call.1} parent=0
    #allocation5 [shape = 'u8[32768]{0}', space=vmem, size = 0x8000, scoped, tag = 'input window, operand 0']
    #allocation6 [shape = 's32[2]{0}', space=sflag, size = 0x8, scoped, tag = 'scoped memory for tpu_custom_call.1']
    #allocation7 [shape = 's32[2]{0}', space=sflag, size = 0x8, scoped, tag = 'scoped memory for tpu_custom_call.1']
    #allocation8 [shape = 'u8[1024]{0}', space=vmem, size = 0x400, scoped, tag = 'input window, operand 1']
    #allocation9 [shape = 's32[2]{0}', space=sflag, size = 0x8, scoped, tag = 'scoped memory for tpu_custom_call.1']
    #allocation10 [shape = 'u8[393216]{0}', space=vmem, size = 0x60000, scoped, tag = 'input window, operand 2, single buffered']
    #allocation11 [shape = 'u8[131072]{0}', space=vmem, size = 0x20000, scoped, tag = 'input window, operand 3, single buffered']
    #allocation12 [shape = 's32[1]{0}', space=sflag, size = 0x4, scoped, tag = 'scoped memory for tpu_custom_call.1']
    #allocation13 [shape = 'u8[262144]{0}', space=vmem, size = 0x40000, scoped, tag = 'input window, operand 9, single buffered']
    #allocation14 [shape = 'u8[262144]{0}', space=vmem, size = 0x40000, scoped, tag = 'input window, operand 11, single buffered']
    #allocation15 [shape = 's32[1]{0}', space=sflag, size = 0x4, scoped, tag = 'scoped memory for tpu_custom_call.1']
    #allocation16 [shape = 'u8[16384]{0}', space=vmem, size = 0x4000, scoped, tag = 'output window, operand 0']
    %18 = vsyncpa [#allocation6], 0
    %s19 = scalar_lea.sflag [#allocation6], 1
    %20 = vsyncpa %s19, 0
    %21 = vsyncpa [#allocation9], 0
    %s22 = scalar_lea.sflag [#allocation9], 1
    %23 = vsyncpa %s22, 0
    %24 = vsyncpa [#allocation12], 0
    %25 = vsyncpa [#allocation15], 0
    %26 = vsyncpa [#allocation7], 0
    %s27 = scalar_lea.sflag [#allocation7], 1
    %28 = vsyncpa %s27, 0
    loop: start=0, step=1, limit=6
    $region2: #{tpu_custom_call.1} parent=1 // loop_pre_header
      _
    $region3: #{tpu_custom_call.1} parent=1 // loop_header
      %s30 = sphi 0, %s34
      %p31 = scmp.ge.s32.totalorder %s30, 6
      %s37 = sphi 0, %s49
      %s38 = sphi 0, %s45
      %s39 = sphi 0, %s37
      %s40 = sphi 0, %s38
      %s41 = sphi 0, %s39
      %s42 = sphi 0, %s40
      %s52 = sphi 0, %s54
      %s55 = sphi 0, %s52
      %s56 = sphi 0, %s55
      %s72 = sphi 0, %s56
      %s78 = sphi 0, %s80
      %s81 = sphi 0, %s78
      %s82 = sphi 0, %s81
      %s98 = sphi 0, %s82
      %s102 = sphi 0, %s102
      %s104 = sphi 0, %s102
      %s105 = sphi 0, %s104
      %s119 = sphi 0, %s105
      %s123 = sphi 0, %s123
      %s125 = sphi 0, %s123
      %s126 = sphi 0, %s125
      %s140 = sphi 0, %s126
      %s144 = sphi 0, %s144
      %s146 = sphi 0, %s144
      %s147 = sphi 0, %s146
      %s161 = sphi 0, %s147
      %s165 = sphi 0, %s165
      %s167 = sphi 0, %s165
      %s168 = sphi 0, %s167
      %s182 = sphi 0, %s168
      %s186 = sphi 0, %s186
      %s188 = sphi 0, %s186
      %s189 = sphi 0, %s188
      %s203 = sphi 0, %s189
      %s207 = sphi 0, %s207
      %s209 = sphi 0, %s207
      %s210 = sphi 0, %s209
      %s224 = sphi 0, %s210
      %s228 = sphi 0, %s228
      %s230 = sphi 0, %s228
      %s231 = sphi 0, %s230
      %s245 = sphi 0, %s231
      %s249 = sphi 0, %s249
      %s251 = sphi 0, %s249
      %s252 = sphi 0, %s251
      %s266 = sphi 0, %s252
      %s270 = sphi 0, %s270
      %s272 = sphi 0, %s270
      %s273 = sphi 0, %s272
      %s287 = sphi 0, %s273
      %s291 = sphi 0, %s291
      %s293 = sphi 0, %s291
      %s294 = sphi 0, %s293
      %s308 = sphi 0, %s294
      %s312 = sphi 0, %s312
      %s314 = sphi 0, %s312
      %s315 = sphi 0, %s314
      %s329 = sphi 0, %s315
      %s337 = sphi 0, %s339
      %s340 = sphi 0, %s337
      %s341 = sphi 0, %s340
      %s357 = sphi 0, %s341
    $region4: #{tpu_custom_call.1} parent=1 // loop_header_branch
      %33 = sbr.rel (%p31) target = $region8
    $region5: #{tpu_custom_call.1} parent=1 // loop_body
      %s35 = ssub.s32 %s30, 1
      %s36 = ssub.s32 %s30, 2
      %s43 = sadd.s32 1, %s38
      %p44 = scmp.ge.s32.totalorder %s43, 2
      %s45 = scalar_select %p44, 0, %s43
      %s46 = sadd.s32 1, %s37
      %s47 = scalar_select %p44, %s46, %s37
      %p48 = scmp.ge.s32.totalorder %s47, 2
      %s49 = scalar_select %p48, 0, %s47
      %s50 = ssub.s32 %s37, %s49
      %p51 = scmp.eq.s32.totalorder %s50, 0
      %s53 = sadd.s32 %s52, 1
      %s54 = scalar_select %p51, %s52, %s53
      %p57 = pneg %p51
      %p58 = scmp.eq.s32.totalorder %s30, 3
      %p59 = por %p57, %p58
      %p60 = scmp.ne.s32.totalorder %s52, %s55
      %p61 = scmp.eq.s32.totalorder %s30, 0
      %p62 = por %p60, %p61
      %p63 = scmp.ne.s32.totalorder %s52, %s55
      %p64 = scmp.eq.s32.totalorder %s35, 3
      %p65 = por %p63, %p64
      %p66 = scmp.ne.s32.totalorder %s55, %s56
      %p67 = scmp.eq.s32.totalorder %s35, 0
      %p68 = por %p66, %p67
      %p69 = scmp.ne.s32.totalorder %s55, %s56
      %p70 = scmp.eq.s32.totalorder %s36, 3
      %p71 = por %p69, %p70
      %p73 = scmp.ne.s32.totalorder %s56, %s72
      %p74 = scmp.eq.s32.totalorder %s36, 0
      %p75 = por %p73, %p74
      %s76 = ssub.s32 %s37, %s49
      %p77 = scmp.eq.s32.totalorder %s76, 0
      %s79 = sadd.s32 %s78, 1
      %s80 = scalar_select %p77, %s78, %s79
      %p83 = pneg %p77
      %p84 = scmp.eq.s32.totalorder %s30, 3
      %p85 = por %p83, %p84
      %p86 = scmp.ne.s32.totalorder %s78, %s81
      %p87 = scmp.eq.s32.totalorder %s30, 0
      %p88 = por %p86, %p87
      %p89 = scmp.ne.s32.totalorder %s78, %s81
      %p90 = scmp.eq.s32.totalorder %s35, 3
      %p91 = por %p89, %p90
      %p92 = scmp.ne.s32.totalorder %s81, %s82
      %p93 = scmp.eq.s32.totalorder %s35, 0
      %p94 = por %p92, %p93
      %p95 = scmp.ne.s32.totalorder %s81, %s82
      %p96 = scmp.eq.s32.totalorder %s36, 3
      %p97 = por %p95, %p96
      %p99 = scmp.ne.s32.totalorder %s82, %s98
      %p100 = scmp.eq.s32.totalorder %s36, 0
      %p101 = por %p99, %p100
      %s103 = sadd.s32 %s102, 1
      %p106 = scmp.eq.s32.totalorder %s30, 3
      %p107 = scmp.ne.s32.totalorder %s102, %s104
      %p108 = scmp.eq.s32.totalorder %s30, 0
      %p109 = por %p107, %p108
      %p110 = scmp.ne.s32.totalorder %s102, %s104
      %p111 = scmp.eq.s32.totalorder %s35, 3
      %p112 = por %p110, %p111
      %p113 = scmp.ne.s32.totalorder %s104, %s105
      %p114 = scmp.eq.s32.totalorder %s35, 0
      %p115 = por %p113, %p114
      %p116 = scmp.ne.s32.totalorder %s104, %s105
      %p117 = scmp.eq.s32.totalorder %s36, 3
      %p118 = por %p116, %p117
      %p120 = scmp.ne.s32.totalorder %s105, %s119
      %p121 = scmp.eq.s32.totalorder %s36, 0
      %p122 = por %p120, %p121
      %s124 = sadd.s32 %s123, 1
      %p127 = scmp.eq.s32.totalorder %s30, 3
      %p128 = scmp.ne.s32.totalorder %s123, %s125
      %p129 = scmp.eq.s32.totalorder %s30, 0
      %p130 = por %p128, %p129
      %p131 = scmp.ne.s32.totalorder %s123, %s125
      %p132 = scmp.eq.s32.totalorder %s35, 3
      %p133 = por %p131, %p132
      %p134 = scmp.ne.s32.totalorder %s125, %s126
      %p135 = scmp.eq.s32.totalorder %s35, 0
      %p136 = por %p134, %p135
      %p137 = scmp.ne.s32.totalorder %s125, %s126
      %p138 = scmp.eq.s32.totalorder %s36, 3
      %p139 = por %p137, %p138
      %p141 = scmp.ne.s32.totalorder %s126, %s140
      %p142 = scmp.eq.s32.totalorder %s36, 0
      %p143 = por %p141, %p142
      %s145 = sadd.s32 %s144, 1
      %p148 = scmp.eq.s32.totalorder %s30, 3
      %p149 = scmp.ne.s32.totalorder %s144, %s146
      %p150 = scmp.eq.s32.totalorder %s30, 0
      %p151 = por %p149, %p150
      %p152 = scmp.ne.s32.totalorder %s144, %s146
      %p153 = scmp.eq.s32.totalorder %s35, 3
      %p154 = por %p152, %p153
      %p155 = scmp.ne.s32.totalorder %s146, %s147
      %p156 = scmp.eq.s32.totalorder %s35, 0
      %p157 = por %p155, %p156
      %p158 = scmp.ne.s32.totalorder %s146, %s147
      %p159 = scmp.eq.s32.totalorder %s36, 3
      %p160 = por %p158, %p159
      %p162 = scmp.ne.s32.totalorder %s147, %s161
      %p163 = scmp.eq.s32.totalorder %s36, 0
      %p164 = por %p162, %p163
      %s166 = sadd.s32 %s165, 1
      %p169 = scmp.eq.s32.totalorder %s30, 3
      %p170 = scmp.ne.s32.totalorder %s165, %s167
      %p171 = scmp.eq.s32.totalorder %s30, 0
      %p172 = por %p170, %p171
      %p173 = scmp.ne.s32.totalorder %s165, %s167
      %p174 = scmp.eq.s32.totalorder %s35, 3
      %p175 = por %p173, %p174
      %p176 = scmp.ne.s32.totalorder %s167, %s168
      %p177 = scmp.eq.s32.totalorder %s35, 0
      %p178 = por %p176, %p177
      %p179 = scmp.ne.s32.totalorder %s167, %s168
      %p180 = scmp.eq.s32.totalorder %s36, 3
      %p181 = por %p179, %p180
      %p183 = scmp.ne.s32.totalorder %s168, %s182
      %p184 = scmp.eq.s32.totalorder %s36, 0
      %p185 = por %p183, %p184
      %s187 = sadd.s32 %s186, 1
      %p190 = scmp.eq.s32.totalorder %s30, 3
      %p191 = scmp.ne.s32.totalorder %s186, %s188
      %p192 = scmp.eq.s32.totalorder %s30, 0
      %p193 = por %p191, %p192
      %p194 = scmp.ne.s32.totalorder %s186, %s188
      %p195 = scmp.eq.s32.totalorder %s35, 3
      %p196 = por %p194, %p195
      %p197 = scmp.ne.s32.totalorder %s188, %s189
      %p198 = scmp.eq.s32.totalorder %s35, 0
      %p199 = por %p197, %p198
      %p200 = scmp.ne.s32.totalorder %s188, %s189
      %p201 = scmp.eq.s32.totalorder %s36, 3
      %p202 = por %p200, %p201
      %p204 = scmp.ne.s32.totalorder %s189, %s203
      %p205 = scmp.eq.s32.totalorder %s36, 0
      %p206 = por %p204, %p205
      %s208 = sadd.s32 %s207, 1
      %p211 = scmp.eq.s32.totalorder %s30, 3
      %p212 = scmp.ne.s32.totalorder %s207, %s209
      %p213 = scmp.eq.s32.totalorder %s30, 0
      %p214 = por %p212, %p213
      %p215 = scmp.ne.s32.totalorder %s207, %s209
      %p216 = scmp.eq.s32.totalorder %s35, 3
      %p217 = por %p215, %p216
      %p218 = scmp.ne.s32.totalorder %s209, %s210
      %p219 = scmp.eq.s32.totalorder %s35, 0
      %p220 = por %p218, %p219
      %p221 = scmp.ne.s32.totalorder %s209, %s210
      %p222 = scmp.eq.s32.totalorder %s36, 3
      %p223 = por %p221, %p222
      %p225 = scmp.ne.s32.totalorder %s210, %s224
      %p226 = scmp.eq.s32.totalorder %s36, 0
      %p227 = por %p225, %p226
      %s229 = sadd.s32 %s228, 1
      %p232 = scmp.eq.s32.totalorder %s30, 3
      %p233 = scmp.ne.s32.totalorder %s228, %s230
      %p234 = scmp.eq.s32.totalorder %s30, 0
      %p235 = por %p233, %p234
      %p236 = scmp.ne.s32.totalorder %s228, %s230
      %p237 = scmp.eq.s32.totalorder %s35, 3
      %p238 = por %p236, %p237
      %p239 = scmp.ne.s32.totalorder %s230, %s231
      %p240 = scmp.eq.s32.totalorder %s35, 0
      %p241 = por %p239, %p240
      %p242 = scmp.ne.s32.totalorder %s230, %s231
      %p243 = scmp.eq.s32.totalorder %s36, 3
      %p244 = por %p242, %p243
      %p246 = scmp.ne.s32.totalorder %s231, %s245
      %p247 = scmp.eq.s32.totalorder %s36, 0
      %p248 = por %p246, %p247
      %s250 = sadd.s32 %s249, 1
      %p253 = scmp.eq.s32.totalorder %s30, 3
      %p254 = scmp.ne.s32.totalorder %s249, %s251
      %p255 = scmp.eq.s32.totalorder %s30, 0
      %p256 = por %p254, %p255
      %p257 = scmp.ne.s32.totalorder %s249, %s251
      %p258 = scmp.eq.s32.totalorder %s35, 3
      %p259 = por %p257, %p258
      %p260 = scmp.ne.s32.totalorder %s251, %s252
      %p261 = scmp.eq.s32.totalorder %s35, 0
      %p262 = por %p260, %p261
      %p263 = scmp.ne.s32.totalorder %s251, %s252
      %p264 = scmp.eq.s32.totalorder %s36, 3
      %p265 = por %p263, %p264
      %p267 = scmp.ne.s32.totalorder %s252, %s266
      %p268 = scmp.eq.s32.totalorder %s36, 0
      %p269 = por %p267, %p268
      %s271 = sadd.s32 %s270, 1
      %p274 = scmp.eq.s32.totalorder %s30, 3
      %p275 = scmp.ne.s32.totalorder %s270, %s272
      %p276 = scmp.eq.s32.totalorder %s30, 0
      %p277 = por %p275, %p276
      %p278 = scmp.ne.s32.totalorder %s270, %s272
      %p279 = scmp.eq.s32.totalorder %s35, 3
      %p280 = por %p278, %p279
      %p281 = scmp.ne.s32.totalorder %s272, %s273
      %p282 = scmp.eq.s32.totalorder %s35, 0
      %p283 = por %p281, %p282
      %p284 = scmp.ne.s32.totalorder %s272, %s273
      %p285 = scmp.eq.s32.totalorder %s36, 3
      %p286 = por %p284, %p285
      %p288 = scmp.ne.s32.totalorder %s273, %s287
      %p289 = scmp.eq.s32.totalorder %s36, 0
      %p290 = por %p288, %p289
      %s292 = sadd.s32 %s291, 1
      %p295 = scmp.eq.s32.totalorder %s30, 3
      %p296 = scmp.ne.s32.totalorder %s291, %s293
      %p297 = scmp.eq.s32.totalorder %s30, 0
      %p298 = por %p296, %p297
      %p299 = scmp.ne.s32.totalorder %s291, %s293
      %p300 = scmp.eq.s32.totalorder %s35, 3
      %p301 = por %p299, %p300
      %p302 = scmp.ne.s32.totalorder %s293, %s294
      %p303 = scmp.eq.s32.totalorder %s35, 0
      %p304 = por %p302, %p303
      %p305 = scmp.ne.s32.totalorder %s293, %s294
      %p306 = scmp.eq.s32.totalorder %s36, 3
      %p307 = por %p305, %p306
      %p309 = scmp.ne.s32.totalorder %s294, %s308
      %p310 = scmp.eq.s32.totalorder %s36, 0
      %p311 = por %p309, %p310
      %s313 = sadd.s32 %s312, 1
      %p316 = scmp.eq.s32.totalorder %s30, 3
      %p317 = scmp.ne.s32.totalorder %s312, %s314
      %p318 = scmp.eq.s32.totalorder %s30, 0
      %p319 = por %p317, %p318
      %p320 = scmp.ne.s32.totalorder %s312, %s314
      %p321 = scmp.eq.s32.totalorder %s35, 3
      %p322 = por %p320, %p321
      %p323 = scmp.ne.s32.totalorder %s314, %s315
      %p324 = scmp.eq.s32.totalorder %s35, 0
      %p325 = por %p323, %p324
      %p326 = scmp.ne.s32.totalorder %s314, %s315
      %p327 = scmp.eq.s32.totalorder %s36, 3
      %p328 = por %p326, %p327
      %p330 = scmp.ne.s32.totalorder %s315, %s329
      %p331 = scmp.eq.s32.totalorder %s36, 0
      %p332 = por %p330, %p331
      %s333 = ssub.s32 %s37, %s49
      %s334 = ssub.s32 %s38, %s45
      %s335 = sor.u32 %s333, %s334
      %p336 = scmp.eq.s32.totalorder %s335, 0
      %s338 = sadd.s32 %s337, 1
      %s339 = scalar_select %p336, %s337, %s338
      %p342 = pneg %p336
      %p343 = scmp.eq.s32.totalorder %s30, 3
      %p344 = por %p342, %p343
      %p345 = scmp.ne.s32.totalorder %s337, %s340
      %p346 = scmp.eq.s32.totalorder %s30, 0
      %p347 = por %p345, %p346
      %p348 = scmp.ne.s32.totalorder %s337, %s340
      %p349 = scmp.eq.s32.totalorder %s35, 3
      %p350 = por %p348, %p349
      %p351 = scmp.ne.s32.totalorder %s340, %s341
      %p352 = scmp.eq.s32.totalorder %s35, 0
      %p353 = por %p351, %p352
      %p354 = scmp.ne.s32.totalorder %s340, %s341
      %p355 = scmp.eq.s32.totalorder %s36, 3
      %p356 = por %p354, %p355
      %p358 = scmp.ne.s32.totalorder %s341, %s357
      %p359 = scmp.eq.s32.totalorder %s36, 0
      %p360 = por %p358, %p359
      %p361 = scmp.le.s32.totalorder 1, %s30
      %p362 = scmp.lt.s32.totalorder %s30, 5
      %p363 = pnand %p361, %p362
      %p364 = pneg %p363
      // Predicated region
      $region9: #{tpu_custom_call.1} parent=5 // pred_check
        _
      $region10: #{tpu_custom_call.1} parent=5 // pred_check_branch
        %366 = sbr.rel (%p363) target = $region12
      $region11: #{tpu_custom_call.1} parent=5 // pred_region
        %s367 = ssub.s32 %s30, 1
        // Predicated region
        $region13: #{tpu_custom_call.1} parent=11 // pred_check
          %p368 = pneg %p115
        $region14: #{tpu_custom_call.1} parent=11 // pred_check_branch
          %370 = sbr.rel (%p368) target = $region16
        $region15: #{tpu_custom_call.1} parent=11 // pred_region
          %s372 = ssub.s32 12288, 12288
          %373 = vsyncadd [#allocation9], %s372
          %s374 = sshll.u32 [#allocation10], 4
          %s375 = int_to_ptr.vmem [resolvable:$true] %s374
          %380 = dma.hbm_to_vmem [thread:$0]  %s2, 12288, %s375, [#allocation9], 384, 384, 24
        $region16: #{tpu_custom_call.1} parent=11 // pred_fallthru
          _
        // Predicated region
        $region17: #{tpu_custom_call.1} parent=11 // pred_check
          %p381 = pneg %p136
        $region18: #{tpu_custom_call.1} parent=11 // pred_check_branch
          %383 = sbr.rel (%p381) target = $region20
        $region19: #{tpu_custom_call.1} parent=11 // pred_region
          %s385 = ssub.s32 4096, 4096
          %386 = vsyncadd [#allocation12], %s385
          %s387 = sshll.u32 [#allocation11], 4
          %s388 = int_to_ptr.vmem [resolvable:$true] %s387
          %393 = dma.hbm_to_vmem [thread:$0]  %s3, 4096, %s388, [#allocation12], 128, 128, 8
        $region20: #{tpu_custom_call.1} parent=11 // pred_fallthru
          _
        // Predicated region
        $region21: #{tpu_custom_call.1} parent=11 // pred_check
          %p394 = pneg %p157
        $region22: #{tpu_custom_call.1} parent=11 // pred_check_branch
          %396 = sbr.rel (%p394) target = $region24
        $region23: #{tpu_custom_call.1} parent=11 // pred_region
          _
        $region24: #{tpu_custom_call.1} parent=11 // pred_fallthru
          _
        // Predicated region
        $region25: #{tpu_custom_call.1} parent=11 // pred_check
          %p397 = pneg %p178
        $region26: #{tpu_custom_call.1} parent=11 // pred_check_branch
          %399 = sbr.rel (%p397) target = $region28
        $region27: #{tpu_custom_call.1} parent=11 // pred_region
          _
        $region28: #{tpu_custom_call.1} parent=11 // pred_fallthru
          _
        // Predicated region
        $region29: #{tpu_custom_call.1} parent=11 // pred_check
          %p400 = pneg %p199
        $region30: #{tpu_custom_call.1} parent=11 // pred_check_branch
          %402 = sbr.rel (%p400) target = $region32
        $region31: #{tpu_custom_call.1} parent=11 // pred_region
          _
        $region32: #{tpu_custom_call.1} parent=11 // pred_fallthru
          _
        // Predicated region
        $region33: #{tpu_custom_call.1} parent=11 // pred_check
          %p403 = pneg %p220
        $region34: #{tpu_custom_call.1} parent=11 // pred_check_branch
          %405 = sbr.rel (%p403) target = $region36
        $region35: #{tpu_custom_call.1} parent=11 // pred_region
          _
        $region36: #{tpu_custom_call.1} parent=11 // pred_fallthru
          _
        // Predicated region
        $region37: #{tpu_custom_call.1} parent=11 // pred_check
          %p406 = pneg %p241
        $region38: #{tpu_custom_call.1} parent=11 // pred_check_branch
          %408 = sbr.rel (%p406) target = $region40
        $region39: #{tpu_custom_call.1} parent=11 // pred_region
          _
        $region40: #{tpu_custom_call.1} parent=11 // pred_fallthru
          _
        // Predicated region
        $region41: #{tpu_custom_call.1} parent=11 // pred_check
          %p409 = pneg %p262
        $region42: #{tpu_custom_call.1} parent=11 // pred_check_branch
          %411 = sbr.rel (%p409) target = $region44
        $region43: #{tpu_custom_call.1} parent=11 // pred_region
          %s413 = ssub.s32 8192, 8192
          %414 = vsyncadd [#allocation12], %s413
          %s415 = sshll.u32 [#allocation13], 4
          %s416 = int_to_ptr.vmem [resolvable:$true] %s415
          %421 = dma.hbm_to_vmem [thread:$0]  %s9, 8192, %s416, [#allocation12], 256, 256, 16
        $region44: #{tpu_custom_call.1} parent=11 // pred_fallthru
          _
        // Predicated region
        $region45: #{tpu_custom_call.1} parent=11 // pred_check
          %p422 = pneg %p283
        $region46: #{tpu_custom_call.1} parent=11 // pred_check_branch
          %424 = sbr.rel (%p422) target = $region48
        $region47: #{tpu_custom_call.1} parent=11 // pred_region
          _
        $region48: #{tpu_custom_call.1} parent=11 // pred_fallthru
          _
        // Predicated region
        $region49: #{tpu_custom_call.1} parent=11 // pred_check
          %p425 = pneg %p304
        $region50: #{tpu_custom_call.1} parent=11 // pred_check_branch
          %427 = sbr.rel (%p425) target = $region52
        $region51: #{tpu_custom_call.1} parent=11 // pred_region
          %s429 = ssub.s32 8192, 8192
          %430 = vsyncadd [#allocation15], %s429
          %s431 = sshll.u32 [#allocation14], 4
          %s432 = int_to_ptr.vmem [resolvable:$true] %s431
          %437 = dma.hbm_to_vmem [thread:$0]  %s11, 8192, %s432, [#allocation15], 128, 128, 8
        $region52: #{tpu_custom_call.1} parent=11 // pred_fallthru
          _
        // Predicated region
        $region53: #{tpu_custom_call.1} parent=11 // pred_check
          %p438 = pneg %p325
        $region54: #{tpu_custom_call.1} parent=11 // pred_check_branch
          %440 = sbr.rel (%p438) target = $region56
        $region55: #{tpu_custom_call.1} parent=11 // pred_region
          _
        $region56: #{tpu_custom_call.1} parent=11 // pred_fallthru
          _
      $region12: #{tpu_custom_call.1} parent=5 // pred_fallthru
        _
      %p441 = scmp.lt.s32.totalorder %s30, 4
      // Predicated region
      $region57: #{tpu_custom_call.1} parent=5 // pred_check
        %p442 = pneg %p441
      $region58: #{tpu_custom_call.1} parent=5 // pred_check_branch
        %444 = sbr.rel (%p442) target = $region60
      $region59: #{tpu_custom_call.1} parent=5 // pred_region
        // Predicated region
        $region61: #{tpu_custom_call.1} parent=59 // pred_check
          %p445 = pneg %p62
        $region62: #{tpu_custom_call.1} parent=59 // pred_check_branch
          %447 = sbr.rel (%p445) target = $region64
        $region63: #{tpu_custom_call.1} parent=59 // pred_region
          %s448 = sand.u32 %s52, 1
          %s449 = scalar_lea.sflag [#allocation6], %s448
          %s450 = sand.u32 %s52, 1
          %s451 = smul.addr %s450, 32
          %s452 = scalar_lea.vmem [#allocation5], %s451
          %s454 = ssub.s32 512, 512
          %455 = vsyncadd %s449, %s454
          %s456 = smul.addr %s37, 4
          %s457 = smul.addr %s456, 128
          %s458 = scalar_lea.hbm %s0, %s457
          %s459 = sshll.u32 %s452, 4
          %s460 = int_to_ptr.vmem [resolvable:$true] %s459
          %465 = dma.hbm_to_vmem [thread:$0]  %s458, 512, %s460, %s449, 256, 256, 16
        $region64: #{tpu_custom_call.1} parent=59 // pred_fallthru
          _
        // Predicated region
        $region65: #{tpu_custom_call.1} parent=59 // pred_check
          %p466 = pneg %p88
        $region66: #{tpu_custom_call.1} parent=59 // pred_check_branch
          %468 = sbr.rel (%p466) target = $region68
        $region67: #{tpu_custom_call.1} parent=59 // pred_region
          %s469 = sand.u32 %s30, 1
          %s470 = scalar_lea.sflag [#allocation9], %s469
          %s471 = sand.u32 %s78, 1
          %s472 = scalar_lea.vmem [#allocation8], %s471
          %s474 = ssub.s32 16, 16
          %475 = vsyncadd %s470, %s474
          %s476 = smul.addr %s37, 16
          %s477 = scalar_lea.hbm %s1, %s476
          %s479 = sshll.u32 %s472, 4
          %s480 = int_to_ptr.vmem [resolvable:$true] %s479
          %482 = dma.hbm_to_vmem [thread:$0]  %s477, 16, %s480, %s470
        $region68: #{tpu_custom_call.1} parent=59 // pred_fallthru
          _
      $region60: #{tpu_custom_call.1} parent=5 // pred_fallthru
        _
      %p483 = scmp.le.s32.totalorder 1, %s30
      %p484 = scmp.lt.s32.totalorder %s30, 5
      %p485 = pnand %p483, %p484
      %p486 = pneg %p485
      // Predicated region
      $region69: #{tpu_custom_call.1} parent=5 // pred_check
        _
      $region70: #{tpu_custom_call.1} parent=5 // pred_check_branch
        %488 = sbr.rel (%p485) target = $region72
      $region71: #{tpu_custom_call.1} parent=5 // pred_region
        %s489 = ssub.s32 %s30, 1
        %s490 = sand.u32 %s55, 1
        %s491 = scalar_lea.sflag [#allocation6], %s490
        %s492 = sand.u32 %s55, 1
        %s493 = smul.addr %s492, 32
        %s494 = scalar_lea.vmem [#allocation5], %s493
        // Predicated region
        $region73: #{tpu_custom_call.1} parent=71 // pred_check
          %p495 = pneg %p68
        $region74: #{tpu_custom_call.1} parent=71 // pred_check_branch
          %497 = sbr.rel (%p495) target = $region76
        $region75: #{tpu_custom_call.1} parent=71 // pred_region
          %498 = dma.done %s491, 512
        $region76: #{tpu_custom_call.1} parent=71 // pred_fallthru
          _
        %s499 = sand.u32 %s35, 1
        %s500 = scalar_lea.sflag [#allocation9], %s499
        %s501 = sand.u32 %s81, 1
        %s502 = scalar_lea.vmem [#allocation8], %s501
        // Predicated region
        $region77: #{tpu_custom_call.1} parent=71 // pred_check
          %p503 = pneg %p94
        $region78: #{tpu_custom_call.1} parent=71 // pred_check_branch
          %505 = sbr.rel (%p503) target = $region80
        $region79: #{tpu_custom_call.1} parent=71 // pred_region
          %506 = dma.done %s500, 16
        $region80: #{tpu_custom_call.1} parent=71 // pred_fallthru
          _
        // Predicated region
        $region81: #{tpu_custom_call.1} parent=71 // pred_check
          %p507 = pneg %p115
        $region82: #{tpu_custom_call.1} parent=71 // pred_check_branch
          %509 = sbr.rel (%p507) target = $region84
        $region83: #{tpu_custom_call.1} parent=71 // pred_region
          %510 = dma.done [#allocation9], 12288
        $region84: #{tpu_custom_call.1} parent=71 // pred_fallthru
          _
        // Predicated region
        $region85: #{tpu_custom_call.1} parent=71 // pred_check
          %p511 = pneg %p136
        $region86: #{tpu_custom_call.1} parent=71 // pred_check_branch
          %513 = sbr.rel (%p511) target = $region88
        $region87: #{tpu_custom_call.1} parent=71 // pred_region
          %514 = dma.done [#allocation12], 4096
        $region88: #{tpu_custom_call.1} parent=71 // pred_fallthru
          _
        // Predicated region
        $region89: #{tpu_custom_call.1} parent=71 // pred_check
          %p515 = pneg %p262
        $region90: #{tpu_custom_call.1} parent=71 // pred_check_branch
          %517 = sbr.rel (%p515) target = $region92
        $region91: #{tpu_custom_call.1} parent=71 // pred_region
          %518 = dma.done [#allocation12], 8192
        $region92: #{tpu_custom_call.1} parent=71 // pred_fallthru
          _
        // Predicated region
        $region93: #{tpu_custom_call.1} parent=71 // pred_check
          %p519 = pneg %p304
        $region94: #{tpu_custom_call.1} parent=71 // pred_check_branch
          %521 = sbr.rel (%p519) target = $region96
        $region95: #{tpu_custom_call.1} parent=71 // pred_region
          %522 = dma.done [#allocation15], 8192
        $region96: #{tpu_custom_call.1} parent=71 // pred_fallthru
          _
        %s523 = sand.u32 %s55, 1
        %s524 = scalar_lea.sflag [#allocation6], %s523
        %s525 = sand.u32 %s55, 1
        %s526 = smul.addr %s525, 32
        %s527 = scalar_lea.vmem [#allocation5], %s526
        %p528 = pneg %p68
        %p529 = pneg %p65
        %s530 = sand.u32 %s35, 1
        %s531 = scalar_lea.sflag [#allocation9], %s530
        %s532 = sand.u32 %s81, 1
        %s533 = scalar_lea.vmem [#allocation8], %s532
        %p534 = pneg %p94
        %p535 = pneg %p91
        %p536 = pneg %p115
        %p537 = pneg %p112
        %p538 = pneg %p136
        %p539 = pneg %p133
        %p540 = pneg %p157
        %p541 = pneg %p154
        %p542 = pneg %p178
        %p543 = pneg %p175
        %p544 = pneg %p199
        %p545 = pneg %p196
        %p546 = pneg %p220
        %p547 = pneg %p217
        %p548 = pneg %p241
        %p549 = pneg %p238
        %p550 = pneg %p262
        %p551 = pneg %p259
        %p552 = pneg %p283
        %p553 = pneg %p280
        %p554 = pneg %p304
        %p555 = pneg %p301
        %p556 = pneg %p325
        %p557 = pneg %p322
        %p558 = pneg %p353
        %p559 = pneg %p350
        %s560 = sand.u32 %s340, 1
        %s561 = scalar_lea.sflag [#allocation7], %s560
        %s562 = sand.u32 %s340, 1
        %s563 = smul.addr %s562, 16
        %s564 = scalar_lea.vmem [#allocation16], %s563
        %p566 = scmp.eq.s32.totalorder %s40, 0
        // Predicated region
        $region97: #{tpu_custom_call.1} parent=71 // pred_check
          %p567 = pneg %p566
        $region98: #{tpu_custom_call.1} parent=71 // pred_check_branch
          %569 = sbr.rel (%p567) target = $region100
        $region99: #{tpu_custom_call.1} parent=71 // pred_region
          %v570 = vld [vmem:[%s494] sm:$0xff]
          %v571 = vld [vmem:[%s494 + $0x8] sm:$0xff]
          %v572 = vld [vmem:[%s494 + $0x10] sm:$0xff]
          %v573 = vld [vmem:[%s494 + $0x18] sm:$0xff]
          %v574 = vld [vmem:[%s5] sm:$0x3]
          %v575 = vld [vmem:[%s6] sm:$0x3]
          %v576 = vadd.f32 %v570, %v571
          %577 = vadd.xlane.f32.xlu0 %v576
          %v578 = vpop.xlane.xlu0 %577
          %v579 = vadd.f32 %v572, %v573
          %580 = vadd.xlane.f32.xlu0 %v579
          %v581 = vpop.xlane.xlu0 %580
          %v582 = vrcp.pop 256.0
          %v583 = vmul.f32 %v578, %v582
          %v584 = vmul.f32 %v581, %v582
          %v585 = vsub.f32 %v570, %v583
          %v586 = vsub.f32 %v571, %v583
          %v587 = vsub.f32 %v572, %v584
          %v588 = vsub.f32 %v573, %v584
          %v589 = vmul.f32 %v585, %v585
          %v590 = vmul.f32 %v586, %v586
          %v591 = vmul.f32 %v587, %v587
          %v592 = vmul.f32 %v588, %v588
          %v593 = vadd.f32 %v589, %v590
          %594 = vadd.xlane.f32.xlu0 %v593
          %v595 = vpop.xlane.xlu0 %594
          %v596 = vadd.f32 %v591, %v592
          %597 = vadd.xlane.f32.xlu0 %v596
          %v598 = vpop.xlane.xlu0 %597
          %v599 = vmul.f32 %v595, %v582
          %v600 = vmul.f32 %v598, %v582
          %v601 = vadd.f32 %v599, 1e-05
          %v602 = vadd.f32 %v600, 1e-05
          %v603 = vrsqrt.pop %v601
          %v604 = vrsqrt.pop %v602
          %v605 = vmul.f32 %v585, %v603
          %v606 = vmul.f32 %v586, %v603
          %v607 = vmul.f32 %v587, %v604
          %v608 = vmul.f32 %v588, %v604
          %v610 = vlaneseq
          %v611 = vshrl.u32 %v610, 7
          %v612 = vsub.s32 0, %v611
          %v613 = vrot.slane %v574, %v612
          %v614 = vlaneseq
          %v615 = vshrl.u32 %v614, 7
          %v616 = vsub.s32 1, %v615
          %v617 = vrot.slane %v574, %v616
          %v620 = vmul.f32 %v605, %v613
          %v621 = vmul.f32 %v606, %v617
          %v622 = vmul.f32 %v607, %v613
          %v623 = vmul.f32 %v608, %v617
          %v625 = vlaneseq
          %v626 = vshrl.u32 %v625, 7
          %v627 = vsub.s32 0, %v626
          %v628 = vrot.slane %v575, %v627
          %v629 = vlaneseq
          %v630 = vshrl.u32 %v629, 7
          %v631 = vsub.s32 1, %v630
          %v632 = vrot.slane %v575, %v631
          %v635 = vadd.f32 %v620, %v628
          %v636 = vadd.f32 %v621, %v632
          %v637 = vadd.f32 %v622, %v628
          %v638 = vadd.f32 %v623, %v632
          %v639 = vpack.c.bf16 %v637, %v635
          %v640 = vpack.c.bf16 %v638, %v636
          %v641 = vld [vmem:[#allocation10] sm:$0xff]
          %v642 = vld [vmem:[#allocation10 + $0x8] sm:$0xff]
          %v643 = vld [vmem:[#allocation10 + $0x10] sm:$0xff]
          %v644 = vld [vmem:[#allocation10 + $0x18] sm:$0xff]
          %v645 = vld [vmem:[#allocation10 + $0x20] sm:$0xff]
          %v646 = vld [vmem:[#allocation10 + $0x28] sm:$0xff]
          %v647 = vld [vmem:[#allocation10 + $0x30] sm:$0xff]
          %v648 = vld [vmem:[#allocation10 + $0x38] sm:$0xff]
          %v649 = vld [vmem:[#allocation10 + $0x40] sm:$0xff]
          %v650 = vld [vmem:[#allocation10 + $0x48] sm:$0xff]
          %v651 = vld [vmem:[#allocation10 + $0x50] sm:$0xff]
          %v652 = vld [vmem:[#allocation10 + $0x58] sm:$0xff]
          %v653 = vld [vmem:[#allocation10 + $0x60] sm:$0xff]
          %v654 = vld [vmem:[#allocation10 + $0x68] sm:$0xff]
          %v655 = vld [vmem:[#allocation10 + $0x70] sm:$0xff]
          %v656 = vld [vmem:[#allocation10 + $0x78] sm:$0xff]
          %v657 = vld [vmem:[#allocation10 + $0x80] sm:$0xff]
          %v658 = vld [vmem:[#allocation10 + $0x88] sm:$0xff]
          %v659 = vld [vmem:[#allocation10 + $0x90] sm:$0xff]
          %v660 = vld [vmem:[#allocation10 + $0x98] sm:$0xff]
          %v661 = vld [vmem:[#allocation10 + $0xa0] sm:$0xff]
          %v662 = vld [vmem:[#allocation10 + $0xa8] sm:$0xff]
          %v663 = vld [vmem:[#allocation10 + $0xb0] sm:$0xff]
          %v664 = vld [vmem:[#allocation10 + $0xb8] sm:$0xff]
          %v665 = vld [vmem:[#allocation10 + $0xc0] sm:$0xff]
          %v666 = vld [vmem:[#allocation10 + $0xc8] sm:$0xff]
          %v667 = vld [vmem:[#allocation10 + $0xd0] sm:$0xff]
          %v668 = vld [vmem:[#allocation10 + $0xd8] sm:$0xff]
          %v669 = vld [vmem:[#allocation10 + $0xe0] sm:$0xff]
          %v670 = vld [vmem:[#allocation10 + $0xe8] sm:$0xff]
          %v671 = vld [vmem:[#allocation10 + $0xf0] sm:$0xff]
          %v672 = vld [vmem:[#allocation10 + $0xf8] sm:$0xff]
          %v673 = vld [vmem:[#allocation10 + $0x100] sm:$0xff]
          %v674 = vld [vmem:[#allocation10 + $0x108] sm:$0xff]
          %v675 = vld [vmem:[#allocation10 + $0x110] sm:$0xff]
          %v676 = vld [vmem:[#allocation10 + $0x118] sm:$0xff]
          %v677 = vld [vmem:[#allocation10 + $0x120] sm:$0xff]
          %v678 = vld [vmem:[#allocation10 + $0x128] sm:$0xff]
          %v679 = vld [vmem:[#allocation10 + $0x130] sm:$0xff]
          %v680 = vld [vmem:[#allocation10 + $0x138] sm:$0xff]
          %v681 = vld [vmem:[#allocation10 + $0x140] sm:$0xff]
          %v682 = vld [vmem:[#allocation10 + $0x148] sm:$0xff]
          %v683 = vld [vmem:[#allocation10 + $0x150] sm:$0xff]
          %v684 = vld [vmem:[#allocation10 + $0x158] sm:$0xff]
          %v685 = vld [vmem:[#allocation10 + $0x160] sm:$0xff]
          %v686 = vld [vmem:[#allocation10 + $0x168] sm:$0xff]
          %v687 = vld [vmem:[#allocation10 + $0x170] sm:$0xff]
          %v688 = vld [vmem:[#allocation10 + $0x178] sm:$0xff]
          %v689 = vld [vmem:[#allocation10 + $0x180] sm:$0xff]
          %v690 = vld [vmem:[#allocation10 + $0x188] sm:$0xff]
          %v691 = vld [vmem:[#allocation10 + $0x190] sm:$0xff]
          %v692 = vld [vmem:[#allocation10 + $0x198] sm:$0xff]
          %v693 = vld [vmem:[#allocation10 + $0x1a0] sm:$0xff]
          %v694 = vld [vmem:[#allocation10 + $0x1a8] sm:$0xff]
          %v695 = vld [vmem:[#allocation10 + $0x1b0] sm:$0xff]
          %v696 = vld [vmem:[#allocation10 + $0x1b8] sm:$0xff]
          %v697 = vld [vmem:[#allocation10 + $0x1c0] sm:$0xff]
          %v698 = vld [vmem:[#allocation10 + $0x1c8] sm:$0xff]
          %v699 = vld [vmem:[#allocation10 + $0x1d0] sm:$0xff]
          %v700 = vld [vmem:[#allocation10 + $0x1d8] sm:$0xff]
          %v701 = vld [vmem:[#allocation10 + $0x1e0] sm:$0xff]
          %v702 = vld [vmem:[#allocation10 + $0x1e8] sm:$0xff]
          %v703 = vld [vmem:[#allocation10 + $0x1f0] sm:$0xff]
          %v704 = vld [vmem:[#allocation10 + $0x1f8] sm:$0xff]
          %v705 = vld [vmem:[#allocation10 + $0x200] sm:$0xff]
          %v706 = vld [vmem:[#allocation10 + $0x208] sm:$0xff]
          %v707 = vld [vmem:[#allocation10 + $0x210] sm:$0xff]
          %v708 = vld [vmem:[#allocation10 + $0x218] sm:$0xff]
          %v709 = vld [vmem:[#allocation10 + $0x220] sm:$0xff]
          %v710 = vld [vmem:[#allocation10 + $0x228] sm:$0xff]
          %v711 = vld [vmem:[#allocation10 + $0x230] sm:$0xff]
          %v712 = vld [vmem:[#allocation10 + $0x238] sm:$0xff]
          %v713 = vld [vmem:[#allocation10 + $0x240] sm:$0xff]
          %v714 = vld [vmem:[#allocation10 + $0x248] sm:$0xff]
          %v715 = vld [vmem:[#allocation10 + $0x250] sm:$0xff]
          %v716 = vld [vmem:[#allocation10 + $0x258] sm:$0xff]
          %v717 = vld [vmem:[#allocation10 + $0x260] sm:$0xff]
          %v718 = vld [vmem:[#allocation10 + $0x268] sm:$0xff]
          %v719 = vld [vmem:[#allocation10 + $0x270] sm:$0xff]
          %v720 = vld [vmem:[#allocation10 + $0x278] sm:$0xff]
          %v721 = vld [vmem:[#allocation10 + $0x280] sm:$0xff]
          %v722 = vld [vmem:[#allocation10 + $0x288] sm:$0xff]
          %v723 = vld [vmem:[#allocation10 + $0x290] sm:$0xff]
          %v724 = vld [vmem:[#allocation10 + $0x298] sm:$0xff]
          %v725 = vld [vmem:[#allocation10 + $0x2a0] sm:$0xff]
          %v726 = vld [vmem:[#allocation10 + $0x2a8] sm:$0xff]
          %v727 = vld [vmem:[#allocation10 + $0x2b0] sm:$0xff]
          %v728 = vld [vmem:[#allocation10 + $0x2b8] sm:$0xff]
          %v729 = vld [vmem:[#allocation10 + $0x2c0] sm:$0xff]
          %v730 = vld [vmem:[#allocation10 + $0x2c8] sm:$0xff]
          %v731 = vld [vmem:[#allocation10 + $0x2d0] sm:$0xff]
          %v732 = vld [vmem:[#allocation10 + $0x2d8] sm:$0xff]
          %v733 = vld [vmem:[#allocation10 + $0x2e0] sm:$0xff]
          %v734 = vld [vmem:[#allocation10 + $0x2e8] sm:$0xff]
          %v735 = vld [vmem:[#allocation10 + $0x2f0] sm:$0xff]
          %v736 = vld [vmem:[#allocation10 + $0x2f8] sm:$0xff]
          %v833 = vunpack.c.l.b16 %v641
          %v834 = vunpack.c.h.b16 %v641
          %v835 = vunpack.c.l.b16 %v642
          %v836 = vunpack.c.h.b16 %v642
          %v837 = vunpack.c.l.b16 %v643
          %v838 = vunpack.c.h.b16 %v643
          %v839 = vunpack.c.l.b16 %v644
          %v840 = vunpack.c.h.b16 %v644
          %v841 = vunpack.c.l.b16 %v645
          %v842 = vunpack.c.h.b16 %v645
          %v843 = vunpack.c.l.b16 %v646
          %v844 = vunpack.c.h.b16 %v646
          %v845 = vunpack.c.l.b16 %v647
          %v846 = vunpack.c.h.b16 %v647
          %v847 = vunpack.c.l.b16 %v648
          %v848 = vunpack.c.h.b16 %v648
          %v849 = vunpack.c.l.b16 %v649
          %v850 = vunpack.c.h.b16 %v649
          %v851 = vunpack.c.l.b16 %v650
          %v852 = vunpack.c.h.b16 %v650
          %v853 = vunpack.c.l.b16 %v651
          %v854 = vunpack.c.h.b16 %v651
          %v855 = vunpack.c.l.b16 %v652
          %v856 = vunpack.c.h.b16 %v652
          %v857 = vunpack.c.l.b16 %v653
          %v858 = vunpack.c.h.b16 %v653
          %v859 = vunpack.c.l.b16 %v654
          %v860 = vunpack.c.h.b16 %v654
          %v861 = vunpack.c.l.b16 %v655
          %v862 = vunpack.c.h.b16 %v655
          %v863 = vunpack.c.l.b16 %v656
          %v864 = vunpack.c.h.b16 %v656
          %v865 = vunpack.c.l.b16 %v657
          %v866 = vunpack.c.h.b16 %v657
          %v867 = vunpack.c.l.b16 %v658
          %v868 = vunpack.c.h.b16 %v658
          %v869 = vunpack.c.l.b16 %v659
          %v870 = vunpack.c.h.b16 %v659
          %v871 = vunpack.c.l.b16 %v660
          %v872 = vunpack.c.h.b16 %v660
          %v873 = vunpack.c.l.b16 %v661
          %v874 = vunpack.c.h.b16 %v661
          %v875 = vunpack.c.l.b16 %v662
          %v876 = vunpack.c.h.b16 %v662
          %v877 = vunpack.c.l.b16 %v663
          %v878 = vunpack.c.h.b16 %v663
          %v879 = vunpack.c.l.b16 %v664
          %v880 = vunpack.c.h.b16 %v664
          %v881 = vunpack.c.l.b16 %v665
          %v882 = vunpack.c.h.b16 %v665
          %v883 = vunpack.c.l.b16 %v666
          %v884 = vunpack.c.h.b16 %v666
          %v885 = vunpack.c.l.b16 %v667
          %v886 = vunpack.c.h.b16 %v667
          %v887 = vunpack.c.l.b16 %v668
          %v888 = vunpack.c.h.b16 %v668
          %v889 = vunpack.c.l.b16 %v669
          %v890 = vunpack.c.h.b16 %v669
          %v891 = vunpack.c.l.b16 %v670
          %v892 = vunpack.c.h.b16 %v670
          %v893 = vunpack.c.l.b16 %v671
          %v894 = vunpack.c.h.b16 %v671
          %v895 = vunpack.c.l.b16 %v672
          %v896 = vunpack.c.h.b16 %v672
          %v897 = vunpack.c.l.b16 %v673
          %v898 = vunpack.c.h.b16 %v673
          %v899 = vunpack.c.l.b16 %v674
          %v900 = vunpack.c.h.b16 %v674
          %v901 = vunpack.c.l.b16 %v675
          %v902 = vunpack.c.h.b16 %v675
          %v903 = vunpack.c.l.b16 %v676
          %v904 = vunpack.c.h.b16 %v676
          %v905 = vunpack.c.l.b16 %v677
          %v906 = vunpack.c.h.b16 %v677
          %v907 = vunpack.c.l.b16 %v678
          %v908 = vunpack.c.h.b16 %v678
          %v909 = vunpack.c.l.b16 %v679
          %v910 = vunpack.c.h.b16 %v679
          %v911 = vunpack.c.l.b16 %v680
          %v912 = vunpack.c.h.b16 %v680
          %v913 = vunpack.c.l.b16 %v681
          %v914 = vunpack.c.h.b16 %v681
          %v915 = vunpack.c.l.b16 %v682
          %v916 = vunpack.c.h.b16 %v682
          %v917 = vunpack.c.l.b16 %v683
          %v918 = vunpack.c.h.b16 %v683
          %v919 = vunpack.c.l.b16 %v684
          %v920 = vunpack.c.h.b16 %v684
          %v921 = vunpack.c.l.b16 %v685
          %v922 = vunpack.c.h.b16 %v685
          %v923 = vunpack.c.l.b16 %v686
          %v924 = vunpack.c.h.b16 %v686
          %v925 = vunpack.c.l.b16 %v687
          %v926 = vunpack.c.h.b16 %v687
          %v927 = vunpack.c.l.b16 %v688
          %v928 = vunpack.c.h.b16 %v688
          %v929 = vunpack.c.l.b16 %v689
          %v930 = vunpack.c.h.b16 %v689
          %v931 = vunpack.c.l.b16 %v690
          %v932 = vunpack.c.h.b16 %v690
          %v933 = vunpack.c.l.b16 %v691
          %v934 = vunpack.c.h.b16 %v691
          %v935 = vunpack.c.l.b16 %v692
          %v936 = vunpack.c.h.b16 %v692
          %v937 = vunpack.c.l.b16 %v693
          %v938 = vunpack.c.h.b16 %v693
          %v939 = vunpack.c.l.b16 %v694
          %v940 = vunpack.c.h.b16 %v694
          %v941 = vunpack.c.l.b16 %v695
          %v942 = vunpack.c.h.b16 %v695
          %v943 = vunpack.c.l.b16 %v696
          %v944 = vunpack.c.h.b16 %v696
          %v945 = vunpack.c.l.b16 %v697
          %v946 = vunpack.c.h.b16 %v697
          %v947 = vunpack.c.l.b16 %v698
          %v948 = vunpack.c.h.b16 %v698
          %v949 = vunpack.c.l.b16 %v699
          %v950 = vunpack.c.h.b16 %v699
          %v951 = vunpack.c.l.b16 %v700
          %v952 = vunpack.c.h.b16 %v700
          %v953 = vunpack.c.l.b16 %v701
          %v954 = vunpack.c.h.b16 %v701
          %v955 = vunpack.c.l.b16 %v702
          %v956 = vunpack.c.h.b16 %v702
          %v957 = vunpack.c.l.b16 %v703
          %v958 = vunpack.c.h.b16 %v703
          %v959 = vunpack.c.l.b16 %v704
          %v960 = vunpack.c.h.b16 %v704
          %v961 = vunpack.c.l.b16 %v705
          %v962 = vunpack.c.h.b16 %v705
          %v963 = vunpack.c.l.b16 %v706
          %v964 = vunpack.c.h.b16 %v706
          %v965 = vunpack.c.l.b16 %v707
          %v966 = vunpack.c.h.b16 %v707
          %v967 = vunpack.c.l.b16 %v708
          %v968 = vunpack.c.h.b16 %v708
          %v969 = vunpack.c.l.b16 %v709
          %v970 = vunpack.c.h.b16 %v709
          %v971 = vunpack.c.l.b16 %v710
          %v972 = vunpack.c.h.b16 %v710
          %v973 = vunpack.c.l.b16 %v711
          %v974 = vunpack.c.h.b16 %v711
          %v975 = vunpack.c.l.b16 %v712
          %v976 = vunpack.c.h.b16 %v712
          %v977 = vunpack.c.l.b16 %v713
          %v978 = vunpack.c.h.b16 %v713
          %v979 = vunpack.c.l.b16 %v714
          %v980 = vunpack.c.h.b16 %v714
          %v981 = vunpack.c.l.b16 %v715
          %v982 = vunpack.c.h.b16 %v715
          %v983 = vunpack.c.l.b16 %v716
          %v984 = vunpack.c.h.b16 %v716
          %v985 = vunpack.c.l.b16 %v717
          %v986 = vunpack.c.h.b16 %v717
          %v987 = vunpack.c.l.b16 %v718
          %v988 = vunpack.c.h.b16 %v718
          %v989 = vunpack.c.l.b16 %v719
          %v990 = vunpack.c.h.b16 %v719
          %v991 = vunpack.c.l.b16 %v720
          %v992 = vunpack.c.h.b16 %v720
          %v993 = vunpack.c.l.b16 %v721
          %v994 = vunpack.c.h.b16 %v721
          %v995 = vunpack.c.l.b16 %v722
          %v996 = vunpack.c.h.b16 %v722
          %v997 = vunpack.c.l.b16 %v723
          %v998 = vunpack.c.h.b16 %v723
          %v999 = vunpack.c.l.b16 %v724
          %v1000 = vunpack.c.h.b16 %v724
          %v1001 = vunpack.c.l.b16 %v725
          %v1002 = vunpack.c.h.b16 %v725
          %v1003 = vunpack.c.l.b16 %v726
          %v1004 = vunpack.c.h.b16 %v726
          %v1005 = vunpack.c.l.b16 %v727
          %v1006 = vunpack.c.h.b16 %v727
          %v1007 = vunpack.c.l.b16 %v728
          %v1008 = vunpack.c.h.b16 %v728
          %v1009 = vunpack.c.l.b16 %v729
          %v1010 = vunpack.c.h.b16 %v729
          %v1011 = vunpack.c.l.b16 %v730
          %v1012 = vunpack.c.h.b16 %v730
          %v1013 = vunpack.c.l.b16 %v731
          %v1014 = vunpack.c.h.b16 %v731
          %v1015 = vunpack.c.l.b16 %v732
          %v1016 = vunpack.c.h.b16 %v732
          %v1017 = vunpack.c.l.b16 %v733
          %v1018 = vunpack.c.h.b16 %v733
          %v1019 = vunpack.c.l.b16 %v734
          %v1020 = vunpack.c.h.b16 %v734
          %v1021 = vunpack.c.l.b16 %v735
          %v1022 = vunpack.c.h.b16 %v735
          %v1023 = vunpack.c.l.b16 %v736
          %v1024 = vunpack.c.h.b16 %v736
          %v1025 = vpack.c.b16 %v839, %v833
          %v1026 = vpack.c.b16 %v840, %v834
          %v1027 = vpack.c.b16 %v841, %v835
          %v1028 = vpack.c.b16 %v842, %v836
          %v1029 = vpack.c.b16 %v843, %v837
          %v1030 = vpack.c.b16 %v844, %v838
          %v1031 = vpack.c.b16 %v851, %v845
          %v1032 = vpack.c.b16 %v852, %v846
          %v1033 = vpack.c.b16 %v853, %v847
          %v1034 = vpack.c.b16 %v854, %v848
          %v1035 = vpack.c.b16 %v855, %v849
          %v1036 = vpack.c.b16 %v856, %v850
          %v1037 = vpack.c.b16 %v863, %v857
          %v1038 = vpack.c.b16 %v864, %v858
          %v1039 = vpack.c.b16 %v865, %v859
          %v1040 = vpack.c.b16 %v866, %v860
          %v1041 = vpack.c.b16 %v867, %v861
          %v1042 = vpack.c.b16 %v868, %v862
          %v1043 = vpack.c.b16 %v875, %v869
          %v1044 = vpack.c.b16 %v876, %v870
          %v1045 = vpack.c.b16 %v877, %v871
          %v1046 = vpack.c.b16 %v878, %v872
          %v1047 = vpack.c.b16 %v879, %v873
          %v1048 = vpack.c.b16 %v880, %v874
          %v1049 = vpack.c.b16 %v887, %v881
          %v1050 = vpack.c.b16 %v888, %v882
          %v1051 = vpack.c.b16 %v889, %v883
          %v1052 = vpack.c.b16 %v890, %v884
          %v1053 = vpack.c.b16 %v891, %v885
          %v1054 = vpack.c.b16 %v892, %v886
          %v1055 = vpack.c.b16 %v899, %v893
          %v1056 = vpack.c.b16 %v900, %v894
          %v1057 = vpack.c.b16 %v901, %v895
          %v1058 = vpack.c.b16 %v902, %v896
          %v1059 = vpack.c.b16 %v903, %v897
          %v1060 = vpack.c.b16 %v904, %v898
          %v1061 = vpack.c.b16 %v911, %v905
          %v1062 = vpack.c.b16 %v912, %v906
          %v1063 = vpack.c.b16 %v913, %v907
          %v1064 = vpack.c.b16 %v914, %v908
          %v1065 = vpack.c.b16 %v915, %v909
          %v1066 = vpack.c.b16 %v916, %v910
          %v1067 = vpack.c.b16 %v923, %v917
          %v1068 = vpack.c.b16 %v924, %v918
          %v1069 = vpack.c.b16 %v925, %v919
          %v1070 = vpack.c.b16 %v926, %v920
          %v1071 = vpack.c.b16 %v927, %v921
          %v1072 = vpack.c.b16 %v928, %v922
          %v1073 = vpack.c.b16 %v935, %v929
          %v1074 = vpack.c.b16 %v936, %v930
          %v1075 = vpack.c.b16 %v937, %v931
          %v1076 = vpack.c.b16 %v938, %v932
          %v1077 = vpack.c.b16 %v939, %v933
          %v1078 = vpack.c.b16 %v940, %v934
          %v1079 = vpack.c.b16 %v947, %v941
          %v1080 = vpack.c.b16 %v948, %v942
          %v1081 = vpack.c.b16 %v949, %v943
          %v1082 = vpack.c.b16 %v950, %v944
          %v1083 = vpack.c.b16 %v951, %v945
          %v1084 = vpack.c.b16 %v952, %v946
          %v1085 = vpack.c.b16 %v959, %v953
          %v1086 = vpack.c.b16 %v960, %v954
          %v1087 = vpack.c.b16 %v961, %v955
          %v1088 = vpack.c.b16 %v962, %v956
          %v1089 = vpack.c.b16 %v963, %v957
          %v1090 = vpack.c.b16 %v964, %v958
          %v1091 = vpack.c.b16 %v971, %v965
          %v1092 = vpack.c.b16 %v972, %v966
          %v1093 = vpack.c.b16 %v973, %v967
          %v1094 = vpack.c.b16 %v974, %v968
          %v1095 = vpack.c.b16 %v975, %v969
          %v1096 = vpack.c.b16 %v976, %v970
          %v1097 = vpack.c.b16 %v983, %v977
          %v1098 = vpack.c.b16 %v984, %v978
          %v1099 = vpack.c.b16 %v985, %v979
          %v1100 = vpack.c.b16 %v986, %v980
          %v1101 = vpack.c.b16 %v987, %v981
          %v1102 = vpack.c.b16 %v988, %v982
          %v1103 = vpack.c.b16 %v995, %v989
          %v1104 = vpack.c.b16 %v996, %v990
          %v1105 = vpack.c.b16 %v997, %v991
          %v1106 = vpack.c.b16 %v998, %v992
          %v1107 = vpack.c.b16 %v999, %v993
          %v1108 = vpack.c.b16 %v1000, %v994
          %v1109 = vpack.c.b16 %v1007, %v1001
          %v1110 = vpack.c.b16 %v1008, %v1002
          %v1111 = vpack.c.b16 %v1009, %v1003
          %v1112 = vpack.c.b16 %v1010, %v1004
          %v1113 = vpack.c.b16 %v1011, %v1005
          %v1114 = vpack.c.b16 %v1012, %v1006
          %v1115 = vpack.c.b16 %v1019, %v1013
          %v1116 = vpack.c.b16 %v1020, %v1014
          %v1117 = vpack.c.b16 %v1021, %v1015
          %v1118 = vpack.c.b16 %v1022, %v1016
          %v1119 = vpack.c.b16 %v1023, %v1017
          %v1120 = vpack.c.b16 %v1024, %v1018
          %1217 = vmatprep.subr.bf16.mxu0 %v1068
          %1218 = vmatpush1.bf16.msra.mxu0 %v1067
          %1219 = vmatprep.subr.bf16.mxu0 %v1062
          %1220 = vmatpush1.bf16.msra.mxu0 %v1061
          %1221 = vmatprep.subr.bf16.mxu0 %v1056
          %1222 = vmatpush1.bf16.msra.mxu0 %v1055
          %1223 = vmatprep.subr.bf16.mxu0 %v1050
          %1224 = vmatpush1.bf16.msra.mxu0 %v1049
          %1225 = vmatprep.subr.bf16.mxu0 %v1044
          %1226 = vmatpush1.bf16.msra.mxu0 %v1043
          %1227 = vmatprep.subr.bf16.mxu0 %v1038
          %1228 = vmatpush1.bf16.msra.mxu0 %v1037
          %1229 = vmatprep.subr.bf16.mxu0 %v1032
          %1230 = vmatpush1.bf16.msra.mxu0 %v1031
          %1231 = vmatprep.subr.bf16.mxu0 %v1026
          %1232 = vmatpush1.bf16.msra.mxu0 %v1025
          %1233 = vmatprep.subr.bf16.mxu0 %v1116
          %1234 = vmatpush2.bf16.msra.mxu0 %v1115
          %1235 = vmatprep.subr.bf16.mxu0 %v1110
          %1236 = vmatpush2.bf16.msra.mxu0 %v1109
          %1237 = vmatprep.subr.bf16.mxu0 %v1104
          %1238 = vmatpush2.bf16.msra.mxu0 %v1103
          %1239 = vmatprep.subr.bf16.mxu0 %v1098
          %1240 = vmatpush2.bf16.msra.mxu0 %v1097
          %1241 = vmatprep.subr.bf16.mxu0 %v1092
          %1242 = vmatpush2.bf16.msra.mxu0 %v1091
          %1243 = vmatprep.subr.bf16.mxu0 %v1086
          %1244 = vmatpush2.bf16.msra.mxu0 %v1085
          %1245 = vmatprep.subr.bf16.mxu0 %v1080
          %1246 = vmatpush2.bf16.msra.mxu0 %v1079
          %1247 = vmatprep.subr.bf16.mxu0 %v1074
          %1248 = vmatpush2.bf16.msra.mxu0 %v1073
          %1249 = vmatprep.mubr.bf16.mxu0 %v640
          %1250 = vmatmul.mubr.bf16.gmra.mxu0 %v639
          %v1251 = vpop.f32.mrf.mxu0
          %v1252 = vadd.f32 0.0, %v1251
          %v1253 = vpop.f32.mrf.mxu0
          %v1254 = vadd.f32 0.0, %v1253
          %v1255 = vpop.f32.mrf.mxu0
          %v1256 = vadd.f32 0.0, %v1255
          %v1257 = vpop.f32.mrf.mxu0
          %v1258 = vadd.f32 0.0, %v1257
          %1259 = vdwg.mxu0
          %1260 = vmatprep.subr.bf16.mxu0 %v1070
          %1261 = vmatpush1.bf16.msra.mxu0 %v1069
          %1262 = vmatprep.subr.bf16.mxu0 %v1064
          %1263 = vmatpush1.bf16.msra.mxu0 %v1063
          %1264 = vmatprep.subr.bf16.mxu0 %v1058
          %1265 = vmatpush1.bf16.msra.mxu0 %v1057
          %1266 = vmatprep.subr.bf16.mxu0 %v1052
          %1267 = vmatpush1.bf16.msra.mxu0 %v1051
          %1268 = vmatprep.subr.bf16.mxu0 %v1046
          %1269 = vmatpush1.bf16.msra.mxu0 %v1045
          %1270 = vmatprep.subr.bf16.mxu0 %v1040
          %1271 = vmatpush1.bf16.msra.mxu0 %v1039
          %1272 = vmatprep.subr.bf16.mxu0 %v1034
          %1273 = vmatpush1.bf16.msra.mxu0 %v1033
          %1274 = vmatprep.subr.bf16.mxu0 %v1028
          %1275 = vmatpush1.bf16.msra.mxu0 %v1027
          %1276 = vmatprep.subr.bf16.mxu0 %v1118
          %1277 = vmatpush2.bf16.msra.mxu0 %v1117
          %1278 = vmatprep.subr.bf16.mxu0 %v1112
          %1279 = vmatpush2.bf16.msra.mxu0 %v1111
          %1280 = vmatprep.subr.bf16.mxu0 %v1106
          %1281 = vmatpush2.bf16.msra.mxu0 %v1105
          %1282 = vmatprep.subr.bf16.mxu0 %v1100
          %1283 = vmatpush2.bf16.msra.mxu0 %v1099
          %1284 = vmatprep.subr.bf16.mxu0 %v1094
          %1285 = vmatpush2.bf16.msra.mxu0 %v1093
          %1286 = vmatprep.subr.bf16.mxu0 %v1088
          %1287 = vmatpush2.bf16.msra.mxu0 %v1087
          %1288 = vmatprep.subr.bf16.mxu0 %v1082
          %1289 = vmatpush2.bf16.msra.mxu0 %v1081
          %1290 = vmatprep.subr.bf16.mxu0 %v1076
          %1291 = vmatpush2.bf16.msra.mxu0 %v1075
          %1292 = vmatprep.mubr.bf16.mxu0 %v640
          %1293 = vmatmul.mubr.bf16.gmra.mxu0 %v639
          %v1294 = vpop.f32.mrf.mxu0
          %v1295 = vadd.f32 0.0, %v1294
          %v1296 = vpop.f32.mrf.mxu0
          %v1297 = vadd.f32 0.0, %v1296
          %v1298 = vpop.f32.mrf.mxu0
          %v1299 = vadd.f32 0.0, %v1298
          %v1300 = vpop.f32.mrf.mxu0
          %v1301 = vadd.f32 0.0, %v1300
          %1302 = vdwg.mxu0
          %1303 = vmatprep.subr.bf16.mxu0 %v1072
          %1304 = vmatpush1.bf16.msra.mxu0 %v1071
          %1305 = vmatprep.subr.bf16.mxu0 %v1066
          %1306 = vmatpush1.bf16.msra.mxu0 %v1065
          %1307 = vmatprep.subr.bf16.mxu0 %v1060
          %1308 = vmatpush1.bf16.msra.mxu0 %v1059
          %1309 = vmatprep.subr.bf16.mxu0 %v1054
          %1310 = vmatpush1.bf16.msra.mxu0 %v1053
          %1311 = vmatprep.subr.bf16.mxu0 %v1048
          %1312 = vmatpush1.bf16.msra.mxu0 %v1047
          %1313 = vmatprep.subr.bf16.mxu0 %v1042
          %1314 = vmatpush1.bf16.msra.mxu0 %v1041
          %1315 = vmatprep.subr.bf16.mxu0 %v1036
          %1316 = vmatpush1.bf16.msra.mxu0 %v1035
          %1317 = vmatprep.subr.bf16.mxu0 %v1030
          %1318 = vmatpush1.bf16.msra.mxu0 %v1029
          %1319 = vmatprep.subr.bf16.mxu0 %v1120
          %1320 = vmatpush2.bf16.msra.mxu0 %v1119
          %1321 = vmatprep.subr.bf16.mxu0 %v1114
          %1322 = vmatpush2.bf16.msra.mxu0 %v1113
          %1323 = vmatprep.subr.bf16.mxu0 %v1108
          %1324 = vmatpush2.bf16.msra.mxu0 %v1107
          %1325 = vmatprep.subr.bf16.mxu0 %v1102
          %1326 = vmatpush2.bf16.msra.mxu0 %v1101
          %1327 = vmatprep.subr.bf16.mxu0 %v1096
          %1328 = vmatpush2.bf16.msra.mxu0 %v1095
          %1329 = vmatprep.subr.bf16.mxu0 %v1090
          %1330 = vmatpush2.bf16.msra.mxu0 %v1089
          %1331 = vmatprep.subr.bf16.mxu0 %v1084
          %1332 = vmatpush2.bf16.msra.mxu0 %v1083
          %1333 = vmatprep.subr.bf16.mxu0 %v1078
          %1334 = vmatpush2.bf16.msra.mxu0 %v1077
          %1335 = vmatprep.mubr.bf16.mxu0 %v640
          %1336 = vmatmul.mubr.bf16.gmra.mxu0 %v639
          %v1337 = vpop.f32.mrf.mxu0
          %v1338 = vadd.f32 0.0, %v1337
          %v1339 = vpop.f32.mrf.mxu0
          %v1340 = vadd.f32 0.0, %v1339
          %v1341 = vpop.f32.mrf.mxu0
          %v1342 = vadd.f32 0.0, %v1341
          %v1343 = vpop.f32.mrf.mxu0
          %v1344 = vadd.f32 0.0, %v1343
          %1345 = vdwg.mxu0
          %v1346 = vcombine.high %v1252, 0.0
          %v1348 = vunpack.c.l.s4 1983009808
          %v1349 = vunpack.c.0.s8 %v1348
          %v1350 = vlaneseq
          %v1351 = vshrl.u32 %v1350, 7
          %v1352 = vsub.s32 %v1349, %v1351
          %v1353 = vrot.slane %v1252, %v1352
          %v1355 = vunpack.c.l.s4 1983009808
          %v1356 = vunpack.c.0.s8 %v1355
          %v1357 = vlaneseq
          %v1358 = vshrl.u32 %v1357, 7
          %v1359 = vsub.s32 %v1356, %v1358
          %v1360 = vrot.slane %v1346, %v1359
          %v1361 = vcombine.high %v1254, 0.0
          %v1363 = vunpack.c.l.s4 1983009808
          %v1364 = vunpack.c.0.s8 %v1363
          %v1365 = vlaneseq
          %v1366 = vshrl.u32 %v1365, 7
          %v1367 = vsub.s32 %v1364, %v1366
          %v1368 = vrot.slane %v1254, %v1367
          %v1370 = vunpack.c.l.s4 1983009808
          %v1371 = vunpack.c.0.s8 %v1370
          %v1372 = vlaneseq
          %v1373 = vshrl.u32 %v1372, 7
          %v1374 = vsub.s32 %v1371, %v1373
          %v1375 = vrot.slane %v1361, %v1374
          %v1376 = vcombine.low %v1353, %v1368
          %v1377 = vcombine.high %v1353, %v1368
          %v1379 = vunpack.c.l.s4 1934713408
          %v1380 = vunpack.c.0.s8 %v1379
          %v1381 = vlaneseq
          %v1382 = vshrl.u32 %v1381, 7
          %v1383 = vsub.s32 %v1380, %v1382
          %v1384 = vrot.slane %v1376, %v1383
          %v1386 = vunpack.c.l.s4 1934713408
          %v1387 = vunpack.c.0.s8 %v1386
          %v1388 = vlaneseq
          %v1389 = vshrl.u32 %v1388, 7
          %v1390 = vsub.s32 %v1387, %v1389
          %v1391 = vrot.slane %v1377, %v1390
          %v1392 = vcombine.low %v1360, %v1375
          %v1393 = vcombine.high %v1360, %v1375
          %v1395 = vunpack.c.l.s4 1934713408
          %v1396 = vunpack.c.0.s8 %v1395
          %v1397 = vlaneseq
          %v1398 = vshrl.u32 %v1397, 7
          %v1399 = vsub.s32 %v1396, %v1398
          %v1400 = vrot.slane %v1392, %v1399
          %v1402 = vunpack.c.l.s4 1934713408
          %v1403 = vunpack.c.0.s8 %v1402
          %v1404 = vlaneseq
          %v1405 = vshrl.u32 %v1404, 7
          %v1406 = vsub.s32 %v1403, %v1405
          %v1407 = vrot.slane %v1393, %v1406
          %v1408 = vcombine.high %v1384, 0.0
          %v1409 = vcombine.high %v1391, 0.0
          %v1410 = vcombine.high %v1400, 0.0
          %v1411 = vcombine.high %v1407, 0.0
          %v1412 = vcombine.high %v1256, 0.0
          %v1414 = vunpack.c.l.s4 1983009808
          %v1415 = vunpack.c.0.s8 %v1414
          %v1416 = vlaneseq
          %v1417 = vshrl.u32 %v1416, 7
          %v1418 = vsub.s32 %v1415, %v1417
          %v1419 = vrot.slane %v1256, %v1418
          %v1421 = vunpack.c.l.s4 1983009808
          %v1422 = vunpack.c.0.s8 %v1421
          %v1423 = vlaneseq
          %v1424 = vshrl.u32 %v1423, 7
          %v1425 = vsub.s32 %v1422, %v1424
          %v1426 = vrot.slane %v1412, %v1425
          %v1427 = vcombine.high %v1258, 0.0
          %v1429 = vunpack.c.l.s4 1983009808
          %v1430 = vunpack.c.0.s8 %v1429
          %v1431 = vlaneseq
          %v1432 = vshrl.u32 %v1431, 7
          %v1433 = vsub.s32 %v1430, %v1432
          %v1434 = vrot.slane %v1258, %v1433
          %v1436 = vunpack.c.l.s4 1983009808
          %v1437 = vunpack.c.0.s8 %v1436
          %v1438 = vlaneseq
          %v1439 = vshrl.u32 %v1438, 7
          %v1440 = vsub.s32 %v1437, %v1439
          %v1441 = vrot.slane %v1427, %v1440
          %v1442 = vcombine.low %v1419, %v1434
          %v1443 = vcombine.high %v1419, %v1434
          %v1445 = vunpack.c.l.s4 1934713408
          %v1446 = vunpack.c.0.s8 %v1445
          %v1447 = vlaneseq
          %v1448 = vshrl.u32 %v1447, 7
          %v1449 = vsub.s32 %v1446, %v1448
          %v1450 = vrot.slane %v1442, %v1449
          %v1452 = vunpack.c.l.s4 1934713408
          %v1453 = vunpack.c.0.s8 %v1452
          %v1454 = vlaneseq
          %v1455 = vshrl.u32 %v1454, 7
          %v1456 = vsub.s32 %v1453, %v1455
          %v1457 = vrot.slane %v1443, %v1456
          %v1458 = vcombine.low %v1426, %v1441
          %v1459 = vcombine.high %v1426, %v1441
          %v1461 = vunpack.c.l.s4 1934713408
          %v1462 = vunpack.c.0.s8 %v1461
          %v1463 = vlaneseq
          %v1464 = vshrl.u32 %v1463, 7
          %v1465 = vsub.s32 %v1462, %v1464
          %v1466 = vrot.slane %v1458, %v1465
          %v1468 = vunpack.c.l.s4 1934713408
          %v1469 = vunpack.c.0.s8 %v1468
          %v1470 = vlaneseq
          %v1471 = vshrl.u32 %v1470, 7
          %v1472 = vsub.s32 %v1469, %v1471
          %v1473 = vrot.slane %v1459, %v1472
          %v1474 = vcombine.high %v1450, 0.0
          %v1475 = vcombine.high %v1457, 0.0
          %v1476 = vcombine.high %v1466, 0.0
          %v1477 = vcombine.high %v1473, 0.0
          %v1478 = vcombine.low %v1384, %v1391
          %v1480 = vunpack.c.l.s4 1983009808
          %v1481 = vunpack.c.0.s8 %v1480
          %v1482 = vlaneseq
          %v1483 = vshrl.u32 %v1482, 7
          %v1484 = vsub.s32 %v1481, %v1483
          %v1485 = vrot.slane %v1478, %v1484
          %v1486 = vcombine.low %v1408, %v1409
          %v1488 = vunpack.c.l.s4 1983009808
          %v1489 = vunpack.c.0.s8 %v1488
          %v1490 = vlaneseq
          %v1491 = vshrl.u32 %v1490, 7
          %v1492 = vsub.s32 %v1489, %v1491
          %v1493 = vrot.slane %v1486, %v1492
          %v1494 = vcombine.low %v1400, %v1407
          %v1496 = vunpack.c.l.s4 1983009808
          %v1497 = vunpack.c.0.s8 %v1496
          %v1498 = vlaneseq
          %v1499 = vshrl.u32 %v1498, 7
          %v1500 = vsub.s32 %v1497, %v1499
          %v1501 = vrot.slane %v1494, %v1500
          %v1502 = vcombine.low %v1410, %v1411
          %v1504 = vunpack.c.l.s4 1983009808
          %v1505 = vunpack.c.0.s8 %v1504
          %v1506 = vlaneseq
          %v1507 = vshrl.u32 %v1506, 7
          %v1508 = vsub.s32 %v1505, %v1507
          %v1509 = vrot.slane %v1502, %v1508
          %v1510 = vcombine.low %v1485, %v1493
          %v1512 = vunpack.c.l.s4 1934713408
          %v1513 = vunpack.c.0.s8 %v1512
          %v1514 = vlaneseq
          %v1515 = vshrl.u32 %v1514, 7
          %v1516 = vsub.s32 %v1513, %v1515
          %v1517 = vrot.slane %v1510, %v1516
          %v1518 = vcombine.low %v1501, %v1509
          %v1520 = vunpack.c.l.s4 1934713408
          %v1521 = vunpack.c.0.s8 %v1520
          %v1522 = vlaneseq
          %v1523 = vshrl.u32 %v1522, 7
          %v1524 = vsub.s32 %v1521, %v1523
          %v1525 = vrot.slane %v1518, %v1524
          %v1526 = vcombine.low %v1517, %v1525
          %v1527 = vcombine.high %v1517, %v1525
          %v1528 = vcombine.low %v1450, %v1457
          %v1530 = vunpack.c.l.s4 1983009808
          %v1531 = vunpack.c.0.s8 %v1530
          %v1532 = vlaneseq
          %v1533 = vshrl.u32 %v1532, 7
          %v1534 = vsub.s32 %v1531, %v1533
          %v1535 = vrot.slane %v1528, %v1534
          %v1536 = vcombine.low %v1474, %v1475
          %v1538 = vunpack.c.l.s4 1983009808
          %v1539 = vunpack.c.0.s8 %v1538
          %v1540 = vlaneseq
          %v1541 = vshrl.u32 %v1540, 7
          %v1542 = vsub.s32 %v1539, %v1541
          %v1543 = vrot.slane %v1536, %v1542
          %v1544 = vcombine.low %v1466, %v1473
          %v1546 = vunpack.c.l.s4 1983009808
          %v1547 = vunpack.c.0.s8 %v1546
          %v1548 = vlaneseq
          %v1549 = vshrl.u32 %v1548, 7
          %v1550 = vsub.s32 %v1547, %v1549
          %v1551 = vrot.slane %v1544, %v1550
          %v1552 = vcombine.low %v1476, %v1477
          %v1554 = vunpack.c.l.s4 1983009808
          %v1555 = vunpack.c.0.s8 %v1554
          %v1556 = vlaneseq
          %v1557 = vshrl.u32 %v1556, 7
          %v1558 = vsub.s32 %v1555, %v1557
          %v1559 = vrot.slane %v1552, %v1558
          %v1560 = vcombine.low %v1535, %v1543
          %v1562 = vunpack.c.l.s4 1934713408
          %v1563 = vunpack.c.0.s8 %v1562
          %v1564 = vlaneseq
          %v1565 = vshrl.u32 %v1564, 7
          %v1566 = vsub.s32 %v1563, %v1565
          %v1567 = vrot.slane %v1560, %v1566
          %v1568 = vcombine.low %v1551, %v1559
          %v1570 = vunpack.c.l.s4 1934713408
          %v1571 = vunpack.c.0.s8 %v1570
          %v1572 = vlaneseq
          %v1573 = vshrl.u32 %v1572, 7
          %v1574 = vsub.s32 %v1571, %v1573
          %v1575 = vrot.slane %v1568, %v1574
          %v1576 = vcombine.low %v1567, %v1575
          %v1577 = vcombine.high %v1567, %v1575
          %v1578 = vmul.f32 %v1526, 0.088388346
          %v1579 = vmul.f32 %v1576, 0.088388346
          %v1580 = vmul.f32 %v1527, 0.088388346
          %v1581 = vmul.f32 %v1577, 0.088388346
          %v1582 = vpack.c.bf16 %v1579, %v1578
          %v1583 = vpack.c.bf16 %v1581, %v1580
          %v1586 = vunpack.c.l.b16 %v1582
          %v1587 = vunpack.c.h.b16 %v1582
          %v1588 = vunpack.c.l.b16 %v1583
          %v1589 = vunpack.c.h.b16 %v1583
          %v1590 = vpack.c.b16 %v1586, %v1586
          %v1591 = vpack.c.b16 %v1587, %v1587
          %v1592 = vpack.c.b16 %v1588, %v1588
          %v1593 = vpack.c.b16 %v1589, %v1589
          %1598 = vst [vmem:[#allocation2] sm:$0xf] %v1590
          %1599 = vst [vmem:[#allocation2 + $0x4] sm:$0xf] %v1591
          %1600 = vst [vmem:[#allocation2 + $0x8] sm:$0xf] %v1592
          %1601 = vst [vmem:[#allocation2 + $0xc] sm:$0xf] %v1593
          %v1602 = vcombine.high %v1295, 0.0
          %v1604 = vunpack.c.l.s4 1983009808
          %v1605 = vunpack.c.0.s8 %v1604
          %v1606 = vlaneseq
          %v1607 = vshrl.u32 %v1606, 7
          %v1608 = vsub.s32 %v1605, %v1607
          %v1609 = vrot.slane %v1295, %v1608
          %v1611 = vunpack.c.l.s4 1983009808
          %v1612 = vunpack.c.0.s8 %v1611
          %v1613 = vlaneseq
          %v1614 = vshrl.u32 %v1613, 7
          %v1615 = vsub.s32 %v1612, %v1614
          %v1616 = vrot.slane %v1602, %v1615
          %v1617 = vcombine.high %v1297, 0.0
          %v1619 = vunpack.c.l.s4 1983009808
          %v1620 = vunpack.c.0.s8 %v1619
          %v1621 = vlaneseq
          %v1622 = vshrl.u32 %v1621, 7
          %v1623 = vsub.s32 %v1620, %v1622
          %v1624 = vrot.slane %v1297, %v1623
          %v1626 = vunpack.c.l.s4 1983009808
          %v1627 = vunpack.c.0.s8 %v1626
          %v1628 = vlaneseq
          %v1629 = vshrl.u32 %v1628, 7
          %v1630 = vsub.s32 %v1627, %v1629
          %v1631 = vrot.slane %v1617, %v1630
          %v1632 = vcombine.low %v1609, %v1624
          %v1633 = vcombine.high %v1609, %v1624
          %v1635 = vunpack.c.l.s4 1934713408
          %v1636 = vunpack.c.0.s8 %v1635
          %v1637 = vlaneseq
          %v1638 = vshrl.u32 %v1637, 7
          %v1639 = vsub.s32 %v1636, %v1638
          %v1640 = vrot.slane %v1632, %v1639
          %v1642 = vunpack.c.l.s4 1934713408
          %v1643 = vunpack.c.0.s8 %v1642
          %v1644 = vlaneseq
          %v1645 = vshrl.u32 %v1644, 7
          %v1646 = vsub.s32 %v1643, %v1645
          %v1647 = vrot.slane %v1633, %v1646
          %v1648 = vcombine.low %v1616, %v1631
          %v1649 = vcombine.high %v1616, %v1631
          %v1651 = vunpack.c.l.s4 1934713408
          %v1652 = vunpack.c.0.s8 %v1651
          %v1653 = vlaneseq
          %v1654 = vshrl.u32 %v1653, 7
          %v1655 = vsub.s32 %v1652, %v1654
          %v1656 = vrot.slane %v1648, %v1655
          %v1658 = vunpack.c.l.s4 1934713408
          %v1659 = vunpack.c.0.s8 %v1658
          %v1660 = vlaneseq
          %v1661 = vshrl.u32 %v1660, 7
          %v1662 = vsub.s32 %v1659, %v1661
          %v1663 = vrot.slane %v1649, %v1662
          %v1664 = vcombine.high %v1640, 0.0
          %v1665 = vcombine.high %v1647, 0.0
          %v1666 = vcombine.high %v1656, 0.0
          %v1667 = vcombine.high %v1663, 0.0
          %v1668 = vcombine.high %v1299, 0.0
          %v1670 = vunpack.c.l.s4 1983009808
          %v1671 = vunpack.c.0.s8 %v1670
          %v1672 = vlaneseq
          %v1673 = vshrl.u32 %v1672, 7
          %v1674 = vsub.s32 %v1671, %v1673
          %v1675 = vrot.slane %v1299, %v1674
          %v1677 = vunpack.c.l.s4 1983009808
          %v1678 = vunpack.c.0.s8 %v1677
          %v1679 = vlaneseq
          %v1680 = vshrl.u32 %v1679, 7
          %v1681 = vsub.s32 %v1678, %v1680
          %v1682 = vrot.slane %v1668, %v1681
          %v1683 = vcombine.high %v1301, 0.0
          %v1685 = vunpack.c.l.s4 1983009808
          %v1686 = vunpack.c.0.s8 %v1685
          %v1687 = vlaneseq
          %v1688 = vshrl.u32 %v1687, 7
          %v1689 = vsub.s32 %v1686, %v1688
          %v1690 = vrot.slane %v1301, %v1689
          %v1692 = vunpack.c.l.s4 1983009808
          %v1693 = vunpack.c.0.s8 %v1692
          %v1694 = vlaneseq
          %v1695 = vshrl.u32 %v1694, 7
          %v1696 = vsub.s32 %v1693, %v1695
          %v1697 = vrot.slane %v1683, %v1696
          %v1698 = vcombine.low %v1675, %v1690
          %v1699 = vcombine.high %v1675, %v1690
          %v1701 = vunpack.c.l.s4 1934713408
          %v1702 = vunpack.c.0.s8 %v1701
          %v1703 = vlaneseq
          %v1704 = vshrl.u32 %v1703, 7
          %v1705 = vsub.s32 %v1702, %v1704
          %v1706 = vrot.slane %v1698, %v1705
          %v1708 = vunpack.c.l.s4 1934713408
          %v1709 = vunpack.c.0.s8 %v1708
          %v1710 = vlaneseq
          %v1711 = vshrl.u32 %v1710, 7
          %v1712 = vsub.s32 %v1709, %v1711
          %v1713 = vrot.slane %v1699, %v1712
          %v1714 = vcombine.low %v1682, %v1697
          %v1715 = vcombine.high %v1682, %v1697
          %v1717 = vunpack.c.l.s4 1934713408
          %v1718 = vunpack.c.0.s8 %v1717
          %v1719 = vlaneseq
          %v1720 = vshrl.u32 %v1719, 7
          %v1721 = vsub.s32 %v1718, %v1720
          %v1722 = vrot.slane %v1714, %v1721
          %v1724 = vunpack.c.l.s4 1934713408
          %v1725 = vunpack.c.0.s8 %v1724
          %v1726 = vlaneseq
          %v1727 = vshrl.u32 %v1726, 7
          %v1728 = vsub.s32 %v1725, %v1727
          %v1729 = vrot.slane %v1715, %v1728
          %v1730 = vcombine.high %v1706, 0.0
          %v1731 = vcombine.high %v1713, 0.0
          %v1732 = vcombine.high %v1722, 0.0
          %v1733 = vcombine.high %v1729, 0.0
          %v1734 = vcombine.low %v1640, %v1647
          %v1736 = vunpack.c.l.s4 1983009808
          %v1737 = vunpack.c.0.s8 %v1736
          %v1738 = vlaneseq
          %v1739 = vshrl.u32 %v1738, 7
          %v1740 = vsub.s32 %v1737, %v1739
          %v1741 = vrot.slane %v1734, %v1740
          %v1742 = vcombine.low %v1664, %v1665
          %v1744 = vunpack.c.l.s4 1983009808
          %v1745 = vunpack.c.0.s8 %v1744
          %v1746 = vlaneseq
          %v1747 = vshrl.u32 %v1746, 7
          %v1748 = vsub.s32 %v1745, %v1747
          %v1749 = vrot.slane %v1742, %v1748
          %v1750 = vcombine.low %v1656, %v1663
          %v1752 = vunpack.c.l.s4 1983009808
          %v1753 = vunpack.c.0.s8 %v1752
          %v1754 = vlaneseq
          %v1755 = vshrl.u32 %v1754, 7
          %v1756 = vsub.s32 %v1753, %v1755
          %v1757 = vrot.slane %v1750, %v1756
          %v1758 = vcombine.low %v1666, %v1667
          %v1760 = vunpack.c.l.s4 1983009808
          %v1761 = vunpack.c.0.s8 %v1760
          %v1762 = vlaneseq
          %v1763 = vshrl.u32 %v1762, 7
          %v1764 = vsub.s32 %v1761, %v1763
          %v1765 = vrot.slane %v1758, %v1764
          %v1766 = vcombine.low %v1741, %v1749
          %v1768 = vunpack.c.l.s4 1934713408
          %v1769 = vunpack.c.0.s8 %v1768
          %v1770 = vlaneseq
          %v1771 = vshrl.u32 %v1770, 7
          %v1772 = vsub.s32 %v1769, %v1771
          %v1773 = vrot.slane %v1766, %v1772
          %v1774 = vcombine.low %v1757, %v1765
          %v1776 = vunpack.c.l.s4 1934713408
          %v1777 = vunpack.c.0.s8 %v1776
          %v1778 = vlaneseq
          %v1779 = vshrl.u32 %v1778, 7
          %v1780 = vsub.s32 %v1777, %v1779
          %v1781 = vrot.slane %v1774, %v1780
          %v1782 = vcombine.low %v1773, %v1781
          %v1783 = vcombine.high %v1773, %v1781
          %v1784 = vcombine.low %v1706, %v1713
          %v1786 = vunpack.c.l.s4 1983009808
          %v1787 = vunpack.c.0.s8 %v1786
          %v1788 = vlaneseq
          %v1789 = vshrl.u32 %v1788, 7
          %v1790 = vsub.s32 %v1787, %v1789
          %v1791 = vrot.slane %v1784, %v1790
          %v1792 = vcombine.low %v1730, %v1731
          %v1794 = vunpack.c.l.s4 1983009808
          %v1795 = vunpack.c.0.s8 %v1794
          %v1796 = vlaneseq
          %v1797 = vshrl.u32 %v1796, 7
          %v1798 = vsub.s32 %v1795, %v1797
          %v1799 = vrot.slane %v1792, %v1798
          %v1800 = vcombine.low %v1722, %v1729
          %v1802 = vunpack.c.l.s4 1983009808
          %v1803 = vunpack.c.0.s8 %v1802
          %v1804 = vlaneseq
          %v1805 = vshrl.u32 %v1804, 7
          %v1806 = vsub.s32 %v1803, %v1805
          %v1807 = vrot.slane %v1800, %v1806
          %v1808 = vcombine.low %v1732, %v1733
          %v1810 = vunpack.c.l.s4 1983009808
          %v1811 = vunpack.c.0.s8 %v1810
          %v1812 = vlaneseq
          %v1813 = vshrl.u32 %v1812, 7
          %v1814 = vsub.s32 %v1811, %v1813
          %v1815 = vrot.slane %v1808, %v1814
          %v1816 = vcombine.low %v1791, %v1799
          %v1818 = vunpack.c.l.s4 1934713408
          %v1819 = vunpack.c.0.s8 %v1818
          %v1820 = vlaneseq
          %v1821 = vshrl.u32 %v1820, 7
          %v1822 = vsub.s32 %v1819, %v1821
          %v1823 = vrot.slane %v1816, %v1822
          %v1824 = vcombine.low %v1807, %v1815
          %v1826 = vunpack.c.l.s4 1934713408
          %v1827 = vunpack.c.0.s8 %v1826
          %v1828 = vlaneseq
          %v1829 = vshrl.u32 %v1828, 7
          %v1830 = vsub.s32 %v1827, %v1829
          %v1831 = vrot.slane %v1824, %v1830
          %v1832 = vcombine.low %v1823, %v1831
          %v1833 = vcombine.high %v1823, %v1831
          %v1834 = vpack.c.bf16 %v1832, %v1782
          %v1835 = vpack.c.bf16 %v1833, %v1783
          %v1838 = vunpack.c.l.b16 %v1834
          %v1839 = vunpack.c.h.b16 %v1834
          %v1840 = vunpack.c.l.b16 %v1835
          %v1841 = vunpack.c.h.b16 %v1835
          %v1842 = vpack.c.b16 %v1838, %v1838
          %v1843 = vpack.c.b16 %v1839, %v1839
          %v1844 = vpack.c.b16 %v1840, %v1840
          %v1845 = vpack.c.b16 %v1841, %v1841
          %1850 = vst [vmem:[#allocation3] sm:$0xf] %v1842
          %1851 = vst [vmem:[#allocation3 + $0x4] sm:$0xf] %v1843
          %1852 = vst [vmem:[#allocation3 + $0x8] sm:$0xf] %v1844
          %1853 = vst [vmem:[#allocation3 + $0xc] sm:$0xf] %v1845
          %v1854 = vcombine.high %v1338, 0.0
          %v1856 = vunpack.c.l.s4 1983009808
          %v1857 = vunpack.c.0.s8 %v1856
          %v1858 = vlaneseq
          %v1859 = vshrl.u32 %v1858, 7
          %v1860 = vsub.s32 %v1857, %v1859
          %v1861 = vrot.slane %v1338, %v1860
          %v1863 = vunpack.c.l.s4 1983009808
          %v1864 = vunpack.c.0.s8 %v1863
          %v1865 = vlaneseq
          %v1866 = vshrl.u32 %v1865, 7
          %v1867 = vsub.s32 %v1864, %v1866
          %v1868 = vrot.slane %v1854, %v1867
          %v1869 = vcombine.high %v1340, 0.0
          %v1871 = vunpack.c.l.s4 1983009808
          %v1872 = vunpack.c.0.s8 %v1871
          %v1873 = vlaneseq
          %v1874 = vshrl.u32 %v1873, 7
          %v1875 = vsub.s32 %v1872, %v1874
          %v1876 = vrot.slane %v1340, %v1875
          %v1878 = vunpack.c.l.s4 1983009808
          %v1879 = vunpack.c.0.s8 %v1878
          %v1880 = vlaneseq
          %v1881 = vshrl.u32 %v1880, 7
          %v1882 = vsub.s32 %v1879, %v1881
          %v1883 = vrot.slane %v1869, %v1882
          %v1884 = vcombine.low %v1861, %v1876
          %v1885 = vcombine.high %v1861, %v1876
          %v1887 = vunpack.c.l.s4 1934713408
          %v1888 = vunpack.c.0.s8 %v1887
          %v1889 = vlaneseq
          %v1890 = vshrl.u32 %v1889, 7
          %v1891 = vsub.s32 %v1888, %v1890
          %v1892 = vrot.slane %v1884, %v1891
          %v1894 = vunpack.c.l.s4 1934713408
          %v1895 = vunpack.c.0.s8 %v1894
          %v1896 = vlaneseq
          %v1897 = vshrl.u32 %v1896, 7
          %v1898 = vsub.s32 %v1895, %v1897
          %v1899 = vrot.slane %v1885, %v1898
          %v1900 = vcombine.low %v1868, %v1883
          %v1901 = vcombine.high %v1868, %v1883
          %v1903 = vunpack.c.l.s4 1934713408
          %v1904 = vunpack.c.0.s8 %v1903
          %v1905 = vlaneseq
          %v1906 = vshrl.u32 %v1905, 7
          %v1907 = vsub.s32 %v1904, %v1906
          %v1908 = vrot.slane %v1900, %v1907
          %v1910 = vunpack.c.l.s4 1934713408
          %v1911 = vunpack.c.0.s8 %v1910
          %v1912 = vlaneseq
          %v1913 = vshrl.u32 %v1912, 7
          %v1914 = vsub.s32 %v1911, %v1913
          %v1915 = vrot.slane %v1901, %v1914
          %v1916 = vcombine.high %v1892, 0.0
          %v1917 = vcombine.high %v1899, 0.0
          %v1918 = vcombine.high %v1908, 0.0
          %v1919 = vcombine.high %v1915, 0.0
          %v1920 = vcombine.high %v1342, 0.0
          %v1922 = vunpack.c.l.s4 1983009808
          %v1923 = vunpack.c.0.s8 %v1922
          %v1924 = vlaneseq
          %v1925 = vshrl.u32 %v1924, 7
          %v1926 = vsub.s32 %v1923, %v1925
          %v1927 = vrot.slane %v1342, %v1926
          %v1929 = vunpack.c.l.s4 1983009808
          %v1930 = vunpack.c.0.s8 %v1929
          %v1931 = vlaneseq
          %v1932 = vshrl.u32 %v1931, 7
          %v1933 = vsub.s32 %v1930, %v1932
          %v1934 = vrot.slane %v1920, %v1933
          %v1935 = vcombine.high %v1344, 0.0
          %v1937 = vunpack.c.l.s4 1983009808
          %v1938 = vunpack.c.0.s8 %v1937
          %v1939 = vlaneseq
          %v1940 = vshrl.u32 %v1939, 7
          %v1941 = vsub.s32 %v1938, %v1940
          %v1942 = vrot.slane %v1344, %v1941
          %v1944 = vunpack.c.l.s4 1983009808
          %v1945 = vunpack.c.0.s8 %v1944
          %v1946 = vlaneseq
          %v1947 = vshrl.u32 %v1946, 7
          %v1948 = vsub.s32 %v1945, %v1947
          %v1949 = vrot.slane %v1935, %v1948
          %v1950 = vcombine.low %v1927, %v1942
          %v1951 = vcombine.high %v1927, %v1942
          %v1953 = vunpack.c.l.s4 1934713408
          %v1954 = vunpack.c.0.s8 %v1953
          %v1955 = vlaneseq
          %v1956 = vshrl.u32 %v1955, 7
          %v1957 = vsub.s32 %v1954, %v1956
          %v1958 = vrot.slane %v1950, %v1957
          %v1960 = vunpack.c.l.s4 1934713408
          %v1961 = vunpack.c.0.s8 %v1960
          %v1962 = vlaneseq
          %v1963 = vshrl.u32 %v1962, 7
          %v1964 = vsub.s32 %v1961, %v1963
          %v1965 = vrot.slane %v1951, %v1964
          %v1966 = vcombine.low %v1934, %v1949
          %v1967 = vcombine.high %v1934, %v1949
          %v1969 = vunpack.c.l.s4 1934713408
          %v1970 = vunpack.c.0.s8 %v1969
          %v1971 = vlaneseq
          %v1972 = vshrl.u32 %v1971, 7
          %v1973 = vsub.s32 %v1970, %v1972
          %v1974 = vrot.slane %v1966, %v1973
          %v1976 = vunpack.c.l.s4 1934713408
          %v1977 = vunpack.c.0.s8 %v1976
          %v1978 = vlaneseq
          %v1979 = vshrl.u32 %v1978, 7
          %v1980 = vsub.s32 %v1977, %v1979
          %v1981 = vrot.slane %v1967, %v1980
          %v1982 = vcombine.high %v1958, 0.0
          %v1983 = vcombine.high %v1965, 0.0
          %v1984 = vcombine.high %v1974, 0.0
          %v1985 = vcombine.high %v1981, 0.0
          %v1986 = vcombine.low %v1892, %v1899
          %v1988 = vunpack.c.l.s4 1983009808
          %v1989 = vunpack.c.0.s8 %v1988
          %v1990 = vlaneseq
          %v1991 = vshrl.u32 %v1990, 7
          %v1992 = vsub.s32 %v1989, %v1991
          %v1993 = vrot.slane %v1986, %v1992
          %v1994 = vcombine.low %v1916, %v1917
          %v1996 = vunpack.c.l.s4 1983009808
          %v1997 = vunpack.c.0.s8 %v1996
          %v1998 = vlaneseq
          %v1999 = vshrl.u32 %v1998, 7
          %v2000 = vsub.s32 %v1997, %v1999
          %v2001 = vrot.slane %v1994, %v2000
          %v2002 = vcombine.low %v1908, %v1915
          %v2004 = vunpack.c.l.s4 1983009808
          %v2005 = vunpack.c.0.s8 %v2004
          %v2006 = vlaneseq
          %v2007 = vshrl.u32 %v2006, 7
          %v2008 = vsub.s32 %v2005, %v2007
          %v2009 = vrot.slane %v2002, %v2008
          %v2010 = vcombine.low %v1918, %v1919
          %v2012 = vunpack.c.l.s4 1983009808
          %v2013 = vunpack.c.0.s8 %v2012
          %v2014 = vlaneseq
          %v2015 = vshrl.u32 %v2014, 7
          %v2016 = vsub.s32 %v2013, %v2015
          %v2017 = vrot.slane %v2010, %v2016
          %v2018 = vcombine.low %v1993, %v2001
          %v2020 = vunpack.c.l.s4 1934713408
          %v2021 = vunpack.c.0.s8 %v2020
          %v2022 = vlaneseq
          %v2023 = vshrl.u32 %v2022, 7
          %v2024 = vsub.s32 %v2021, %v2023
          %v2025 = vrot.slane %v2018, %v2024
          %v2026 = vcombine.low %v2009, %v2017
          %v2028 = vunpack.c.l.s4 1934713408
          %v2029 = vunpack.c.0.s8 %v2028
          %v2030 = vlaneseq
          %v2031 = vshrl.u32 %v2030, 7
          %v2032 = vsub.s32 %v2029, %v2031
          %v2033 = vrot.slane %v2026, %v2032
          %v2034 = vcombine.low %v2025, %v2033
          %v2035 = vcombine.high %v2025, %v2033
          %v2036 = vcombine.low %v1958, %v1965
          %v2038 = vunpack.c.l.s4 1983009808
          %v2039 = vunpack.c.0.s8 %v2038
          %v2040 = vlaneseq
          %v2041 = vshrl.u32 %v2040, 7
          %v2042 = vsub.s32 %v2039, %v2041
          %v2043 = vrot.slane %v2036, %v2042
          %v2044 = vcombine.low %v1982, %v1983
          %v2046 = vunpack.c.l.s4 1983009808
          %v2047 = vunpack.c.0.s8 %v2046
          %v2048 = vlaneseq
          %v2049 = vshrl.u32 %v2048, 7
          %v2050 = vsub.s32 %v2047, %v2049
          %v2051 = vrot.slane %v2044, %v2050
          %v2052 = vcombine.low %v1974, %v1981
          %v2054 = vunpack.c.l.s4 1983009808
          %v2055 = vunpack.c.0.s8 %v2054
          %v2056 = vlaneseq
          %v2057 = vshrl.u32 %v2056, 7
          %v2058 = vsub.s32 %v2055, %v2057
          %v2059 = vrot.slane %v2052, %v2058
          %v2060 = vcombine.low %v1984, %v1985
          %v2062 = vunpack.c.l.s4 1983009808
          %v2063 = vunpack.c.0.s8 %v2062
          %v2064 = vlaneseq
          %v2065 = vshrl.u32 %v2064, 7
          %v2066 = vsub.s32 %v2063, %v2065
          %v2067 = vrot.slane %v2060, %v2066
          %v2068 = vcombine.low %v2043, %v2051
          %v2070 = vunpack.c.l.s4 1934713408
          %v2071 = vunpack.c.0.s8 %v2070
          %v2072 = vlaneseq
          %v2073 = vshrl.u32 %v2072, 7
          %v2074 = vsub.s32 %v2071, %v2073
          %v2075 = vrot.slane %v2068, %v2074
          %v2076 = vcombine.low %v2059, %v2067
          %v2078 = vunpack.c.l.s4 1934713408
          %v2079 = vunpack.c.0.s8 %v2078
          %v2080 = vlaneseq
          %v2081 = vshrl.u32 %v2080, 7
          %v2082 = vsub.s32 %v2079, %v2081
          %v2083 = vrot.slane %v2076, %v2082
          %v2084 = vcombine.low %v2075, %v2083
          %v2085 = vcombine.high %v2075, %v2083
          %v2086 = vpack.c.bf16 %v2084, %v2034
          %v2087 = vpack.c.bf16 %v2085, %v2035
          %v2090 = vunpack.c.l.b16 %v2086
          %v2091 = vunpack.c.h.b16 %v2086
          %v2092 = vunpack.c.l.b16 %v2087
          %v2093 = vunpack.c.h.b16 %v2087
          %v2094 = vpack.c.b16 %v2090, %v2090
          %v2095 = vpack.c.b16 %v2091, %v2091
          %v2096 = vpack.c.b16 %v2092, %v2092
          %v2097 = vpack.c.b16 %v2093, %v2093
          %2102 = vst [vmem:[#allocation4] sm:$0xf] %v2094
          %2103 = vst [vmem:[#allocation4 + $0x4] sm:$0xf] %v2095
          %2104 = vst [vmem:[#allocation4 + $0x8] sm:$0xf] %v2096
          %2105 = vst [vmem:[#allocation4 + $0xc] sm:$0xf] %v2097
        $region100: #{tpu_custom_call.1} parent=71 // pred_fallthru
          _
        %s2106 = smul.u32 %s40, 8
        %s2107 = sshra.s32 %s2106, 3
        %s2108 = sand.u32 %s2106, 7
        %s2109 = smul.u32 %s2107, 2
        %s2110 = smul.addr %s2109, 8
        %s2111 = scalar_lea.vmem %s494, %s2110 [#allocation5]
        %v2112 = vld [vmem:[%s2111] sm:$0xff]
        %v2113 = vld [vmem:[%s2111 + $0x8] sm:$0xff]
        %s2114 = smul.addr %s2107, 4
        %s2115 = scalar_lea.vmem [#allocation2], %s2114
        %v2116 = vld [vmem:[%s2115] sm:$0xf]
        %v2117 = vld [vmem:[%s2115 + $0x8] sm:$0xf]
        %v2118 = vld [vmem:[#allocation3] sm:$0xf]
        %v2119 = vld [vmem:[#allocation3 + $0x4] sm:$0xf]
        %v2120 = vld [vmem:[#allocation3 + $0x8] sm:$0xf]
        %v2121 = vld [vmem:[#allocation3 + $0xc] sm:$0xf]
        %v2122 = vunpack.c.l.bf16 %v2116
        %v2123 = vunpack.c.l.bf16 %v2117
        %2124 = vadd.xlane.f32.xlu0 %v2122
        %v2125 = vpop.xlane.xlu0 %2124
        %2126 = vadd.xlane.f32.xlu0 %v2123
        %v2127 = vpop.xlane.xlu0 %2126
        %v2128 = vld [vmem:[%s502] sm:$0x1]
        %v2130 = vlaneseq
        %v2131 = vshrl.u32 %v2130, 7
        %v2132 = vsub.s32 0, %v2131
        %v2133 = vrot.slane %v2128, %v2132
        %v2135 = vmul.f32 %v2125, %v2133
        %v2136 = vmul.f32 %v2127, %v2133
        %v2139 = vunpack.c.l.b16 %v2118
        %v2140 = vunpack.c.l.b16 %v2119
        %v2141 = vpack.c.b16 %v2140, %v2139
        %2143 = vmatprep.subr.bf16.mxu0 0
        %2144 = vmatpush1.bf16.xpose.msra.mxu0 0
        %2145 = vmatprep.subr.bf16.mxu0 0
        %2146 = vmatpush1.bf16.xpose.msra.mxu0 0
        %2147 = vmatprep.subr.bf16.mxu0 0
        %2148 = vmatpush1.bf16.xpose.msra.mxu0 0
        %2149 = vmatprep.subr.bf16.mxu0 0
        %2150 = vmatpush1.bf16.xpose.msra.mxu0 0
        %2151 = vmatprep.subr.bf16.mxu0 0
        %2152 = vmatpush1.bf16.xpose.msra.mxu0 0
        %2153 = vmatprep.subr.bf16.mxu0 0
        %2154 = vmatpush1.bf16.xpose.msra.mxu0 0
        %2155 = vmatprep.subr.bf16.mxu0 0
        %2156 = vmatpush1.bf16.xpose.msra.mxu0 0
        %2157 = vmatprep.subr.bf16.mxu0 0
        %2158 = vmatpush1.bf16.xpose.msra.mxu0 %v2141
        %2159 = vmatprep.subr.bf16.mxu0 0
        %2160 = vmatpush2.bf16.xpose.msra.mxu0 0
        %2161 = vmatprep.subr.bf16.mxu0 0
        %2162 = vmatpush2.bf16.xpose.msra.mxu0 0
        %2163 = vmatprep.subr.bf16.mxu0 0
        %2164 = vmatpush2.bf16.xpose.msra.mxu0 0
        %2165 = vmatprep.subr.bf16.mxu0 0
        %2166 = vmatpush2.bf16.xpose.msra.mxu0 0
        %2167 = vmatprep.subr.bf16.mxu0 0
        %2168 = vmatpush2.bf16.xpose.msra.mxu0 0
        %2169 = vmatprep.subr.bf16.mxu0 0
        %2170 = vmatpush2.bf16.xpose.msra.mxu0 0
        %2171 = vmatprep.subr.bf16.mxu0 0
        %2172 = vmatpush2.bf16.xpose.msra.mxu0 0
        %2173 = vmatprep.subr.bf16.mxu0 0
        %2174 = vmatpush2.bf16.xpose.msra.mxu0 0
        %2175 = vmatprep.mubr.bf16.mxu0 0
        %2176 = vmatmul.mubr.bf16.gmra.mxu0 %v2116
        %v2177 = vpop.f32.mrf.mxu0
        %v2178 = vadd.f32 %v2135, %v2177
        %v2179 = vpop.f32.mrf.mxu0
        %v2180 = vpop.f32.mrf.mxu0
        %v2181 = vpop.f32.mrf.mxu0
        %2182 = vdwg.mxu0
        %v2185 = vunpack.c.l.b16 %v2120
        %v2186 = vunpack.c.l.b16 %v2121
        %v2187 = vpack.c.b16 %v2186, %v2185
        %2189 = vmatprep.subr.bf16.mxu0 0
        %2190 = vmatpush1.bf16.xpose.msra.mxu0 0
        %2191 = vmatprep.subr.bf16.mxu0 0
        %2192 = vmatpush1.bf16.xpose.msra.mxu0 0
        %2193 = vmatprep.subr.bf16.mxu0 0
        %2194 = vmatpush1.bf16.xpose.msra.mxu0 0
        %2195 = vmatprep.subr.bf16.mxu0 0
        %2196 = vmatpush1.bf16.xpose.msra.mxu0 0
        %2197 = vmatprep.subr.bf16.mxu0 0
        %2198 = vmatpush1.bf16.xpose.msra.mxu0 0
        %2199 = vmatprep.subr.bf16.mxu0 0
        %2200 = vmatpush1.bf16.xpose.msra.mxu0 0
        %2201 = vmatprep.subr.bf16.mxu0 0
        %2202 = vmatpush1.bf16.xpose.msra.mxu0 0
        %2203 = vmatprep.subr.bf16.mxu0 0
        %2204 = vmatpush1.bf16.xpose.msra.mxu0 %v2187
        %2205 = vmatprep.subr.bf16.mxu0 0
        %2206 = vmatpush2.bf16.xpose.msra.mxu0 0
        %2207 = vmatprep.subr.bf16.mxu0 0
        %2208 = vmatpush2.bf16.xpose.msra.mxu0 0
        %2209 = vmatprep.subr.bf16.mxu0 0
        %2210 = vmatpush2.bf16.xpose.msra.mxu0 0
        %2211 = vmatprep.subr.bf16.mxu0 0
        %2212 = vmatpush2.bf16.xpose.msra.mxu0 0
        %2213 = vmatprep.subr.bf16.mxu0 0
        %2214 = vmatpush2.bf16.xpose.msra.mxu0 0
        %2215 = vmatprep.subr.bf16.mxu0 0
        %2216 = vmatpush2.bf16.xpose.msra.mxu0 0
        %2217 = vmatprep.subr.bf16.mxu0 0
        %2218 = vmatpush2.bf16.xpose.msra.mxu0 0
        %2219 = vmatprep.subr.bf16.mxu0 0
        %2220 = vmatpush2.bf16.xpose.msra.mxu0 0
        %2221 = vmatprep.mubr.bf16.mxu0 0
        %2222 = vmatmul.mubr.bf16.gmra.mxu0 %v2117
        %v2223 = vpop.f32.mrf.mxu0
        %v2224 = vadd.f32 %v2136, %v2223
        %v2225 = vpop.f32.mrf.mxu0
        %v2226 = vpop.f32.mrf.mxu0
        %v2227 = vpop.f32.mrf.mxu0
        %2228 = vdwg.mxu0
        %vm2229 = vcmask 130048
        %v2230 = vsel %vm2229, %v2178, -inf
        %2231 = vmax.xlane.f32.xlu0 %v2230
        %v2232 = vpop.xlane.xlu0 %2231
        %v2233 = vsel %vm2229, %v2224, -inf
        %2234 = vmax.xlane.f32.xlu0 %v2233
        %v2235 = vpop.xlane.xlu0 %2234
        %v2236 = vsub.f32 %v2178, %v2232
        %v2237 = vsub.f32 %v2224, %v2235
        %v2238 = vmul.f32 %v2236, 1.442695
        %v2239 = vpow.pop %v2238
        %v2240 = vmul.f32 %v2237, 1.442695
        %v2241 = vpow.pop %v2240
        %v2242 = vsel %vm2229, %v2239, 0.0
        %2243 = vadd.xlane.f32.xlu0 %v2242
        %v2244 = vpop.xlane.xlu0 %2243
        %v2245 = vsel %vm2229, %v2241, 0.0
        %2246 = vadd.xlane.f32.xlu0 %v2245
        %v2247 = vpop.xlane.xlu0 %2246
        %v2248 = vrcp.pop %v2244
        %v2249 = vrcp.pop %v2247
        %v2250 = vmul.f32 %v2239, %v2248
        %v2251 = vmul.f32 %v2241, %v2249
        %v2252 = vpack.c.bf16 %v2250, %v2250
        %v2253 = vpack.c.bf16 %v2251, %v2251
        %v2254 = vld [vmem:[#allocation4] sm:$0xf]
        %v2255 = vld [vmem:[#allocation4 + $0x4] sm:$0xf]
        %v2256 = vld [vmem:[#allocation4 + $0x8] sm:$0xf]
        %v2257 = vld [vmem:[#allocation4 + $0xc] sm:$0xf]
        %v2260 = vunpack.c.l.b16 %v2254
        %v2261 = vunpack.c.l.b16 %v2255
        %v2262 = vpack.c.b16 %v2261, %v2260
        %v2265 = vsel %vm2229, %v2252, 0
        %2267 = vmatprep.subr.bf16.mxu0 0
        %2268 = vmatpush1.bf16.msra.mxu0 0
        %2269 = vmatprep.subr.bf16.mxu0 0
        %2270 = vmatpush1.bf16.msra.mxu0 0
        %2271 = vmatprep.subr.bf16.mxu0 0
        %2272 = vmatpush1.bf16.msra.mxu0 0
        %2273 = vmatprep.subr.bf16.mxu0 0
        %2274 = vmatpush1.bf16.msra.mxu0 0
        %2275 = vmatprep.subr.bf16.mxu0 0
        %2276 = vmatpush1.bf16.msra.mxu0 0
        %2277 = vmatprep.subr.bf16.mxu0 0
        %2278 = vmatpush1.bf16.msra.mxu0 0
        %2279 = vmatprep.subr.bf16.mxu0 0
        %2280 = vmatpush1.bf16.msra.mxu0 0
        %2281 = vmatprep.subr.bf16.mxu0 0
        %2282 = vmatpush1.bf16.msra.mxu0 %v2262
        %2283 = vmatprep.subr.bf16.mxu0 0
        %2284 = vmatpush2.bf16.msra.mxu0 0
        %2285 = vmatprep.subr.bf16.mxu0 0
        %2286 = vmatpush2.bf16.msra.mxu0 0
        %2287 = vmatprep.subr.bf16.mxu0 0
        %2288 = vmatpush2.bf16.msra.mxu0 0
        %2289 = vmatprep.subr.bf16.mxu0 0
        %2290 = vmatpush2.bf16.msra.mxu0 0
        %2291 = vmatprep.subr.bf16.mxu0 0
        %2292 = vmatpush2.bf16.msra.mxu0 0
        %2293 = vmatprep.subr.bf16.mxu0 0
        %2294 = vmatpush2.bf16.msra.mxu0 0
        %2295 = vmatprep.subr.bf16.mxu0 0
        %2296 = vmatpush2.bf16.msra.mxu0 0
        %2297 = vmatprep.subr.bf16.mxu0 0
        %2298 = vmatpush2.bf16.msra.mxu0 0
        %2299 = vmatprep.mubr.bf16.mxu0 0
        %2300 = vmatmul.mubr.bf16.gmra.mxu0 %v2265
        %v2301 = vpop.f32.mrf.mxu0
        %v2302 = vadd.f32 0.0, %v2301
        %v2303 = vpop.f32.mrf.mxu0
        %v2304 = vpop.f32.mrf.mxu0
        %v2305 = vpop.f32.mrf.mxu0
        %2306 = vdwg.mxu0
        %v2309 = vunpack.c.l.b16 %v2256
        %v2310 = vunpack.c.l.b16 %v2257
        %v2311 = vpack.c.b16 %v2310, %v2309
        %v2314 = vsel %vm2229, %v2253, 0
        %2316 = vmatprep.subr.bf16.mxu0 0
        %2317 = vmatpush1.bf16.msra.mxu0 0
        %2318 = vmatprep.subr.bf16.mxu0 0
        %2319 = vmatpush1.bf16.msra.mxu0 0
        %2320 = vmatprep.subr.bf16.mxu0 0
        %2321 = vmatpush1.bf16.msra.mxu0 0
        %2322 = vmatprep.subr.bf16.mxu0 0
        %2323 = vmatpush1.bf16.msra.mxu0 0
        %2324 = vmatprep.subr.bf16.mxu0 0
        %2325 = vmatpush1.bf16.msra.mxu0 0
        %2326 = vmatprep.subr.bf16.mxu0 0
        %2327 = vmatpush1.bf16.msra.mxu0 0
        %2328 = vmatprep.subr.bf16.mxu0 0
        %2329 = vmatpush1.bf16.msra.mxu0 0
        %2330 = vmatprep.subr.bf16.mxu0 0
        %2331 = vmatpush1.bf16.msra.mxu0 %v2311
        %2332 = vmatprep.subr.bf16.mxu0 0
        %2333 = vmatpush2.bf16.msra.mxu0 0
        %2334 = vmatprep.subr.bf16.mxu0 0
        %2335 = vmatpush2.bf16.msra.mxu0 0
        %2336 = vmatprep.subr.bf16.mxu0 0
        %2337 = vmatpush2.bf16.msra.mxu0 0
        %2338 = vmatprep.subr.bf16.mxu0 0
        %2339 = vmatpush2.bf16.msra.mxu0 0
        %2340 = vmatprep.subr.bf16.mxu0 0
        %2341 = vmatpush2.bf16.msra.mxu0 0
        %2342 = vmatprep.subr.bf16.mxu0 0
        %2343 = vmatpush2.bf16.msra.mxu0 0
        %2344 = vmatprep.subr.bf16.mxu0 0
        %2345 = vmatpush2.bf16.msra.mxu0 0
        %2346 = vmatprep.subr.bf16.mxu0 0
        %2347 = vmatpush2.bf16.msra.mxu0 0
        %2348 = vmatprep.mubr.bf16.mxu0 0
        %2349 = vmatmul.mubr.bf16.gmra.mxu0 %v2314
        %v2350 = vpop.f32.mrf.mxu0
        %v2351 = vadd.f32 0.0, %v2350
        %v2352 = vpop.f32.mrf.mxu0
        %v2353 = vpop.f32.mrf.mxu0
        %v2354 = vpop.f32.mrf.mxu0
        %2355 = vdwg.mxu0
        %v2356 = vcombine.high %v2302, 0.0
        %v2358 = vunpack.c.l.s4 1983009808
        %v2359 = vunpack.c.0.s8 %v2358
        %v2360 = vlaneseq
        %v2361 = vshrl.u32 %v2360, 7
        %v2362 = vsub.s32 %v2359, %v2361
        %v2363 = vrot.slane %v2302, %v2362
        %v2365 = vunpack.c.l.s4 1983009808
        %v2366 = vunpack.c.0.s8 %v2365
        %v2367 = vlaneseq
        %v2368 = vshrl.u32 %v2367, 7
        %v2369 = vsub.s32 %v2366, %v2368
        %v2370 = vrot.slane %v2356, %v2369
        %v2371 = vcombine.high %v2351, 0.0
        %v2373 = vunpack.c.l.s4 1983009808
        %v2374 = vunpack.c.0.s8 %v2373
        %v2375 = vlaneseq
        %v2376 = vshrl.u32 %v2375, 7
        %v2377 = vsub.s32 %v2374, %v2376
        %v2378 = vrot.slane %v2351, %v2377
        %v2380 = vunpack.c.l.s4 1983009808
        %v2381 = vunpack.c.0.s8 %v2380
        %v2382 = vlaneseq
        %v2383 = vshrl.u32 %v2382, 7
        %v2384 = vsub.s32 %v2381, %v2383
        %v2385 = vrot.slane %v2371, %v2384
        %v2386 = vcombine.low %v2363, %v2378
        %v2387 = vcombine.high %v2363, %v2378
        %v2389 = vunpack.c.l.s4 1934713408
        %v2390 = vunpack.c.0.s8 %v2389
        %v2391 = vlaneseq
        %v2392 = vshrl.u32 %v2391, 7
        %v2393 = vsub.s32 %v2390, %v2392
        %v2394 = vrot.slane %v2386, %v2393
        %v2396 = vunpack.c.l.s4 1934713408
        %v2397 = vunpack.c.0.s8 %v2396
        %v2398 = vlaneseq
        %v2399 = vshrl.u32 %v2398, 7
        %v2400 = vsub.s32 %v2397, %v2399
        %v2401 = vrot.slane %v2387, %v2400
        %v2402 = vcombine.low %v2370, %v2385
        %v2403 = vcombine.high %v2370, %v2385
        %v2405 = vunpack.c.l.s4 1934713408
        %v2406 = vunpack.c.0.s8 %v2405
        %v2407 = vlaneseq
        %v2408 = vshrl.u32 %v2407, 7
        %v2409 = vsub.s32 %v2406, %v2408
        %v2410 = vrot.slane %v2402, %v2409
        %v2412 = vunpack.c.l.s4 1934713408
        %v2413 = vunpack.c.0.s8 %v2412
        %v2414 = vlaneseq
        %v2415 = vshrl.u32 %v2414, 7
        %v2416 = vsub.s32 %v2413, %v2415
        %v2417 = vrot.slane %v2403, %v2416
        %v2418 = vcombine.high %v2394, 0.0
        %v2419 = vcombine.high %v2401, 0.0
        %v2420 = vcombine.high %v2410, 0.0
        %v2421 = vcombine.high %v2417, 0.0
        %v2422 = vcombine.low %v2394, %v2401
        %v2424 = vunpack.c.l.s4 1983009808
        %v2425 = vunpack.c.0.s8 %v2424
        %v2426 = vlaneseq
        %v2427 = vshrl.u32 %v2426, 7
        %v2428 = vsub.s32 %v2425, %v2427
        %v2429 = vrot.slane %v2422, %v2428
        %v2430 = vcombine.low %v2418, %v2419
        %v2432 = vunpack.c.l.s4 1983009808
        %v2433 = vunpack.c.0.s8 %v2432
        %v2434 = vlaneseq
        %v2435 = vshrl.u32 %v2434, 7
        %v2436 = vsub.s32 %v2433, %v2435
        %v2437 = vrot.slane %v2430, %v2436
        %v2438 = vcombine.low %v2410, %v2417
        %v2440 = vunpack.c.l.s4 1983009808
        %v2441 = vunpack.c.0.s8 %v2440
        %v2442 = vlaneseq
        %v2443 = vshrl.u32 %v2442, 7
        %v2444 = vsub.s32 %v2441, %v2443
        %v2445 = vrot.slane %v2438, %v2444
        %v2446 = vcombine.low %v2420, %v2421
        %v2448 = vunpack.c.l.s4 1983009808
        %v2449 = vunpack.c.0.s8 %v2448
        %v2450 = vlaneseq
        %v2451 = vshrl.u32 %v2450, 7
        %v2452 = vsub.s32 %v2449, %v2451
        %v2453 = vrot.slane %v2446, %v2452
        %v2454 = vcombine.low %v2429, %v2437
        %v2456 = vunpack.c.l.s4 1934713408
        %v2457 = vunpack.c.0.s8 %v2456
        %v2458 = vlaneseq
        %v2459 = vshrl.u32 %v2458, 7
        %v2460 = vsub.s32 %v2457, %v2459
        %v2461 = vrot.slane %v2454, %v2460
        %v2462 = vcombine.low %v2445, %v2453
        %v2464 = vunpack.c.l.s4 1934713408
        %v2465 = vunpack.c.0.s8 %v2464
        %v2466 = vlaneseq
        %v2467 = vshrl.u32 %v2466, 7
        %v2468 = vsub.s32 %v2465, %v2467
        %v2469 = vrot.slane %v2462, %v2468
        %v2470 = vcombine.low %v2461, %v2469
        %v2471 = vcombine.high %v2461, %v2469
        %v2472 = vpack.c.bf16 %v2470, %v2470
        %v2473 = vpack.c.bf16 %v2471, %v2471
        %v2474 = vld [vmem:[#allocation11] sm:$0xff]
        %v2475 = vld [vmem:[#allocation11 + $0x8] sm:$0xff]
        %v2476 = vld [vmem:[#allocation11 + $0x10] sm:$0xff]
        %v2477 = vld [vmem:[#allocation11 + $0x18] sm:$0xff]
        %v2478 = vld [vmem:[#allocation11 + $0x20] sm:$0xff]
        %v2479 = vld [vmem:[#allocation11 + $0x28] sm:$0xff]
        %v2480 = vld [vmem:[#allocation11 + $0x30] sm:$0xff]
        %v2481 = vld [vmem:[#allocation11 + $0x38] sm:$0xff]
        %v2482 = vld [vmem:[#allocation11 + $0x40] sm:$0xff]
        %v2483 = vld [vmem:[#allocation11 + $0x48] sm:$0xff]
        %v2484 = vld [vmem:[#allocation11 + $0x50] sm:$0xff]
        %v2485 = vld [vmem:[#allocation11 + $0x58] sm:$0xff]
        %v2486 = vld [vmem:[#allocation11 + $0x60] sm:$0xff]
        %v2487 = vld [vmem:[#allocation11 + $0x68] sm:$0xff]
        %v2488 = vld [vmem:[#allocation11 + $0x70] sm:$0xff]
        %v2489 = vld [vmem:[#allocation11 + $0x78] sm:$0xff]
        %v2490 = vld [vmem:[#allocation11 + $0x80] sm:$0xff]
        %v2491 = vld [vmem:[#allocation11 + $0x88] sm:$0xff]
        %v2492 = vld [vmem:[#allocation11 + $0x90] sm:$0xff]
        %v2493 = vld [vmem:[#allocation11 + $0x98] sm:$0xff]
        %v2494 = vld [vmem:[#allocation11 + $0xa0] sm:$0xff]
        %v2495 = vld [vmem:[#allocation11 + $0xa8] sm:$0xff]
        %v2496 = vld [vmem:[#allocation11 + $0xb0] sm:$0xff]
        %v2497 = vld [vmem:[#allocation11 + $0xb8] sm:$0xff]
        %v2498 = vld [vmem:[#allocation11 + $0xc0] sm:$0xff]
        %v2499 = vld [vmem:[#allocation11 + $0xc8] sm:$0xff]
        %v2500 = vld [vmem:[#allocation11 + $0xd0] sm:$0xff]
        %v2501 = vld [vmem:[#allocation11 + $0xd8] sm:$0xff]
        %v2502 = vld [vmem:[#allocation11 + $0xe0] sm:$0xff]
        %v2503 = vld [vmem:[#allocation11 + $0xe8] sm:$0xff]
        %v2504 = vld [vmem:[#allocation11 + $0xf0] sm:$0xff]
        %v2505 = vld [vmem:[#allocation11 + $0xf8] sm:$0xff]
        %v2506 = vld [vmem:[%s4] sm:$0x3]
        %v2508 = vlaneseq
        %v2509 = vshrl.u32 %v2508, 7
        %v2510 = vsub.s32 0, %v2509
        %v2511 = vrot.slane %v2506, %v2510
        %v2512 = vlaneseq
        %v2513 = vshrl.u32 %v2512, 7
        %v2514 = vsub.s32 1, %v2513
        %v2515 = vrot.slane %v2506, %v2514
        %v2550 = vunpack.c.l.b16 %v2474
        %v2551 = vunpack.c.h.b16 %v2474
        %v2552 = vunpack.c.l.b16 %v2475
        %v2553 = vunpack.c.h.b16 %v2475
        %v2554 = vunpack.c.l.b16 %v2476
        %v2555 = vunpack.c.h.b16 %v2476
        %v2556 = vunpack.c.l.b16 %v2477
        %v2557 = vunpack.c.h.b16 %v2477
        %v2558 = vunpack.c.l.b16 %v2478
        %v2559 = vunpack.c.h.b16 %v2478
        %v2560 = vunpack.c.l.b16 %v2479
        %v2561 = vunpack.c.h.b16 %v2479
        %v2562 = vunpack.c.l.b16 %v2480
        %v2563 = vunpack.c.h.b16 %v2480
        %v2564 = vunpack.c.l.b16 %v2481
        %v2565 = vunpack.c.h.b16 %v2481
        %v2566 = vunpack.c.l.b16 %v2482
        %v2567 = vunpack.c.h.b16 %v2482
        %v2568 = vunpack.c.l.b16 %v2483
        %v2569 = vunpack.c.h.b16 %v2483
        %v2570 = vunpack.c.l.b16 %v2484
        %v2571 = vunpack.c.h.b16 %v2484
        %v2572 = vunpack.c.l.b16 %v2485
        %v2573 = vunpack.c.h.b16 %v2485
        %v2574 = vunpack.c.l.b16 %v2486
        %v2575 = vunpack.c.h.b16 %v2486
        %v2576 = vunpack.c.l.b16 %v2487
        %v2577 = vunpack.c.h.b16 %v2487
        %v2578 = vunpack.c.l.b16 %v2488
        %v2579 = vunpack.c.h.b16 %v2488
        %v2580 = vunpack.c.l.b16 %v2489
        %v2581 = vunpack.c.h.b16 %v2489
        %v2582 = vunpack.c.l.b16 %v2490
        %v2583 = vunpack.c.h.b16 %v2490
        %v2584 = vunpack.c.l.b16 %v2491
        %v2585 = vunpack.c.h.b16 %v2491
        %v2586 = vunpack.c.l.b16 %v2492
        %v2587 = vunpack.c.h.b16 %v2492
        %v2588 = vunpack.c.l.b16 %v2493
        %v2589 = vunpack.c.h.b16 %v2493
        %v2590 = vunpack.c.l.b16 %v2494
        %v2591 = vunpack.c.h.b16 %v2494
        %v2592 = vunpack.c.l.b16 %v2495
        %v2593 = vunpack.c.h.b16 %v2495
        %v2594 = vunpack.c.l.b16 %v2496
        %v2595 = vunpack.c.h.b16 %v2496
        %v2596 = vunpack.c.l.b16 %v2497
        %v2597 = vunpack.c.h.b16 %v2497
        %v2598 = vunpack.c.l.b16 %v2498
        %v2599 = vunpack.c.h.b16 %v2498
        %v2600 = vunpack.c.l.b16 %v2499
        %v2601 = vunpack.c.h.b16 %v2499
        %v2602 = vunpack.c.l.b16 %v2500
        %v2603 = vunpack.c.h.b16 %v2500
        %v2604 = vunpack.c.l.b16 %v2501
        %v2605 = vunpack.c.h.b16 %v2501
        %v2606 = vunpack.c.l.b16 %v2502
        %v2607 = vunpack.c.h.b16 %v2502
        %v2608 = vunpack.c.l.b16 %v2503
        %v2609 = vunpack.c.h.b16 %v2503
        %v2610 = vunpack.c.l.b16 %v2504
        %v2611 = vunpack.c.h.b16 %v2504
        %v2612 = vunpack.c.l.b16 %v2505
        %v2613 = vunpack.c.h.b16 %v2505
        %v2614 = vpack.c.b16 %v2552, %v2550
        %v2615 = vpack.c.b16 %v2553, %v2551
        %v2616 = vpack.c.b16 %v2556, %v2554
        %v2617 = vpack.c.b16 %v2557, %v2555
        %v2618 = vpack.c.b16 %v2560, %v2558
        %v2619 = vpack.c.b16 %v2561, %v2559
        %v2620 = vpack.c.b16 %v2564, %v2562
        %v2621 = vpack.c.b16 %v2565, %v2563
        %v2622 = vpack.c.b16 %v2568, %v2566
        %v2623 = vpack.c.b16 %v2569, %v2567
        %v2624 = vpack.c.b16 %v2572, %v2570
        %v2625 = vpack.c.b16 %v2573, %v2571
        %v2626 = vpack.c.b16 %v2576, %v2574
        %v2627 = vpack.c.b16 %v2577, %v2575
        %v2628 = vpack.c.b16 %v2580, %v2578
        %v2629 = vpack.c.b16 %v2581, %v2579
        %v2630 = vpack.c.b16 %v2584, %v2582
        %v2631 = vpack.c.b16 %v2585, %v2583
        %v2632 = vpack.c.b16 %v2588, %v2586
        %v2633 = vpack.c.b16 %v2589, %v2587
        %v2634 = vpack.c.b16 %v2592, %v2590
        %v2635 = vpack.c.b16 %v2593, %v2591
        %v2636 = vpack.c.b16 %v2596, %v2594
        %v2637 = vpack.c.b16 %v2597, %v2595
        %v2638 = vpack.c.b16 %v2600, %v2598
        %v2639 = vpack.c.b16 %v2601, %v2599
        %v2640 = vpack.c.b16 %v2604, %v2602
        %v2641 = vpack.c.b16 %v2605, %v2603
        %v2642 = vpack.c.b16 %v2608, %v2606
        %v2643 = vpack.c.b16 %v2609, %v2607
        %v2644 = vpack.c.b16 %v2612, %v2610
        %v2645 = vpack.c.b16 %v2613, %v2611
        %2678 = vmatprep.subr.bf16.mxu0 %v2629
        %2679 = vmatpush1.bf16.msra.mxu0 %v2628
        %2680 = vmatprep.subr.bf16.mxu0 %v2627
        %2681 = vmatpush1.bf16.msra.mxu0 %v2626
        %2682 = vmatprep.subr.bf16.mxu0 %v2625
        %2683 = vmatpush1.bf16.msra.mxu0 %v2624
        %2684 = vmatprep.subr.bf16.mxu0 %v2623
        %2685 = vmatpush1.bf16.msra.mxu0 %v2622
        %2686 = vmatprep.subr.bf16.mxu0 %v2621
        %2687 = vmatpush1.bf16.msra.mxu0 %v2620
        %2688 = vmatprep.subr.bf16.mxu0 %v2619
        %2689 = vmatpush1.bf16.msra.mxu0 %v2618
        %2690 = vmatprep.subr.bf16.mxu0 %v2617
        %2691 = vmatpush1.bf16.msra.mxu0 %v2616
        %2692 = vmatprep.subr.bf16.mxu0 %v2615
        %2693 = vmatpush1.bf16.msra.mxu0 %v2614
        %2694 = vmatprep.subr.bf16.mxu0 %v2645
        %2695 = vmatpush2.bf16.msra.mxu0 %v2644
        %2696 = vmatprep.subr.bf16.mxu0 %v2643
        %2697 = vmatpush2.bf16.msra.mxu0 %v2642
        %2698 = vmatprep.subr.bf16.mxu0 %v2641
        %2699 = vmatpush2.bf16.msra.mxu0 %v2640
        %2700 = vmatprep.subr.bf16.mxu0 %v2639
        %2701 = vmatpush2.bf16.msra.mxu0 %v2638
        %2702 = vmatprep.subr.bf16.mxu0 %v2637
        %2703 = vmatpush2.bf16.msra.mxu0 %v2636
        %2704 = vmatprep.subr.bf16.mxu0 %v2635
        %2705 = vmatpush2.bf16.msra.mxu0 %v2634
        %2706 = vmatprep.subr.bf16.mxu0 %v2633
        %2707 = vmatpush2.bf16.msra.mxu0 %v2632
        %2708 = vmatprep.subr.bf16.mxu0 %v2631
        %2709 = vmatpush2.bf16.msra.mxu0 %v2630
        %2710 = vmatprep.mubr.bf16.mxu0 %v2473
        %2711 = vmatmul.mubr.bf16.gmra.mxu0 %v2472
        %v2712 = vpop.f32.mrf.mxu0
        %v2713 = vadd.f32 %v2511, %v2712
        %v2714 = vpop.f32.mrf.mxu0
        %v2715 = vadd.f32 %v2515, %v2714
        %v2716 = vpop.f32.mrf.mxu0
        %v2717 = vpop.f32.mrf.mxu0
        %2718 = vdwg.mxu0
        %v2719 = vadd.f32 %v2112, %v2713
        %v2720 = vadd.f32 %v2113, %v2715
        %v2721 = vld [vmem:[%s7] sm:$0x3]
        %v2722 = vld [vmem:[%s8] sm:$0x3]
        %v2723 = vadd.f32 %v2719, %v2720
        %2724 = vadd.xlane.f32.xlu0 %v2723
        %v2725 = vpop.xlane.xlu0 %2724
        %v2726 = vrcp.pop 256.0
        %v2727 = vmul.f32 %v2725, %v2726
        %v2728 = vsub.f32 %v2719, %v2727
        %v2729 = vsub.f32 %v2720, %v2727
        %v2730 = vmul.f32 %v2728, %v2728
        %v2731 = vmul.f32 %v2729, %v2729
        %v2732 = vadd.f32 %v2730, %v2731
        %2733 = vadd.xlane.f32.xlu0 %v2732
        %v2734 = vpop.xlane.xlu0 %2733
        %v2735 = vmul.f32 %v2734, %v2726
        %v2736 = vadd.f32 %v2735, 1e-05
        %v2737 = vrsqrt.pop %v2736
        %v2738 = vmul.f32 %v2728, %v2737
        %v2739 = vmul.f32 %v2729, %v2737
        %v2741 = vlaneseq
        %v2742 = vshrl.u32 %v2741, 7
        %v2743 = vsub.s32 0, %v2742
        %v2744 = vrot.slane %v2721, %v2743
        %v2745 = vlaneseq
        %v2746 = vshrl.u32 %v2745, 7
        %v2747 = vsub.s32 1, %v2746
        %v2748 = vrot.slane %v2721, %v2747
        %v2751 = vmul.f32 %v2738, %v2744
        %v2752 = vmul.f32 %v2739, %v2748
        %v2754 = vlaneseq
        %v2755 = vshrl.u32 %v2754, 7
        %v2756 = vsub.s32 0, %v2755
        %v2757 = vrot.slane %v2722, %v2756
        %v2758 = vlaneseq
        %v2759 = vshrl.u32 %v2758, 7
        %v2760 = vsub.s32 1, %v2759
        %v2761 = vrot.slane %v2722, %v2760
        %v2764 = vadd.f32 %v2751, %v2757
        %v2765 = vadd.f32 %v2752, %v2761
        %v2766 = vpack.c.bf16 %v2764, %v2764
        %v2767 = vpack.c.bf16 %v2765, %v2765
        %v2768 = vld [vmem:[#allocation13] sm:$0xff]
        %v2769 = vld [vmem:[#allocation13 + $0x8] sm:$0xff]
        %v2770 = vld [vmem:[#allocation13 + $0x10] sm:$0xff]
        %v2771 = vld [vmem:[#allocation13 + $0x18] sm:$0xff]
        %v2772 = vld [vmem:[#allocation13 + $0x20] sm:$0xff]
        %v2773 = vld [vmem:[#allocation13 + $0x28] sm:$0xff]
        %v2774 = vld [vmem:[#allocation13 + $0x30] sm:$0xff]
        %v2775 = vld [vmem:[#allocation13 + $0x38] sm:$0xff]
        %v2776 = vld [vmem:[#allocation13 + $0x40] sm:$0xff]
        %v2777 = vld [vmem:[#allocation13 + $0x48] sm:$0xff]
        %v2778 = vld [vmem:[#allocation13 + $0x50] sm:$0xff]
        %v2779 = vld [vmem:[#allocation13 + $0x58] sm:$0xff]
        %v2780 = vld [vmem:[#allocation13 + $0x60] sm:$0xff]
        %v2781 = vld [vmem:[#allocation13 + $0x68] sm:$0xff]
        %v2782 = vld [vmem:[#allocation13 + $0x70] sm:$0xff]
        %v2783 = vld [vmem:[#allocation13 + $0x78] sm:$0xff]
        %v2784 = vld [vmem:[#allocation13 + $0x80] sm:$0xff]
        %v2785 = vld [vmem:[#allocation13 + $0x88] sm:$0xff]
        %v2786 = vld [vmem:[#allocation13 + $0x90] sm:$0xff]
        %v2787 = vld [vmem:[#allocation13 + $0x98] sm:$0xff]
        %v2788 = vld [vmem:[#allocation13 + $0xa0] sm:$0xff]
        %v2789 = vld [vmem:[#allocation13 + $0xa8] sm:$0xff]
        %v2790 = vld [vmem:[#allocation13 + $0xb0] sm:$0xff]
        %v2791 = vld [vmem:[#allocation13 + $0xb8] sm:$0xff]
        %v2792 = vld [vmem:[#allocation13 + $0xc0] sm:$0xff]
        %v2793 = vld [vmem:[#allocation13 + $0xc8] sm:$0xff]
        %v2794 = vld [vmem:[#allocation13 + $0xd0] sm:$0xff]
        %v2795 = vld [vmem:[#allocation13 + $0xd8] sm:$0xff]
        %v2796 = vld [vmem:[#allocation13 + $0xe0] sm:$0xff]
        %v2797 = vld [vmem:[#allocation13 + $0xe8] sm:$0xff]
        %v2798 = vld [vmem:[#allocation13 + $0xf0] sm:$0xff]
        %v2799 = vld [vmem:[#allocation13 + $0xf8] sm:$0xff]
        %v2800 = vld [vmem:[#allocation13 + $0x100] sm:$0xff]
        %v2801 = vld [vmem:[#allocation13 + $0x108] sm:$0xff]
        %v2802 = vld [vmem:[#allocation13 + $0x110] sm:$0xff]
        %v2803 = vld [vmem:[#allocation13 + $0x118] sm:$0xff]
        %v2804 = vld [vmem:[#allocation13 + $0x120] sm:$0xff]
        %v2805 = vld [vmem:[#allocation13 + $0x128] sm:$0xff]
        %v2806 = vld [vmem:[#allocation13 + $0x130] sm:$0xff]
        %v2807 = vld [vmem:[#allocation13 + $0x138] sm:$0xff]
        %v2808 = vld [vmem:[#allocation13 + $0x140] sm:$0xff]
        %v2809 = vld [vmem:[#allocation13 + $0x148] sm:$0xff]
        %v2810 = vld [vmem:[#allocation13 + $0x150] sm:$0xff]
        %v2811 = vld [vmem:[#allocation13 + $0x158] sm:$0xff]
        %v2812 = vld [vmem:[#allocation13 + $0x160] sm:$0xff]
        %v2813 = vld [vmem:[#allocation13 + $0x168] sm:$0xff]
        %v2814 = vld [vmem:[#allocation13 + $0x170] sm:$0xff]
        %v2815 = vld [vmem:[#allocation13 + $0x178] sm:$0xff]
        %v2816 = vld [vmem:[#allocation13 + $0x180] sm:$0xff]
        %v2817 = vld [vmem:[#allocation13 + $0x188] sm:$0xff]
        %v2818 = vld [vmem:[#allocation13 + $0x190] sm:$0xff]
        %v2819 = vld [vmem:[#allocation13 + $0x198] sm:$0xff]
        %v2820 = vld [vmem:[#allocation13 + $0x1a0] sm:$0xff]
        %v2821 = vld [vmem:[#allocation13 + $0x1a8] sm:$0xff]
        %v2822 = vld [vmem:[#allocation13 + $0x1b0] sm:$0xff]
        %v2823 = vld [vmem:[#allocation13 + $0x1b8] sm:$0xff]
        %v2824 = vld [vmem:[#allocation13 + $0x1c0] sm:$0xff]
        %v2825 = vld [vmem:[#allocation13 + $0x1c8] sm:$0xff]
        %v2826 = vld [vmem:[#allocation13 + $0x1d0] sm:$0xff]
        %v2827 = vld [vmem:[#allocation13 + $0x1d8] sm:$0xff]
        %v2828 = vld [vmem:[#allocation13 + $0x1e0] sm:$0xff]
        %v2829 = vld [vmem:[#allocation13 + $0x1e8] sm:$0xff]
        %v2830 = vld [vmem:[#allocation13 + $0x1f0] sm:$0xff]
        %v2831 = vld [vmem:[#allocation13 + $0x1f8] sm:$0xff]
        %v2832 = vld [vmem:[%s10] sm:$0xf]
        %v2834 = vlaneseq
        %v2835 = vshrl.u32 %v2834, 7
        %v2836 = vsub.s32 0, %v2835
        %v2837 = vrot.slane %v2832, %v2836
        %v2838 = vlaneseq
        %v2839 = vshrl.u32 %v2838, 7
        %v2840 = vsub.s32 1, %v2839
        %v2841 = vrot.slane %v2832, %v2840
        %v2842 = vlaneseq
        %v2843 = vshrl.u32 %v2842, 7
        %v2844 = vsub.s32 2, %v2843
        %v2845 = vrot.slane %v2832, %v2844
        %v2846 = vlaneseq
        %v2847 = vshrl.u32 %v2846, 7
        %v2848 = vsub.s32 3, %v2847
        %v2849 = vrot.slane %v2832, %v2848
        %v2918 = vunpack.c.l.b16 %v2768
        %v2919 = vunpack.c.h.b16 %v2768
        %v2920 = vunpack.c.l.b16 %v2769
        %v2921 = vunpack.c.h.b16 %v2769
        %v2922 = vunpack.c.l.b16 %v2770
        %v2923 = vunpack.c.h.b16 %v2770
        %v2924 = vunpack.c.l.b16 %v2771
        %v2925 = vunpack.c.h.b16 %v2771
        %v2926 = vunpack.c.l.b16 %v2772
        %v2927 = vunpack.c.h.b16 %v2772
        %v2928 = vunpack.c.l.b16 %v2773
        %v2929 = vunpack.c.h.b16 %v2773
        %v2930 = vunpack.c.l.b16 %v2774
        %v2931 = vunpack.c.h.b16 %v2774
        %v2932 = vunpack.c.l.b16 %v2775
        %v2933 = vunpack.c.h.b16 %v2775
        %v2934 = vunpack.c.l.b16 %v2776
        %v2935 = vunpack.c.h.b16 %v2776
        %v2936 = vunpack.c.l.b16 %v2777
        %v2937 = vunpack.c.h.b16 %v2777
        %v2938 = vunpack.c.l.b16 %v2778
        %v2939 = vunpack.c.h.b16 %v2778
        %v2940 = vunpack.c.l.b16 %v2779
        %v2941 = vunpack.c.h.b16 %v2779
        %v2942 = vunpack.c.l.b16 %v2780
        %v2943 = vunpack.c.h.b16 %v2780
        %v2944 = vunpack.c.l.b16 %v2781
        %v2945 = vunpack.c.h.b16 %v2781
        %v2946 = vunpack.c.l.b16 %v2782
        %v2947 = vunpack.c.h.b16 %v2782
        %v2948 = vunpack.c.l.b16 %v2783
        %v2949 = vunpack.c.h.b16 %v2783
        %v2950 = vunpack.c.l.b16 %v2784
        %v2951 = vunpack.c.h.b16 %v2784
        %v2952 = vunpack.c.l.b16 %v2785
        %v2953 = vunpack.c.h.b16 %v2785
        %v2954 = vunpack.c.l.b16 %v2786
        %v2955 = vunpack.c.h.b16 %v2786
        %v2956 = vunpack.c.l.b16 %v2787
        %v2957 = vunpack.c.h.b16 %v2787
        %v2958 = vunpack.c.l.b16 %v2788
        %v2959 = vunpack.c.h.b16 %v2788
        %v2960 = vunpack.c.l.b16 %v2789
        %v2961 = vunpack.c.h.b16 %v2789
        %v2962 = vunpack.c.l.b16 %v2790
        %v2963 = vunpack.c.h.b16 %v2790
        %v2964 = vunpack.c.l.b16 %v2791
        %v2965 = vunpack.c.h.b16 %v2791
        %v2966 = vunpack.c.l.b16 %v2792
        %v2967 = vunpack.c.h.b16 %v2792
        %v2968 = vunpack.c.l.b16 %v2793
        %v2969 = vunpack.c.h.b16 %v2793
        %v2970 = vunpack.c.l.b16 %v2794
        %v2971 = vunpack.c.h.b16 %v2794
        %v2972 = vunpack.c.l.b16 %v2795
        %v2973 = vunpack.c.h.b16 %v2795
        %v2974 = vunpack.c.l.b16 %v2796
        %v2975 = vunpack.c.h.b16 %v2796
        %v2976 = vunpack.c.l.b16 %v2797
        %v2977 = vunpack.c.h.b16 %v2797
        %v2978 = vunpack.c.l.b16 %v2798
        %v2979 = vunpack.c.h.b16 %v2798
        %v2980 = vunpack.c.l.b16 %v2799
        %v2981 = vunpack.c.h.b16 %v2799
        %v2982 = vunpack.c.l.b16 %v2800
        %v2983 = vunpack.c.h.b16 %v2800
        %v2984 = vunpack.c.l.b16 %v2801
        %v2985 = vunpack.c.h.b16 %v2801
        %v2986 = vunpack.c.l.b16 %v2802
        %v2987 = vunpack.c.h.b16 %v2802
        %v2988 = vunpack.c.l.b16 %v2803
        %v2989 = vunpack.c.h.b16 %v2803
        %v2990 = vunpack.c.l.b16 %v2804
        %v2991 = vunpack.c.h.b16 %v2804
        %v2992 = vunpack.c.l.b16 %v2805
        %v2993 = vunpack.c.h.b16 %v2805
        %v2994 = vunpack.c.l.b16 %v2806
        %v2995 = vunpack.c.h.b16 %v2806
        %v2996 = vunpack.c.l.b16 %v2807
        %v2997 = vunpack.c.h.b16 %v2807
        %v2998 = vunpack.c.l.b16 %v2808
        %v2999 = vunpack.c.h.b16 %v2808
        %v3000 = vunpack.c.l.b16 %v2809
        %v3001 = vunpack.c.h.b16 %v2809
        %v3002 = vunpack.c.l.b16 %v2810
        %v3003 = vunpack.c.h.b16 %v2810
        %v3004 = vunpack.c.l.b16 %v2811
        %v3005 = vunpack.c.h.b16 %v2811
        %v3006 = vunpack.c.l.b16 %v2812
        %v3007 = vunpack.c.h.b16 %v2812
        %v3008 = vunpack.c.l.b16 %v2813
        %v3009 = vunpack.c.h.b16 %v2813
        %v3010 = vunpack.c.l.b16 %v2814
        %v3011 = vunpack.c.h.b16 %v2814
        %v3012 = vunpack.c.l.b16 %v2815
        %v3013 = vunpack.c.h.b16 %v2815
        %v3014 = vunpack.c.l.b16 %v2816
        %v3015 = vunpack.c.h.b16 %v2816
        %v3016 = vunpack.c.l.b16 %v2817
        %v3017 = vunpack.c.h.b16 %v2817
        %v3018 = vunpack.c.l.b16 %v2818
        %v3019 = vunpack.c.h.b16 %v2818
        %v3020 = vunpack.c.l.b16 %v2819
        %v3021 = vunpack.c.h.b16 %v2819
        %v3022 = vunpack.c.l.b16 %v2820
        %v3023 = vunpack.c.h.b16 %v2820
        %v3024 = vunpack.c.l.b16 %v2821
        %v3025 = vunpack.c.h.b16 %v2821
        %v3026 = vunpack.c.l.b16 %v2822
        %v3027 = vunpack.c.h.b16 %v2822
        %v3028 = vunpack.c.l.b16 %v2823
        %v3029 = vunpack.c.h.b16 %v2823
        %v3030 = vunpack.c.l.b16 %v2824
        %v3031 = vunpack.c.h.b16 %v2824
        %v3032 = vunpack.c.l.b16 %v2825
        %v3033 = vunpack.c.h.b16 %v2825
        %v3034 = vunpack.c.l.b16 %v2826
        %v3035 = vunpack.c.h.b16 %v2826
        %v3036 = vunpack.c.l.b16 %v2827
        %v3037 = vunpack.c.h.b16 %v2827
        %v3038 = vunpack.c.l.b16 %v2828
        %v3039 = vunpack.c.h.b16 %v2828
        %v3040 = vunpack.c.l.b16 %v2829
        %v3041 = vunpack.c.h.b16 %v2829
        %v3042 = vunpack.c.l.b16 %v2830
        %v3043 = vunpack.c.h.b16 %v2830
        %v3044 = vunpack.c.l.b16 %v2831
        %v3045 = vunpack.c.h.b16 %v2831
        %v3046 = vpack.c.b16 %v2922, %v2918
        %v3047 = vpack.c.b16 %v2923, %v2919
        %v3048 = vpack.c.b16 %v2924, %v2920
        %v3049 = vpack.c.b16 %v2925, %v2921
        %v3050 = vpack.c.b16 %v2930, %v2926
        %v3051 = vpack.c.b16 %v2931, %v2927
        %v3052 = vpack.c.b16 %v2932, %v2928
        %v3053 = vpack.c.b16 %v2933, %v2929
        %v3054 = vpack.c.b16 %v2938, %v2934
        %v3055 = vpack.c.b16 %v2939, %v2935
        %v3056 = vpack.c.b16 %v2940, %v2936
        %v3057 = vpack.c.b16 %v2941, %v2937
        %v3058 = vpack.c.b16 %v2946, %v2942
        %v3059 = vpack.c.b16 %v2947, %v2943
        %v3060 = vpack.c.b16 %v2948, %v2944
        %v3061 = vpack.c.b16 %v2949, %v2945
        %v3062 = vpack.c.b16 %v2954, %v2950
        %v3063 = vpack.c.b16 %v2955, %v2951
        %v3064 = vpack.c.b16 %v2956, %v2952
        %v3065 = vpack.c.b16 %v2957, %v2953
        %v3066 = vpack.c.b16 %v2962, %v2958
        %v3067 = vpack.c.b16 %v2963, %v2959
        %v3068 = vpack.c.b16 %v2964, %v2960
        %v3069 = vpack.c.b16 %v2965, %v2961
        %v3070 = vpack.c.b16 %v2970, %v2966
        %v3071 = vpack.c.b16 %v2971, %v2967
        %v3072 = vpack.c.b16 %v2972, %v2968
        %v3073 = vpack.c.b16 %v2973, %v2969
        %v3074 = vpack.c.b16 %v2978, %v2974
        %v3075 = vpack.c.b16 %v2979, %v2975
        %v3076 = vpack.c.b16 %v2980, %v2976
        %v3077 = vpack.c.b16 %v2981, %v2977
        %v3078 = vpack.c.b16 %v2986, %v2982
        %v3079 = vpack.c.b16 %v2987, %v2983
        %v3080 = vpack.c.b16 %v2988, %v2984
        %v3081 = vpack.c.b16 %v2989, %v2985
        %v3082 = vpack.c.b16 %v2994, %v2990
        %v3083 = vpack.c.b16 %v2995, %v2991
        %v3084 = vpack.c.b16 %v2996, %v2992
        %v3085 = vpack.c.b16 %v2997, %v2993
        %v3086 = vpack.c.b16 %v3002, %v2998
        %v3087 = vpack.c.b16 %v3003, %v2999
        %v3088 = vpack.c.b16 %v3004, %v3000
        %v3089 = vpack.c.b16 %v3005, %v3001
        %v3090 = vpack.c.b16 %v3010, %v3006
        %v3091 = vpack.c.b16 %v3011, %v3007
        %v3092 = vpack.c.b16 %v3012, %v3008
        %v3093 = vpack.c.b16 %v3013, %v3009
        %v3094 = vpack.c.b16 %v3018, %v3014
        %v3095 = vpack.c.b16 %v3019, %v3015
        %v3096 = vpack.c.b16 %v3020, %v3016
        %v3097 = vpack.c.b16 %v3021, %v3017
        %v3098 = vpack.c.b16 %v3026, %v3022
        %v3099 = vpack.c.b16 %v3027, %v3023
        %v3100 = vpack.c.b16 %v3028, %v3024
        %v3101 = vpack.c.b16 %v3029, %v3025
        %v3102 = vpack.c.b16 %v3034, %v3030
        %v3103 = vpack.c.b16 %v3035, %v3031
        %v3104 = vpack.c.b16 %v3036, %v3032
        %v3105 = vpack.c.b16 %v3037, %v3033
        %v3106 = vpack.c.b16 %v3042, %v3038
        %v3107 = vpack.c.b16 %v3043, %v3039
        %v3108 = vpack.c.b16 %v3044, %v3040
        %v3109 = vpack.c.b16 %v3045, %v3041
        %3174 = vmatprep.subr.bf16.mxu0 %v3075
        %3175 = vmatpush1.bf16.msra.mxu0 %v3074
        %3176 = vmatprep.subr.bf16.mxu0 %v3071
        %3177 = vmatpush1.bf16.msra.mxu0 %v3070
        %3178 = vmatprep.subr.bf16.mxu0 %v3067
        %3179 = vmatpush1.bf16.msra.mxu0 %v3066
        %3180 = vmatprep.subr.bf16.mxu0 %v3063
        %3181 = vmatpush1.bf16.msra.mxu0 %v3062
        %3182 = vmatprep.subr.bf16.mxu0 %v3059
        %3183 = vmatpush1.bf16.msra.mxu0 %v3058
        %3184 = vmatprep.subr.bf16.mxu0 %v3055
        %3185 = vmatpush1.bf16.msra.mxu0 %v3054
        %3186 = vmatprep.subr.bf16.mxu0 %v3051
        %3187 = vmatpush1.bf16.msra.mxu0 %v3050
        %3188 = vmatprep.subr.bf16.mxu0 %v3047
        %3189 = vmatpush1.bf16.msra.mxu0 %v3046
        %3190 = vmatprep.subr.bf16.mxu0 %v3107
        %3191 = vmatpush2.bf16.msra.mxu0 %v3106
        %3192 = vmatprep.subr.bf16.mxu0 %v3103
        %3193 = vmatpush2.bf16.msra.mxu0 %v3102
        %3194 = vmatprep.subr.bf16.mxu0 %v3099
        %3195 = vmatpush2.bf16.msra.mxu0 %v3098
        %3196 = vmatprep.subr.bf16.mxu0 %v3095
        %3197 = vmatpush2.bf16.msra.mxu0 %v3094
        %3198 = vmatprep.subr.bf16.mxu0 %v3091
        %3199 = vmatpush2.bf16.msra.mxu0 %v3090
        %3200 = vmatprep.subr.bf16.mxu0 %v3087
        %3201 = vmatpush2.bf16.msra.mxu0 %v3086
        %3202 = vmatprep.subr.bf16.mxu0 %v3083
        %3203 = vmatpush2.bf16.msra.mxu0 %v3082
        %3204 = vmatprep.subr.bf16.mxu0 %v3079
        %3205 = vmatpush2.bf16.msra.mxu0 %v3078
        %3206 = vmatprep.mubr.bf16.mxu0 %v2767
        %3207 = vmatmul.mubr.bf16.gmra.mxu0 %v2766
        %v3208 = vpop.f32.mrf.mxu0
        %v3209 = vadd.f32 %v2837, %v3208
        %v3210 = vpop.f32.mrf.mxu0
        %v3211 = vadd.f32 %v2841, %v3210
        %v3212 = vpop.f32.mrf.mxu0
        %v3213 = vpop.f32.mrf.mxu0
        %3214 = vdwg.mxu0
        %3215 = vmatprep.subr.bf16.mxu0 %v3077
        %3216 = vmatpush1.bf16.msra.mxu0 %v3076
        %3217 = vmatprep.subr.bf16.mxu0 %v3073
        %3218 = vmatpush1.bf16.msra.mxu0 %v3072
        %3219 = vmatprep.subr.bf16.mxu0 %v3069
        %3220 = vmatpush1.bf16.msra.mxu0 %v3068
        %3221 = vmatprep.subr.bf16.mxu0 %v3065
        %3222 = vmatpush1.bf16.msra.mxu0 %v3064
        %3223 = vmatprep.subr.bf16.mxu0 %v3061
        %3224 = vmatpush1.bf16.msra.mxu0 %v3060
        %3225 = vmatprep.subr.bf16.mxu0 %v3057
        %3226 = vmatpush1.bf16.msra.mxu0 %v3056
        %3227 = vmatprep.subr.bf16.mxu0 %v3053
        %3228 = vmatpush1.bf16.msra.mxu0 %v3052
        %3229 = vmatprep.subr.bf16.mxu0 %v3049
        %3230 = vmatpush1.bf16.msra.mxu0 %v3048
        %3231 = vmatprep.subr.bf16.mxu0 %v3109
        %3232 = vmatpush2.bf16.msra.mxu0 %v3108
        %3233 = vmatprep.subr.bf16.mxu0 %v3105
        %3234 = vmatpush2.bf16.msra.mxu0 %v3104
        %3235 = vmatprep.subr.bf16.mxu0 %v3101
        %3236 = vmatpush2.bf16.msra.mxu0 %v3100
        %3237 = vmatprep.subr.bf16.mxu0 %v3097
        %3238 = vmatpush2.bf16.msra.mxu0 %v3096
        %3239 = vmatprep.subr.bf16.mxu0 %v3093
        %3240 = vmatpush2.bf16.msra.mxu0 %v3092
        %3241 = vmatprep.subr.bf16.mxu0 %v3089
        %3242 = vmatpush2.bf16.msra.mxu0 %v3088
        %3243 = vmatprep.subr.bf16.mxu0 %v3085
        %3244 = vmatpush2.bf16.msra.mxu0 %v3084
        %3245 = vmatprep.subr.bf16.mxu0 %v3081
        %3246 = vmatpush2.bf16.msra.mxu0 %v3080
        %3247 = vmatprep.mubr.bf16.mxu0 %v2767
        %3248 = vmatmul.mubr.bf16.gmra.mxu0 %v2766
        %v3249 = vpop.f32.mrf.mxu0
        %v3250 = vadd.f32 %v2845, %v3249
        %v3251 = vpop.f32.mrf.mxu0
        %v3252 = vadd.f32 %v2849, %v3251
        %v3253 = vpop.f32.mrf.mxu0
        %v3254 = vpop.f32.mrf.mxu0
        %3255 = vdwg.mxu0
        %v3256 = vmul.f32 %v3209, 0.5
        %v3257 = vmul.f32 %v3211, 0.5
        %v3258 = vmul.f32 %v3250, 0.5
        %v3259 = vmul.f32 %v3252, 0.5
        %v3260 = vmul.f32 %v3209, 0.70710677
        %v3261 = vmul.f32 %v3211, 0.70710677
        %v3262 = vmul.f32 %v3250, 0.70710677
        %v3263 = vmul.f32 %v3252, 0.70710677
        %v3264 = verf.f32.pop %v3260
        %v3265 = verf.f32.pop %v3261
        %v3266 = verf.f32.pop %v3262
        %v3267 = verf.f32.pop %v3263
        %v3268 = vadd.f32 %v3264, 1.0
        %v3269 = vadd.f32 %v3265, 1.0
        %v3270 = vadd.f32 %v3266, 1.0
        %v3271 = vadd.f32 %v3267, 1.0
        %v3272 = vmul.f32 %v3256, %v3268
        %v3273 = vmul.f32 %v3257, %v3269
        %v3274 = vmul.f32 %v3258, %v3270
        %v3275 = vmul.f32 %v3259, %v3271
        %v3276 = vpack.c.bf16 %v3272, %v3272
        %v3277 = vpack.c.bf16 %v3273, %v3273
        %v3278 = vpack.c.bf16 %v3274, %v3274
        %v3279 = vpack.c.bf16 %v3275, %v3275
        %v3280 = vld [vmem:[#allocation14] sm:$0xff]
        %v3281 = vld [vmem:[#allocation14 + $0x8] sm:$0xff]
        %v3282 = vld [vmem:[#allocation14 + $0x10] sm:$0xff]
        %v3283 = vld [vmem:[#allocation14 + $0x18] sm:$0xff]
        %v3284 = vld [vmem:[#allocation14 + $0x20] sm:$0xff]
        %v3285 = vld [vmem:[#allocation14 + $0x28] sm:$0xff]
        %v3286 = vld [vmem:[#allocation14 + $0x30] sm:$0xff]
        %v3287 = vld [vmem:[#allocation14 + $0x38] sm:$0xff]
        %v3288 = vld [vmem:[#allocation14 + $0x40] sm:$0xff]
        %v3289 = vld [vmem:[#allocation14 + $0x48] sm:$0xff]
        %v3290 = vld [vmem:[#allocation14 + $0x50] sm:$0xff]
        %v3291 = vld [vmem:[#allocation14 + $0x58] sm:$0xff]
        %v3292 = vld [vmem:[#allocation14 + $0x60] sm:$0xff]
        %v3293 = vld [vmem:[#allocation14 + $0x68] sm:$0xff]
        %v3294 = vld [vmem:[#allocation14 + $0x70] sm:$0xff]
        %v3295 = vld [vmem:[#allocation14 + $0x78] sm:$0xff]
        %v3296 = vld [vmem:[#allocation14 + $0x80] sm:$0xff]
        %v3297 = vld [vmem:[#allocation14 + $0x88] sm:$0xff]
        %v3298 = vld [vmem:[#allocation14 + $0x90] sm:$0xff]
        %v3299 = vld [vmem:[#allocation14 + $0x98] sm:$0xff]
        %v3300 = vld [vmem:[#allocation14 + $0xa0] sm:$0xff]
        %v3301 = vld [vmem:[#allocation14 + $0xa8] sm:$0xff]
        %v3302 = vld [vmem:[#allocation14 + $0xb0] sm:$0xff]
        %v3303 = vld [vmem:[#allocation14 + $0xb8] sm:$0xff]
        %v3304 = vld [vmem:[#allocation14 + $0xc0] sm:$0xff]
        %v3305 = vld [vmem:[#allocation14 + $0xc8] sm:$0xff]
        %v3306 = vld [vmem:[#allocation14 + $0xd0] sm:$0xff]
        %v3307 = vld [vmem:[#allocation14 + $0xd8] sm:$0xff]
        %v3308 = vld [vmem:[#allocation14 + $0xe0] sm:$0xff]
        %v3309 = vld [vmem:[#allocation14 + $0xe8] sm:$0xff]
        %v3310 = vld [vmem:[#allocation14 + $0xf0] sm:$0xff]
        %v3311 = vld [vmem:[#allocation14 + $0xf8] sm:$0xff]
        %v3312 = vld [vmem:[#allocation14 + $0x100] sm:$0xff]
        %v3313 = vld [vmem:[#allocation14 + $0x108] sm:$0xff]
        %v3314 = vld [vmem:[#allocation14 + $0x110] sm:$0xff]
        %v3315 = vld [vmem:[#allocation14 + $0x118] sm:$0xff]
        %v3316 = vld [vmem:[#allocation14 + $0x120] sm:$0xff]
        %v3317 = vld [vmem:[#allocation14 + $0x128] sm:$0xff]
        %v3318 = vld [vmem:[#allocation14 + $0x130] sm:$0xff]
        %v3319 = vld [vmem:[#allocation14 + $0x138] sm:$0xff]
        %v3320 = vld [vmem:[#allocation14 + $0x140] sm:$0xff]
        %v3321 = vld [vmem:[#allocation14 + $0x148] sm:$0xff]
        %v3322 = vld [vmem:[#allocation14 + $0x150] sm:$0xff]
        %v3323 = vld [vmem:[#allocation14 + $0x158] sm:$0xff]
        %v3324 = vld [vmem:[#allocation14 + $0x160] sm:$0xff]
        %v3325 = vld [vmem:[#allocation14 + $0x168] sm:$0xff]
        %v3326 = vld [vmem:[#allocation14 + $0x170] sm:$0xff]
        %v3327 = vld [vmem:[#allocation14 + $0x178] sm:$0xff]
        %v3328 = vld [vmem:[#allocation14 + $0x180] sm:$0xff]
        %v3329 = vld [vmem:[#allocation14 + $0x188] sm:$0xff]
        %v3330 = vld [vmem:[#allocation14 + $0x190] sm:$0xff]
        %v3331 = vld [vmem:[#allocation14 + $0x198] sm:$0xff]
        %v3332 = vld [vmem:[#allocation14 + $0x1a0] sm:$0xff]
        %v3333 = vld [vmem:[#allocation14 + $0x1a8] sm:$0xff]
        %v3334 = vld [vmem:[#allocation14 + $0x1b0] sm:$0xff]
        %v3335 = vld [vmem:[#allocation14 + $0x1b8] sm:$0xff]
        %v3336 = vld [vmem:[#allocation14 + $0x1c0] sm:$0xff]
        %v3337 = vld [vmem:[#allocation14 + $0x1c8] sm:$0xff]
        %v3338 = vld [vmem:[#allocation14 + $0x1d0] sm:$0xff]
        %v3339 = vld [vmem:[#allocation14 + $0x1d8] sm:$0xff]
        %v3340 = vld [vmem:[#allocation14 + $0x1e0] sm:$0xff]
        %v3341 = vld [vmem:[#allocation14 + $0x1e8] sm:$0xff]
        %v3342 = vld [vmem:[#allocation14 + $0x1f0] sm:$0xff]
        %v3343 = vld [vmem:[#allocation14 + $0x1f8] sm:$0xff]
        %v3344 = vld [vmem:[%s12] sm:$0x3]
        %v3346 = vlaneseq
        %v3347 = vshrl.u32 %v3346, 7
        %v3348 = vsub.s32 0, %v3347
        %v3349 = vrot.slane %v3344, %v3348
        %v3350 = vlaneseq
        %v3351 = vshrl.u32 %v3350, 7
        %v3352 = vsub.s32 1, %v3351
        %v3353 = vrot.slane %v3344, %v3352
        %v3420 = vunpack.c.l.b16 %v3280
        %v3421 = vunpack.c.h.b16 %v3280
        %v3422 = vunpack.c.l.b16 %v3281
        %v3423 = vunpack.c.h.b16 %v3281
        %v3424 = vunpack.c.l.b16 %v3282
        %v3425 = vunpack.c.h.b16 %v3282
        %v3426 = vunpack.c.l.b16 %v3283
        %v3427 = vunpack.c.h.b16 %v3283
        %v3428 = vunpack.c.l.b16 %v3284
        %v3429 = vunpack.c.h.b16 %v3284
        %v3430 = vunpack.c.l.b16 %v3285
        %v3431 = vunpack.c.h.b16 %v3285
        %v3432 = vunpack.c.l.b16 %v3286
        %v3433 = vunpack.c.h.b16 %v3286
        %v3434 = vunpack.c.l.b16 %v3287
        %v3435 = vunpack.c.h.b16 %v3287
        %v3436 = vunpack.c.l.b16 %v3288
        %v3437 = vunpack.c.h.b16 %v3288
        %v3438 = vunpack.c.l.b16 %v3289
        %v3439 = vunpack.c.h.b16 %v3289
        %v3440 = vunpack.c.l.b16 %v3290
        %v3441 = vunpack.c.h.b16 %v3290
        %v3442 = vunpack.c.l.b16 %v3291
        %v3443 = vunpack.c.h.b16 %v3291
        %v3444 = vunpack.c.l.b16 %v3292
        %v3445 = vunpack.c.h.b16 %v3292
        %v3446 = vunpack.c.l.b16 %v3293
        %v3447 = vunpack.c.h.b16 %v3293
        %v3448 = vunpack.c.l.b16 %v3294
        %v3449 = vunpack.c.h.b16 %v3294
        %v3450 = vunpack.c.l.b16 %v3295
        %v3451 = vunpack.c.h.b16 %v3295
        %v3452 = vunpack.c.l.b16 %v3296
        %v3453 = vunpack.c.h.b16 %v3296
        %v3454 = vunpack.c.l.b16 %v3297
        %v3455 = vunpack.c.h.b16 %v3297
        %v3456 = vunpack.c.l.b16 %v3298
        %v3457 = vunpack.c.h.b16 %v3298
        %v3458 = vunpack.c.l.b16 %v3299
        %v3459 = vunpack.c.h.b16 %v3299
        %v3460 = vunpack.c.l.b16 %v3300
        %v3461 = vunpack.c.h.b16 %v3300
        %v3462 = vunpack.c.l.b16 %v3301
        %v3463 = vunpack.c.h.b16 %v3301
        %v3464 = vunpack.c.l.b16 %v3302
        %v3465 = vunpack.c.h.b16 %v3302
        %v3466 = vunpack.c.l.b16 %v3303
        %v3467 = vunpack.c.h.b16 %v3303
        %v3468 = vunpack.c.l.b16 %v3304
        %v3469 = vunpack.c.h.b16 %v3304
        %v3470 = vunpack.c.l.b16 %v3305
        %v3471 = vunpack.c.h.b16 %v3305
        %v3472 = vunpack.c.l.b16 %v3306
        %v3473 = vunpack.c.h.b16 %v3306
        %v3474 = vunpack.c.l.b16 %v3307
        %v3475 = vunpack.c.h.b16 %v3307
        %v3476 = vunpack.c.l.b16 %v3308
        %v3477 = vunpack.c.h.b16 %v3308
        %v3478 = vunpack.c.l.b16 %v3309
        %v3479 = vunpack.c.h.b16 %v3309
        %v3480 = vunpack.c.l.b16 %v3310
        %v3481 = vunpack.c.h.b16 %v3310
        %v3482 = vunpack.c.l.b16 %v3311
        %v3483 = vunpack.c.h.b16 %v3311
        %v3484 = vunpack.c.l.b16 %v3312
        %v3485 = vunpack.c.h.b16 %v3312
        %v3486 = vunpack.c.l.b16 %v3313
        %v3487 = vunpack.c.h.b16 %v3313
        %v3488 = vunpack.c.l.b16 %v3314
        %v3489 = vunpack.c.h.b16 %v3314
        %v3490 = vunpack.c.l.b16 %v3315
        %v3491 = vunpack.c.h.b16 %v3315
        %v3492 = vunpack.c.l.b16 %v3316
        %v3493 = vunpack.c.h.b16 %v3316
        %v3494 = vunpack.c.l.b16 %v3317
        %v3495 = vunpack.c.h.b16 %v3317
        %v3496 = vunpack.c.l.b16 %v3318
        %v3497 = vunpack.c.h.b16 %v3318
        %v3498 = vunpack.c.l.b16 %v3319
        %v3499 = vunpack.c.h.b16 %v3319
        %v3500 = vunpack.c.l.b16 %v3320
        %v3501 = vunpack.c.h.b16 %v3320
        %v3502 = vunpack.c.l.b16 %v3321
        %v3503 = vunpack.c.h.b16 %v3321
        %v3504 = vunpack.c.l.b16 %v3322
        %v3505 = vunpack.c.h.b16 %v3322
        %v3506 = vunpack.c.l.b16 %v3323
        %v3507 = vunpack.c.h.b16 %v3323
        %v3508 = vunpack.c.l.b16 %v3324
        %v3509 = vunpack.c.h.b16 %v3324
        %v3510 = vunpack.c.l.b16 %v3325
        %v3511 = vunpack.c.h.b16 %v3325
        %v3512 = vunpack.c.l.b16 %v3326
        %v3513 = vunpack.c.h.b16 %v3326
        %v3514 = vunpack.c.l.b16 %v3327
        %v3515 = vunpack.c.h.b16 %v3327
        %v3516 = vunpack.c.l.b16 %v3328
        %v3517 = vunpack.c.h.b16 %v3328
        %v3518 = vunpack.c.l.b16 %v3329
        %v3519 = vunpack.c.h.b16 %v3329
        %v3520 = vunpack.c.l.b16 %v3330
        %v3521 = vunpack.c.h.b16 %v3330
        %v3522 = vunpack.c.l.b16 %v3331
        %v3523 = vunpack.c.h.b16 %v3331
        %v3524 = vunpack.c.l.b16 %v3332
        %v3525 = vunpack.c.h.b16 %v3332
        %v3526 = vunpack.c.l.b16 %v3333
        %v3527 = vunpack.c.h.b16 %v3333
        %v3528 = vunpack.c.l.b16 %v3334
        %v3529 = vunpack.c.h.b16 %v3334
        %v3530 = vunpack.c.l.b16 %v3335
        %v3531 = vunpack.c.h.b16 %v3335
        %v3532 = vunpack.c.l.b16 %v3336
        %v3533 = vunpack.c.h.b16 %v3336
        %v3534 = vunpack.c.l.b16 %v3337
        %v3535 = vunpack.c.h.b16 %v3337
        %v3536 = vunpack.c.l.b16 %v3338
        %v3537 = vunpack.c.h.b16 %v3338
        %v3538 = vunpack.c.l.b16 %v3339
        %v3539 = vunpack.c.h.b16 %v3339
        %v3540 = vunpack.c.l.b16 %v3340
        %v3541 = vunpack.c.h.b16 %v3340
        %v3542 = vunpack.c.l.b16 %v3341
        %v3543 = vunpack.c.h.b16 %v3341
        %v3544 = vunpack.c.l.b16 %v3342
        %v3545 = vunpack.c.h.b16 %v3342
        %v3546 = vunpack.c.l.b16 %v3343
        %v3547 = vunpack.c.h.b16 %v3343
        %v3548 = vpack.c.b16 %v3422, %v3420
        %v3549 = vpack.c.b16 %v3423, %v3421
        %v3550 = vpack.c.b16 %v3426, %v3424
        %v3551 = vpack.c.b16 %v3427, %v3425
        %v3552 = vpack.c.b16 %v3430, %v3428
        %v3553 = vpack.c.b16 %v3431, %v3429
        %v3554 = vpack.c.b16 %v3434, %v3432
        %v3555 = vpack.c.b16 %v3435, %v3433
        %v3556 = vpack.c.b16 %v3438, %v3436
        %v3557 = vpack.c.b16 %v3439, %v3437
        %v3558 = vpack.c.b16 %v3442, %v3440
        %v3559 = vpack.c.b16 %v3443, %v3441
        %v3560 = vpack.c.b16 %v3446, %v3444
        %v3561 = vpack.c.b16 %v3447, %v3445
        %v3562 = vpack.c.b16 %v3450, %v3448
        %v3563 = vpack.c.b16 %v3451, %v3449
        %v3564 = vpack.c.b16 %v3454, %v3452
        %v3565 = vpack.c.b16 %v3455, %v3453
        %v3566 = vpack.c.b16 %v3458, %v3456
        %v3567 = vpack.c.b16 %v3459, %v3457
        %v3568 = vpack.c.b16 %v3462, %v3460
        %v3569 = vpack.c.b16 %v3463, %v3461
        %v3570 = vpack.c.b16 %v3466, %v3464
        %v3571 = vpack.c.b16 %v3467, %v3465
        %v3572 = vpack.c.b16 %v3470, %v3468
        %v3573 = vpack.c.b16 %v3471, %v3469
        %v3574 = vpack.c.b16 %v3474, %v3472
        %v3575 = vpack.c.b16 %v3475, %v3473
        %v3576 = vpack.c.b16 %v3478, %v3476
        %v3577 = vpack.c.b16 %v3479, %v3477
        %v3578 = vpack.c.b16 %v3482, %v3480
        %v3579 = vpack.c.b16 %v3483, %v3481
        %v3580 = vpack.c.b16 %v3486, %v3484
        %v3581 = vpack.c.b16 %v3487, %v3485
        %v3582 = vpack.c.b16 %v3490, %v3488
        %v3583 = vpack.c.b16 %v3491, %v3489
        %v3584 = vpack.c.b16 %v3494, %v3492
        %v3585 = vpack.c.b16 %v3495, %v3493
        %v3586 = vpack.c.b16 %v3498, %v3496
        %v3587 = vpack.c.b16 %v3499, %v3497
        %v3588 = vpack.c.b16 %v3502, %v3500
        %v3589 = vpack.c.b16 %v3503, %v3501
        %v3590 = vpack.c.b16 %v3506, %v3504
        %v3591 = vpack.c.b16 %v3507, %v3505
        %v3592 = vpack.c.b16 %v3510, %v3508
        %v3593 = vpack.c.b16 %v3511, %v3509
        %v3594 = vpack.c.b16 %v3514, %v3512
        %v3595 = vpack.c.b16 %v3515, %v3513
        %v3596 = vpack.c.b16 %v3518, %v3516
        %v3597 = vpack.c.b16 %v3519, %v3517
        %v3598 = vpack.c.b16 %v3522, %v3520
        %v3599 = vpack.c.b16 %v3523, %v3521
        %v3600 = vpack.c.b16 %v3526, %v3524
        %v3601 = vpack.c.b16 %v3527, %v3525
        %v3602 = vpack.c.b16 %v3530, %v3528
        %v3603 = vpack.c.b16 %v3531, %v3529
        %v3604 = vpack.c.b16 %v3534, %v3532
        %v3605 = vpack.c.b16 %v3535, %v3533
        %v3606 = vpack.c.b16 %v3538, %v3536
        %v3607 = vpack.c.b16 %v3539, %v3537
        %v3608 = vpack.c.b16 %v3542, %v3540
        %v3609 = vpack.c.b16 %v3543, %v3541
        %v3610 = vpack.c.b16 %v3546, %v3544
        %v3611 = vpack.c.b16 %v3547, %v3545
        %3676 = vmatprep.subr.bf16.mxu0 %v3563
        %3677 = vmatpush1.bf16.msra.mxu0 %v3562
        %3678 = vmatprep.subr.bf16.mxu0 %v3561
        %3679 = vmatpush1.bf16.msra.mxu0 %v3560
        %3680 = vmatprep.subr.bf16.mxu0 %v3559
        %3681 = vmatpush1.bf16.msra.mxu0 %v3558
        %3682 = vmatprep.subr.bf16.mxu0 %v3557
        %3683 = vmatpush1.bf16.msra.mxu0 %v3556
        %3684 = vmatprep.subr.bf16.mxu0 %v3555
        %3685 = vmatpush1.bf16.msra.mxu0 %v3554
        %3686 = vmatprep.subr.bf16.mxu0 %v3553
        %3687 = vmatpush1.bf16.msra.mxu0 %v3552
        %3688 = vmatprep.subr.bf16.mxu0 %v3551
        %3689 = vmatpush1.bf16.msra.mxu0 %v3550
        %3690 = vmatprep.subr.bf16.mxu0 %v3549
        %3691 = vmatpush1.bf16.msra.mxu0 %v3548
        %3692 = vmatprep.subr.bf16.mxu0 %v3579
        %3693 = vmatpush2.bf16.msra.mxu0 %v3578
        %3694 = vmatprep.subr.bf16.mxu0 %v3577
        %3695 = vmatpush2.bf16.msra.mxu0 %v3576
        %3696 = vmatprep.subr.bf16.mxu0 %v3575
        %3697 = vmatpush2.bf16.msra.mxu0 %v3574
        %3698 = vmatprep.subr.bf16.mxu0 %v3573
        %3699 = vmatpush2.bf16.msra.mxu0 %v3572
        %3700 = vmatprep.subr.bf16.mxu0 %v3571
        %3701 = vmatpush2.bf16.msra.mxu0 %v3570
        %3702 = vmatprep.subr.bf16.mxu0 %v3569
        %3703 = vmatpush2.bf16.msra.mxu0 %v3568
        %3704 = vmatprep.subr.bf16.mxu0 %v3567
        %3705 = vmatpush2.bf16.msra.mxu0 %v3566
        %3706 = vmatprep.subr.bf16.mxu0 %v3565
        %3707 = vmatpush2.bf16.msra.mxu0 %v3564
        %3708 = vmatprep.mubr.bf16.mxu0 %v3277
        %3709 = vmatmul.mubr.bf16.gmra.mxu0 %v3276
        %v3710 = vpop.f32.mrf.mxu0
        %v3711 = vadd.f32 %v3349, %v3710
        %v3712 = vpop.f32.mrf.mxu0
        %v3713 = vadd.f32 %v3353, %v3712
        %v3714 = vpop.f32.mrf.mxu0
        %v3715 = vpop.f32.mrf.mxu0
        %3716 = vdwg.mxu0
        %3717 = vmatprep.subr.bf16.mxu0 %v3595
        %3718 = vmatpush1.bf16.msra.mxu0 %v3594
        %3719 = vmatprep.subr.bf16.mxu0 %v3593
        %3720 = vmatpush1.bf16.msra.mxu0 %v3592
        %3721 = vmatprep.subr.bf16.mxu0 %v3591
        %3722 = vmatpush1.bf16.msra.mxu0 %v3590
        %3723 = vmatprep.subr.bf16.mxu0 %v3589
        %3724 = vmatpush1.bf16.msra.mxu0 %v3588
        %3725 = vmatprep.subr.bf16.mxu0 %v3587
        %3726 = vmatpush1.bf16.msra.mxu0 %v3586
        %3727 = vmatprep.subr.bf16.mxu0 %v3585
        %3728 = vmatpush1.bf16.msra.mxu0 %v3584
        %3729 = vmatprep.subr.bf16.mxu0 %v3583
        %3730 = vmatpush1.bf16.msra.mxu0 %v3582
        %3731 = vmatprep.subr.bf16.mxu0 %v3581
        %3732 = vmatpush1.bf16.msra.mxu0 %v3580
        %3733 = vmatprep.subr.bf16.mxu0 %v3611
        %3734 = vmatpush2.bf16.msra.mxu0 %v3610
        %3735 = vmatprep.subr.bf16.mxu0 %v3609
        %3736 = vmatpush2.bf16.msra.mxu0 %v3608
        %3737 = vmatprep.subr.bf16.mxu0 %v3607
        %3738 = vmatpush2.bf16.msra.mxu0 %v3606
        %3739 = vmatprep.subr.bf16.mxu0 %v3605
        %3740 = vmatpush2.bf16.msra.mxu0 %v3604
        %3741 = vmatprep.subr.bf16.mxu0 %v3603
        %3742 = vmatpush2.bf16.msra.mxu0 %v3602
        %3743 = vmatprep.subr.bf16.mxu0 %v3601
        %3744 = vmatpush2.bf16.msra.mxu0 %v3600
        %3745 = vmatprep.subr.bf16.mxu0 %v3599
        %3746 = vmatpush2.bf16.msra.mxu0 %v3598
        %3747 = vmatprep.subr.bf16.mxu0 %v3597
        %3748 = vmatpush2.bf16.msra.mxu0 %v3596
        %3749 = vmatprep.mubr.bf16.mxu0 %v3279
        %3750 = vmatmul.mubr.bf16.gmra.mxu0 %v3278
        %v3751 = vpop.f32.mrf.mxu0
        %v3752 = vadd.f32 %v3711, %v3751
        %v3753 = vpop.f32.mrf.mxu0
        %v3754 = vadd.f32 %v3713, %v3753
        %v3755 = vpop.f32.mrf.mxu0
        %v3756 = vpop.f32.mrf.mxu0
        %3757 = vdwg.mxu0
        %v3758 = vadd.f32 %v2719, %v3752
        %v3759 = vadd.f32 %v2720, %v3754
        %3760 = vst [vmem:[%s564] sm:$0xff] %v3758
        %3761 = vst [vmem:[%s564 + $0x8] sm:$0xff] %v3759
        %s3762 = sand.u32 %s340, 1
        %s3763 = scalar_lea.sflag [#allocation7], %s3762
        %s3764 = sand.u32 %s340, 1
        %s3765 = smul.addr %s3764, 16
        %s3766 = scalar_lea.vmem [#allocation16], %s3765
        // Predicated region
        $region101: #{tpu_custom_call.1} parent=71 // pred_check
          %p3767 = pneg %p350
        $region102: #{tpu_custom_call.1} parent=71 // pred_check_branch
          %3769 = sbr.rel (%p3767) target = $region104
        $region103: #{tpu_custom_call.1} parent=71 // pred_region
          %s3771 = ssub.s32 256, 256
          %3772 = vsyncadd %s3763, %s3771
          %s3773 = smul.addr %s40, 2
          %s3774 = smul.addr %s39, 4
          %s3775 = sadd.s32 %s3773, %s3774
          %s3776 = smul.addr %s3775, 128
          %s3777 = scalar_lea.hbm %s13, %s3776
          %s3779 = sshll.u32 %s3766, 4
          %s3780 = int_to_ptr.vmem [resolvable:$true] %s3779
          %3782 = dma.vmem_to_hbm [thread:$0]  %s3780, 256, %s3777, %s3763
        $region104: #{tpu_custom_call.1} parent=71 // pred_fallthru
          _
      $region72: #{tpu_custom_call.1} parent=5 // pred_fallthru
        _
      %p3783 = scmp.le.s32.totalorder 2, %s30
      // Predicated region
      $region105: #{tpu_custom_call.1} parent=5 // pred_check
        %p3784 = pneg %p3783
      $region106: #{tpu_custom_call.1} parent=5 // pred_check_branch
        %3786 = sbr.rel (%p3784) target = $region108
      $region107: #{tpu_custom_call.1} parent=5 // pred_region
        %s3787 = ssub.s32 %s30, 2
        // Predicated region
        $region109: #{tpu_custom_call.1} parent=107 // pred_check
          %p3788 = pneg %p356
        $region110: #{tpu_custom_call.1} parent=107 // pred_check_branch
          %3790 = sbr.rel (%p3788) target = $region112
        $region111: #{tpu_custom_call.1} parent=107 // pred_region
          %s3791 = sand.u32 %s341, 1
          %s3792 = scalar_lea.sflag [#allocation7], %s3791
          %s3793 = sand.u32 %s341, 1
          %s3794 = smul.addr %s3793, 16
          %s3795 = scalar_lea.vmem [#allocation16], %s3794
          %3796 = dma.done %s3792, 256
        $region112: #{tpu_custom_call.1} parent=107 // pred_fallthru
          _
      $region108: #{tpu_custom_call.1} parent=5 // pred_fallthru
        _
    $region6: #{tpu_custom_call.1} parent=1 // loop_footer
      %s34 = sadd.s32 1, %s30
    $region7: #{tpu_custom_call.1} parent=1 // loop_footer_branch
      %29 = sbr.rel target = $region3
    $region8: #{tpu_custom_call.1} parent=1 // loop_exit
      _
    %3797 = vsyncpa [#allocation6], 1
    %s3798 = scalar_lea.sflag [#allocation6], 1
    %3799 = vsyncpa %s3798, 1
    %3800 = vsyncpa [#allocation9], 1
    %s3801 = scalar_lea.sflag [#allocation9], 1
    %3802 = vsyncpa %s3801, 1
    %3803 = vsyncpa [#allocation12], 1
    %3804 = vsyncpa [#allocation15], 1
    %3805 = vsyncpa [#allocation7], 1
    %s3806 = scalar_lea.sflag [#allocation7], 1
    %3807 = vsyncpa %s3806, 1

// kernel: tpu_custom_call.1
$region0: #{tpu_custom_call.1}
  #allocation0 [shape = 'u32[]', space=smem, size = 0x4, offset = 0x4, fixed_abs, tag = 'smem constant byte address 0x4 - core index']
  #allocation1 [shape = 'u32[144,128]{1,0:T(1,128)}', space=vmem, size = 0x12000, scoped, tag = 'internal scratch']
  #allocation2 [shape = 'bf16[2,16,128]{2,1,0:T(8,128)(2,1)}', space=vmem, size = 0x2000, scoped, tag = 'scratch operand']
  #allocation3 [shape = 'bf16[2,16,128]{2,1,0:T(8,128)(2,1)}', space=vmem, size = 0x2000, scoped, tag = 'scratch operand']
  #allocation4 [shape = 'bf16[2,16,128]{2,1,0:T(8,128)(2,1)}', space=vmem, size = 0x2000, scoped, tag = 'scratch operand']
  %s0 = inlined_call_operand.hbm [shape: f32[2,16,256], index: 0, kind: input, shape index: {}]
  %s1 = inlined_call_operand.hbm [shape: f32[2,1,16], index: 1, kind: input, shape index: {}]
  %s2 = inlined_call_operand.hbm [shape: bf16[256,768], index: 2, kind: input, shape index: {}]
  %s3 = inlined_call_operand.hbm [shape: bf16[256,256], index: 3, kind: input, shape index: {}]
  %s4 = inlined_call_operand.vmem [shape: f32[1,256], index: 4, kind: input, shape index: {}]
  %s5 = inlined_call_operand.vmem [shape: f32[1,256], index: 5, kind: input, shape index: {}]
  %s6 = inlined_call_operand.vmem [shape: f32[1,256], index: 6, kind: input, shape index: {}]
  %s7 = inlined_call_operand.vmem [shape: f32[1,256], index: 7, kind: input, shape index: {}]
  %s8 = inlined_call_operand.vmem [shape: f32[1,256], index: 8, kind: input, shape index: {}]
  %s9 = inlined_call_operand.hbm [shape: bf16[256,512], index: 9, kind: input, shape index: {}]
  %s10 = inlined_call_operand.vmem [shape: f32[1,512], index: 10, kind: input, shape index: {}]
  %s11 = inlined_call_operand.hbm [shape: bf16[512,256], index: 11, kind: input, shape index: {}]
  %s12 = inlined_call_operand.vmem [shape: f32[1,256], index: 12, kind: input, shape index: {}]
  %s13 = inlined_call_operand.hbm [shape: f32[2,16,256], index: 13, kind: output, shape index: {}]
  %s14 = sld [smem:[#allocation0]]
  $region113: #{tpu_custom_call.1} parent=0
    _
  %s16 = ssub.s32 1, %s14
  %s17 = scalar_select 0, %s16, %s14
  $region1: #{tpu_custom_call.1} parent=0
    #allocation5 [shape = 'u8[32768]{0}', space=vmem, size = 0x8000, scoped, tag = 'input window, operand 0']
    #allocation6 [shape = 's32[2]{0}', space=sflag, size = 0x8, scoped, tag = 'scoped memory for tpu_custom_call.1']
    #allocation7 [shape = 's32[2]{0}', space=sflag, size = 0x8, scoped, tag = 'scoped memory for tpu_custom_call.1']
    #allocation8 [shape = 'u8[1024]{0}', space=vmem, size = 0x400, scoped, tag = 'input window, operand 1']
    #allocation9 [shape = 's32[2]{0}', space=sflag, size = 0x8, scoped, tag = 'scoped memory for tpu_custom_call.1']
    #allocation10 [shape = 'u8[393216]{0}', space=vmem, size = 0x60000, scoped, tag = 'input window, operand 2, single buffered']
    #allocation11 [shape = 'u8[131072]{0}', space=vmem, size = 0x20000, scoped, tag = 'input window, operand 3, single buffered']
    #allocation12 [shape = 's32[1]{0}', space=sflag, size = 0x4, scoped, tag = 'scoped memory for tpu_custom_call.1']
    #allocation13 [shape = 'u8[262144]{0}', space=vmem, size = 0x40000, scoped, tag = 'input window, operand 9, single buffered']
    #allocation14 [shape = 'u8[262144]{0}', space=vmem, size = 0x40000, scoped, tag = 'input window, operand 11, single buffered']
    #allocation15 [shape = 's32[1]{0}', space=sflag, size = 0x4, scoped, tag = 'scoped memory for tpu_custom_call.1']
    #allocation16 [shape = 'u8[16384]{0}', space=vmem, size = 0x4000, scoped, tag = 'output window, operand 0']
    %18 = vsyncpa [#allocation6], 0
    %s19 = scalar_lea.sflag [#allocation6], 1
    %20 = vsyncpa %s19, 0
    %21 = vsyncpa [#allocation9], 0
    %s22 = scalar_lea.sflag [#allocation9], 1
    %23 = vsyncpa %s22, 0
    %24 = vsyncpa [#allocation12], 0
    %25 = vsyncpa [#allocation15], 0
    %26 = vsyncpa [#allocation7], 0
    %s27 = scalar_lea.sflag [#allocation7], 1
    %28 = vsyncpa %s27, 0
    loop: start=0, step=1, limit=6
    $region2: #{tpu_custom_call.1} parent=1 // loop_pre_header
      _
    $region3: #{tpu_custom_call.1} parent=1 // loop_header
      %s30 = sphi 0, %s34
      %p31 = scmp.ge.s32.totalorder %s30, 6
      %s37 = sphi 0, %s49
      %s38 = sphi 0, %s45
      %s39 = sphi 0, %s37
      %s40 = sphi 0, %s38
      %s41 = sphi 0, %s39
      %s42 = sphi 0, %s40
      %s52 = sphi 0, %s54
      %s55 = sphi 0, %s52
      %s56 = sphi 0, %s55
      %s72 = sphi 0, %s56
      %s78 = sphi 0, %s80
      %s81 = sphi 0, %s78
      %s82 = sphi 0, %s81
      %s98 = sphi 0, %s82
      %s102 = sphi 0, %s102
      %s104 = sphi 0, %s102
      %s105 = sphi 0, %s104
      %s119 = sphi 0, %s105
      %s123 = sphi 0, %s123
      %s125 = sphi 0, %s123
      %s126 = sphi 0, %s125
      %s140 = sphi 0, %s126
      %s144 = sphi 0, %s144
      %s146 = sphi 0, %s144
      %s147 = sphi 0, %s146
      %s161 = sphi 0, %s147
      %s165 = sphi 0, %s165
      %s167 = sphi 0, %s165
      %s168 = sphi 0, %s167
      %s182 = sphi 0, %s168
      %s186 = sphi 0, %s186
      %s188 = sphi 0, %s186
      %s189 = sphi 0, %s188
      %s203 = sphi 0, %s189
      %s207 = sphi 0, %s207
      %s209 = sphi 0, %s207
      %s210 = sphi 0, %s209
      %s224 = sphi 0, %s210
      %s228 = sphi 0, %s228
      %s230 = sphi 0, %s228
      %s231 = sphi 0, %s230
      %s245 = sphi 0, %s231
      %s249 = sphi 0, %s249
      %s251 = sphi 0, %s249
      %s252 = sphi 0, %s251
      %s266 = sphi 0, %s252
      %s270 = sphi 0, %s270
      %s272 = sphi 0, %s270
      %s273 = sphi 0, %s272
      %s287 = sphi 0, %s273
      %s291 = sphi 0, %s291
      %s293 = sphi 0, %s291
      %s294 = sphi 0, %s293
      %s308 = sphi 0, %s294
      %s312 = sphi 0, %s312
      %s314 = sphi 0, %s312
      %s315 = sphi 0, %s314
      %s329 = sphi 0, %s315
      %s337 = sphi 0, %s339
      %s340 = sphi 0, %s337
      %s341 = sphi 0, %s340
      %s357 = sphi 0, %s341
    $region4: #{tpu_custom_call.1} parent=1 // loop_header_branch
      %33 = sbr.rel (%p31) target = $region8
    $region5: #{tpu_custom_call.1} parent=1 // loop_body
      %s35 = ssub.s32 %s30, 1
      %s36 = ssub.s32 %s30, 2
      %s43 = sadd.s32 1, %s38
      %p44 = scmp.ge.s32.totalorder %s43, 2
      %s45 = scalar_select %p44, 0, %s43
      %s46 = sadd.s32 1, %s37
      %s47 = scalar_select %p44, %s46, %s37
      %p48 = scmp.ge.s32.totalorder %s47, 2
      %s49 = scalar_select %p48, 0, %s47
      %s50 = ssub.s32 %s37, %s49
      %p51 = scmp.eq.s32.totalorder %s50, 0
      %s53 = sadd.s32 %s52, 1
      %s54 = scalar_select %p51, %s52, %s53
      %p57 = pneg %p51
      %p58 = scmp.eq.s32.totalorder %s30, 3
      %p59 = por %p57, %p58
      %p60 = scmp.ne.s32.totalorder %s52, %s55
      %p61 = scmp.eq.s32.totalorder %s30, 0
      %p62 = por %p60, %p61
      %p63 = scmp.ne.s32.totalorder %s52, %s55
      %p64 = scmp.eq.s32.totalorder %s35, 3
      %p65 = por %p63, %p64
      %p66 = scmp.ne.s32.totalorder %s55, %s56
      %p67 = scmp.eq.s32.totalorder %s35, 0
      %p68 = por %p66, %p67
      %p69 = scmp.ne.s32.totalorder %s55, %s56
      %p70 = scmp.eq.s32.totalorder %s36, 3
      %p71 = por %p69, %p70
      %p73 = scmp.ne.s32.totalorder %s56, %s72
      %p74 = scmp.eq.s32.totalorder %s36, 0
      %p75 = por %p73, %p74
      %s76 = ssub.s32 %s37, %s49
      %p77 = scmp.eq.s32.totalorder %s76, 0
      %s79 = sadd.s32 %s78, 1
      %s80 = scalar_select %p77, %s78, %s79
      %p83 = pneg %p77
      %p84 = scmp.eq.s32.totalorder %s30, 3
      %p85 = por %p83, %p84
      %p86 = scmp.ne.s32.totalorder %s78, %s81
      %p87 = scmp.eq.s32.totalorder %s30, 0
      %p88 = por %p86, %p87
      %p89 = scmp.ne.s32.totalorder %s78, %s81
      %p90 = scmp.eq.s32.totalorder %s35, 3
      %p91 = por %p89, %p90
      %p92 = scmp.ne.s32.totalorder %s81, %s82
      %p93 = scmp.eq.s32.totalorder %s35, 0
      %p94 = por %p92, %p93
      %p95 = scmp.ne.s32.totalorder %s81, %s82
      %p96 = scmp.eq.s32.totalorder %s36, 3
      %p97 = por %p95, %p96
      %p99 = scmp.ne.s32.totalorder %s82, %s98
      %p100 = scmp.eq.s32.totalorder %s36, 0
      %p101 = por %p99, %p100
      %s103 = sadd.s32 %s102, 1
      %p106 = scmp.eq.s32.totalorder %s30, 3
      %p107 = scmp.ne.s32.totalorder %s102, %s104
      %p108 = scmp.eq.s32.totalorder %s30, 0
      %p109 = por %p107, %p108
      %p110 = scmp.ne.s32.totalorder %s102, %s104
      %p111 = scmp.eq.s32.totalorder %s35, 3
      %p112 = por %p110, %p111
      %p113 = scmp.ne.s32.totalorder %s104, %s105
      %p114 = scmp.eq.s32.totalorder %s35, 0
      %p115 = por %p113, %p114
      %p116 = scmp.ne.s32.totalorder %s104, %s105
      %p117 = scmp.eq.s32.totalorder %s36, 3
      %p118 = por %p116, %p117
      %p120 = scmp.ne.s32.totalorder %s105, %s119
      %p121 = scmp.eq.s32.totalorder %s36, 0
      %p122 = por %p120, %p121
      %s124 = sadd.s32 %s123, 1
      %p127 = scmp.eq.s32.totalorder %s30, 3
      %p128 = scmp.ne.s32.totalorder %s123, %s125
      %p129 = scmp.eq.s32.totalorder %s30, 0
      %p130 = por %p128, %p129
      %p131 = scmp.ne.s32.totalorder %s123, %s125
      %p132 = scmp.eq.s32.totalorder %s35, 3
      %p133 = por %p131, %p132
      %p134 = scmp.ne.s32.totalorder %s125, %s126
      %p135 = scmp.eq.s32.totalorder %s35, 0
      %p136 = por %p134, %p135
      %p137 = scmp.ne.s32.totalorder %s125, %s126
      %p138 = scmp.eq.s32.totalorder %s36, 3
      %p139 = por %p137, %p138
      %p141 = scmp.ne.s32.totalorder %s126, %s140
      %p142 = scmp.eq.s32.totalorder %s36, 0
      %p143 = por %p141, %p142
      %s145 = sadd.s32 %s144, 1
      %p148 = scmp.eq.s32.totalorder %s30, 3
      %p149 = scmp.ne.s32.totalorder %s144, %s146
      %p150 = scmp.eq.s32.totalorder %s30, 0
      %p151 = por %p149, %p150
      %p152 = scmp.ne.s32.totalorder %s144, %s146
      %p153 = scmp.eq.s32.totalorder %s35, 3
      %p154 = por %p152, %p153
      %p155 = scmp.ne.s32.totalorder %s146, %s147
      %p156 = scmp.eq.s32.totalorder %s35, 0
      %p157 = por %p155, %p156
      %p158 = scmp.ne.s32.totalorder %s146, %s147
      %p159 = scmp.eq.s32.totalorder %s36, 3
      %p160 = por %p158, %p159
      %p162 = scmp.ne.s32.totalorder %s147, %s161
      %p163 = scmp.eq.s32.totalorder %s36, 0
      %p164 = por %p162, %p163
      %s166 = sadd.s32 %s165, 1
      %p169 = scmp.eq.s32.totalorder %s30, 3
      %p170 = scmp.ne.s32.totalorder %s165, %s167
      %p171 = scmp.eq.s32.totalorder %s30, 0
      %p172 = por %p170, %p171
      %p173 = scmp.ne.s32.totalorder %s165, %s167
      %p174 = scmp.eq.s32.totalorder %s35, 3
      %p175 = por %p173, %p174
      %p176 = scmp.ne.s32.totalorder %s167, %s168
      %p177 = scmp.eq.s32.totalorder %s35, 0
      %p178 = por %p176, %p177
      %p179 = scmp.ne.s32.totalorder %s167, %s168
      %p180 = scmp.eq.s32.totalorder %s36, 3
      %p181 = por %p179, %p180
      %p183 = scmp.ne.s32.totalorder %s168, %s182
      %p184 = scmp.eq.s32.totalorder %s36, 0
      %p185 = por %p183, %p184
      %s187 = sadd.s32 %s186, 1
      %p190 = scmp.eq.s32.totalorder %s30, 3
      %p191 = scmp.ne.s32.totalorder %s186, %s188
      %p192 = scmp.eq.s32.totalorder %s30, 0
      %p193 = por %p191, %p192
      %p194 = scmp.ne.s32.totalorder %s186, %s188
      %p195 = scmp.eq.s32.totalorder %s35, 3
      %p196 = por %p194, %p195
      %p197 = scmp.ne.s32.totalorder %s188, %s189
      %p198 = scmp.eq.s32.totalorder %s35, 0
      %p199 = por %p197, %p198
      %p200 = scmp.ne.s32.totalorder %s188, %s189
      %p201 = scmp.eq.s32.totalorder %s36, 3
      %p202 = por %p200, %p201
      %p204 = scmp.ne.s32.totalorder %s189, %s203
      %p205 = scmp.eq.s32.totalorder %s36, 0
      %p206 = por %p204, %p205
      %s208 = sadd.s32 %s207, 1
      %p211 = scmp.eq.s32.totalorder %s30, 3
      %p212 = scmp.ne.s32.totalorder %s207, %s209
      %p213 = scmp.eq.s32.totalorder %s30, 0
      %p214 = por %p212, %p213
      %p215 = scmp.ne.s32.totalorder %s207, %s209
      %p216 = scmp.eq.s32.totalorder %s35, 3
      %p217 = por %p215, %p216
      %p218 = scmp.ne.s32.totalorder %s209, %s210
      %p219 = scmp.eq.s32.totalorder %s35, 0
      %p220 = por %p218, %p219
      %p221 = scmp.ne.s32.totalorder %s209, %s210
      %p222 = scmp.eq.s32.totalorder %s36, 3
      %p223 = por %p221, %p222
      %p225 = scmp.ne.s32.totalorder %s210, %s224
      %p226 = scmp.eq.s32.totalorder %s36, 0
      %p227 = por %p225, %p226
      %s229 = sadd.s32 %s228, 1
      %p232 = scmp.eq.s32.totalorder %s30, 3
      %p233 = scmp.ne.s32.totalorder %s228, %s230
      %p234 = scmp.eq.s32.totalorder %s30, 0
      %p235 = por %p233, %p234
      %p236 = scmp.ne.s32.totalorder %s228, %s230
      %p237 = scmp.eq.s32.totalorder %s35, 3
      %p238 = por %p236, %p237
      %p239 = scmp.ne.s32.totalorder %s230, %s231
      %p240 = scmp.eq.s32.totalorder %s35, 0
      %p241 = por %p239, %p240
      %p242 = scmp.ne.s32.totalorder %s230, %s231
      %p243 = scmp.eq.s32.totalorder %s36, 3
      %p244 = por %p242, %p243
      %p246 = scmp.ne.s32.totalorder %s231, %s245
      %p247 = scmp.eq.s32.totalorder %s36, 0
      %p248 = por %p246, %p247
      %s250 = sadd.s32 %s249, 1
      %p253 = scmp.eq.s32.totalorder %s30, 3
      %p254 = scmp.ne.s32.totalorder %s249, %s251
      %p255 = scmp.eq.s32.totalorder %s30, 0
      %p256 = por %p254, %p255
      %p257 = scmp.ne.s32.totalorder %s249, %s251
      %p258 = scmp.eq.s32.totalorder %s35, 3
      %p259 = por %p257, %p258
      %p260 = scmp.ne.s32.totalorder %s251, %s252
      %p261 = scmp.eq.s32.totalorder %s35, 0
      %p262 = por %p260, %p261
      %p263 = scmp.ne.s32.totalorder %s251, %s252
      %p264 = scmp.eq.s32.totalorder %s36, 3
      %p265 = por %p263, %p264
      %p267 = scmp.ne.s32.totalorder %s252, %s266
      %p268 = scmp.eq.s32.totalorder %s36, 0
      %p269 = por %p267, %p268
      %s271 = sadd.s32 %s270, 1
      %p274 = scmp.eq.s32.totalorder %s30, 3
      %p275 = scmp.ne.s32.totalorder %s270, %s272
      %p276 = scmp.eq.s32.totalorder %s30, 0
      %p277 = por %p275, %p276
      %p278 = scmp.ne.s32.totalorder %s270, %s272
      %p279 = scmp.eq.s32.totalorder %s35, 3
      %p280 = por %p278, %p279
      %p281 = scmp.ne.s32.totalorder %s272, %s273
      %p282 = scmp.eq.s32.totalorder %s35, 0
      %p283 = por %p281, %p282
      %p284 = scmp.ne.s32.totalorder %s272, %s273
      %p285 = scmp.eq.s32.totalorder %s36, 3
      %p286 = por %p284, %p285
      %p288 = scmp.ne.s32.totalorder %s273, %s287
      %p289 = scmp.eq.s32.totalorder %s36, 0
      %p290 = por %p288, %p289
      %s292 = sadd.s32 %s291, 1
      %p295 = scmp.eq.s32.totalorder %s30, 3
      %p296 = scmp.ne.s32.totalorder %s291, %s293
      %p297 = scmp.eq.s32.totalorder %s30, 0
      %p298 = por %p296, %p297
      %p299 = scmp.ne.s32.totalorder %s291, %s293
      %p300 = scmp.eq.s32.totalorder %s35, 3
      %p301 = por %p299, %p300
      %p302 = scmp.ne.s32.totalorder %s293, %s294
      %p303 = scmp.eq.s32.totalorder %s35, 0
      %p304 = por %p302, %p303
      %p305 = scmp.ne.s32.totalorder %s293, %s294
      %p306 = scmp.eq.s32.totalorder %s36, 3
      %p307 = por %p305, %p306
      %p309 = scmp.ne.s32.totalorder %s294, %s308
      %p310 = scmp.eq.s32.totalorder %s36, 0
      %p311 = por %p309, %p310
      %s313 = sadd.s32 %s312, 1
      %p316 = scmp.eq.s32.totalorder %s30, 3
      %p317 = scmp.ne.s32.totalorder %s312, %s314
      %p318 = scmp.eq.s32.totalorder %s30, 0
      %p319 = por %p317, %p318
      %p320 = scmp.ne.s32.totalorder %s312, %s314
      %p321 = scmp.eq.s32.totalorder %s35, 3
      %p322 = por %p320, %p321
      %p323 = scmp.ne.s32.totalorder %s314, %s315
      %p324 = scmp.eq.s32.totalorder %s35, 0
      %p325 = por %p323, %p324
      %p326 = scmp.ne.s32.totalorder %s314, %s315
      %p327 = scmp.eq.s32.totalorder %s36, 3
      %p328 = por %p326, %p327
      %p330 = scmp.ne.s32.totalorder %s315, %s329
      %p331 = scmp.eq.s32.totalorder %s36, 0
      %p332 = por %p330, %p331
      %s333 = ssub.s32 %s37, %s49
      %s334 = ssub.s32 %s38, %s45
      %s335 = sor.u32 %s333, %s334
      %p336 = scmp.eq.s32.totalorder %s335, 0
      %s338 = sadd.s32 %s337, 1
      %s339 = scalar_select %p336, %s337, %s338
      %p342 = pneg %p336
      %p343 = scmp.eq.s32.totalorder %s30, 3
      %p344 = por %p342, %p343
      %p345 = scmp.ne.s32.totalorder %s337, %s340
      %p346 = scmp.eq.s32.totalorder %s30, 0
      %p347 = por %p345, %p346
      %p348 = scmp.ne.s32.totalorder %s337, %s340
      %p349 = scmp.eq.s32.totalorder %s35, 3
      %p350 = por %p348, %p349
      %p351 = scmp.ne.s32.totalorder %s340, %s341
      %p352 = scmp.eq.s32.totalorder %s35, 0
      %p353 = por %p351, %p352
      %p354 = scmp.ne.s32.totalorder %s340, %s341
      %p355 = scmp.eq.s32.totalorder %s36, 3
      %p356 = por %p354, %p355
      %p358 = scmp.ne.s32.totalorder %s341, %s357
      %p359 = scmp.eq.s32.totalorder %s36, 0
      %p360 = por %p358, %p359
      %p361 = scmp.le.s32.totalorder 1, %s30
      %p362 = scmp.lt.s32.totalorder %s30, 5
      %p363 = pnand %p361, %p362
      %p364 = pneg %p363
      // Predicated region
      $region9: #{tpu_custom_call.1} parent=5 // pred_check
        _
      $region10: #{tpu_custom_call.1} parent=5 // pred_check_branch
        %366 = sbr.rel (%p363) target = $region12
      $region11: #{tpu_custom_call.1} parent=5 // pred_region
        %s367 = ssub.s32 %s30, 1
        // Predicated region
        $region13: #{tpu_custom_call.1} parent=11 // pred_check
          %p368 = pneg %p115
        $region14: #{tpu_custom_call.1} parent=11 // pred_check_branch
          %370 = sbr.rel (%p368) target = $region16
        $region15: #{tpu_custom_call.1} parent=11 // pred_region
          %s372 = ssub.s32 12288, 12288
          %373 = vsyncadd [#allocation9], %s372
          %s374 = sshll.u32 [#allocation10], 4
          %s375 = int_to_ptr.vmem [resolvable:$true] %s374
          %380 = dma.hbm_to_vmem [thread:$0]  %s2, 12288, %s375, [#allocation9], 384, 384, 24
        $region16: #{tpu_custom_call.1} parent=11 // pred_fallthru
          _
        // Predicated region
        $region17: #{tpu_custom_call.1} parent=11 // pred_check
          %p381 = pneg %p136
        $region18: #{tpu_custom_call.1} parent=11 // pred_check_branch
          %383 = sbr.rel (%p381) target = $region20
        $region19: #{tpu_custom_call.1} parent=11 // pred_region
          %s385 = ssub.s32 4096, 4096
          %386 = vsyncadd [#allocation12], %s385
          %s387 = sshll.u32 [#allocation11], 4
          %s388 = int_to_ptr.vmem [resolvable:$true] %s387
          %393 = dma.hbm_to_vmem [thread:$0]  %s3, 4096, %s388, [#allocation12], 128, 128, 8
        $region20: #{tpu_custom_call.1} parent=11 // pred_fallthru
          _
        // Predicated region
        $region21: #{tpu_custom_call.1} parent=11 // pred_check
          %p394 = pneg %p157
        $region22: #{tpu_custom_call.1} parent=11 // pred_check_branch
          %396 = sbr.rel (%p394) target = $region24
        $region23: #{tpu_custom_call.1} parent=11 // pred_region
          _
        $region24: #{tpu_custom_call.1} parent=11 // pred_fallthru
          _
        // Predicated region
        $region25: #{tpu_custom_call.1} parent=11 // pred_check
          %p397 = pneg %p178
        $region26: #{tpu_custom_call.1} parent=11 // pred_check_branch
          %399 = sbr.rel (%p397) target = $region28
        $region27: #{tpu_custom_call.1} parent=11 // pred_region
          _
        $region28: #{tpu_custom_call.1} parent=11 // pred_fallthru
          _
        // Predicated region
        $region29: #{tpu_custom_call.1} parent=11 // pred_check
          %p400 = pneg %p199
        $region30: #{tpu_custom_call.1} parent=11 // pred_check_branch
          %402 = sbr.rel (%p400) target = $region32
        $region31: #{tpu_custom_call.1} parent=11 // pred_region
          _
        $region32: #{tpu_custom_call.1} parent=11 // pred_fallthru
          _
        // Predicated region
        $region33: #{tpu_custom_call.1} parent=11 // pred_check
          %p403 = pneg %p220
        $region34: #{tpu_custom_call.1} parent=11 // pred_check_branch
          %405 = sbr.rel (%p403) target = $region36
        $region35: #{tpu_custom_call.1} parent=11 // pred_region
          _
        $region36: #{tpu_custom_call.1} parent=11 // pred_fallthru
          _
        // Predicated region
        $region37: #{tpu_custom_call.1} parent=11 // pred_check
          %p406 = pneg %p241
        $region38: #{tpu_custom_call.1} parent=11 // pred_check_branch
          %408 = sbr.rel (%p406) target = $region40
        $region39: #{tpu_custom_call.1} parent=11 // pred_region
          _
        $region40: #{tpu_custom_call.1} parent=11 // pred_fallthru
          _
        // Predicated region
        $region41: #{tpu_custom_call.1} parent=11 // pred_check
          %p409 = pneg %p262
        $region42: #{tpu_custom_call.1} parent=11 // pred_check_branch
          %411 = sbr.rel (%p409) target = $region44
        $region43: #{tpu_custom_call.1} parent=11 // pred_region
          %s413 = ssub.s32 8192, 8192
          %414 = vsyncadd [#allocation12], %s413
          %s415 = sshll.u32 [#allocation13], 4
          %s416 = int_to_ptr.vmem [resolvable:$true] %s415
          %421 = dma.hbm_to_vmem [thread:$0]  %s9, 8192, %s416, [#allocation12], 256, 256, 16
        $region44: #{tpu_custom_call.1} parent=11 // pred_fallthru
          _
        // Predicated region
        $region45: #{tpu_custom_call.1} parent=11 // pred_check
          %p422 = pneg %p283
        $region46: #{tpu_custom_call.1} parent=11 // pred_check_branch
          %424 = sbr.rel (%p422) target = $region48
        $region47: #{tpu_custom_call.1} parent=11 // pred_region
          _
        $region48: #{tpu_custom_call.1} parent=11 // pred_fallthru
          _
        // Predicated region
        $region49: #{tpu_custom_call.1} parent=11 // pred_check
          %p425 = pneg %p304
        $region50: #{tpu_custom_call.1} parent=11 // pred_check_branch
          %427 = sbr.rel (%p425) target = $region52
        $region51: #{tpu_custom_call.1} parent=11 // pred_region
          %s429 = ssub.s32 8192, 8192
          %430 = vsyncadd [#allocation15], %s429
          %s431 = sshll.u32 [#allocation14], 4
          %s432 = int_to_ptr.vmem [resolvable:$true] %s431
          %437 = dma.hbm_to_vmem [thread:$0]  %s11, 8192, %s432, [#allocation15], 128, 128, 8
        $region52: #{tpu_custom_call.1} parent=11 // pred_fallthru
          _
        // Predicated region
        $region53: #{tpu_custom_call.1} parent=11 // pred_check
          %p438 = pneg %p325
        $region54: #{tpu_custom_call.1} parent=11 // pred_check_branch
          %440 = sbr.rel (%p438) target = $region56
        $region55: #{tpu_custom_call.1} parent=11 // pred_region
          _
        $region56: #{tpu_custom_call.1} parent=11 // pred_fallthru
          _
      $region12: #{tpu_custom_call.1} parent=5 // pred_fallthru
        _
      %p441 = scmp.lt.s32.totalorder %s30, 4
      // Predicated region
      $region57: #{tpu_custom_call.1} parent=5 // pred_check
        %p442 = pneg %p441
      $region58: #{tpu_custom_call.1} parent=5 // pred_check_branch
        %444 = sbr.rel (%p442) target = $region60
      $region59: #{tpu_custom_call.1} parent=5 // pred_region
        // Predicated region
        $region61: #{tpu_custom_call.1} parent=59 // pred_check
          %p445 = pneg %p62
        $region62: #{tpu_custom_call.1} parent=59 // pred_check_branch
          %447 = sbr.rel (%p445) target = $region64
        $region63: #{tpu_custom_call.1} parent=59 // pred_region
          %s448 = sand.u32 %s52, 1
          %s449 = scalar_lea.sflag [#allocation6], %s448
          %s450 = sand.u32 %s52, 1
          %s451 = smul.addr %s450, 32
          %s452 = scalar_lea.vmem [#allocation5], %s451
          %s454 = ssub.s32 512, 512
          %455 = vsyncadd %s449, %s454
          %s456 = smul.addr %s37, 4
          %s457 = smul.addr %s456, 128
          %s458 = scalar_lea.hbm %s0, %s457
          %s459 = sshll.u32 %s452, 4
          %s460 = int_to_ptr.vmem [resolvable:$true] %s459
          %465 = dma.hbm_to_vmem [thread:$0]  %s458, 512, %s460, %s449, 256, 256, 16
        $region64: #{tpu_custom_call.1} parent=59 // pred_fallthru
          _
        // Predicated region
        $region65: #{tpu_custom_call.1} parent=59 // pred_check
          %p466 = pneg %p88
        $region66: #{tpu_custom_call.1} parent=59 // pred_check_branch
          %468 = sbr.rel (%p466) target = $region68
        $region67: #{tpu_custom_call.1} parent=59 // pred_region
          %s469 = sand.u32 %s30, 1
          %s470 = scalar_lea.sflag [#allocation9], %s469
          %s471 = sand.u32 %s78, 1
          %s472 = scalar_lea.vmem [#allocation8], %s471
          %s474 = ssub.s32 16, 16
          %475 = vsyncadd %s470, %s474
          %s476 = smul.addr %s37, 16
          %s477 = scalar_lea.hbm %s1, %s476
          %s479 = sshll.u32 %s472, 4
          %s480 = int_to_ptr.vmem [resolvable:$true] %s479
          %482 = dma.hbm_to_vmem [thread:$0]  %s477, 16, %s480, %s470
        $region68: #{tpu_custom_call.1} parent=59 // pred_fallthru
          _
      $region60: #{tpu_custom_call.1} parent=5 // pred_fallthru
        _
      %p483 = scmp.le.s32.totalorder 1, %s30
      %p484 = scmp.lt.s32.totalorder %s30, 5
      %p485 = pnand %p483, %p484
      %p486 = pneg %p485
      // Predicated region
      $region69: #{tpu_custom_call.1} parent=5 // pred_check
        _
      $region70: #{tpu_custom_call.1} parent=5 // pred_check_branch
        %488 = sbr.rel (%p485) target = $region72
      $region71: #{tpu_custom_call.1} parent=5 // pred_region
        %s489 = ssub.s32 %s30, 1
        %s490 = sand.u32 %s55, 1
        %s491 = scalar_lea.sflag [#allocation6], %s490
        %s492 = sand.u32 %s55, 1
        %s493 = smul.addr %s492, 32
        %s494 = scalar_lea.vmem [#allocation5], %s493
        // Predicated region
        $region73: #{tpu_custom_call.1} parent=71 // pred_check
          %p495 = pneg %p68
        $region74: #{tpu_custom_call.1} parent=71 // pred_check_branch
          %497 = sbr.rel (%p495) target = $region76
        $region75: #{tpu_custom_call.1} parent=71 // pred_region
          %498 = dma.done %s491, 512
        $region76: #{tpu_custom_call.1} parent=71 // pred_fallthru
          _
        %s499 = sand.u32 %s35, 1
        %s500 = scalar_lea.sflag [#allocation9], %s499
        %s501 = sand.u32 %s81, 1
        %s502 = scalar_lea.vmem [#allocation8], %s501
        // Predicated region
        $region77: #{tpu_custom_call.1} parent=71 // pred_check
          %p503 = pneg %p94
        $region78: #{tpu_custom_call.1} parent=71 // pred_check_branch
          %505 = sbr.rel (%p503) target = $region80
        $region79: #{tpu_custom_call.1} parent=71 // pred_region
          %506 = dma.done %s500, 16
        $region80: #{tpu_custom_call.1} parent=71 // pred_fallthru
          _
        // Predicated region
        $region81: #{tpu_custom_call.1} parent=71 // pred_check
          %p507 = pneg %p115
        $region82: #{tpu_custom_call.1} parent=71 // pred_check_branch
          %509 = sbr.rel (%p507) target = $region84
        $region83: #{tpu_custom_call.1} parent=71 // pred_region
          %510 = dma.done [#allocation9], 12288
        $region84: #{tpu_custom_call.1} parent=71 // pred_fallthru
          _
        // Predicated region
        $region85: #{tpu_custom_call.1} parent=71 // pred_check
          %p511 = pneg %p136
        $region86: #{tpu_custom_call.1} parent=71 // pred_check_branch
          %513 = sbr.rel (%p511) target = $region88
        $region87: #{tpu_custom_call.1} parent=71 // pred_region
          %514 = dma.done [#allocation12], 4096
        $region88: #{tpu_custom_call.1} parent=71 // pred_fallthru
          _
        // Predicated region
        $region89: #{tpu_custom_call.1} parent=71 // pred_check
          %p515 = pneg %p262
        $region90: #{tpu_custom_call.1} parent=71 // pred_check_branch
          %517 = sbr.rel (%p515) target = $region92
        $region91: #{tpu_custom_call.1} parent=71 // pred_region
          %518 = dma.done [#allocation12], 8192
        $region92: #{tpu_custom_call.1} parent=71 // pred_fallthru
          _
        // Predicated region
        $region93: #{tpu_custom_call.1} parent=71 // pred_check
          %p519 = pneg %p304
        $region94: #{tpu_custom_call.1} parent=71 // pred_check_branch
          %521 = sbr.rel (%p519) target = $region96
        $region95: #{tpu_custom_call.1} parent=71 // pred_region
          %522 = dma.done [#allocation15], 8192
        $region96: #{tpu_custom_call.1} parent=71 // pred_fallthru
          _
        %s523 = sand.u32 %s55, 1
        %s524 = scalar_lea.sflag [#allocation6], %s523
        %s525 = sand.u32 %s55, 1
        %s526 = smul.addr %s525, 32
        %s527 = scalar_lea.vmem [#allocation5], %s526
        %p528 = pneg %p68
        %p529 = pneg %p65
        %s530 = sand.u32 %s35, 1
        %s531 = scalar_lea.sflag [#allocation9], %s530
        %s532 = sand.u32 %s81, 1
        %s533 = scalar_lea.vmem [#allocation8], %s532
        %p534 = pneg %p94
        %p535 = pneg %p91
        %p536 = pneg %p115
        %p537 = pneg %p112
        %p538 = pneg %p136
        %p539 = pneg %p133
        %p540 = pneg %p157
        %p541 = pneg %p154
        %p542 = pneg %p178
        %p543 = pneg %p175
        %p544 = pneg %p199
        %p545 = pneg %p196
        %p546 = pneg %p220
        %p547 = pneg %p217
        %p548 = pneg %p241
        %p549 = pneg %p238
        %p550 = pneg %p262
        %p551 = pneg %p259
        %p552 = pneg %p283
        %p553 = pneg %p280
        %p554 = pneg %p304
        %p555 = pneg %p301
        %p556 = pneg %p325
        %p557 = pneg %p322
        %p558 = pneg %p353
        %p559 = pneg %p350
        %s560 = sand.u32 %s340, 1
        %s561 = scalar_lea.sflag [#allocation7], %s560
        %s562 = sand.u32 %s340, 1
        %s563 = smul.addr %s562, 16
        %s564 = scalar_lea.vmem [#allocation16], %s563
        %p566 = scmp.eq.s32.totalorder %s40, 0
        // Predicated region
        $region97: #{tpu_custom_call.1} parent=71 // pred_check
          %p567 = pneg %p566
        $region98: #{tpu_custom_call.1} parent=71 // pred_check_branch
          %569 = sbr.rel (%p567) target = $region100
        $region99: #{tpu_custom_call.1} parent=71 // pred_region
          %v570 = vld [vmem:[%s494] sm:$0xff]
          %v571 = vld [vmem:[%s494 + $0x8] sm:$0xff]
          %v572 = vld [vmem:[%s494 + $0x10] sm:$0xff]
          %v573 = vld [vmem:[%s494 + $0x18] sm:$0xff]
          %v574 = vld [vmem:[%s5] sm:$0x3]
          %v575 = vld [vmem:[%s6] sm:$0x3]
          %v576 = vadd.f32 %v570, %v571
          %577 = vadd.xlane.f32.xlu0 %v576
          %v578 = vpop.xlane.xlu0 %577
          %v579 = vadd.f32 %v572, %v573
          %580 = vadd.xlane.f32.xlu0 %v579
          %v581 = vpop.xlane.xlu0 %580
          %v582 = vrcp.pop 256.0
          %v583 = vmul.f32 %v578, %v582
          %v584 = vmul.f32 %v581, %v582
          %v585 = vsub.f32 %v570, %v583
          %v586 = vsub.f32 %v571, %v583
          %v587 = vsub.f32 %v572, %v584
          %v588 = vsub.f32 %v573, %v584
          %v589 = vmul.f32 %v585, %v585
          %v590 = vmul.f32 %v586, %v586
          %v591 = vmul.f32 %v587, %v587
          %v592 = vmul.f32 %v588, %v588
          %v593 = vadd.f32 %v589, %v590
          %594 = vadd.xlane.f32.xlu0 %v593
          %v595 = vpop.xlane.xlu0 %594
          %v596 = vadd.f32 %v591, %v592
          %597 = vadd.xlane.f32.xlu0 %v596
          %v598 = vpop.xlane.xlu0 %597
          %v599 = vmul.f32 %v595, %v582
          %v600 = vmul.f32 %v598, %v582
          %v601 = vadd.f32 %v599, 1e-05
          %v602 = vadd.f32 %v600, 1e-05
          %v603 = vrsqrt.pop %v601
          %v604 = vrsqrt.pop %v602
          %v605 = vmul.f32 %v585, %v603
          %v606 = vmul.f32 %v586, %v603
          %v607 = vmul.f32 %v587, %v604
          %v608 = vmul.f32 %v588, %v604
          %v610 = vlaneseq
          %v611 = vshrl.u32 %v610, 7
          %v612 = vsub.s32 0, %v611
          %v613 = vrot.slane %v574, %v612
          %v614 = vlaneseq
          %v615 = vshrl.u32 %v614, 7
          %v616 = vsub.s32 1, %v615
          %v617 = vrot.slane %v574, %v616
          %v620 = vmul.f32 %v605, %v613
          %v621 = vmul.f32 %v606, %v617
          %v622 = vmul.f32 %v607, %v613
          %v623 = vmul.f32 %v608, %v617
          %v625 = vlaneseq
          %v626 = vshrl.u32 %v625, 7
          %v627 = vsub.s32 0, %v626
          %v628 = vrot.slane %v575, %v627
          %v629 = vlaneseq
          %v630 = vshrl.u32 %v629, 7
          %v631 = vsub.s32 1, %v630
          %v632 = vrot.slane %v575, %v631
          %v635 = vadd.f32 %v620, %v628
          %v636 = vadd.f32 %v621, %v632
          %v637 = vadd.f32 %v622, %v628
          %v638 = vadd.f32 %v623, %v632
          %v639 = vpack.c.bf16 %v637, %v635
          %v640 = vpack.c.bf16 %v638, %v636
          %v641 = vld [vmem:[#allocation10] sm:$0xff]
          %v642 = vld [vmem:[#allocation10 + $0x8] sm:$0xff]
          %v643 = vld [vmem:[#allocation10 + $0x10] sm:$0xff]
          %v644 = vld [vmem:[#allocation10 + $0x18] sm:$0xff]
          %v645 = vld [vmem:[#allocation10 + $0x20] sm:$0xff]
          %v646 = vld [vmem:[#allocation10 + $0x28] sm:$0xff]
          %v647 = vld [vmem:[#allocation10 + $0x30] sm:$0xff]
          %v648 = vld [vmem:[#allocation10 + $0x38] sm:$0xff]
          %v649 = vld [vmem:[#allocation10 + $0x40] sm:$0xff]
          %v650 = vld [vmem:[#allocation10 + $0x48] sm:$0xff]
          %v651 = vld [vmem:[#allocation10 + $0x50] sm:$0xff]
          %v652 = vld [vmem:[#allocation10 + $0x58] sm:$0xff]
          %v653 = vld [vmem:[#allocation10 + $0x60] sm:$0xff]
          %v654 = vld [vmem:[#allocation10 + $0x68] sm:$0xff]
          %v655 = vld [vmem:[#allocation10 + $0x70] sm:$0xff]
          %v656 = vld [vmem:[#allocation10 + $0x78] sm:$0xff]
          %v657 = vld [vmem:[#allocation10 + $0x80] sm:$0xff]
          %v658 = vld [vmem:[#allocation10 + $0x88] sm:$0xff]
          %v659 = vld [vmem:[#allocation10 + $0x90] sm:$0xff]
          %v660 = vld [vmem:[#allocation10 + $0x98] sm:$0xff]
          %v661 = vld [vmem:[#allocation10 + $0xa0] sm:$0xff]
          %v662 = vld [vmem:[#allocation10 + $0xa8] sm:$0xff]
          %v663 = vld [vmem:[#allocation10 + $0xb0] sm:$0xff]
          %v664 = vld [vmem:[#allocation10 + $0xb8] sm:$0xff]
          %v665 = vld [vmem:[#allocation10 + $0xc0] sm:$0xff]
          %v666 = vld [vmem:[#allocation10 + $0xc8] sm:$0xff]
          %v667 = vld [vmem:[#allocation10 + $0xd0] sm:$0xff]
          %v668 = vld [vmem:[#allocation10 + $0xd8] sm:$0xff]
          %v669 = vld [vmem:[#allocation10 + $0xe0] sm:$0xff]
          %v670 = vld [vmem:[#allocation10 + $0xe8] sm:$0xff]
          %v671 = vld [vmem:[#allocation10 + $0xf0] sm:$0xff]
          %v672 = vld [vmem:[#allocation10 + $0xf8] sm:$0xff]
          %v673 = vld [vmem:[#allocation10 + $0x100] sm:$0xff]
          %v674 = vld [vmem:[#allocation10 + $0x108] sm:$0xff]
          %v675 = vld [vmem:[#allocation10 + $0x110] sm:$0xff]
          %v676 = vld [vmem:[#allocation10 + $0x118] sm:$0xff]
          %v677 = vld [vmem:[#allocation10 + $0x120] sm:$0xff]
          %v678 = vld [vmem:[#allocation10 + $0x128] sm:$0xff]
          %v679 = vld [vmem:[#allocation10 + $0x130] sm:$0xff]
          %v680 = vld [vmem:[#allocation10 + $0x138] sm:$0xff]
          %v681 = vld [vmem:[#allocation10 + $0x140] sm:$0xff]
          %v682 = vld [vmem:[#allocation10 + $0x148] sm:$0xff]
          %v683 = vld [vmem:[#allocation10 + $0x150] sm:$0xff]
          %v684 = vld [vmem:[#allocation10 + $0x158] sm:$0xff]
          %v685 = vld [vmem:[#allocation10 + $0x160] sm:$0xff]
          %v686 = vld [vmem:[#allocation10 + $0x168] sm:$0xff]
          %v687 = vld [vmem:[#allocation10 + $0x170] sm:$0xff]
          %v688 = vld [vmem:[#allocation10 + $0x178] sm:$0xff]
          %v689 = vld [vmem:[#allocation10 + $0x180] sm:$0xff]
          %v690 = vld [vmem:[#allocation10 + $0x188] sm:$0xff]
          %v691 = vld [vmem:[#allocation10 + $0x190] sm:$0xff]
          %v692 = vld [vmem:[#allocation10 + $0x198] sm:$0xff]
          %v693 = vld [vmem:[#allocation10 + $0x1a0] sm:$0xff]
          %v694 = vld [vmem:[#allocation10 + $0x1a8] sm:$0xff]
          %v695 = vld [vmem:[#allocation10 + $0x1b0] sm:$0xff]
          %v696 = vld [vmem:[#allocation10 + $0x1b8] sm:$0xff]
          %v697 = vld [vmem:[#allocation10 + $0x1c0] sm:$0xff]
          %v698 = vld [vmem:[#allocation10 + $0x1c8] sm:$0xff]
          %v699 = vld [vmem:[#allocation10 + $0x1d0] sm:$0xff]
          %v700 = vld [vmem:[#allocation10 + $0x1d8] sm:$0xff]
          %v701 = vld [vmem:[#allocation10 + $0x1e0] sm:$0xff]
          %v702 = vld [vmem:[#allocation10 + $0x1e8] sm:$0xff]
          %v703 = vld [vmem:[#allocation10 + $0x1f0] sm:$0xff]
          %v704 = vld [vmem:[#allocation10 + $0x1f8] sm:$0xff]
          %v705 = vld [vmem:[#allocation10 + $0x200] sm:$0xff]
          %v706 = vld [vmem:[#allocation10 + $0x208] sm:$0xff]
          %v707 = vld [vmem:[#allocation10 + $0x210] sm:$0xff]
          %v708 = vld [vmem:[#allocation10 + $0x218] sm:$0xff]
          %v709 = vld [vmem:[#allocation10 + $0x220] sm:$0xff]
          %v710 = vld [vmem:[#allocation10 + $0x228] sm:$0xff]
          %v711 = vld [vmem:[#allocation10 + $0x230] sm:$0xff]
          %v712 = vld [vmem:[#allocation10 + $0x238] sm:$0xff]
          %v713 = vld [vmem:[#allocation10 + $0x240] sm:$0xff]
          %v714 = vld [vmem:[#allocation10 + $0x248] sm:$0xff]
          %v715 = vld [vmem:[#allocation10 + $0x250] sm:$0xff]
          %v716 = vld [vmem:[#allocation10 + $0x258] sm:$0xff]
          %v717 = vld [vmem:[#allocation10 + $0x260] sm:$0xff]
          %v718 = vld [vmem:[#allocation10 + $0x268] sm:$0xff]
          %v719 = vld [vmem:[#allocation10 + $0x270] sm:$0xff]
          %v720 = vld [vmem:[#allocation10 + $0x278] sm:$0xff]
          %v721 = vld [vmem:[#allocation10 + $0x280] sm:$0xff]
          %v722 = vld [vmem:[#allocation10 + $0x288] sm:$0xff]
          %v723 = vld [vmem:[#allocation10 + $0x290] sm:$0xff]
          %v724 = vld [vmem:[#allocation10 + $0x298] sm:$0xff]
          %v725 = vld [vmem:[#allocation10 + $0x2a0] sm:$0xff]
          %v726 = vld [vmem:[#allocation10 + $0x2a8] sm:$0xff]
          %v727 = vld [vmem:[#allocation10 + $0x2b0] sm:$0xff]
          %v728 = vld [vmem:[#allocation10 + $0x2b8] sm:$0xff]
          %v729 = vld [vmem:[#allocation10 + $0x2c0] sm:$0xff]
          %v730 = vld [vmem:[#allocation10 + $0x2c8] sm:$0xff]
          %v731 = vld [vmem:[#allocation10 + $0x2d0] sm:$0xff]
          %v732 = vld [vmem:[#allocation10 + $0x2d8] sm:$0xff]
          %v733 = vld [vmem:[#allocation10 + $0x2e0] sm:$0xff]
          %v734 = vld [vmem:[#allocation10 + $0x2e8] sm:$0xff]
          %v735 = vld [vmem:[#allocation10 + $0x2f0] sm:$0xff]
          %v736 = vld [vmem:[#allocation10 + $0x2f8] sm:$0xff]
          %v833 = vunpack.c.l.b16 %v641
          %v834 = vunpack.c.h.b16 %v641
          %v835 = vunpack.c.l.b16 %v642
          %v836 = vunpack.c.h.b16 %v642
          %v837 = vunpack.c.l.b16 %v643
          %v838 = vunpack.c.h.b16 %v643
          %v839 = vunpack.c.l.b16 %v644
          %v840 = vunpack.c.h.b16 %v644
          %v841 = vunpack.c.l.b16 %v645
          %v842 = vunpack.c.h.b16 %v645
          %v843 = vunpack.c.l.b16 %v646
          %v844 = vunpack.c.h.b16 %v646
          %v845 = vunpack.c.l.b16 %v647
          %v846 = vunpack.c.h.b16 %v647
          %v847 = vunpack.c.l.b16 %v648
          %v848 = vunpack.c.h.b16 %v648
          %v849 = vunpack.c.l.b16 %v649
          %v850 = vunpack.c.h.b16 %v649
          %v851 = vunpack.c.l.b16 %v650
          %v852 = vunpack.c.h.b16 %v650
          %v853 = vunpack.c.l.b16 %v651
          %v854 = vunpack.c.h.b16 %v651
          %v855 = vunpack.c.l.b16 %v652
          %v856 = vunpack.c.h.b16 %v652
          %v857 = vunpack.c.l.b16 %v653
          %v858 = vunpack.c.h.b16 %v653
          %v859 = vunpack.c.l.b16 %v654
          %v860 = vunpack.c.h.b16 %v654
          %v861 = vunpack.c.l.b16 %v655
          %v862 = vunpack.c.h.b16 %v655
          %v863 = vunpack.c.l.b16 %v656
          %v864 = vunpack.c.h.b16 %v656
          %v865 = vunpack.c.l.b16 %v657
          %v866 = vunpack.c.h.b16 %v657
          %v867 = vunpack.c.l.b16 %v658
          %v868 = vunpack.c.h.b16 %v658
          %v869 = vunpack.c.l.b16 %v659
          %v870 = vunpack.c.h.b16 %v659
          %v871 = vunpack.c.l.b16 %v660
          %v872 = vunpack.c.h.b16 %v660
          %v873 = vunpack.c.l.b16 %v661
          %v874 = vunpack.c.h.b16 %v661
          %v875 = vunpack.c.l.b16 %v662
          %v876 = vunpack.c.h.b16 %v662
          %v877 = vunpack.c.l.b16 %v663
          %v878 = vunpack.c.h.b16 %v663
          %v879 = vunpack.c.l.b16 %v664
          %v880 = vunpack.c.h.b16 %v664
          %v881 = vunpack.c.l.b16 %v665
          %v882 = vunpack.c.h.b16 %v665
          %v883 = vunpack.c.l.b16 %v666
          %v884 = vunpack.c.h.b16 %v666
          %v885 = vunpack.c.l.b16 %v667
          %v886 = vunpack.c.h.b16 %v667
          %v887 = vunpack.c.l.b16 %v668
          %v888 = vunpack.c.h.b16 %v668
          %v889 = vunpack.c.l.b16 %v669
          %v890 = vunpack.c.h.b16 %v669
          %v891 = vunpack.c.l.b16 %v670
          %v892 = vunpack.c.h.b16 %v670
          %v893 = vunpack.c.l.b16 %v671
          %v894 = vunpack.c.h.b16 %v671
          %v895 = vunpack.c.l.b16 %v672
          %v896 = vunpack.c.h.b16 %v672
          %v897 = vunpack.c.l.b16 %v673
          %v898 = vunpack.c.h.b16 %v673
          %v899 = vunpack.c.l.b16 %v674
          %v900 = vunpack.c.h.b16 %v674
          %v901 = vunpack.c.l.b16 %v675
          %v902 = vunpack.c.h.b16 %v675
          %v903 = vunpack.c.l.b16 %v676
          %v904 = vunpack.c.h.b16 %v676
          %v905 = vunpack.c.l.b16 %v677
          %v906 = vunpack.c.h.b16 %v677
          %v907 = vunpack.c.l.b16 %v678
          %v908 = vunpack.c.h.b16 %v678
          %v909 = vunpack.c.l.b16 %v679
          %v910 = vunpack.c.h.b16 %v679
          %v911 = vunpack.c.l.b16 %v680
          %v912 = vunpack.c.h.b16 %v680
          %v913 = vunpack.c.l.b16 %v681
          %v914 = vunpack.c.h.b16 %v681
          %v915 = vunpack.c.l.b16 %v682
          %v916 = vunpack.c.h.b16 %v682
          %v917 = vunpack.c.l.b16 %v683
          %v918 = vunpack.c.h.b16 %v683
          %v919 = vunpack.c.l.b16 %v684
          %v920 = vunpack.c.h.b16 %v684
          %v921 = vunpack.c.l.b16 %v685
          %v922 = vunpack.c.h.b16 %v685
          %v923 = vunpack.c.l.b16 %v686
          %v924 = vunpack.c.h.b16 %v686
          %v925 = vunpack.c.l.b16 %v687
          %v926 = vunpack.c.h.b16 %v687
          %v927 = vunpack.c.l.b16 %v688
          %v928 = vunpack.c.h.b16 %v688
          %v929 = vunpack.c.l.b16 %v689
          %v930 = vunpack.c.h.b16 %v689
          %v931 = vunpack.c.l.b16 %v690
          %v932 = vunpack.c.h.b16 %v690
          %v933 = vunpack.c.l.b16 %v691
          %v934 = vunpack.c.h.b16 %v691
          %v935 = vunpack.c.l.b16 %v692
          %v936 = vunpack.c.h.b16 %v692
          %v937 = vunpack.c.l.b16 %v693
          %v938 = vunpack.c.h.b16 %v693
          %v939 = vunpack.c.l.b16 %v694
          %v940 = vunpack.c.h.b16 %v694
          %v941 = vunpack.c.l.b16 %v695
          %v942 = vunpack.c.h.b16 %v695
          %v943 = vunpack.c.l.b16 %v696
          %v944 = vunpack.c.h.b16 %v696
          %v945 = vunpack.c.l.b16 %v697
          %v946 = vunpack.c.h.b16 %v697
          %v947 = vunpack.c.l.b16 %v698
          %v948 = vunpack.c.h.b16 %v698
          %v949 = vunpack.c.l.b16 %v699
          %v950 = vunpack.c.h.b16 %v699
          %v951 = vunpack.c.l.b16 %v700
          %v952 = vunpack.c.h.b16 %v700
          %v953 = vunpack.c.l.b16 %v701
          %v954 = vunpack.c.h.b16 %v701
          %v955 = vunpack.c.l.b16 %v702
          %v956 = vunpack.c.h.b16 %v702
          %v957 = vunpack.c.l.b16 %v703
          %v958 = vunpack.c.h.b16 %v703
          %v959 = vunpack.c.l.b16 %v704
          %v960 = vunpack.c.h.b16 %v704
          %v961 = vunpack.c.l.b16 %v705
          %v962 = vunpack.c.h.b16 %v705
          %v963 = vunpack.c.l.b16 %v706
          %v964 = vunpack.c.h.b16 %v706
          %v965 = vunpack.c.l.b16 %v707
          %v966 = vunpack.c.h.b16 %v707
          %v967 = vunpack.c.l.b16 %v708
          %v968 = vunpack.c.h.b16 %v708
          %v969 = vunpack.c.l.b16 %v709
          %v970 = vunpack.c.h.b16 %v709
          %v971 = vunpack.c.l.b16 %v710
          %v972 = vunpack.c.h.b16 %v710
          %v973 = vunpack.c.l.b16 %v711
          %v974 = vunpack.c.h.b16 %v711
          %v975 = vunpack.c.l.b16 %v712
          %v976 = vunpack.c.h.b16 %v712
          %v977 = vunpack.c.l.b16 %v713
          %v978 = vunpack.c.h.b16 %v713
          %v979 = vunpack.c.l.b16 %v714
          %v980 = vunpack.c.h.b16 %v714
          %v981 = vunpack.c.l.b16 %v715
          %v982 = vunpack.c.h.b16 %v715
          %v983 = vunpack.c.l.b16 %v716
          %v984 = vunpack.c.h.b16 %v716
          %v985 = vunpack.c.l.b16 %v717
          %v986 = vunpack.c.h.b16 %v717
          %v987 = vunpack.c.l.b16 %v718
          %v988 = vunpack.c.h.b16 %v718
          %v989 = vunpack.c.l.b16 %v719
          %v990 = vunpack.c.h.b16 %v719
          %v991 = vunpack.c.l.b16 %v720
          %v992 = vunpack.c.h.b16 %v720
          %v993 = vunpack.c.l.b16 %v721
          %v994 = vunpack.c.h.b16 %v721
          %v995 = vunpack.c.l.b16 %v722
          %v996 = vunpack.c.h.b16 %v722
          %v997 = vunpack.c.l.b16 %v723
          %v998 = vunpack.c.h.b16 %v723
          %v999 = vunpack.c.l.b16 %v724
          %v1000 = vunpack.c.h.b16 %v724
          %v1001 = vunpack.c.l.b16 %v725
          %v1002 = vunpack.c.h.b16 %v725
          %v1003 = vunpack.c.l.b16 %v726
          %v1004 = vunpack.c.h.b16 %v726
          %v1005 = vunpack.c.l.b16 %v727
          %v1006 = vunpack.c.h.b16 %v727
          %v1007 = vunpack.c.l.b16 %v728
          %v1008 = vunpack.c.h.b16 %v728
          %v1009 = vunpack.c.l.b16 %v729
          %v1010 = vunpack.c.h.b16 %v729
          %v1011 = vunpack.c.l.b16 %v730
          %v1012 = vunpack.c.h.b16 %v730
          %v1013 = vunpack.c.l.b16 %v731
          %v1014 = vunpack.c.h.b16 %v731
          %v1015 = vunpack.c.l.b16 %v732
          %v1016 = vunpack.c.h.b16 %v732
          %v1017 = vunpack.c.l.b16 %v733
          %v1018 = vunpack.c.h.b16 %v733
          %v1019 = vunpack.c.l.b16 %v734
          %v1020 = vunpack.c.h.b16 %v734
          %v1021 = vunpack.c.l.b16 %v735
          %v1022 = vunpack.c.h.b16 %v735
          %v1023 = vunpack.c.l.b16 %v736
          %v1024 = vunpack.c.h.b16 %v736
          %v1025 = vpack.c.b16 %v839, %v833
          %v1026 = vpack.c.b16 %v840, %v834
          %v1027 = vpack.c.b16 %v841, %v835
          %v1028 = vpack.c.b16 %v842, %v836
          %v1029 = vpack.c.b16 %v843, %v837
          %v1030 = vpack.c.b16 %v844, %v838
          %v1031 = vpack.c.b16 %v851, %v845
          %v1032 = vpack.c.b16 %v852, %v846
          %v1033 = vpack.c.b16 %v853, %v847
          %v1034 = vpack.c.b16 %v854, %v848
          %v1035 = vpack.c.b16 %v855, %v849
          %v1036 = vpack.c.b16 %v856, %v850
          %v1037 = vpack.c.b16 %v863, %v857
          %v1038 = vpack.c.b16 %v864, %v858
          %v1039 = vpack.c.b16 %v865, %v859
          %v1040 = vpack.c.b16 %v866, %v860
          %v1041 = vpack.c.b16 %v867, %v861
          %v1042 = vpack.c.b16 %v868, %v862
          %v1043 = vpack.c.b16 %v875, %v869
          %v1044 = vpack.c.b16 %v876, %v870
          %v1045 = vpack.c.b16 %v877, %v871
          %v1046 = vpack.c.b16 %v878, %v872
          %v1047 = vpack.c.b16 %v879, %v873
          %v1048 = vpack.c.b16 %v880, %v874
          %v1049 = vpack.c.b16 %v887, %v881
          %v1050 = vpack.c.b16 %v888, %v882
          %v1051 = vpack.c.b16 %v889, %v883
          %v1052 = vpack.c.b16 %v890, %v884
          %v1053 = vpack.c.b16 %v891, %v885
          %v1054 = vpack.c.b16 %v892, %v886
          %v1055 = vpack.c.b16 %v899, %v893
          %v1056 = vpack.c.b16 %v900, %v894
          %v1057 = vpack.c.b16 %v901, %v895
          %v1058 = vpack.c.b16 %v902, %v896
          %v1059 = vpack.c.b16 %v903, %v897
          %v1060 = vpack.c.b16 %v904, %v898
          %v1061 = vpack.c.b16 %v911, %v905
          %v1062 = vpack.c.b16 %v912, %v906
          %v1063 = vpack.c.b16 %v913, %v907
          %v1064 = vpack.c.b16 %v914, %v908
          %v1065 = vpack.c.b16 %v915, %v909
          %v1066 = vpack.c.b16 %v916, %v910
          %v1067 = vpack.c.b16 %v923, %v917
          %v1068 = vpack.c.b16 %v924, %v918
          %v1069 = vpack.c.b16 %v925, %v919
          %v1070 = vpack.c.b16 %v926, %v920
          %v1071 = vpack.c.b16 %v927, %v921
          %v1072 = vpack.c.b16 %v928, %v922
          %v1073 = vpack.c.b16 %v935, %v929
          %v1074 = vpack.c.b16 %v936, %v930
          %v1075 = vpack.c.b16 %v937, %v931
          %v1076 = vpack.c.b16 %v938, %v932
          %v1077 = vpack.c.b16 %v939, %v933
          %v1078 = vpack.c.b16 %v940, %v934
          %v1079 = vpack.c.b16 %v947, %v941
          %v1080 = vpack.c.b16 %v948, %v942
          %v1081 = vpack.c.b16 %v949, %v943
          %v1082 = vpack.c.b16 %v950, %v944
          %v1083 = vpack.c.b16 %v951, %v945
          %v1084 = vpack.c.b16 %v952, %v946
          %v1085 = vpack.c.b16 %v959, %v953
          %v1086 = vpack.c.b16 %v960, %v954
          %v1087 = vpack.c.b16 %v961, %v955
          %v1088 = vpack.c.b16 %v962, %v956
          %v1089 = vpack.c.b16 %v963, %v957
          %v1090 = vpack.c.b16 %v964, %v958
          %v1091 = vpack.c.b16 %v971, %v965
          %v1092 = vpack.c.b16 %v972, %v966
          %v1093 = vpack.c.b16 %v973, %v967
          %v1094 = vpack.c.b16 %v974, %v968
          %v1095 = vpack.c.b16 %v975, %v969
          %v1096 = vpack.c.b16 %v976, %v970
          %v1097 = vpack.c.b16 %v983, %v977
          %v1098 = vpack.c.b16 %v984, %v978
          %v1099 = vpack.c.b16 %v985, %v979
          %v1100 = vpack.c.b16 %v986, %v980
          %v1101 = vpack.c.b16 %v987, %v981
          %v1102 = vpack.c.b16 %v988, %v982
          %v1103 = vpack.c.b16 %v995, %v989
          %v1104 = vpack.c.b16 %v996, %v990
          %v1105 = vpack.c.b16 %v997, %v991
          %v1106 = vpack.c.b16 %v998, %v992
          %v1107 = vpack.c.b16 %v999, %v993
          %v1108 = vpack.c.b16 %v1000, %v994
          %v1109 = vpack.c.b16 %v1007, %v1001
          %v1110 = vpack.c.b16 %v1008, %v1002
          %v1111 = vpack.c.b16 %v1009, %v1003
          %v1112 = vpack.c.b16 %v1010, %v1004
          %v1113 = vpack.c.b16 %v1011, %v1005
          %v1114 = vpack.c.b16 %v1012, %v1006
          %v1115 = vpack.c.b16 %v1019, %v1013
          %v1116 = vpack.c.b16 %v1020, %v1014
          %v1117 = vpack.c.b16 %v1021, %v1015
          %v1118 = vpack.c.b16 %v1022, %v1016
          %v1119 = vpack.c.b16 %v1023, %v1017
          %v1120 = vpack.c.b16 %v1024, %v1018
          %1217 = vmatprep.subr.bf16.mxu0 %v1068
          %1218 = vmatpush1.bf16.msra.mxu0 %v1067
          %1219 = vmatprep.subr.bf16.mxu0 %v1062
          %1220 = vmatpush1.bf16.msra.mxu0 %v1061
          %1221 = vmatprep.subr.bf16.mxu0 %v1056
          %1222 = vmatpush1.bf16.msra.mxu0 %v1055
          %1223 = vmatprep.subr.bf16.mxu0 %v1050
          %1224 = vmatpush1.bf16.msra.mxu0 %v1049
          %1225 = vmatprep.subr.bf16.mxu0 %v1044
          %1226 = vmatpush1.bf16.msra.mxu0 %v1043
          %1227 = vmatprep.subr.bf16.mxu0 %v1038
          %1228 = vmatpush1.bf16.msra.mxu0 %v1037
          %1229 = vmatprep.subr.bf16.mxu0 %v1032
          %1230 = vmatpush1.bf16.msra.mxu0 %v1031
          %1231 = vmatprep.subr.bf16.mxu0 %v1026
          %1232 = vmatpush1.bf16.msra.mxu0 %v1025
          %1233 = vmatprep.subr.bf16.mxu0 %v1116
          %1234 = vmatpush2.bf16.msra.mxu0 %v1115
          %1235 = vmatprep.subr.bf16.mxu0 %v1110
          %1236 = vmatpush2.bf16.msra.mxu0 %v1109
          %1237 = vmatprep.subr.bf16.mxu0 %v1104
          %1238 = vmatpush2.bf16.msra.mxu0 %v1103
          %1239 = vmatprep.subr.bf16.mxu0 %v1098
          %1240 = vmatpush2.bf16.msra.mxu0 %v1097
          %1241 = vmatprep.subr.bf16.mxu0 %v1092
          %1242 = vmatpush2.bf16.msra.mxu0 %v1091
          %1243 = vmatprep.subr.bf16.mxu0 %v1086
          %1244 = vmatpush2.bf16.msra.mxu0 %v1085
          %1245 = vmatprep.subr.bf16.mxu0 %v1080
          %1246 = vmatpush2.bf16.msra.mxu0 %v1079
          %1247 = vmatprep.subr.bf16.mxu0 %v1074
          %1248 = vmatpush2.bf16.msra.mxu0 %v1073
          %1249 = vmatprep.mubr.bf16.mxu0 %v640
          %1250 = vmatmul.mubr.bf16.gmra.mxu0 %v639
          %v1251 = vpop.f32.mrf.mxu0
          %v1252 = vadd.f32 0.0, %v1251
          %v1253 = vpop.f32.mrf.mxu0
          %v1254 = vadd.f32 0.0, %v1253
          %v1255 = vpop.f32.mrf.mxu0
          %v1256 = vadd.f32 0.0, %v1255
          %v1257 = vpop.f32.mrf.mxu0
          %v1258 = vadd.f32 0.0, %v1257
          %1259 = vdwg.mxu0
          %1260 = vmatprep.subr.bf16.mxu0 %v1070
          %1261 = vmatpush1.bf16.msra.mxu0 %v1069
          %1262 = vmatprep.subr.bf16.mxu0 %v1064
          %1263 = vmatpush1.bf16.msra.mxu0 %v1063
          %1264 = vmatprep.subr.bf16.mxu0 %v1058
          %1265 = vmatpush1.bf16.msra.mxu0 %v1057
          %1266 = vmatprep.subr.bf16.mxu0 %v1052
          %1267 = vmatpush1.bf16.msra.mxu0 %v1051
          %1268 = vmatprep.subr.bf16.mxu0 %v1046
          %1269 = vmatpush1.bf16.msra.mxu0 %v1045
          %1270 = vmatprep.subr.bf16.mxu0 %v1040
          %1271 = vmatpush1.bf16.msra.mxu0 %v1039
          %1272 = vmatprep.subr.bf16.mxu0 %v1034
          %1273 = vmatpush1.bf16.msra.mxu0 %v1033
          %1274 = vmatprep.subr.bf16.mxu0 %v1028
          %1275 = vmatpush1.bf16.msra.mxu0 %v1027
          %1276 = vmatprep.subr.bf16.mxu0 %v1118
          %1277 = vmatpush2.bf16.msra.mxu0 %v1117
          %1278 = vmatprep.subr.bf16.mxu0 %v1112
          %1279 = vmatpush2.bf16.msra.mxu0 %v1111
          %1280 = vmatprep.subr.bf16.mxu0 %v1106
          %1281 = vmatpush2.bf16.msra.mxu0 %v1105
          %1282 = vmatprep.subr.bf16.mxu0 %v1100
          %1283 = vmatpush2.bf16.msra.mxu0 %v1099
          %1284 = vmatprep.subr.bf16.mxu0 %v1094
          %1285 = vmatpush2.bf16.msra.mxu0 %v1093
          %1286 = vmatprep.subr.bf16.mxu0 %v1088
          %1287 = vmatpush2.bf16.msra.mxu0 %v1087
          %1288 = vmatprep.subr.bf16.mxu0 %v1082
          %1289 = vmatpush2.bf16.msra.mxu0 %v1081
          %1290 = vmatprep.subr.bf16.mxu0 %v1076
          %1291 = vmatpush2.bf16.msra.mxu0 %v1075
          %1292 = vmatprep.mubr.bf16.mxu0 %v640
          %1293 = vmatmul.mubr.bf16.gmra.mxu0 %v639
          %v1294 = vpop.f32.mrf.mxu0
          %v1295 = vadd.f32 0.0, %v1294
          %v1296 = vpop.f32.mrf.mxu0
          %v1297 = vadd.f32 0.0, %v1296
          %v1298 = vpop.f32.mrf.mxu0
          %v1299 = vadd.f32 0.0, %v1298
          %v1300 = vpop.f32.mrf.mxu0
          %v1301 = vadd.f32 0.0, %v1300
          %1302 = vdwg.mxu0
          %1303 = vmatprep.subr.bf16.mxu0 %v1072
          %1304 = vmatpush1.bf16.msra.mxu0 %v1071
          %1305 = vmatprep.subr.bf16.mxu0 %v1066
          %1306 = vmatpush1.bf16.msra.mxu0 %v1065
          %1307 = vmatprep.subr.bf16.mxu0 %v1060
          %1308 = vmatpush1.bf16.msra.mxu0 %v1059
          %1309 = vmatprep.subr.bf16.mxu0 %v1054
          %1310 = vmatpush1.bf16.msra.mxu0 %v1053
          %1311 = vmatprep.subr.bf16.mxu0 %v1048
          %1312 = vmatpush1.bf16.msra.mxu0 %v1047
          %1313 = vmatprep.subr.bf16.mxu0 %v1042
          %1314 = vmatpush1.bf16.msra.mxu0 %v1041
          %1315 = vmatprep.subr.bf16.mxu0 %v1036
          %1316 = vmatpush1.bf16.msra.mxu0 %v1035
          %1317 = vmatprep.subr.bf16.mxu0 %v1030
          %1318 = vmatpush1.bf16.msra.mxu0 %v1029
          %1319 = vmatprep.subr.bf16.mxu0 %v1120
          %1320 = vmatpush2.bf16.msra.mxu0 %v1119
          %1321 = vmatprep.subr.bf16.mxu0 %v1114
          %1322 = vmatpush2.bf16.msra.mxu0 %v1113
          %1323 = vmatprep.subr.bf16.mxu0 %v1108
          %1324 = vmatpush2.bf16.msra.mxu0 %v1107
          %1325 = vmatprep.subr.bf16.mxu0 %v1102
          %1326 = vmatpush2.bf16.msra.mxu0 %v1101
          %1327 = vmatprep.subr.bf16.mxu0 %v1096
          %1328 = vmatpush2.bf16.msra.mxu0 %v1095
          %1329 = vmatprep.subr.bf16.mxu0 %v1090
          %1330 = vmatpush2.bf16.msra.mxu0 %v1089
          %1331 = vmatprep.subr.bf16.mxu0 %v1084
          %1332 = vmatpush2.bf16.msra.mxu0 %v1083
          %1333 = vmatprep.subr.bf16.mxu0 %v1078
          %1334 = vmatpush2.bf16.msra.mxu0 %v1077
          %1335 = vmatprep.mubr.bf16.mxu0 %v640
          %1336 = vmatmul.mubr.bf16.gmra.mxu0 %v639
          %v1337 = vpop.f32.mrf.mxu0
          %v1338 = vadd.f32 0.0, %v1337
          %v1339 = vpop.f32.mrf.mxu0
          %v1340 = vadd.f32 0.0, %v1339
          %v1341 = vpop.f32.mrf.mxu0
          %v1342 = vadd.f32 0.0, %v1341
          %v1343 = vpop.f32.mrf.mxu0
          %v1344 = vadd.f32 0.0, %v1343
          %1345 = vdwg.mxu0
          %v1346 = vcombine.high %v1252, 0.0
          %v1348 = vunpack.c.l.s4 1983009808
          %v1349 = vunpack.c.0.s8 %v1348
          %v1350 = vlaneseq
          %v1351 = vshrl.u32 %v1350, 7
          %v1352 = vsub.s32 %v1349, %v1351
          %v1353 = vrot.slane %v1252, %v1352
          %v1355 = vunpack.c.l.s4 1983009808
          %v1356 = vunpack.c.0.s8 %v1355
          %v1357 = vlaneseq
          %v1358 = vshrl.u32 %v1357, 7
          %v1359 = vsub.s32 %v1356, %v1358
          %v1360 = vrot.slane %v1346, %v1359
          %v1361 = vcombine.high %v1254, 0.0
          %v1363 = vunpack.c.l.s4 1983009808
          %v1364 = vunpack.c.0.s8 %v1363
          %v1365 = vlaneseq
          %v1366 = vshrl.u32 %v1365, 7
          %v1367 = vsub.s32 %v1364, %v1366
          %v1368 = vrot.slane %v1254, %v1367
          %v1370 = vunpack.c.l.s4 1983009808
          %v1371 = vunpack.c.0.s8 %v1370
          %v1372 = vlaneseq
          %v1373 = vshrl.u32 %v1372, 7
          %v1374 = vsub.s32 %v1371, %v1373
          %v1375 = vrot.slane %v1361, %v1374
          %v1376 = vcombine.low %v1353, %v1368
          %v1377 = vcombine.high %v1353, %v1368
          %v1379 = vunpack.c.l.s4 1934713408
          %v1380 = vunpack.c.0.s8 %v1379
          %v1381 = vlaneseq
          %v1382 = vshrl.u32 %v1381, 7
          %v1383 = vsub.s32 %v1380, %v1382
          %v1384 = vrot.slane %v1376, %v1383
          %v1386 = vunpack.c.l.s4 1934713408
          %v1387 = vunpack.c.0.s8 %v1386
          %v1388 = vlaneseq
          %v1389 = vshrl.u32 %v1388, 7
          %v1390 = vsub.s32 %v1387, %v1389
          %v1391 = vrot.slane %v1377, %v1390
          %v1392 = vcombine.low %v1360, %v1375
          %v1393 = vcombine.high %v1360, %v1375
          %v1395 = vunpack.c.l.s4 1934713408
          %v1396 = vunpack.c.0.s8 %v1395
          %v1397 = vlaneseq
          %v1398 = vshrl.u32 %v1397, 7
          %v1399 = vsub.s32 %v1396, %v1398
          %v1400 = vrot.slane %v1392, %v1399
          %v1402 = vunpack.c.l.s4 1934713408
          %v1403 = vunpack.c.0.s8 %v1402
          %v1404 = vlaneseq
          %v1405 = vshrl.u32 %v1404, 7
          %v1406 = vsub.s32 %v1403, %v1405
          %v1407 = vrot.slane %v1393, %v1406
          %v1408 = vcombine.high %v1384, 0.0
          %v1409 = vcombine.high %v1391, 0.0
          %v1410 = vcombine.high %v1400, 0.0
          %v1411 = vcombine.high %v1407, 0.0
          %v1412 = vcombine.high %v1256, 0.0
          %v1414 = vunpack.c.l.s4 1983009808
          %v1415 = vunpack.c.0.s8 %v1414
          %v1416 = vlaneseq
          %v1417 = vshrl.u32 %v1416, 7
          %v1418 = vsub.s32 %v1415, %v1417
          %v1419 = vrot.slane %v1256, %v1418
          %v1421 = vunpack.c.l.s4 1983009808
          %v1422 = vunpack.c.0.s8 %v1421
          %v1423 = vlaneseq
          %v1424 = vshrl.u32 %v1423, 7
          %v1425 = vsub.s32 %v1422, %v1424
          %v1426 = vrot.slane %v1412, %v1425
          %v1427 = vcombine.high %v1258, 0.0
          %v1429 = vunpack.c.l.s4 1983009808
          %v1430 = vunpack.c.0.s8 %v1429
          %v1431 = vlaneseq
          %v1432 = vshrl.u32 %v1431, 7
          %v1433 = vsub.s32 %v1430, %v1432
          %v1434 = vrot.slane %v1258, %v1433
          %v1436 = vunpack.c.l.s4 1983009808
          %v1437 = vunpack.c.0.s8 %v1436
          %v1438 = vlaneseq
          %v1439 = vshrl.u32 %v1438, 7
          %v1440 = vsub.s32 %v1437, %v1439
          %v1441 = vrot.slane %v1427, %v1440
          %v1442 = vcombine.low %v1419, %v1434
          %v1443 = vcombine.high %v1419, %v1434
          %v1445 = vunpack.c.l.s4 1934713408
          %v1446 = vunpack.c.0.s8 %v1445
          %v1447 = vlaneseq
          %v1448 = vshrl.u32 %v1447, 7
          %v1449 = vsub.s32 %v1446, %v1448
          %v1450 = vrot.slane %v1442, %v1449
          %v1452 = vunpack.c.l.s4 1934713408
          %v1453 = vunpack.c.0.s8 %v1452
          %v1454 = vlaneseq
          %v1455 = vshrl.u32 %v1454, 7
          %v1456 = vsub.s32 %v1453, %v1455
          %v1457 = vrot.slane %v1443, %v1456
          %v1458 = vcombine.low %v1426, %v1441
          %v1459 = vcombine.high %v1426, %v1441
          %v1461 = vunpack.c.l.s4 1934713408
          %v1462 = vunpack.c.0.s8 %v1461
          %v1463 = vlaneseq
          %v1464 = vshrl.u32 %v1463, 7
          %v1465 = vsub.s32 %v1462, %v1464
          %v1466 = vrot.slane %v1458, %v1465
          %v1468 = vunpack.c.l.s4 1934713408
          %v1469 = vunpack.c.0.s8 %v1468
          %v1470 = vlaneseq
          %v1471 = vshrl.u32 %v1470, 7
          %v1472 = vsub.s32 %v1469, %v1471
          %v1473 = vrot.slane %v1459, %v1472
          %v1474 = vcombine.high %v1450, 0.0
          %v1475 = vcombine.high %v1457, 0.0
          %v1476 = vcombine.high %v1466, 0.0
          %v1477 = vcombine.high %v1473, 0.0
          %v1478 = vcombine.low %v1384, %v1391
          %v1480 = vunpack.c.l.s4 1983009808
          %v1481 = vunpack.c.0.s8 %v1480
          %v1482 = vlaneseq
          %v1483 = vshrl.u32 %v1482, 7
          %v1484 = vsub.s32 %v1481, %v1483
          %v1485 = vrot.slane %v1478, %v1484
          %v1486 = vcombine.low %v1408, %v1409
          %v1488 = vunpack.c.l.s4 1983009808
          %v1489 = vunpack.c.0.s8 %v1488
          %v1490 = vlaneseq
          %v1491 = vshrl.u32 %v1490, 7
          %v1492 = vsub.s32 %v1489, %v1491
          %v1493 = vrot.slane %v1486, %v1492
          %v1494 = vcombine.low %v1400, %v1407
          %v1496 = vunpack.c.l.s4 1983009808
          %v1497 = vunpack.c.0.s8 %v1496
          %v1498 = vlaneseq
          %v1499 = vshrl.u32 %v1498, 7
          %v1500 = vsub.s32 %v1497, %v1499
          %v1501 = vrot.slane %v1494, %v1500
          %v1502 = vcombine.low %v1410, %v1411
          %v1504 = vunpack.c.l.s4 1983009808
          %v1505 = vunpack.c.0.s8 %v1504
          %v1506 = vlaneseq
          %v1507 = vshrl.u32 %v1506, 7
          %v1508 = vsub.s32 %v1505, %v1507
          %v1509 = vrot.slane %v1502, %v1508
          %v1510 = vcombine.low %v1485, %v1493
          %v1512 = vunpack.c.l.s4 1934713408
          %v1513 = vunpack.c.0.s8 %v1512
          %v1514 = vlaneseq
          %v1515 = vshrl.u32 %v1514, 7
          %v1516 = vsub.s32 %v1513, %v1515
          %v1517 = vrot.slane %v1510, %v1516
          %v1518 = vcombine.low %v1501, %v1509
          %v1520 = vunpack.c.l.s4 1934713408
          %v1521 = vunpack.c.0.s8 %v1520
          %v1522 = vlaneseq
          %v1523 = vshrl.u32 %v1522, 7
          %v1524 = vsub.s32 %v1521, %v1523
          %v1525 = vrot.slane %v1518, %v1524
          %v1526 = vcombine.low %v1517, %v1525
          %v1527 = vcombine.high %v1517, %v1525
          %v1528 = vcombine.low %v1450, %v1457
          %v1530 = vunpack.c.l.s4 1983009808
          %v1531 = vunpack.c.0.s8 %v1530
          %v1532 = vlaneseq
          %v1533 = vshrl.u32 %v1532, 7
          %v1534 = vsub.s32 %v1531, %v1533
          %v1535 = vrot.slane %v1528, %v1534
          %v1536 = vcombine.low %v1474, %v1475
          %v1538 = vunpack.c.l.s4 1983009808
          %v1539 = vunpack.c.0.s8 %v1538
          %v1540 = vlaneseq
          %v1541 = vshrl.u32 %v1540, 7
          %v1542 = vsub.s32 %v1539, %v1541
          %v1543 = vrot.slane %v1536, %v1542
          %v1544 = vcombine.low %v1466, %v1473
          %v1546 = vunpack.c.l.s4 1983009808
          %v1547 = vunpack.c.0.s8 %v1546
          %v1548 = vlaneseq
          %v1549 = vshrl.u32 %v1548, 7
          %v1550 = vsub.s32 %v1547, %v1549
          %v1551 = vrot.slane %v1544, %v1550
          %v1552 = vcombine.low %v1476, %v1477
          %v1554 = vunpack.c.l.s4 1983009808
          %v1555 = vunpack.c.0.s8 %v1554
          %v1556 = vlaneseq
          %v1557 = vshrl.u32 %v1556, 7
          %v1558 = vsub.s32 %v1555, %v1557
          %v1559 = vrot.slane %v1552, %v1558
          %v1560 = vcombine.low %v1535, %v1543
          %v1562 = vunpack.c.l.s4 1934713408
          %v1563 = vunpack.c.0.s8 %v1562
          %v1564 = vlaneseq
          %v1565 = vshrl.u32 %v1564, 7
          %v1566 = vsub.s32 %v1563, %v1565
          %v1567 = vrot.slane %v1560, %v1566
          %v1568 = vcombine.low %v1551, %v1559
          %v1570 = vunpack.c.l.s4 1934713408
          %v1571 = vunpack.c.0.s8 %v1570
          %v1572 = vlaneseq
          %v1573 = vshrl.u32 %v1572, 7
          %v1574 = vsub.s32 %v1571, %v1573
          %v1575 = vrot.slane %v1568, %v1574
          %v1576 = vcombine.low %v1567, %v1575
          %v1577 = vcombine.high %v1567, %v1575
          %v1578 = vmul.f32 %v1526, 0.088388346
          %v1579 = vmul.f32 %v1576, 0.088388346
          %v1580 = vmul.f32 %v1527, 0.088388346
          %v1581 = vmul.f32 %v1577, 0.088388346
          %v1582 = vpack.c.bf16 %v1579, %v1578
          %v1583 = vpack.c.bf16 %v1581, %v1580
          %v1586 = vunpack.c.l.b16 %v1582
          %v1587 = vunpack.c.h.b16 %v1582
          %v1588 = vunpack.c.l.b16 %v1583
          %v1589 = vunpack.c.h.b16 %v1583
          %v1590 = vpack.c.b16 %v1586, %v1586
          %v1591 = vpack.c.b16 %v1587, %v1587
          %v1592 = vpack.c.b16 %v1588, %v1588
          %v1593 = vpack.c.b16 %v1589, %v1589
          %1598 = vst [vmem:[#allocation2] sm:$0xf] %v1590
          %1599 = vst [vmem:[#allocation2 + $0x4] sm:$0xf] %v1591
          %1600 = vst [vmem:[#allocation2 + $0x8] sm:$0xf] %v1592
          %1601 = vst [vmem:[#allocation2 + $0xc] sm:$0xf] %v1593
          %v1602 = vcombine.high %v1295, 0.0
          %v1604 = vunpack.c.l.s4 1983009808
          %v1605 = vunpack.c.0.s8 %v1604
          %v1606 = vlaneseq
          %v1607 = vshrl.u32 %v1606, 7
          %v1608 = vsub.s32 %v1605, %v1607
          %v1609 = vrot.slane %v1295, %v1608
          %v1611 = vunpack.c.l.s4 1983009808
          %v1612 = vunpack.c.0.s8 %v1611
          %v1613 = vlaneseq
          %v1614 = vshrl.u32 %v1613, 7
          %v1615 = vsub.s32 %v1612, %v1614
          %v1616 = vrot.slane %v1602, %v1615
          %v1617 = vcombine.high %v1297, 0.0
          %v1619 = vunpack.c.l.s4 1983009808
          %v1620 = vunpack.c.0.s8 %v1619
          %v1621 = vlaneseq
          %v1622 = vshrl.u32 %v1621, 7
          %v1623 = vsub.s32 %v1620, %v1622
          %v1624 = vrot.slane %v1297, %v1623
          %v1626 = vunpack.c.l.s4 1983009808
          %v1627 = vunpack.c.0.s8 %v1626
          %v1628 = vlaneseq
          %v1629 = vshrl.u32 %v1628, 7
          %v1630 = vsub.s32 %v1627, %v1629
          %v1631 = vrot.slane %v1617, %v1630
          %v1632 = vcombine.low %v1609, %v1624
          %v1633 = vcombine.high %v1609, %v1624
          %v1635 = vunpack.c.l.s4 1934713408
          %v1636 = vunpack.c.0.s8 %v1635
          %v1637 = vlaneseq
          %v1638 = vshrl.u32 %v1637, 7
          %v1639 = vsub.s32 %v1636, %v1638
          %v1640 = vrot.slane %v1632, %v1639
          %v1642 = vunpack.c.l.s4 1934713408
          %v1643 = vunpack.c.0.s8 %v1642
          %v1644 = vlaneseq
          %v1645 = vshrl.u32 %v1644, 7
          %v1646 = vsub.s32 %v1643, %v1645
          %v1647 = vrot.slane %v1633, %v1646
          %v1648 = vcombine.low %v1616, %v1631
          %v1649 = vcombine.high %v1616, %v1631
          %v1651 = vunpack.c.l.s4 1934713408
          %v1652 = vunpack.c.0.s8 %v1651
          %v1653 = vlaneseq
          %v1654 = vshrl.u32 %v1653, 7
          %v1655 = vsub.s32 %v1652, %v1654
          %v1656 = vrot.slane %v1648, %v1655
          %v1658 = vunpack.c.l.s4 1934713408
          %v1659 = vunpack.c.0.s8 %v1658
          %v1660 = vlaneseq
          %v1661 = vshrl.u32 %v1660, 7
          %v1662 = vsub.s32 %v1659, %v1661
          %v1663 = vrot.slane %v1649, %v1662
          %v1664 = vcombine.high %v1640, 0.0
          %v1665 = vcombine.high %v1647, 0.0
          %v1666 = vcombine.high %v1656, 0.0
          %v1667 = vcombine.high %v1663, 0.0
          %v1668 = vcombine.high %v1299, 0.0
          %v1670 = vunpack.c.l.s4 1983009808
          %v1671 = vunpack.c.0.s8 %v1670
          %v1672 = vlaneseq
          %v1673 = vshrl.u32 %v1672, 7
          %v1674 = vsub.s32 %v1671, %v1673
          %v1675 = vrot.slane %v1299, %v1674
          %v1677 = vunpack.c.l.s4 1983009808
          %v1678 = vunpack.c.0.s8 %v1677
          %v1679 = vlaneseq
          %v1680 = vshrl.u32 %v1679, 7
          %v1681 = vsub.s32 %v1678, %v1680
          %v1682 = vrot.slane %v1668, %v1681
          %v1683 = vcombine.high %v1301, 0.0
          %v1685 = vunpack.c.l.s4 1983009808
          %v1686 = vunpack.c.0.s8 %v1685
          %v1687 = vlaneseq
          %v1688 = vshrl.u32 %v1687, 7
          %v1689 = vsub.s32 %v1686, %v1688
          %v1690 = vrot.slane %v1301, %v1689
          %v1692 = vunpack.c.l.s4 1983009808
          %v1693 = vunpack.c.0.s8 %v1692
          %v1694 = vlaneseq
          %v1695 = vshrl.u32 %v1694, 7
          %v1696 = vsub.s32 %v1693, %v1695
          %v1697 = vrot.slane %v1683, %v1696
          %v1698 = vcombine.low %v1675, %v1690
          %v1699 = vcombine.high %v1675, %v1690
          %v1701 = vunpack.c.l.s4 1934713408
          %v1702 = vunpack.c.0.s8 %v1701
          %v1703 = vlaneseq
          %v1704 = vshrl.u32 %v1703, 7
          %v1705 = vsub.s32 %v1702, %v1704
          %v1706 = vrot.slane %v1698, %v1705
          %v1708 = vunpack.c.l.s4 1934713408
          %v1709 = vunpack.c.0.s8 %v1708
          %v1710 = vlaneseq
          %v1711 = vshrl.u32 %v1710, 7
          %v1712 = vsub.s32 %v1709, %v1711
          %v1713 = vrot.slane %v1699, %v1712
          %v1714 = vcombine.low %v1682, %v1697
          %v1715 = vcombine.high %v1682, %v1697
          %v1717 = vunpack.c.l.s4 1934713408
          %v1718 = vunpack.c.0.s8 %v1717
          %v1719 = vlaneseq
          %v1720 = vshrl.u32 %v1719, 7
          %v1721 = vsub.s32 %v1718, %v1720
          %v1722 = vrot.slane %v1714, %v1721
          %v1724 = vunpack.c.l.s4 1934713408
          %v1725 = vunpack.c.0.s8 %v1724
          %v1726 = vlaneseq
          %v1727 = vshrl.u32 %v1726, 7
          %v1728 = vsub.s32 %v1725, %v1727
          %v1729 = vrot.slane %v1715, %v1728
          %v1730 = vcombine.high %v1706, 0.0
          %v1731 = vcombine.high %v1713, 0.0
          %v1732 = vcombine.high %v1722, 0.0
          %v1733 = vcombine.high %v1729, 0.0
          %v1734 = vcombine.low %v1640, %v1647
          %v1736 = vunpack.c.l.s4 1983009808
          %v1737 = vunpack.c.0.s8 %v1736
          %v1738 = vlaneseq
          %v1739 = vshrl.u32 %v1738, 7
          %v1740 = vsub.s32 %v1737, %v1739
          %v1741 = vrot.slane %v1734, %v1740
          %v1742 = vcombine.low %v1664, %v1665
          %v1744 = vunpack.c.l.s4 1983009808
          %v1745 = vunpack.c.0.s8 %v1744
          %v1746 = vlaneseq
          %v1747 = vshrl.u32 %v1746, 7
          %v1748 = vsub.s32 %v1745, %v1747
          %v1749 = vrot.slane %v1742, %v1748
          %v1750 = vcombine.low %v1656, %v1663
          %v1752 = vunpack.c.l.s4 1983009808
          %v1753 = vunpack.c.0.s8 %v1752
          %v1754 = vlaneseq
          %v1755 = vshrl.u32 %v1754, 7
          %v1756 = vsub.s32 %v1753, %v1755
          %v1757 = vrot.slane %v1750, %v1756
          %v1758 = vcombine.low %v1666, %v1667
          %v1760 = vunpack.c.l.s4 1983009808
          %v1761 = vunpack.c.0.s8 %v1760
          %v1762 = vlaneseq
          %v1763 = vshrl.u32 %v1762, 7
          %v1764 = vsub.s32 %v1761, %v1763
          %v1765 = vrot.slane %v1758, %v1764
          %v1766 = vcombine.low %v1741, %v1749
          %v1768 = vunpack.c.l.s4 1934713408
          %v1769 = vunpack.c.0.s8 %v1768
          %v1770 = vlaneseq
          %v1771 = vshrl.u32 %v1770, 7
          %v1772 = vsub.s32 %v1769, %v1771
          %v1773 = vrot.slane %v1766, %v1772
          %v1774 = vcombine.low %v1757, %v1765
          %v1776 = vunpack.c.l.s4 1934713408
          %v1777 = vunpack.c.0.s8 %v1776
          %v1778 = vlaneseq
          %v1779 = vshrl.u32 %v1778, 7
          %v1780 = vsub.s32 %v1777, %v1779
          %v1781 = vrot.slane %v1774, %v1780
          %v1782 = vcombine.low %v1773, %v1781
          %v1783 = vcombine.high %v1773, %v1781
          %v1784 = vcombine.low %v1706, %v1713
          %v1786 = vunpack.c.l.s4 1983009808
          %v1787 = vunpack.c.0.s8 %v1786
          %v1788 = vlaneseq
          %v1789 = vshrl.u32 %v1788, 7
          %v1790 = vsub.s32 %v1787, %v1789
          %v1791 = vrot.slane %v1784, %v1790
          %v1792 = vcombine.low %v1730, %v1731
          %v1794 = vunpack.c.l.s4 1983009808
          %v1795 = vunpack.c.0.s8 %v1794
          %v1796 = vlaneseq
          %v1797 = vshrl.u32 %v1796, 7
          %v1798 = vsub.s32 %v1795, %v1797
          %v1799 = vrot.slane %v1792, %v1798
          %v1800 = vcombine.low %v1722, %v1729
          %v1802 = vunpack.c.l.s4 1983009808
          %v1803 = vunpack.c.0.s8 %v1802
          %v1804 = vlaneseq
          %v1805 = vshrl.u32 %v1804, 7
          %v1806 = vsub.s32 %v1803, %v1805
          %v1807 = vrot.slane %v1800, %v1806
          %v1808 = vcombine.low %v1732, %v1733
          %v1810 = vunpack.c.l.s4 1983009808
          %v1811 = vunpack.c.0.s8 %v1810
          %v1812 = vlaneseq
          %v1813 = vshrl.u32 %v1812, 7
          %v1814 = vsub.s32 %v1811, %v1813
          %v1815 = vrot.slane %v1808, %v1814
          %v1816 = vcombine.low %v1791, %v1799
          %v1818 = vunpack.c.l.s4 1934713408
          %v1819 = vunpack.c.0.s8 %v1818
          %v1820 = vlaneseq
          %v1821 = vshrl.u32 %v1820, 7
          %v1822 = vsub.s32 %v1819, %v1821
          %v1823 = vrot.slane %v1816, %v1822
          %v1824 = vcombine.low %v1807, %v1815
          %v1826 = vunpack.c.l.s4 1934713408
          %v1827 = vunpack.c.0.s8 %v1826
          %v1828 = vlaneseq
          %v1829 = vshrl.u32 %v1828, 7
          %v1830 = vsub.s32 %v1827, %v1829
          %v1831 = vrot.slane %v1824, %v1830
          %v1832 = vcombine.low %v1823, %v1831
          %v1833 = vcombine.high %v1823, %v1831
          %v1834 = vpack.c.bf16 %v1832, %v1782
          %v1835 = vpack.c.bf16 %v1833, %v1783
          %v1838 = vunpack.c.l.b16 %v1834
          %v1839 = vunpack.c.h.b16 %v1834
          %v1840 = vunpack.c.l.b16 %v1835
          %v1841 = vunpack.c.h.b16 %v1835
          %v1842 = vpack.c.b16 %v1838, %v1838
          %v1843 = vpack.c.b16 %v1839, %v1839
          %v1844 = vpack.c.b16 %v1840, %v1840
          %v1845 = vpack.c.b16 %v1841, %v1841
          %1850 = vst [vmem:[#allocation3] sm:$0xf] %v1842
          %1851 = vst [vmem:[#allocation3 + $0x4] sm:$0xf] %v1843
          %1852 = vst [vmem:[#allocation3 + $0x8] sm:$0xf] %v1844
          %1853 = vst [vmem:[#allocation3 + $0xc] sm:$0xf] %v1845
          %v1854 = vcombine.high %v1338, 0.0
          %v1856 = vunpack.c.l.s4 1983009808
          %v1857 = vunpack.c.0.s8 %v1856
          %v1858 = vlaneseq
          %v1859 = vshrl.u32 %v1858, 7
          %v1860 = vsub.s32 %v1857, %v1859
          %v1861 = vrot.slane %v1338, %v1860
          %v1863 = vunpack.c.l.s4 1983009808
          %v1864 = vunpack.c.0.s8 %v1863
          %v1865 = vlaneseq
          %v1866 = vshrl.u32 %v1865, 7
          %v1867 = vsub.s32 %v1864, %v1866
          %v1868 = vrot.slane %v1854, %v1867
          %v1869 = vcombine.high %v1340, 0.0
          %v1871 = vunpack.c.l.s4 1983009808
          %v1872 = vunpack.c.0.s8 %v1871
          %v1873 = vlaneseq
          %v1874 = vshrl.u32 %v1873, 7
          %v1875 = vsub.s32 %v1872, %v1874
          %v1876 = vrot.slane %v1340, %v1875
          %v1878 = vunpack.c.l.s4 1983009808
          %v1879 = vunpack.c.0.s8 %v1878
          %v1880 = vlaneseq
          %v1881 = vshrl.u32 %v1880, 7
          %v1882 = vsub.s32 %v1879, %v1881
          %v1883 = vrot.slane %v1869, %v1882
          %v1884 = vcombine.low %v1861, %v1876
          %v1885 = vcombine.high %v1861, %v1876
          %v1887 = vunpack.c.l.s4 1934713408
          %v1888 = vunpack.c.0.s8 %v1887
          %v1889 = vlaneseq
          %v1890 = vshrl.u32 %v1889, 7
          %v1891 = vsub.s32 %v1888, %v1890
          %v1892 = vrot.slane %v1884, %v1891
          %v1894 = vunpack.c.l.s4 1934713408
          %v1895 = vunpack.c.0.s8 %v1894
          %v1896 = vlaneseq
          %v1897 = vshrl.u32 %v1896, 7
          %v1898 = vsub.s32 %v1895, %v1897
          %v1899 = vrot.slane %v1885, %v1898
          %v1900 = vcombine.low %v1868, %v1883
          %v1901 = vcombine.high %v1868, %v1883
          %v1903 = vunpack.c.l.s4 1934713408
          %v1904 = vunpack.c.0.s8 %v1903
          %v1905 = vlaneseq
          %v1906 = vshrl.u32 %v1905, 7
          %v1907 = vsub.s32 %v1904, %v1906
          %v1908 = vrot.slane %v1900, %v1907
          %v1910 = vunpack.c.l.s4 1934713408
          %v1911 = vunpack.c.0.s8 %v1910
          %v1912 = vlaneseq
          %v1913 = vshrl.u32 %v1912, 7
          %v1914 = vsub.s32 %v1911, %v1913
          %v1915 = vrot.slane %v1901, %v1914
          %v1916 = vcombine.high %v1892, 0.0
          %v1917 = vcombine.high %v1899, 0.0
          %v1918 = vcombine.high %v1908, 0.0
          %v1919 = vcombine.high %v1915, 0.0
          %v1920 = vcombine.high %v1342, 0.0
          %v1922 = vunpack.c.l.s4 1983009808
          %v1923 = vunpack.c.0.s8 %v1922
          %v1924 = vlaneseq
          %v1925 = vshrl.u32 %v1924, 7
          %v1926 = vsub.s32 %v1923, %v1925
          %v1927 = vrot.slane %v1342, %v1926
          %v1929 = vunpack.c.l.s4 1983009808
          %v1930 = vunpack.c.0.s8 %v1929
          %v1931 = vlaneseq
          %v1932 = vshrl.u32 %v1931, 7
          %v1933 = vsub.s32 %v1930, %v1932
          %v1934 = vrot.slane %v1920, %v1933
          %v1935 = vcombine.high %v1344, 0.0
          %v1937 = vunpack.c.l.s4 1983009808
          %v1938 = vunpack.c.0.s8 %v1937
          %v1939 = vlaneseq
          %v1940 = vshrl.u32 %v1939, 7
          %v1941 = vsub.s32 %v1938, %v1940
          %v1942 = vrot.slane %v1344, %v1941
          %v1944 = vunpack.c.l.s4 1983009808
          %v1945 = vunpack.c.0.s8 %v1944
          %v1946 = vlaneseq
          %v1947 = vshrl.u32 %v1946, 7
          %v1948 = vsub.s32 %v1945, %v1947
          %v1949 = vrot.slane %v1935, %v1948
          %v1950 = vcombine.low %v1927, %v1942
          %v1951 = vcombine.high %v1927, %v1942
          %v1953 = vunpack.c.l.s4 1934713408
          %v1954 = vunpack.c.0.s8 %v1953
          %v1955 = vlaneseq
          %v1956 = vshrl.u32 %v1955, 7
          %v1957 = vsub.s32 %v1954, %v1956
          %v1958 = vrot.slane %v1950, %v1957
          %v1960 = vunpack.c.l.s4 1934713408
          %v1961 = vunpack.c.0.s8 %v1960
          %v1962 = vlaneseq
          %v1963 = vshrl.u32 %v1962, 7
          %v1964 = vsub.s32 %v1961, %v1963
          %v1965 = vrot.slane %v1951, %v1964
          %v1966 = vcombine.low %v1934, %v1949
          %v1967 = vcombine.high %v1934, %v1949
          %v1969 = vunpack.c.l.s4 1934713408
          %v1970 = vunpack.c.0.s8 %v1969
          %v1971 = vlaneseq
          %v1972 = vshrl.u32 %v1971, 7
          %v1973 = vsub.s32 %v1970, %v1972
          %v1974 = vrot.slane %v1966, %v1973
          %v1976 = vunpack.c.l.s4 1934713408
          %v1977 = vunpack.c.0.s8 %v1976
          %v1978 = vlaneseq
          %v1979 = vshrl.u32 %v1978, 7
          %v1980 = vsub.s32 %v1977, %v1979
          %v1981 = vrot.slane %v1967, %v1980
          %v1982 = vcombine.high %v1958, 0.0
          %v1983 = vcombine.high %v1965, 0.0
          %v1984 = vcombine.high %v1974, 0.0
          %v1985 = vcombine.high %v1981, 0.0
          %v1986 = vcombine.low %v1892, %v1899
          %v1988 = vunpack.c.l.s4 1983009808
          %v1989 = vunpack.c.0.s8 %v1988
          %v1990 = vlaneseq
          %v1991 = vshrl.u32 %v1990, 7
          %v1992 = vsub.s32 %v1989, %v1991
          %v1993 = vrot.slane %v1986, %v1992
          %v1994 = vcombine.low %v1916, %v1917
          %v1996 = vunpack.c.l.s4 1983009808
          %v1997 = vunpack.c.0.s8 %v1996
          %v1998 = vlaneseq
          %v1999 = vshrl.u32 %v1998, 7
          %v2000 = vsub.s32 %v1997, %v1999
          %v2001 = vrot.slane %v1994, %v2000
          %v2002 = vcombine.low %v1908, %v1915
          %v2004 = vunpack.c.l.s4 1983009808
          %v2005 = vunpack.c.0.s8 %v2004
          %v2006 = vlaneseq
          %v2007 = vshrl.u32 %v2006, 7
          %v2008 = vsub.s32 %v2005, %v2007
          %v2009 = vrot.slane %v2002, %v2008
          %v2010 = vcombine.low %v1918, %v1919
          %v2012 = vunpack.c.l.s4 1983009808
          %v2013 = vunpack.c.0.s8 %v2012
          %v2014 = vlaneseq
          %v2015 = vshrl.u32 %v2014, 7
          %v2016 = vsub.s32 %v2013, %v2015
          %v2017 = vrot.slane %v2010, %v2016
          %v2018 = vcombine.low %v1993, %v2001
          %v2020 = vunpack.c.l.s4 1934713408
          %v2021 = vunpack.c.0.s8 %v2020
          %v2022 = vlaneseq
          %v2023 = vshrl.u32 %v2022, 7
          %v2024 = vsub.s32 %v2021, %v2023
          %v2025 = vrot.slane %v2018, %v2024
          %v2026 = vcombine.low %v2009, %v2017
          %v2028 = vunpack.c.l.s4 1934713408
          %v2029 = vunpack.c.0.s8 %v2028
          %v2030 = vlaneseq
          %v2031 = vshrl.u32 %v2030, 7
          %v2032 = vsub.s32 %v2029, %v2031
          %v2033 = vrot.slane %v2026, %v2032
          %v2034 = vcombine.low %v2025, %v2033
          %v2035 = vcombine.high %v2025, %v2033
          %v2036 = vcombine.low %v1958, %v1965
          %v2038 = vunpack.c.l.s4 1983009808
          %v2039 = vunpack.c.0.s8 %v2038
          %v2040 = vlaneseq
          %v2041 = vshrl.u32 %v2040, 7
          %v2042 = vsub.s32 %v2039, %v2041
          %v2043 = vrot.slane %v2036, %v2042
          %v2044 = vcombine.low %v1982, %v1983
          %v2046 = vunpack.c.l.s4 1983009808
          %v2047 = vunpack.c.0.s8 %v2046
          %v2048 = vlaneseq
          %v2049 = vshrl.u32 %v2048, 7
          %v2050 = vsub.s32 %v2047, %v2049
          %v2051 = vrot.slane %v2044, %v2050
          %v2052 = vcombine.low %v1974, %v1981
          %v2054 = vunpack.c.l.s4 1983009808
          %v2055 = vunpack.c.0.s8 %v2054
          %v2056 = vlaneseq
          %v2057 = vshrl.u32 %v2056, 7
          %v2058 = vsub.s32 %v2055, %v2057
          %v2059 = vrot.slane %v2052, %v2058
          %v2060 = vcombine.low %v1984, %v1985
          %v2062 = vunpack.c.l.s4 1983009808
          %v2063 = vunpack.c.0.s8 %v2062
          %v2064 = vlaneseq
          %v2065 = vshrl.u32 %v2064, 7
          %v2066 = vsub.s32 %v2063, %v2065
          %v2067 = vrot.slane %v2060, %v2066
          %v2068 = vcombine.low %v2043, %v2051
          %v2070 = vunpack.c.l.s4 1934713408
          %v2071 = vunpack.c.0.s8 %v2070
          %v2072 = vlaneseq
          %v2073 = vshrl.u32 %v2072, 7
          %v2074 = vsub.s32 %v2071, %v2073
          %v2075 = vrot.slane %v2068, %v2074
          %v2076 = vcombine.low %v2059, %v2067
          %v2078 = vunpack.c.l.s4 1934713408
          %v2079 = vunpack.c.0.s8 %v2078
          %v2080 = vlaneseq
          %v2081 = vshrl.u32 %v2080, 7
          %v2082 = vsub.s32 %v2079, %v2081
          %v2083 = vrot.slane %v2076, %v2082
          %v2084 = vcombine.low %v2075, %v2083
          %v2085 = vcombine.high %v2075, %v2083
          %v2086 = vpack.c.bf16 %v2084, %v2034
          %v2087 = vpack.c.bf16 %v2085, %v2035
          %v2090 = vunpack.c.l.b16 %v2086
          %v2091 = vunpack.c.h.b16 %v2086
          %v2092 = vunpack.c.l.b16 %v2087
          %v2093 = vunpack.c.h.b16 %v2087
          %v2094 = vpack.c.b16 %v2090, %v2090
          %v2095 = vpack.c.b16 %v2091, %v2091
          %v2096 = vpack.c.b16 %v2092, %v2092
          %v2097 = vpack.c.b16 %v2093, %v2093
          %2102 = vst [vmem:[#allocation4] sm:$0xf] %v2094
          %2103 = vst [vmem:[#allocation4 + $0x4] sm:$0xf] %v2095
          %2104 = vst [vmem:[#allocation4 + $0x8] sm:$0xf] %v2096
          %2105 = vst [vmem:[#allocation4 + $0xc] sm:$0xf] %v2097
        $region100: #{tpu_custom_call.1} parent=71 // pred_fallthru
          _
        %s2106 = smul.u32 %s40, 8
        %s2107 = sshra.s32 %s2106, 3
        %s2108 = sand.u32 %s2106, 7
        %s2109 = smul.u32 %s2107, 2
        %s2110 = smul.addr %s2109, 8
        %s2111 = scalar_lea.vmem %s494, %s2110 [#allocation5]
        %v2112 = vld [vmem:[%s2111] sm:$0xff]
        %v2113 = vld [vmem:[%s2111 + $0x8] sm:$0xff]
        %s2114 = smul.addr %s2107, 4
        %s2115 = scalar_lea.vmem [#allocation2], %s2114
        %v2116 = vld [vmem:[%s2115] sm:$0xf]
        %v2117 = vld [vmem:[%s2115 + $0x8] sm:$0xf]
        %v2118 = vld [vmem:[#allocation3] sm:$0xf]
        %v2119 = vld [vmem:[#allocation3 + $0x4] sm:$0xf]
        %v2120 = vld [vmem:[#allocation3 + $0x8] sm:$0xf]
        %v2121 = vld [vmem:[#allocation3 + $0xc] sm:$0xf]
        %v2122 = vunpack.c.l.bf16 %v2116
        %v2123 = vunpack.c.l.bf16 %v2117
        %2124 = vadd.xlane.f32.xlu0 %v2122
        %v2125 = vpop.xlane.xlu0 %2124
        %2126 = vadd.xlane.f32.xlu0 %v2123
        %v2127 = vpop.xlane.xlu0 %2126
        %v2128 = vld [vmem:[%s502] sm:$0x1]
        %v2130 = vlaneseq
        %v2131 = vshrl.u32 %v2130, 7
        %v2132 = vsub.s32 0, %v2131
        %v2133 = vrot.slane %v2128, %v2132
        %v2135 = vmul.f32 %v2125, %v2133
        %v2136 = vmul.f32 %v2127, %v2133
        %v2139 = vunpack.c.l.b16 %v2118
        %v2140 = vunpack.c.l.b16 %v2119
        %v2141 = vpack.c.b16 %v2140, %v2139
        %2143 = vmatprep.subr.bf16.mxu0 0
        %2144 = vmatpush1.bf16.xpose.msra.mxu0 0
        %2145 = vmatprep.subr.bf16.mxu0 0
        %2146 = vmatpush1.bf16.xpose.msra.mxu0 0
        %2147 = vmatprep.subr.bf16.mxu0 0
        %2148 = vmatpush1.bf16.xpose.msra.mxu0 0
        %2149 = vmatprep.subr.bf16.mxu0 0
        %2150 = vmatpush1.bf16.xpose.msra.mxu0 0
        %2151 = vmatprep.subr.bf16.mxu0 0
        %2152 = vmatpush1.bf16.xpose.msra.mxu0 0
        %2153 = vmatprep.subr.bf16.mxu0 0
        %2154 = vmatpush1.bf16.xpose.msra.mxu0 0
        %2155 = vmatprep.subr.bf16.mxu0 0
        %2156 = vmatpush1.bf16.xpose.msra.mxu0 0
        %2157 = vmatprep.subr.bf16.mxu0 0
        %2158 = vmatpush1.bf16.xpose.msra.mxu0 %v2141
        %2159 = vmatprep.subr.bf16.mxu0 0
        %2160 = vmatpush2.bf16.xpose.msra.mxu0 0
        %2161 = vmatprep.subr.bf16.mxu0 0
        %2162 = vmatpush2.bf16.xpose.msra.mxu0 0
        %2163 = vmatprep.subr.bf16.mxu0 0
        %2164 = vmatpush2.bf16.xpose.msra.mxu0 0
        %2165 = vmatprep.subr.bf16.mxu0 0
        %2166 = vmatpush2.bf16.xpose.msra.mxu0 0
        %2167 = vmatprep.subr.bf16.mxu0 0
        %2168 = vmatpush2.bf16.xpose.msra.mxu0 0
        %2169 = vmatprep.subr.bf16.mxu0 0
        %2170 = vmatpush2.bf16.xpose.msra.mxu0 0
        %2171 = vmatprep.subr.bf16.mxu0 0
        %2172 = vmatpush2.bf16.xpose.msra.mxu0 0
        %2173 = vmatprep.subr.bf16.mxu0 0
        %2174 = vmatpush2.bf16.xpose.msra.mxu0 0
        %2175 = vmatprep.mubr.bf16.mxu0 0
        %2176 = vmatmul.mubr.bf16.gmra.mxu0 %v2116
        %v2177 = vpop.f32.mrf.mxu0
        %v2178 = vadd.f32 %v2135, %v2177
        %v2179 = vpop.f32.mrf.mxu0
        %v2180 = vpop.f32.mrf.mxu0
        %v2181 = vpop.f32.mrf.mxu0
        %2182 = vdwg.mxu0
        %v2185 = vunpack.c.l.b16 %v2120
        %v2186 = vunpack.c.l.b16 %v2121
        %v2187 = vpack.c.b16 %v2186, %v2185
        %2189 = vmatprep.subr.bf16.mxu0 0
        %2190 = vmatpush1.bf16.xpose.msra.mxu0 0
        %2191 = vmatprep.subr.bf16.mxu0 0
        %2192 = vmatpush1.bf16.xpose.msra.mxu0 0
        %2193 = vmatprep.subr.bf16.mxu0 0
        %2194 = vmatpush1.bf16.xpose.msra.mxu0 0
        %2195 = vmatprep.subr.bf16.mxu0 0
        %2196 = vmatpush1.bf16.xpose.msra.mxu0 0
        %2197 = vmatprep.subr.bf16.mxu0 0
        %2198 = vmatpush1.bf16.xpose.msra.mxu0 0
        %2199 = vmatprep.subr.bf16.mxu0 0
        %2200 = vmatpush1.bf16.xpose.msra.mxu0 0
        %2201 = vmatprep.subr.bf16.mxu0 0
        %2202 = vmatpush1.bf16.xpose.msra.mxu0 0
        %2203 = vmatprep.subr.bf16.mxu0 0
        %2204 = vmatpush1.bf16.xpose.msra.mxu0 %v2187
        %2205 = vmatprep.subr.bf16.mxu0 0
        %2206 = vmatpush2.bf16.xpose.msra.mxu0 0
        %2207 = vmatprep.subr.bf16.mxu0 0
        %2208 = vmatpush2.bf16.xpose.msra.mxu0 0
        %2209 = vmatprep.subr.bf16.mxu0 0
        %2210 = vmatpush2.bf16.xpose.msra.mxu0 0
        %2211 = vmatprep.subr.bf16.mxu0 0
        %2212 = vmatpush2.bf16.xpose.msra.mxu0 0
        %2213 = vmatprep.subr.bf16.mxu0 0
        %2214 = vmatpush2.bf16.xpose.msra.mxu0 0
        %2215 = vmatprep.subr.bf16.mxu0 0
        %2216 = vmatpush2.bf16.xpose.msra.mxu0 0
        %2217 = vmatprep.subr.bf16.mxu0 0
        %2218 = vmatpush2.bf16.xpose.msra.mxu0 0
        %2219 = vmatprep.subr.bf16.mxu0 0
        %2220 = vmatpush2.bf16.xpose.msra.mxu0 0
        %2221 = vmatprep.mubr.bf16.mxu0 0
        %2222 = vmatmul.mubr.bf16.gmra.mxu0 %v2117
        %v2223 = vpop.f32.mrf.mxu0
        %v2224 = vadd.f32 %v2136, %v2223
        %v2225 = vpop.f32.mrf.mxu0
        %v2226 = vpop.f32.mrf.mxu0
        %v2227 = vpop.f32.mrf.mxu0
        %2228 = vdwg.mxu0
        %vm2229 = vcmask 130048
        %v2230 = vsel %vm2229, %v2178, -inf
        %2231 = vmax.xlane.f32.xlu0 %v2230
        %v2232 = vpop.xlane.xlu0 %2231
        %v2233 = vsel %vm2229, %v2224, -inf
        %2234 = vmax.xlane.f32.xlu0 %v2233
        %v2235 = vpop.xlane.xlu0 %2234
        %v2236 = vsub.f32 %v2178, %v2232
        %v2237 = vsub.f32 %v2224, %v2235
        %v2238 = vmul.f32 %v2236, 1.442695
        %v2239 = vpow.pop %v2238
        %v2240 = vmul.f32 %v2237, 1.442695
        %v2241 = vpow.pop %v2240
        %v2242 = vsel %vm2229, %v2239, 0.0
        %2243 = vadd.xlane.f32.xlu0 %v2242
        %v2244 = vpop.xlane.xlu0 %2243
        %v2245 = vsel %vm2229, %v2241, 0.0
        %2246 = vadd.xlane.f32.xlu0 %v2245
        %v2247 = vpop.xlane.xlu0 %2246
        %v2248 = vrcp.pop %v2244
        %v2249 = vrcp.pop %v2247
        %v2250 = vmul.f32 %v2239, %v2248
        %v2251 = vmul.f32 %v2241, %v2249
        %v2252 = vpack.c.bf16 %v2250, %v2250
        %v2253 = vpack.c.bf16 %v2251, %v2251
        %v2254 = vld [vmem:[#allocation4] sm:$0xf]
        %v2255 = vld [vmem:[#allocation4 + $0x4] sm:$0xf]
        %v2256 = vld [vmem:[#allocation4 + $0x8] sm:$0xf]
        %v2257 = vld [vmem:[#allocation4 + $0xc] sm:$0xf]
        %v2260 = vunpack.c.l.b16 %v2254
        %v2261 = vunpack.c.l.b16 %v2255
        %v2262 = vpack.c.b16 %v2261, %v2260
        %v2265 = vsel %vm2229, %v2252, 0
        %2267 = vmatprep.subr.bf16.mxu0 0
        %2268 = vmatpush1.bf16.msra.mxu0 0
        %2269 = vmatprep.subr.bf16.mxu0 0
        %2270 = vmatpush1.bf16.msra.mxu0 0
        %2271 = vmatprep.subr.bf16.mxu0 0
        %2272 = vmatpush1.bf16.msra.mxu0 0
        %2273 = vmatprep.subr.bf16.mxu0 0
        %2274 = vmatpush1.bf16.msra.mxu0 0
        %2275 = vmatprep.subr.bf16.mxu0 0
        %2276 = vmatpush1.bf16.msra.mxu0 0
        %2277 = vmatprep.subr.bf16.mxu0 0
        %2278 = vmatpush1.bf16.msra.mxu0 0
        %2279 = vmatprep.subr.bf16.mxu0 0
        %2280 = vmatpush1.bf16.msra.mxu0 0
        %2281 = vmatprep.subr.bf16.mxu0 0
        %2282 = vmatpush1.bf16.msra.mxu0 %v2262
        %2283 = vmatprep.subr.bf16.mxu0 0
        %2284 = vmatpush2.bf16.msra.mxu0 0
        %2285 = vmatprep.subr.bf16.mxu0 0
        %2286 = vmatpush2.bf16.msra.mxu0 0
        %2287 = vmatprep.subr.bf16.mxu0 0
        %2288 = vmatpush2.bf16.msra.mxu0 0
        %2289 = vmatprep.subr.bf16.mxu0 0
        %2290 = vmatpush2.bf16.msra.mxu0 0
        %2291 = vmatprep.subr.bf16.mxu0 0
        %2292 = vmatpush2.bf16.msra.mxu0 0
        %2293 = vmatprep.subr.bf16.mxu0 0
        %2294 = vmatpush2.bf16.msra.mxu0 0
        %2295 = vmatprep.subr.bf16.mxu0 0
        %2296 = vmatpush2.bf16.msra.mxu0 0
        %2297 = vmatprep.subr.bf16.mxu0 0
        %2298 = vmatpush2.bf16.msra.mxu0 0
        %2299 = vmatprep.mubr.bf16.mxu0 0
        %2300 = vmatmul.mubr.bf16.gmra.mxu0 %v2265
        %v2301 = vpop.f32.mrf.mxu0
        %v2302 = vadd.f32 0.0, %v2301
        %v2303 = vpop.f32.mrf.mxu0
        %v2304 = vpop.f32.mrf.mxu0
        %v2305 = vpop.f32.mrf.mxu0
        %2306 = vdwg.mxu0
        %v2309 = vunpack.c.l.b16 %v2256
        %v2310 = vunpack.c.l.b16 %v2257
        %v2311 = vpack.c.b16 %v2310, %v2309
        %v2314 = vsel %vm2229, %v2253, 0
        %2316 = vmatprep.subr.bf16.mxu0 0
        %2317 = vmatpush1.bf16.msra.mxu0 0
        %2318 = vmatprep.subr.bf16.mxu0 0
        %2319 = vmatpush1.bf16.msra.mxu0 0
        %2320 = vmatprep.subr.bf16.mxu0 0
        %2321 = vmatpush1.bf16.msra.mxu0 0
        %2322 = vmatprep.subr.bf16.mxu0 0
        %2323 = vmatpush1.bf16.msra.mxu0 0
        %2324 = vmatprep.subr.bf16.mxu0 0
        %2325 = vmatpush1.bf16.msra.mxu0 0
        %2326 = vmatprep.subr.bf16.mxu0 0
        %2327 = vmatpush1.bf16.msra.mxu0 0
        %2328 = vmatprep.subr.bf16.mxu0 0
        %2329 = vmatpush1.bf16.msra.mxu0 0
        %2330 = vmatprep.subr.bf16.mxu0 0
        %2331 = vmatpush1.bf16.msra.mxu0 %v2311
        %2332 = vmatprep.subr.bf16.mxu0 0
        %2333 = vmatpush2.bf16.msra.mxu0 0
        %2334 = vmatprep.subr.bf16.mxu0 0
        %2335 = vmatpush2.bf16.msra.mxu0 0
        %2336 = vmatprep.subr.bf16.mxu0 0
        %2337 = vmatpush2.bf16.msra.mxu0 0
        %2338 = vmatprep.subr.bf16.mxu0 0
        %2339 = vmatpush2.bf16.msra.mxu0 0
        %2340 = vmatprep.subr.bf16.mxu0 0
        %2341 = vmatpush2.bf16.msra.mxu0 0
        %2342 = vmatprep.subr.bf16.mxu0 0
        %2343 = vmatpush2.bf16.msra.mxu0 0
        %2344 = vmatprep.subr.bf16.mxu0 0
        %2345 = vmatpush2.bf16.msra.mxu0 0
        %2346 = vmatprep.subr.bf16.mxu0 0
        %2347 = vmatpush2.bf16.msra.mxu0 0
        %2348 = vmatprep.mubr.bf16.mxu0 0
        %2349 = vmatmul.mubr.bf16.gmra.mxu0 %v2314
        %v2350 = vpop.f32.mrf.mxu0
        %v2351 = vadd.f32 0.0, %v2350
        %v2352 = vpop.f32.mrf.mxu0
        %v2353 = vpop.f32.mrf.mxu0
        %v2354 = vpop.f32.mrf.mxu0
        %2355 = vdwg.mxu0
        %v2356 = vcombine.high %v2302, 0.0
        %v2358 = vunpack.c.l.s4 1983009808
        %v2359 = vunpack.c.0.s8 %v2358
        %v2360 = vlaneseq
        %v2361 = vshrl.u32 %v2360, 7
        %v2362 = vsub.s32 %v2359, %v2361
        %v2363 = vrot.slane %v2302, %v2362
        %v2365 = vunpack.c.l.s4 1983009808
        %v2366 = vunpack.c.0.s8 %v2365
        %v2367 = vlaneseq
        %v2368 = vshrl.u32 %v2367, 7
        %v2369 = vsub.s32 %v2366, %v2368
        %v2370 = vrot.slane %v2356, %v2369
        %v2371 = vcombine.high %v2351, 0.0
        %v2373 = vunpack.c.l.s4 1983009808
        %v2374 = vunpack.c.0.s8 %v2373
        %v2375 = vlaneseq
        %v2376 = vshrl.u32 %v2375, 7
        %v2377 = vsub.s32 %v2374, %v2376
        %v2378 = vrot.slane %v2351, %v2377
        %v2380 = vunpack.c.l.s4 1983009808
        %v2381 = vunpack.c.0.s8 %v2380
        %v2382 = vlaneseq
        %v2383 = vshrl.u32 %v2382, 7
        %v2384 = vsub.s32 %v2381, %v2383
        %v2385 = vrot.slane %v2371, %v2384
        %v2386 = vcombine.low %v2363, %v2378
        %v2387 = vcombine.high %v2363, %v2378
        %v2389 = vunpack.c.l.s4 1934713408
        %v2390 = vunpack.c.0.s8 %v2389
        %v2391 = vlaneseq
        %v2392 = vshrl.u32 %v2391, 7
        %v2393 = vsub.s32 %v2390, %v2392
        %v2394 = vrot.slane %v2386, %v2393
        %v2396 = vunpack.c.l.s4 1934713408
        %v2397 = vunpack.c.0.s8 %v2396
        %v2398 = vlaneseq
        %v2399 = vshrl.u32 %v2398, 7
        %v2400 = vsub.s32 %v2397, %v2399
        %v2401 = vrot.slane %v2387, %v2400
        %v2402 = vcombine.low %v2370, %v2385
        %v2403 = vcombine.high %v2370, %v2385
        %v2405 = vunpack.c.l.s4 1934713408
        %v2406 = vunpack.c.0.s8 %v2405
        %v2407 = vlaneseq
        %v2408 = vshrl.u32 %v2407, 7
        %v2409 = vsub.s32 %v2406, %v2408
        %v2410 = vrot.slane %v2402, %v2409
        %v2412 = vunpack.c.l.s4 1934713408
        %v2413 = vunpack.c.0.s8 %v2412
        %v2414 = vlaneseq
        %v2415 = vshrl.u32 %v2414, 7
        %v2416 = vsub.s32 %v2413, %v2415
        %v2417 = vrot.slane %v2403, %v2416
        %v2418 = vcombine.high %v2394, 0.0
        %v2419 = vcombine.high %v2401, 0.0
        %v2420 = vcombine.high %v2410, 0.0
        %v2421 = vcombine.high %v2417, 0.0
        %v2422 = vcombine.low %v2394, %v2401
        %v2424 = vunpack.c.l.s4 1983009808
        %v2425 = vunpack.c.0.s8 %v2424
        %v2426 = vlaneseq
        %v2427 = vshrl.u32 %v2426, 7
        %v2428 = vsub.s32 %v2425, %v2427
        %v2429 = vrot.slane %v2422, %v2428
        %v2430 = vcombine.low %v2418, %v2419
        %v2432 = vunpack.c.l.s4 1983009808
        %v2433 = vunpack.c.0.s8 %v2432
        %v2434 = vlaneseq
        %v2435 = vshrl.u32 %v2434, 7
        %v2436 = vsub.s32 %v2433, %v2435
        %v2437 = vrot.slane %v2430, %v2436
        %v2438 = vcombine.low %v2410, %v2417
        %v2440 = vunpack.c.l.s4 1983009808
        %v2441 = vunpack.c.0.s8 %v2440
        %v2442 = vlaneseq
        %v2443 = vshrl.u32 %v2442, 7
        %v2444 = vsub.s32 %v2441, %v2443
        %v2445 = vrot.slane %v2438, %v2444
        %v2446 = vcombine.low %v2420, %v2421
        %v2448 = vunpack.c.l.s4 1983009808
        %v2449 = vunpack.c.0.s8 %v2448
        %v2450 = vlaneseq
        %v2451 = vshrl.u32 %v2450, 7
        %v2452 = vsub.s32 %v2449, %v2451
        %v2453 = vrot.slane %v2446, %v2452
        %v2454 = vcombine.low %v2429, %v2437
        %v2456 = vunpack.c.l.s4 1934713408
        %v2457 = vunpack.c.0.s8 %v2456
        %v2458 = vlaneseq
        %v2459 = vshrl.u32 %v2458, 7
        %v2460 = vsub.s32 %v2457, %v2459
        %v2461 = vrot.slane %v2454, %v2460
        %v2462 = vcombine.low %v2445, %v2453
        %v2464 = vunpack.c.l.s4 1934713408
        %v2465 = vunpack.c.0.s8 %v2464
        %v2466 = vlaneseq
        %v2467 = vshrl.u32 %v2466, 7
        %v2468 = vsub.s32 %v2465, %v2467
        %v2469 = vrot.slane %v2462, %v2468
        %v2470 = vcombine.low %v2461, %v2469
        %v2471 = vcombine.high %v2461, %v2469
        %v2472 = vpack.c.bf16 %v2470, %v2470
        %v2473 = vpack.c.bf16 %v2471, %v2471
        %v2474 = vld [vmem:[#allocation11] sm:$0xff]
        %v2475 = vld [vmem:[#allocation11 + $0x8] sm:$0xff]
        %v2476 = vld [vmem:[#allocation11 + $0x10] sm:$0xff]
        %v2477 = vld [vmem:[#allocation11 + $0x18] sm:$0xff]
        %v2478 = vld [vmem:[#allocation11 + $0x20] sm:$0xff]
        %v2479 = vld [vmem:[#allocation11 + $0x28] sm:$0xff]
        %v2480 = vld [vmem:[#allocation11 + $0x30] sm:$0xff]
        %v2481 = vld [vmem:[#allocation11 + $0x38] sm:$0xff]
        %v2482 = vld [vmem:[#allocation11 + $0x40] sm:$0xff]
        %v2483 = vld [vmem:[#allocation11 + $0x48] sm:$0xff]
        %v2484 = vld [vmem:[#allocation11 + $0x50] sm:$0xff]
        %v2485 = vld [vmem:[#allocation11 + $0x58] sm:$0xff]
        %v2486 = vld [vmem:[#allocation11 + $0x60] sm:$0xff]
        %v2487 = vld [vmem:[#allocation11 + $0x68] sm:$0xff]
        %v2488 = vld [vmem:[#allocation11 + $0x70] sm:$0xff]
        %v2489 = vld [vmem:[#allocation11 + $0x78] sm:$0xff]
        %v2490 = vld [vmem:[#allocation11 + $0x80] sm:$0xff]
        %v2491 = vld [vmem:[#allocation11 + $0x88] sm:$0xff]
        %v2492 = vld [vmem:[#allocation11 + $0x90] sm:$0xff]
        %v2493 = vld [vmem:[#allocation11 + $0x98] sm:$0xff]
        %v2494 = vld [vmem:[#allocation11 + $0xa0] sm:$0xff]
        %v2495 = vld [vmem:[#allocation11 + $0xa8] sm:$0xff]
        %v2496 = vld [vmem:[#allocation11 + $0xb0] sm:$0xff]
        %v2497 = vld [vmem:[#allocation11 + $0xb8] sm:$0xff]
        %v2498 = vld [vmem:[#allocation11 + $0xc0] sm:$0xff]
        %v2499 = vld [vmem:[#allocation11 + $0xc8] sm:$0xff]
        %v2500 = vld [vmem:[#allocation11 + $0xd0] sm:$0xff]
        %v2501 = vld [vmem:[#allocation11 + $0xd8] sm:$0xff]
        %v2502 = vld [vmem:[#allocation11 + $0xe0] sm:$0xff]
        %v2503 = vld [vmem:[#allocation11 + $0xe8] sm:$0xff]
        %v2504 = vld [vmem:[#allocation11 + $0xf0] sm:$0xff]
        %v2505 = vld [vmem:[#allocation11 + $0xf8] sm:$0xff]
        %v2506 = vld [vmem:[%s4] sm:$0x3]
        %v2508 = vlaneseq
        %v2509 = vshrl.u32 %v2508, 7
        %v2510 = vsub.s32 0, %v2509
        %v2511 = vrot.slane %v2506, %v2510
        %v2512 = vlaneseq
        %v2513 = vshrl.u32 %v2512, 7
        %v2514 = vsub.s32 1, %v2513
        %v2515 = vrot.slane %v2506, %v2514
        %v2550 = vunpack.c.l.b16 %v2474
        %v2551 = vunpack.c.h.b16 %v2474
        %v2552 = vunpack.c.l.b16 %v2475
        %v2553 = vunpack.c.h.b16 %v2475
        %v2554 = vunpack.c.l.b16 %v2476
        %v2555 = vunpack.c.h.b16 %v2476
        %v2556 = vunpack.c.l.b16 %v2477
        %v2557 = vunpack.c.h.b16 %v2477
        %v2558 = vunpack.c.l.b16 %v2478
        %v2559 = vunpack.c.h.b16 %v2478
        %v2560 = vunpack.c.l.b16 %v2479
        %v2561 = vunpack.c.h.b16 %v2479
        %v2562 = vunpack.c.l.b16 %v2480
        %v2563 = vunpack.c.h.b16 %v2480
        %v2564 = vunpack.c.l.b16 %v2481
        %v2565 = vunpack.c.h.b16 %v2481
        %v2566 = vunpack.c.l.b16 %v2482
        %v2567 = vunpack.c.h.b16 %v2482
        %v2568 = vunpack.c.l.b16 %v2483
        %v2569 = vunpack.c.h.b16 %v2483
        %v2570 = vunpack.c.l.b16 %v2484
        %v2571 = vunpack.c.h.b16 %v2484
        %v2572 = vunpack.c.l.b16 %v2485
        %v2573 = vunpack.c.h.b16 %v2485
        %v2574 = vunpack.c.l.b16 %v2486
        %v2575 = vunpack.c.h.b16 %v2486
        %v2576 = vunpack.c.l.b16 %v2487
        %v2577 = vunpack.c.h.b16 %v2487
        %v2578 = vunpack.c.l.b16 %v2488
        %v2579 = vunpack.c.h.b16 %v2488
        %v2580 = vunpack.c.l.b16 %v2489
        %v2581 = vunpack.c.h.b16 %v2489
        %v2582 = vunpack.c.l.b16 %v2490
        %v2583 = vunpack.c.h.b16 %v2490
        %v2584 = vunpack.c.l.b16 %v2491
        %v2585 = vunpack.c.h.b16 %v2491
        %v2586 = vunpack.c.l.b16 %v2492
        %v2587 = vunpack.c.h.b16 %v2492
        %v2588 = vunpack.c.l.b16 %v2493
        %v2589 = vunpack.c.h.b16 %v2493
        %v2590 = vunpack.c.l.b16 %v2494
        %v2591 = vunpack.c.h.b16 %v2494
        %v2592 = vunpack.c.l.b16 %v2495
        %v2593 = vunpack.c.h.b16 %v2495
        %v2594 = vunpack.c.l.b16 %v2496
        %v2595 = vunpack.c.h.b16 %v2496
        %v2596 = vunpack.c.l.b16 %v2497
        %v2597 = vunpack.c.h.b16 %v2497
        %v2598 = vunpack.c.l.b16 %v2498
        %v2599 = vunpack.c.h.b16 %v2498
        %v2600 = vunpack.c.l.b16 %v2499
        %v2601 = vunpack.c.h.b16 %v2499
        %v2602 = vunpack.c.l.b16 %v2500
        %v2603 = vunpack.c.h.b16 %v2500
        %v2604 = vunpack.c.l.b16 %v2501
        %v2605 = vunpack.c.h.b16 %v2501
        %v2606 = vunpack.c.l.b16 %v2502
        %v2607 = vunpack.c.h.b16 %v2502
        %v2608 = vunpack.c.l.b16 %v2503
        %v2609 = vunpack.c.h.b16 %v2503
        %v2610 = vunpack.c.l.b16 %v2504
        %v2611 = vunpack.c.h.b16 %v2504
        %v2612 = vunpack.c.l.b16 %v2505
        %v2613 = vunpack.c.h.b16 %v2505
        %v2614 = vpack.c.b16 %v2552, %v2550
        %v2615 = vpack.c.b16 %v2553, %v2551
        %v2616 = vpack.c.b16 %v2556, %v2554
        %v2617 = vpack.c.b16 %v2557, %v2555
        %v2618 = vpack.c.b16 %v2560, %v2558
        %v2619 = vpack.c.b16 %v2561, %v2559
        %v2620 = vpack.c.b16 %v2564, %v2562
        %v2621 = vpack.c.b16 %v2565, %v2563
        %v2622 = vpack.c.b16 %v2568, %v2566
        %v2623 = vpack.c.b16 %v2569, %v2567
        %v2624 = vpack.c.b16 %v2572, %v2570
        %v2625 = vpack.c.b16 %v2573, %v2571
        %v2626 = vpack.c.b16 %v2576, %v2574
        %v2627 = vpack.c.b16 %v2577, %v2575
        %v2628 = vpack.c.b16 %v2580, %v2578
        %v2629 = vpack.c.b16 %v2581, %v2579
        %v2630 = vpack.c.b16 %v2584, %v2582
        %v2631 = vpack.c.b16 %v2585, %v2583
        %v2632 = vpack.c.b16 %v2588, %v2586
        %v2633 = vpack.c.b16 %v2589, %v2587
        %v2634 = vpack.c.b16 %v2592, %v2590
        %v2635 = vpack.c.b16 %v2593, %v2591
        %v2636 = vpack.c.b16 %v2596, %v2594
        %v2637 = vpack.c.b16 %v2597, %v2595
        %v2638 = vpack.c.b16 %v2600, %v2598
        %v2639 = vpack.c.b16 %v2601, %v2599
        %v2640 = vpack.c.b16 %v2604, %v2602
        %v2641 = vpack.c.b16 %v2605, %v2603
        %v2642 = vpack.c.b16 %v2608, %v2606
        %v2643 = vpack.c.b16 %v2609, %v2607
        %v2644 = vpack.c.b16 %v2612, %v2610
        %v2645 = vpack.c.b16 %v2613, %v2611
        %2678 = vmatprep.subr.bf16.mxu0 %v2629
        %2679 = vmatpush1.bf16.msra.mxu0 %v2628
        %2680 = vmatprep.subr.bf16.mxu0 %v2627
        %2681 = vmatpush1.bf16.msra.mxu0 %v2626
        %2682 = vmatprep.subr.bf16.mxu0 %v2625
        %2683 = vmatpush1.bf16.msra.mxu0 %v2624
        %2684 = vmatprep.subr.bf16.mxu0 %v2623
        %2685 = vmatpush1.bf16.msra.mxu0 %v2622
        %2686 = vmatprep.subr.bf16.mxu0 %v2621
        %2687 = vmatpush1.bf16.msra.mxu0 %v2620
        %2688 = vmatprep.subr.bf16.mxu0 %v2619
        %2689 = vmatpush1.bf16.msra.mxu0 %v2618
        %2690 = vmatprep.subr.bf16.mxu0 %v2617
        %2691 = vmatpush1.bf16.msra.mxu0 %v2616
        %2692 = vmatprep.subr.bf16.mxu0 %v2615
        %2693 = vmatpush1.bf16.msra.mxu0 %v2614
        %2694 = vmatprep.subr.bf16.mxu0 %v2645
        %2695 = vmatpush2.bf16.msra.mxu0 %v2644
        %2696 = vmatprep.subr.bf16.mxu0 %v2643
        %2697 = vmatpush2.bf16.msra.mxu0 %v2642
        %2698 = vmatprep.subr.bf16.mxu0 %v2641
        %2699 = vmatpush2.bf16.msra.mxu0 %v2640
        %2700 = vmatprep.subr.bf16.mxu0 %v2639
        %2701 = vmatpush2.bf16.msra.mxu0 %v2638
        %2702 = vmatprep.subr.bf16.mxu0 %v2637
        %2703 = vmatpush2.bf16.msra.mxu0 %v2636
        %2704 = vmatprep.subr.bf16.mxu0 %v2635
        %2705 = vmatpush2.bf16.msra.mxu0 %v2634
        %2706 = vmatprep.subr.bf16.mxu0 %v2633
        %2707 = vmatpush2.bf16.msra.mxu0 %v2632
        %2708 = vmatprep.subr.bf16.mxu0 %v2631
        %2709 = vmatpush2.bf16.msra.mxu0 %v2630
        %2710 = vmatprep.mubr.bf16.mxu0 %v2473
        %2711 = vmatmul.mubr.bf16.gmra.mxu0 %v2472
        %v2712 = vpop.f32.mrf.mxu0
        %v2713 = vadd.f32 %v2511, %v2712
        %v2714 = vpop.f32.mrf.mxu0
        %v2715 = vadd.f32 %v2515, %v2714
        %v2716 = vpop.f32.mrf.mxu0
        %v2717 = vpop.f32.mrf.mxu0
        %2718 = vdwg.mxu0
        %v2719 = vadd.f32 %v2112, %v2713
        %v2720 = vadd.f32 %v2113, %v2715
        %v2721 = vld [vmem:[%s7] sm:$0x3]
        %v2722 = vld [vmem:[%s8] sm:$0x3]
        %v2723 = vadd.f32 %v2719, %v2720
        %2724 = vadd.xlane.f32.xlu0 %v2723
        %v2725 = vpop.xlane.xlu0 %2724
        %v2726 = vrcp.pop 256.0
        %v2727 = vmul.f32 %v2725, %v2726
        %v2728 = vsub.f32 %v2719, %v2727
        %v2729 = vsub.f32 %v2720, %v2727
        %v2730 = vmul.f32 %v2728, %v2728
        %v2731 = vmul.f32 %v2729, %v2729
        %v2732 = vadd.f32 %v2730, %v2731
        %2733 = vadd.xlane.f32.xlu0 %v2732
        %v2734 = vpop.xlane.xlu0 %2733
        %v2735 = vmul.f32 %v2734, %v2726
        %v2736 = vadd.f32 %v2735, 1e-05
        %v2737 = vrsqrt.pop %v2736
        %v2738 = vmul.f32 %v2728, %v2737
        %v2739 = vmul.f32 %v2729, %v2737
        %v2741 = vlaneseq
        %v2742 = vshrl.u32 %v2741, 7
        %v2743 = vsub.s32 0, %v2742
        %v2744 = vrot.slane %v2721, %v2743
        %v2745 = vlaneseq
        %v2746 = vshrl.u32 %v2745, 7
        %v2747 = vsub.s32 1, %v2746
        %v2748 = vrot.slane %v2721, %v2747
        %v2751 = vmul.f32 %v2738, %v2744
        %v2752 = vmul.f32 %v2739, %v2748
        %v2754 = vlaneseq
        %v2755 = vshrl.u32 %v2754, 7
        %v2756 = vsub.s32 0, %v2755
        %v2757 = vrot.slane %v2722, %v2756
        %v2758 = vlaneseq
        %v2759 = vshrl.u32 %v2758, 7
        %v2760 = vsub.s32 1, %v2759
        %v2761 = vrot.slane %v2722, %v2760
        %v2764 = vadd.f32 %v2751, %v2757
        %v2765 = vadd.f32 %v2752, %v2761
        %v2766 = vpack.c.bf16 %v2764, %v2764
        %v2767 = vpack.c.bf16 %v2765, %v2765
        %v2768 = vld [vmem:[#allocation13] sm:$0xff]
        %v2769 = vld [vmem:[#allocation13 + $0x8] sm:$0xff]
        %v2770 = vld [vmem:[#allocation13 + $0x10] sm:$0xff]
        %v2771 = vld [vmem:[#allocation13 + $0x18] sm:$0xff]
        %v2772 = vld [vmem:[#allocation13 + $0x20] sm:$0xff]
        %v2773 = vld [vmem:[#allocation13 + $0x28] sm:$0xff]
        %v2774 = vld [vmem:[#allocation13 + $0x30] sm:$0xff]
        %v2775 = vld [vmem:[#allocation13 + $0x38] sm:$0xff]
        %v2776 = vld [vmem:[#allocation13 + $0x40] sm:$0xff]
        %v2777 = vld [vmem:[#allocation13 + $0x48] sm:$0xff]
        %v2778 = vld [vmem:[#allocation13 + $0x50] sm:$0xff]
        %v2779 = vld [vmem:[#allocation13 + $0x58] sm:$0xff]
        %v2780 = vld [vmem:[#allocation13 + $0x60] sm:$0xff]
        %v2781 = vld [vmem:[#allocation13 + $0x68] sm:$0xff]
        %v2782 = vld [vmem:[#allocation13 + $0x70] sm:$0xff]
        %v2783 = vld [vmem:[#allocation13 + $0x78] sm:$0xff]
        %v2784 = vld [vmem:[#allocation13 + $0x80] sm:$0xff]
        %v2785 = vld [vmem:[#allocation13 + $0x88] sm:$0xff]
        %v2786 = vld [vmem:[#allocation13 + $0x90] sm:$0xff]
        %v2787 = vld [vmem:[#allocation13 + $0x98] sm:$0xff]
        %v2788 = vld [vmem:[#allocation13 + $0xa0] sm:$0xff]
        %v2789 = vld [vmem:[#allocation13 + $0xa8] sm:$0xff]
        %v2790 = vld [vmem:[#allocation13 + $0xb0] sm:$0xff]
        %v2791 = vld [vmem:[#allocation13 + $0xb8] sm:$0xff]
        %v2792 = vld [vmem:[#allocation13 + $0xc0] sm:$0xff]
        %v2793 = vld [vmem:[#allocation13 + $0xc8] sm:$0xff]
        %v2794 = vld [vmem:[#allocation13 + $0xd0] sm:$0xff]
        %v2795 = vld [vmem:[#allocation13 + $0xd8] sm:$0xff]
        %v2796 = vld [vmem:[#allocation13 + $0xe0] sm:$0xff]
        %v2797 = vld [vmem:[#allocation13 + $0xe8] sm:$0xff]
        %v2798 = vld [vmem:[#allocation13 + $0xf0] sm:$0xff]
        %v2799 = vld [vmem:[#allocation13 + $0xf8] sm:$0xff]
        %v2800 = vld [vmem:[#allocation13 + $0x100] sm:$0xff]
        %v2801 = vld [vmem:[#allocation13 + $0x108] sm:$0xff]
        %v2802 = vld [vmem:[#allocation13 + $0x110] sm:$0xff]
        %v2803 = vld [vmem:[#allocation13 + $0x118] sm:$0xff]
        %v2804 = vld [vmem:[#allocation13 + $0x120] sm:$0xff]
        %v2805 = vld [vmem:[#allocation13 + $0x128] sm:$0xff]
        %v2806 = vld [vmem:[#allocation13 + $0x130] sm:$0xff]
        %v2807 = vld [vmem:[#allocation13 + $0x138] sm:$0xff]
        %v2808 = vld [vmem:[#allocation13 + $0x140] sm:$0xff]
        %v2809 = vld [vmem:[#allocation13 + $0x148] sm:$0xff]
        %v2810 = vld [vmem:[#allocation13 + $0x150] sm:$0xff]
        %v2811 = vld [vmem:[#allocation13 + $0x158] sm:$0xff]
        %v2812 = vld [vmem:[#allocation13 + $0x160] sm:$0xff]
        %v2813 = vld [vmem:[#allocation13 + $0x168] sm:$0xff]
        %v2814 = vld [vmem:[#allocation13 + $0x170] sm:$0xff]
        %v2815 = vld [vmem:[#allocation13 + $0x178] sm:$0xff]
        %v2816 = vld [vmem:[#allocation13 + $0x180] sm:$0xff]
        %v2817 = vld [vmem:[#allocation13 + $0x188] sm:$0xff]
        %v2818 = vld [vmem:[#allocation13 + $0x190] sm:$0xff]
        %v2819 = vld [vmem:[#allocation13 + $0x198] sm:$0xff]
        %v2820 = vld [vmem:[#allocation13 + $0x1a0] sm:$0xff]
        %v2821 = vld [vmem:[#allocation13 + $0x1a8] sm:$0xff]
        %v2822 = vld [vmem:[#allocation13 + $0x1b0] sm:$0xff]
        %v2823 = vld [vmem:[#allocation13 + $0x1b8] sm:$0xff]
        %v2824 = vld [vmem:[#allocation13 + $0x1c0] sm:$0xff]
        %v2825 = vld [vmem:[#allocation13 + $0x1c8] sm:$0xff]
        %v2826 = vld [vmem:[#allocation13 + $0x1d0] sm:$0xff]
        %v2827 = vld [vmem:[#allocation13 + $0x1d8] sm:$0xff]
        %v2828 = vld [vmem:[#allocation13 + $0x1e0] sm:$0xff]
        %v2829 = vld [vmem:[#allocation13 + $0x1e8] sm:$0xff]
        %v2830 = vld [vmem:[#allocation13 + $0x1f0] sm:$0xff]
        %v2831 = vld [vmem:[#allocation13 + $0x1f8] sm:$0xff]
        %v2832 = vld [vmem:[%s10] sm:$0xf]
        %v2834 = vlaneseq
        %v2835 = vshrl.u32 %v2834, 7
        %v2836 = vsub.s32 0, %v2835
        %v2837 = vrot.slane %v2832, %v2836
        %v2838 = vlaneseq
        %v2839 = vshrl.u32 %v2838, 7
        %v2840 = vsub.s32 1, %v2839
        %v2841 = vrot.slane %v2832, %v2840
        %v2842 = vlaneseq
        %v2843 = vshrl.u32 %v2842, 7
        %v2844 = vsub.s32 2, %v2843
        %v2845 = vrot.slane %v2832, %v2844
        %v2846 = vlaneseq
        %v2847 = vshrl.u32 %v2846, 7
        %v2848 = vsub.s32 3, %v2847
        %v2849 = vrot.slane %v2832, %v2848
        %v2918 = vunpack.c.l.b16 %v2768
        %v2919 = vunpack.c.h.b16 %v2768
        %v2920 = vunpack.c.l.b16 %v2769
        %v2921 = vunpack.c.h.b16 %v2769
        %v2922 = vunpack.c.l.b16 %v2770
        %v2923 = vunpack.c.h.b16 %v2770
        %v2924 = vunpack.c.l.b16 %v2771
        %v2925 = vunpack.c.h.b16 %v2771
        %v2926 = vunpack.c.l.b16 %v2772
        %v2927 = vunpack.c.h.b16 %v2772
        %v2928 = vunpack.c.l.b16 %v2773
        %v2929 = vunpack.c.h.b16 %v2773
        %v2930 = vunpack.c.l.b16 %v2774
        %v2931 = vunpack.c.h.b16 %v2774
        %v2932 = vunpack.c.l.b16 %v2775
        %v2933 = vunpack.c.h.b16 %v2775
        %v2934 = vunpack.c.l.b16 %v2776
        %v2935 = vunpack.c.h.b16 %v2776
        %v2936 = vunpack.c.l.b16 %v2777
        %v2937 = vunpack.c.h.b16 %v2777
        %v2938 = vunpack.c.l.b16 %v2778
        %v2939 = vunpack.c.h.b16 %v2778
        %v2940 = vunpack.c.l.b16 %v2779
        %v2941 = vunpack.c.h.b16 %v2779
        %v2942 = vunpack.c.l.b16 %v2780
        %v2943 = vunpack.c.h.b16 %v2780
        %v2944 = vunpack.c.l.b16 %v2781
        %v2945 = vunpack.c.h.b16 %v2781
        %v2946 = vunpack.c.l.b16 %v2782
        %v2947 = vunpack.c.h.b16 %v2782
        %v2948 = vunpack.c.l.b16 %v2783
        %v2949 = vunpack.c.h.b16 %v2783
        %v2950 = vunpack.c.l.b16 %v2784
        %v2951 = vunpack.c.h.b16 %v2784
        %v2952 = vunpack.c.l.b16 %v2785
        %v2953 = vunpack.c.h.b16 %v2785
        %v2954 = vunpack.c.l.b16 %v2786
        %v2955 = vunpack.c.h.b16 %v2786
        %v2956 = vunpack.c.l.b16 %v2787
        %v2957 = vunpack.c.h.b16 %v2787
        %v2958 = vunpack.c.l.b16 %v2788
        %v2959 = vunpack.c.h.b16 %v2788
        %v2960 = vunpack.c.l.b16 %v2789
        %v2961 = vunpack.c.h.b16 %v2789
        %v2962 = vunpack.c.l.b16 %v2790
        %v2963 = vunpack.c.h.b16 %v2790
        %v2964 = vunpack.c.l.b16 %v2791
        %v2965 = vunpack.c.h.b16 %v2791
        %v2966 = vunpack.c.l.b16 %v2792
        %v2967 = vunpack.c.h.b16 %v2792
        %v2968 = vunpack.c.l.b16 %v2793
        %v2969 = vunpack.c.h.b16 %v2793
        %v2970 = vunpack.c.l.b16 %v2794
        %v2971 = vunpack.c.h.b16 %v2794
        %v2972 = vunpack.c.l.b16 %v2795
        %v2973 = vunpack.c.h.b16 %v2795
        %v2974 = vunpack.c.l.b16 %v2796
        %v2975 = vunpack.c.h.b16 %v2796
        %v2976 = vunpack.c.l.b16 %v2797
        %v2977 = vunpack.c.h.b16 %v2797
        %v2978 = vunpack.c.l.b16 %v2798
        %v2979 = vunpack.c.h.b16 %v2798
        %v2980 = vunpack.c.l.b16 %v2799
        %v2981 = vunpack.c.h.b16 %v2799
        %v2982 = vunpack.c.l.b16 %v2800
        %v2983 = vunpack.c.h.b16 %v2800
        %v2984 = vunpack.c.l.b16 %v2801
        %v2985 = vunpack.c.h.b16 %v2801
        %v2986 = vunpack.c.l.b16 %v2802
        %v2987 = vunpack.c.h.b16 %v2802
        %v2988 = vunpack.c.l.b16 %v2803
        %v2989 = vunpack.c.h.b16 %v2803
        %v2990 = vunpack.c.l.b16 %v2804
        %v2991 = vunpack.c.h.b16 %v2804
        %v2992 = vunpack.c.l.b16 %v2805
        %v2993 = vunpack.c.h.b16 %v2805
        %v2994 = vunpack.c.l.b16 %v2806
        %v2995 = vunpack.c.h.b16 %v2806
        %v2996 = vunpack.c.l.b16 %v2807
        %v2997 = vunpack.c.h.b16 %v2807
        %v2998 = vunpack.c.l.b16 %v2808
        %v2999 = vunpack.c.h.b16 %v2808
        %v3000 = vunpack.c.l.b16 %v2809
        %v3001 = vunpack.c.h.b16 %v2809
        %v3002 = vunpack.c.l.b16 %v2810
        %v3003 = vunpack.c.h.b16 %v2810
        %v3004 = vunpack.c.l.b16 %v2811
        %v3005 = vunpack.c.h.b16 %v2811
        %v3006 = vunpack.c.l.b16 %v2812
        %v3007 = vunpack.c.h.b16 %v2812
        %v3008 = vunpack.c.l.b16 %v2813
        %v3009 = vunpack.c.h.b16 %v2813
        %v3010 = vunpack.c.l.b16 %v2814
        %v3011 = vunpack.c.h.b16 %v2814
        %v3012 = vunpack.c.l.b16 %v2815
        %v3013 = vunpack.c.h.b16 %v2815
        %v3014 = vunpack.c.l.b16 %v2816
        %v3015 = vunpack.c.h.b16 %v2816
        %v3016 = vunpack.c.l.b16 %v2817
        %v3017 = vunpack.c.h.b16 %v2817
        %v3018 = vunpack.c.l.b16 %v2818
        %v3019 = vunpack.c.h.b16 %v2818
        %v3020 = vunpack.c.l.b16 %v2819
        %v3021 = vunpack.c.h.b16 %v2819
        %v3022 = vunpack.c.l.b16 %v2820
        %v3023 = vunpack.c.h.b16 %v2820
        %v3024 = vunpack.c.l.b16 %v2821
        %v3025 = vunpack.c.h.b16 %v2821
        %v3026 = vunpack.c.l.b16 %v2822
        %v3027 = vunpack.c.h.b16 %v2822
        %v3028 = vunpack.c.l.b16 %v2823
        %v3029 = vunpack.c.h.b16 %v2823
        %v3030 = vunpack.c.l.b16 %v2824
        %v3031 = vunpack.c.h.b16 %v2824
        %v3032 = vunpack.c.l.b16 %v2825
        %v3033 = vunpack.c.h.b16 %v2825
        %v3034 = vunpack.c.l.b16 %v2826
        %v3035 = vunpack.c.h.b16 %v2826
        %v3036 = vunpack.c.l.b16 %v2827
        %v3037 = vunpack.c.h.b16 %v2827
        %v3038 = vunpack.c.l.b16 %v2828
        %v3039 = vunpack.c.h.b16 %v2828
        %v3040 = vunpack.c.l.b16 %v2829
        %v3041 = vunpack.c.h.b16 %v2829
        %v3042 = vunpack.c.l.b16 %v2830
        %v3043 = vunpack.c.h.b16 %v2830
        %v3044 = vunpack.c.l.b16 %v2831
        %v3045 = vunpack.c.h.b16 %v2831
        %v3046 = vpack.c.b16 %v2922, %v2918
        %v3047 = vpack.c.b16 %v2923, %v2919
        %v3048 = vpack.c.b16 %v2924, %v2920
        %v3049 = vpack.c.b16 %v2925, %v2921
        %v3050 = vpack.c.b16 %v2930, %v2926
        %v3051 = vpack.c.b16 %v2931, %v2927
        %v3052 = vpack.c.b16 %v2932, %v2928
        %v3053 = vpack.c.b16 %v2933, %v2929
        %v3054 = vpack.c.b16 %v2938, %v2934
        %v3055 = vpack.c.b16 %v2939, %v2935
        %v3056 = vpack.c.b16 %v2940, %v2936
        %v3057 = vpack.c.b16 %v2941, %v2937
        %v3058 = vpack.c.b16 %v2946, %v2942
        %v3059 = vpack.c.b16 %v2947, %v2943
        %v3060 = vpack.c.b16 %v2948, %v2944
        %v3061 = vpack.c.b16 %v2949, %v2945
        %v3062 = vpack.c.b16 %v2954, %v2950
        %v3063 = vpack.c.b16 %v2955, %v2951
        %v3064 = vpack.c.b16 %v2956, %v2952
        %v3065 = vpack.c.b16 %v2957, %v2953
        %v3066 = vpack.c.b16 %v2962, %v2958
        %v3067 = vpack.c.b16 %v2963, %v2959
        %v3068 = vpack.c.b16 %v2964, %v2960
        %v3069 = vpack.c.b16 %v2965, %v2961
        %v3070 = vpack.c.b16 %v2970, %v2966
        %v3071 = vpack.c.b16 %v2971, %v2967
        %v3072 = vpack.c.b16 %v2972, %v2968
        %v3073 = vpack.c.b16 %v2973, %v2969
        %v3074 = vpack.c.b16 %v2978, %v2974
        %v3075 = vpack.c.b16 %v2979, %v2975
        %v3076 = vpack.c.b16 %v2980, %v2976
        %v3077 = vpack.c.b16 %v2981, %v2977
        %v3078 = vpack.c.b16 %v2986, %v2982
        %v3079 = vpack.c.b16 %v2987, %v2983
        %v3080 = vpack.c.b16 %v2988, %v2984
        %v3081 = vpack.c.b16 %v2989, %v2985
        %v3082 = vpack.c.b16 %v2994, %v2990
        %v3083 = vpack.c.b16 %v2995, %v2991
        %v3084 = vpack.c.b16 %v2996, %v2992
        %v3085 = vpack.c.b16 %v2997, %v2993
        %v3086 = vpack.c.b16 %v3002, %v2998
        %v3087 = vpack.c.b16 %v3003, %v2999
        %v3088 = vpack.c.b16 %v3004, %v3000
        %v3089 = vpack.c.b16 %v3005, %v3001
        %v3090 = vpack.c.b16 %v3010, %v3006
        %v3091 = vpack.c.b16 %v3011, %v3007
        %v3092 = vpack.c.b16 %v3012, %v3008
        %v3093 = vpack.c.b16 %v3013, %v3009
        %v3094 = vpack.c.b16 %v3018, %v3014
        %v3095 = vpack.c.b16 %v3019, %v3015
        %v3096 = vpack.c.b16 %v3020, %v3016
        %v3097 = vpack.c.b16 %v3021, %v3017
        %v3098 = vpack.c.b16 %v3026, %v3022
        %v3099 = vpack.c.b16 %v3027, %v3023
        %v3100 = vpack.c.b16 %v3028, %v3024
        %v3101 = vpack.c.b16 %v3029, %v3025
        %v3102 = vpack.c.b16 %v3034, %v3030
        %v3103 = vpack.c.b16 %v3035, %v3031
        %v3104 = vpack.c.b16 %v3036, %v3032
        %v3105 = vpack.c.b16 %v3037, %v3033
        %v3106 = vpack.c.b16 %v3042, %v3038
        %v3107 = vpack.c.b16 %v3043, %v3039
        %v3108 = vpack.c.b16 %v3044, %v3040
        %v3109 = vpack.c.b16 %v3045, %v3041
        %3174 = vmatprep.subr.bf16.mxu0 %v3075
        %3175 = vmatpush1.bf16.msra.mxu0 %v3074
        %3176 = vmatprep.subr.bf16.mxu0 %v3071
        %3177 = vmatpush1.bf16.msra.mxu0 %v3070
        %3178 = vmatprep.subr.bf16.mxu0 %v3067
        %3179 = vmatpush1.bf16.msra.mxu0 %v3066
        %3180 = vmatprep.subr.bf16.mxu0 %v3063
        %3181 = vmatpush1.bf16.msra.mxu0 %v3062
        %3182 = vmatprep.subr.bf16.mxu0 %v3059
        %3183 = vmatpush1.bf16.msra.mxu0 %v3058
        %3184 = vmatprep.subr.bf16.mxu0 %v3055
        %3185 = vmatpush1.bf16.msra.mxu0 %v3054
        %3186 = vmatprep.subr.bf16.mxu0 %v3051
        %3187 = vmatpush1.bf16.msra.mxu0 %v3050
        %3188 = vmatprep.subr.bf16.mxu0 %v3047
        %3189 = vmatpush1.bf16.msra.mxu0 %v3046
        %3190 = vmatprep.subr.bf16.mxu0 %v3107
        %3191 = vmatpush2.bf16.msra.mxu0 %v3106
        %3192 = vmatprep.subr.bf16.mxu0 %v3103
        %3193 = vmatpush2.bf16.msra.mxu0 %v3102
        %3194 = vmatprep.subr.bf16.mxu0 %v3099
        %3195 = vmatpush2.bf16.msra.mxu0 %v3098
        %3196 = vmatprep.subr.bf16.mxu0 %v3095
        %3197 = vmatpush2.bf16.msra.mxu0 %v3094
        %3198 = vmatprep.subr.bf16.mxu0 %v3091
        %3199 = vmatpush2.bf16.msra.mxu0 %v3090
        %3200 = vmatprep.subr.bf16.mxu0 %v3087
        %3201 = vmatpush2.bf16.msra.mxu0 %v3086
        %3202 = vmatprep.subr.bf16.mxu0 %v3083
        %3203 = vmatpush2.bf16.msra.mxu0 %v3082
        %3204 = vmatprep.subr.bf16.mxu0 %v3079
        %3205 = vmatpush2.bf16.msra.mxu0 %v3078
        %3206 = vmatprep.mubr.bf16.mxu0 %v2767
        %3207 = vmatmul.mubr.bf16.gmra.mxu0 %v2766
        %v3208 = vpop.f32.mrf.mxu0
        %v3209 = vadd.f32 %v2837, %v3208
        %v3210 = vpop.f32.mrf.mxu0
        %v3211 = vadd.f32 %v2841, %v3210
        %v3212 = vpop.f32.mrf.mxu0
        %v3213 = vpop.f32.mrf.mxu0
        %3214 = vdwg.mxu0
        %3215 = vmatprep.subr.bf16.mxu0 %v3077
        %3216 = vmatpush1.bf16.msra.mxu0 %v3076
        %3217 = vmatprep.subr.bf16.mxu0 %v3073
        %3218 = vmatpush1.bf16.msra.mxu0 %v3072
        %3219 = vmatprep.subr.bf16.mxu0 %v3069
        %3220 = vmatpush1.bf16.msra.mxu0 %v3068
        %3221 = vmatprep.subr.bf16.mxu0 %v3065
        %3222 = vmatpush1.bf16.msra.mxu0 %v3064
        %3223 = vmatprep.subr.bf16.mxu0 %v3061
        %3224 = vmatpush1.bf16.msra.mxu0 %v3060
        %3225 = vmatprep.subr.bf16.mxu0 %v3057
        %3226 = vmatpush1.bf16.msra.mxu0 %v3056
        %3227 = vmatprep.subr.bf16.mxu0 %v3053
        %3228 = vmatpush1.bf16.msra.mxu0 %v3052
        %3229 = vmatprep.subr.bf16.mxu0 %v3049
        %3230 = vmatpush1.bf16.msra.mxu0 %v3048
        %3231 = vmatprep.subr.bf16.mxu0 %v3109
        %3232 = vmatpush2.bf16.msra.mxu0 %v3108
        %3233 = vmatprep.subr.bf16.mxu0 %v3105
        %3234 = vmatpush2.bf16.msra.mxu0 %v3104
        %3235 = vmatprep.subr.bf16.mxu0 %v3101
        %3236 = vmatpush2.bf16.msra.mxu0 %v3100
        %3237 = vmatprep.subr.bf16.mxu0 %v3097
        %3238 = vmatpush2.bf16.msra.mxu0 %v3096
        %3239 = vmatprep.subr.bf16.mxu0 %v3093
        %3240 = vmatpush2.bf16.msra.mxu0 %v3092
        %3241 = vmatprep.subr.bf16.mxu0 %v3089
        %3242 = vmatpush2.bf16.msra.mxu0 %v3088
        %3243 = vmatprep.subr.bf16.mxu0 %v3085
        %3244 = vmatpush2.bf16.msra.mxu0 %v3084
        %3245 = vmatprep.subr.bf16.mxu0 %v3081
        %3246 = vmatpush2.bf16.msra.mxu0 %v3080
        %3247 = vmatprep.mubr.bf16.mxu0 %v2767
        %3248 = vmatmul.mubr.bf16.gmra.mxu0 %v2766
        %v3249 = vpop.f32.mrf.mxu0
        %v3250 = vadd.f32 %v2845, %v3249
        %v3251 = vpop.f32.mrf.mxu0
        %v3252 = vadd.f32 %v2849, %v3251
        %v3253 = vpop.f32.mrf.mxu0
        %v3254 = vpop.f32.mrf.mxu0
        %3255 = vdwg.mxu0
        %v3256 = vmul.f32 %v3209, 0.5
        %v3257 = vmul.f32 %v3211, 0.5
        %v3258 = vmul.f32 %v3250, 0.5
        %v3259 = vmul.f32 %v3252, 0.5
        %v3260 = vmul.f32 %v3209, 0.70710677
        %v3261 = vmul.f32 %v3211, 0.70710677
        %v3262 = vmul.f32 %v3250, 0.70710677
        %v3263 = vmul.f32 %v3252, 0.70710677
        %v3264 = verf.f32.pop %v3260
        %v3265 = verf.f32.pop %v3261
        %v3266 = verf.f32.pop %v3262
        %v3267 = verf.f32.pop %v3263
        %v3268 = vadd.f32 %v3264, 1.0
        %v3269 = vadd.f32 %v3265, 1.0
        %v3270 = vadd.f32 %v3266, 1.0
        %v3271 = vadd.f32 %v3267, 1.0
        %v3272 = vmul.f32 %v3256, %v3268
        %v3273 = vmul.f32 %v3257, %v3269
        %v3274 = vmul.f32 %v3258, %v3270
        %v3275 = vmul.f32 %v3259, %v3271
        %v3276 = vpack.c.bf16 %v3272, %v3272
        %v3277 = vpack.c.bf16 %v3273, %v3273
        %v3278 = vpack.c.bf16 %v3274, %v3274
        %v3279 = vpack.c.bf16 %v3275, %v3275
        %v3280 = vld [vmem:[#allocation14] sm:$0xff]
        %v3281 = vld [vmem:[#allocation14 + $0x8] sm:$0xff]
        %v3282 = vld [vmem:[#allocation14 + $0x10] sm:$0xff]
        %v3283 = vld [vmem:[#allocation14 + $0x18] sm:$0xff]
        %v3284 = vld [vmem:[#allocation14 + $0x20] sm:$0xff]
        %v3285 = vld [vmem:[#allocation14 + $0x28] sm:$0xff]
        %v3286 = vld [vmem:[#allocation14 + $0x30] sm:$0xff]
        %v3287 = vld [vmem:[#allocation14 + $0x38] sm:$0xff]
        %v3288 = vld [vmem:[#allocation14 + $0x40] sm:$0xff]
        %v3289 = vld [vmem:[#allocation14 + $0x48] sm:$0xff]
        %v3290 = vld [vmem:[#allocation14 + $0x50] sm:$0xff]
        %v3291 = vld [vmem:[#allocation14 + $0x58] sm:$0xff]
        %v3292 = vld [vmem:[#allocation14 + $0x60] sm:$0xff]
        %v3293 = vld [vmem:[#allocation14 + $0x68] sm:$0xff]
        %v3294 = vld [vmem:[#allocation14 + $0x70] sm:$0xff]
        %v3295 = vld [vmem:[#allocation14 + $0x78] sm:$0xff]
        %v3296 = vld [vmem:[#allocation14 + $0x80] sm:$0xff]
        %v3297 = vld [vmem:[#allocation14 + $0x88] sm:$0xff]
        %v3298 = vld [vmem:[#allocation14 + $0x90] sm:$0xff]
        %v3299 = vld [vmem:[#allocation14 + $0x98] sm:$0xff]
        %v3300 = vld [vmem:[#allocation14 + $0xa0] sm:$0xff]
        %v3301 = vld [vmem:[#allocation14 + $0xa8] sm:$0xff]
        %v3302 = vld [vmem:[#allocation14 + $0xb0] sm:$0xff]
        %v3303 = vld [vmem:[#allocation14 + $0xb8] sm:$0xff]
        %v3304 = vld [vmem:[#allocation14 + $0xc0] sm:$0xff]
        %v3305 = vld [vmem:[#allocation14 + $0xc8] sm:$0xff]
        %v3306 = vld [vmem:[#allocation14 + $0xd0] sm:$0xff]
        %v3307 = vld [vmem:[#allocation14 + $0xd8] sm:$0xff]
        %v3308 = vld [vmem:[#allocation14 + $0xe0] sm:$0xff]
        %v3309 = vld [vmem:[#allocation14 + $0xe8] sm:$0xff]
        %v3310 = vld [vmem:[#allocation14 + $0xf0] sm:$0xff]
        %v3311 = vld [vmem:[#allocation14 + $0xf8] sm:$0xff]
        %v3312 = vld [vmem:[#allocation14 + $0x100] sm:$0xff]
        %v3313 = vld [vmem:[#allocation14 + $0x108] sm:$0xff]
        %v3314 = vld [vmem:[#allocation14 + $0x110] sm:$0xff]
        %v3315 = vld [vmem:[#allocation14 + $0x118] sm:$0xff]
        %v3316 = vld [vmem:[#allocation14 + $0x120] sm:$0xff]
        %v3317 = vld [vmem:[#allocation14 + $0x128] sm:$0xff]
        %v3318 = vld [vmem:[#allocation14 + $0x130] sm:$0xff]
        %v3319 = vld [vmem:[#allocation14 + $0x138] sm:$0xff]
        %v3320 = vld [vmem:[#allocation14 + $0x140] sm:$0xff]
        %v3321 = vld [vmem:[#allocation14 + $0x148] sm:$0xff]
        %v3322 = vld [vmem:[#allocation14 + $0x150] sm:$0xff]
        %v3323 = vld [vmem:[#allocation14 + $0x158] sm:$0xff]
        %v3324 = vld [vmem:[#allocation14 + $0x160] sm:$0xff]
        %v3325 = vld [vmem:[#allocation14 + $0x168] sm:$0xff]
        %v3326 = vld [vmem:[#allocation14 + $0x170] sm:$0xff]
        %v3327 = vld [vmem:[#allocation14 + $0x178] sm:$0xff]
        %v3328 = vld [vmem:[#allocation14 + $0x180] sm:$0xff]
        %v3329 = vld [vmem:[#allocation14 + $0x188] sm:$0xff]
        %v3330 = vld [vmem:[#allocation14 + $0x190] sm:$0xff]
        %v3331 = vld [vmem:[#allocation14 + $0x198] sm:$0xff]
        %v3332 = vld [vmem:[#allocation14 + $0x1a0] sm:$0xff]
        %v3333 = vld [vmem:[#allocation14 + $0x1a8] sm:$0xff]
        %v3334 = vld [vmem:[#allocation14 + $0x1b0] sm:$0xff]
        %v3335 = vld [vmem:[#allocation14 + $0x1b8] sm:$0xff]
        %v3336 = vld [vmem:[#allocation14 + $0x1c0] sm:$0xff]
        %v3337 = vld [vmem:[#allocation14 + $0x1c8] sm:$0xff]
        %v3338 = vld [vmem:[#allocation14 + $0x1d0] sm:$0xff]
        %v3339 = vld [vmem:[#allocation14 + $0x1d8] sm:$0xff]
        %v3340 = vld [vmem:[#allocation14 + $0x1e0] sm:$0xff]
        %v3341 = vld [vmem:[#allocation14 + $0x1e8] sm:$0xff]
        %v3342 = vld [vmem:[#allocation14 + $0x1f0] sm:$0xff]
        %v3343 = vld [vmem:[#allocation14 + $0x1f8] sm:$0xff]
        %v3344 = vld [vmem:[%s12] sm:$0x3]
        %v3346 = vlaneseq
        %v3347 = vshrl.u32 %v3346, 7
        %v3348 = vsub.s32 0, %v3347
        %v3349 = vrot.slane %v3344, %v3348
        %v3350 = vlaneseq
        %v3351 = vshrl.u32 %v3350, 7
        %v3352 = vsub.s32 1, %v3351
        %v3353 = vrot.slane %v3344, %v3352
        %v3420 = vunpack.c.l.b16 %v3280
        %v3421 = vunpack.c.h.b16 %v3280
        %v3422 = vunpack.c.l.b16 %v3281
        %v3423 = vunpack.c.h.b16 %v3281
        %v3424 = vunpack.c.l.b16 %v3282
        %v3425 = vunpack.c.h.b16 %v3282
        %v3426 = vunpack.c.l.b16 %v3283
        %v3427 = vunpack.c.h.b16 %v3283
        %v3428 = vunpack.c.l.b16 %v3284
        %v3429 = vunpack.c.h.b16 %v3284
        %v3430 = vunpack.c.l.b16 %v3285
        %v3431 = vunpack.c.h.b16 %v3285
        %v3432 = vunpack.c.l.b16 %v3286
        %v3433 = vunpack.c.h.b16 %v3286
        %v3434 = vunpack.c.l.b16 %v3287
        %v3435 = vunpack.c.h.b16 %v3287
        %v3436 = vunpack.c.l.b16 %v3288
        %v3437 = vunpack.c.h.b16 %v3288
        %v3438 = vunpack.c.l.b16 %v3289
        %v3439 = vunpack.c.h.b16 %v3289
        %v3440 = vunpack.c.l.b16 %v3290
        %v3441 = vunpack.c.h.b16 %v3290
        %v3442 = vunpack.c.l.b16 %v3291
        %v3443 = vunpack.c.h.b16 %v3291
        %v3444 = vunpack.c.l.b16 %v3292
        %v3445 = vunpack.c.h.b16 %v3292
        %v3446 = vunpack.c.l.b16 %v3293
        %v3447 = vunpack.c.h.b16 %v3293
        %v3448 = vunpack.c.l.b16 %v3294
        %v3449 = vunpack.c.h.b16 %v3294
        %v3450 = vunpack.c.l.b16 %v3295
        %v3451 = vunpack.c.h.b16 %v3295
        %v3452 = vunpack.c.l.b16 %v3296
        %v3453 = vunpack.c.h.b16 %v3296
        %v3454 = vunpack.c.l.b16 %v3297
        %v3455 = vunpack.c.h.b16 %v3297
        %v3456 = vunpack.c.l.b16 %v3298
        %v3457 = vunpack.c.h.b16 %v3298
        %v3458 = vunpack.c.l.b16 %v3299
        %v3459 = vunpack.c.h.b16 %v3299
        %v3460 = vunpack.c.l.b16 %v3300
        %v3461 = vunpack.c.h.b16 %v3300
        %v3462 = vunpack.c.l.b16 %v3301
        %v3463 = vunpack.c.h.b16 %v3301
        %v3464 = vunpack.c.l.b16 %v3302
        %v3465 = vunpack.c.h.b16 %v3302
        %v3466 = vunpack.c.l.b16 %v3303
        %v3467 = vunpack.c.h.b16 %v3303
        %v3468 = vunpack.c.l.b16 %v3304
        %v3469 = vunpack.c.h.b16 %v3304
        %v3470 = vunpack.c.l.b16 %v3305
        %v3471 = vunpack.c.h.b16 %v3305
        %v3472 = vunpack.c.l.b16 %v3306
        %v3473 = vunpack.c.h.b16 %v3306
        %v3474 = vunpack.c.l.b16 %v3307
        %v3475 = vunpack.c.h.b16 %v3307
        %v3476 = vunpack.c.l.b16 %v3308
        %v3477 = vunpack.c.h.b16 %v3308
        %v3478 = vunpack.c.l.b16 %v3309
        %v3479 = vunpack.c.h.b16 %v3309
        %v3480 = vunpack.c.l.b16 %v3310
        %v3481 = vunpack.c.h.b16 %v3310
        %v3482 = vunpack.c.l.b16 %v3311
        %v3483 = vunpack.c.h.b16 %v3311
        %v3484 = vunpack.c.l.b16 %v3312
        %v3485 = vunpack.c.h.b16 %v3312
        %v3486 = vunpack.c.l.b16 %v3313
        %v3487 = vunpack.c.h.b16 %v3313
        %v3488 = vunpack.c.l.b16 %v3314
        %v3489 = vunpack.c.h.b16 %v3314
        %v3490 = vunpack.c.l.b16 %v3315
        %v3491 = vunpack.c.h.b16 %v3315
        %v3492 = vunpack.c.l.b16 %v3316
        %v3493 = vunpack.c.h.b16 %v3316
        %v3494 = vunpack.c.l.b16 %v3317
        %v3495 = vunpack.c.h.b16 %v3317
        %v3496 = vunpack.c.l.b16 %v3318
        %v3497 = vunpack.c.h.b16 %v3318
        %v3498 = vunpack.c.l.b16 %v3319
        %v3499 = vunpack.c.h.b16 %v3319
        %v3500 = vunpack.c.l.b16 %v3320
        %v3501 = vunpack.c.h.b16 %v3320
        %v3502 = vunpack.c.l.b16 %v3321
        %v3503 = vunpack.c.h.b16 %v3321
        %v3504 = vunpack.c.l.b16 %v3322
        %v3505 = vunpack.c.h.b16 %v3322
        %v3506 = vunpack.c.l.b16 %v3323
        %v3507 = vunpack.c.h.b16 %v3323
        %v3508 = vunpack.c.l.b16 %v3324
        %v3509 = vunpack.c.h.b16 %v3324
        %v3510 = vunpack.c.l.b16 %v3325
        %v3511 = vunpack.c.h.b16 %v3325
        %v3512 = vunpack.c.l.b16 %v3326
        %v3513 = vunpack.c.h.b16 %v3326
        %v3514 = vunpack.c.l.b16 %v3327
        %v3515 = vunpack.c.h.b16 %v3327
        %v3516 = vunpack.c.l.b16 %v3328
        %v3517 = vunpack.c.h.b16 %v3328
        %v3518 = vunpack.c.l.b16 %v3329
        %v3519 = vunpack.c.h.b16 %v3329
        %v3520 = vunpack.c.l.b16 %v3330
        %v3521 = vunpack.c.h.b16 %v3330
        %v3522 = vunpack.c.l.b16 %v3331
        %v3523 = vunpack.c.h.b16 %v3331
        %v3524 = vunpack.c.l.b16 %v3332
        %v3525 = vunpack.c.h.b16 %v3332
        %v3526 = vunpack.c.l.b16 %v3333
        %v3527 = vunpack.c.h.b16 %v3333
        %v3528 = vunpack.c.l.b16 %v3334
        %v3529 = vunpack.c.h.b16 %v3334
        %v3530 = vunpack.c.l.b16 %v3335
        %v3531 = vunpack.c.h.b16 %v3335
        %v3532 = vunpack.c.l.b16 %v3336
        %v3533 = vunpack.c.h.b16 %v3336
        %v3534 = vunpack.c.l.b16 %v3337
        %v3535 = vunpack.c.h.b16 %v3337
        %v3536 = vunpack.c.l.b16 %v3338
        %v3537 = vunpack.c.h.b16 %v3338
        %v3538 = vunpack.c.l.b16 %v3339
        %v3539 = vunpack.c.h.b16 %v3339
        %v3540 = vunpack.c.l.b16 %v3340
        %v3541 = vunpack.c.h.b16 %v3340
        %v3542 = vunpack.c.l.b16 %v3341
        %v3543 = vunpack.c.h.b16 %v3341
        %v3544 = vunpack.c.l.b16 %v3342
        %v3545 = vunpack.c.h.b16 %v3342
        %v3546 = vunpack.c.l.b16 %v3343
        %v3547 = vunpack.c.h.b16 %v3343
        %v3548 = vpack.c.b16 %v3422, %v3420
        %v3549 = vpack.c.b16 %v3423, %v3421
        %v3550 = vpack.c.b16 %v3426, %v3424
        %v3551 = vpack.c.b16 %v3427, %v3425
        %v3552 = vpack.c.b16 %v3430, %v3428
        %v3553 = vpack.c.b16 %v3431, %v3429
        %v3554 = vpack.c.b16 %v3434, %v3432
        %v3555 = vpack.c.b16 %v3435, %v3433
        %v3556 = vpack.c.b16 %v3438, %v3436
        %v3557 = vpack.c.b16 %v3439, %v3437
        %v3558 = vpack.c.b16 %v3442, %v3440
        %v3559 = vpack.c.b16 %v3443, %v3441
        %v3560 = vpack.c.b16 %v3446, %v3444
        %v3561 = vpack.c.b16 %v3447, %v3445
        %v3562 = vpack.c.b16 %v3450, %v3448
        %v3563 = vpack.c.b16 %v3451, %v3449
        %v3564 = vpack.c.b16 %v3454, %v3452
        %v3565 = vpack.c.b16 %v3455, %v3453
        %v3566 = vpack.c.b16 %v3458, %v3456
        %v3567 = vpack.c.b16 %v3459, %v3457
        %v3568 = vpack.c.b16 %v3462, %v3460
        %v3569 = vpack.c.b16 %v3463, %v3461
        %v3570 = vpack.c.b16 %v3466, %v3464
        %v3571 = vpack.c.b16 %v3467, %v3465
        %v3572 = vpack.c.b16 %v3470, %v3468
        %v3573 = vpack.c.b16 %v3471, %v3469
        %v3574 = vpack.c.b16 %v3474, %v3472
        %v3575 = vpack.c.b16 %v3475, %v3473
        %v3576 = vpack.c.b16 %v3478, %v3476
        %v3577 = vpack.c.b16 %v3479, %v3477
        %v3578 = vpack.c.b16 %v3482, %v3480
        %v3579 = vpack.c.b16 %v3483, %v3481
        %v3580 = vpack.c.b16 %v3486, %v3484
        %v3581 = vpack.c.b16 %v3487, %v3485
        %v3582 = vpack.c.b16 %v3490, %v3488
        %v3583 = vpack.c.b16 %v3491, %v3489
        %v3584 = vpack.c.b16 %v3494, %v3492
        %v3585 = vpack.c.b16 %v3495, %v3493
        %v3586 = vpack.c.b16 %v3498, %v3496
        %v3587 = vpack.c.b16 %v3499, %v3497
        %v3588 = vpack.c.b16 %v3502, %v3500
        %v3589 = vpack.c.b16 %v3503, %v3501
        %v3590 = vpack.c.b16 %v3506, %v3504
        %v3591 = vpack.c.b16 %v3507, %v3505
        %v3592 = vpack.c.b16 %v3510, %v3508
        %v3593 = vpack.c.b16 %v3511, %v3509
        %v3594 = vpack.c.b16 %v3514, %v3512
        %v3595 = vpack.c.b16 %v3515, %v3513
        %v3596 = vpack.c.b16 %v3518, %v3516
        %v3597 = vpack.c.b16 %v3519, %v3517
        %v3598 = vpack.c.b16 %v3522, %v3520
        %v3599 = vpack.c.b16 %v3523, %v3521
        %v3600 = vpack.c.b16 %v3526, %v3524
        %v3601 = vpack.c.b16 %v3527, %v3525
        %v3602 = vpack.c.b16 %v3530, %v3528
        %v3603 = vpack.c.b16 %v3531, %v3529
        %v3604 = vpack.c.b16 %v3534, %v3532
        %v3605 = vpack.c.b16 %v3535, %v3533
        %v3606 = vpack.c.b16 %v3538, %v3536
        %v3607 = vpack.c.b16 %v3539, %v3537
        %v3608 = vpack.c.b16 %v3542, %v3540
        %v3609 = vpack.c.b16 %v3543, %v3541
        %v3610 = vpack.c.b16 %v3546, %v3544
        %v3611 = vpack.c.b16 %v3547, %v3545
        %3676 = vmatprep.subr.bf16.mxu0 %v3563
        %3677 = vmatpush1.bf16.msra.mxu0 %v3562
        %3678 = vmatprep.subr.bf16.mxu0 %v3561
        %3679 = vmatpush1.bf16.msra.mxu0 %v3560
        %3680 = vmatprep.subr.bf16.mxu0 %v3559
        %3681 = vmatpush1.bf16.msra.mxu0 %v3558
        %3682 = vmatprep.subr.bf16.mxu0 %v3557
        %3683 = vmatpush1.bf16.msra.mxu0 %v3556
        %3684 = vmatprep.subr.bf16.mxu0 %v3555
        %3685 = vmatpush1.bf16.msra.mxu0 %v3554
        %3686 = vmatprep.subr.bf16.mxu0 %v3553
        %3687 = vmatpush1.bf16.msra.mxu0 %v3552
        %3688 = vmatprep.subr.bf16.mxu0 %v3551
        %3689 = vmatpush1.bf16.msra.mxu0 %v3550
        %3690 = vmatprep.subr.bf16.mxu0 %v3549
        %3691 = vmatpush1.bf16.msra.mxu0 %v3548
        %3692 = vmatprep.subr.bf16.mxu0 %v3579
        %3693 = vmatpush2.bf16.msra.mxu0 %v3578
        %3694 = vmatprep.subr.bf16.mxu0 %v3577
        %3695 = vmatpush2.bf16.msra.mxu0 %v3576
        %3696 = vmatprep.subr.bf16.mxu0 %v3575
        %3697 = vmatpush2.bf16.msra.mxu0 %v3574
        %3698 = vmatprep.subr.bf16.mxu0 %v3573
        %3699 = vmatpush2.bf16.msra.mxu0 %v3572
        %3700 = vmatprep.subr.bf16.mxu0 %v3571
        %3701 = vmatpush2.bf16.msra.mxu0 %v3570
        %3702 = vmatprep.subr.bf16.mxu0 %v3569
        %3703 = vmatpush2.bf16.msra.mxu0 %v3568
        %3704 = vmatprep.subr.bf16.mxu0 %v3567
        %3705 = vmatpush2.bf16.msra.mxu0 %v3566
        %3706 = vmatprep.subr.bf16.mxu0 %v3565
        %3707 = vmatpush2.bf16.msra.mxu0 %v3564
        %3708 = vmatprep.mubr.bf16.mxu0 %v3277
        %3709 = vmatmul.mubr.bf16.gmra.mxu0 %v3276
        %v3710 = vpop.f32.mrf.mxu0
        %v3711 = vadd.f32 %v3349, %v3710
        %v3712 = vpop.f32.mrf.mxu0
        %v3713 = vadd.f32 %v3353, %v3712
        %v3714 = vpop.f32.mrf.mxu0
        %v3715 = vpop.f32.mrf.mxu0
        %3716 = vdwg.mxu0
        %3717 = vmatprep.subr.bf16.mxu0 %v3595
        %3718 = vmatpush1.bf16.msra.mxu0 %v3594
        %3719 = vmatprep.subr.bf16.mxu0 %v3593
        %3720 = vmatpush1.bf16.msra.mxu0 %v3592
        %3721 = vmatprep.subr.bf16.mxu0 %v3591
        %3722 = vmatpush1.bf16.msra.mxu0 %v3590
        %3723 = vmatprep.subr.bf16.mxu0 %v3589
        %3724 = vmatpush1.bf16.msra.mxu0 %v3588
        %3725 = vmatprep.subr.bf16.mxu0 %v3587
        %3726 = vmatpush1.bf16.msra.mxu0 %v3586
        %3727 = vmatprep.subr.bf16.mxu0 %v3585
        %3728 = vmatpush1.bf16.msra.mxu0 %v3584
        %3729 = vmatprep.subr.bf16.mxu0 %v3583
        %3730 = vmatpush1.bf16.msra.mxu0 %v3582
        %3731 = vmatprep.subr.bf16.mxu0 %v3581
        %3732 = vmatpush1.bf16.msra.mxu0 %v3580
        %3733 = vmatprep.subr.bf16.mxu0 %v3611
        %3734 = vmatpush2.bf16.msra.mxu0 %v3610
        %3735 = vmatprep.subr.bf16.mxu0 %v3609
        %3736 = vmatpush2.bf16.msra.mxu0 %v3608
        %3737 = vmatprep.subr.bf16.mxu0 %v3607
        %3738 = vmatpush2.bf16.msra.mxu0 %v3606
        %3739 = vmatprep.subr.bf16.mxu0 %v3605
        %3740 = vmatpush2.bf16.msra.mxu0 %v3604
        %3741 = vmatprep.subr.bf16.mxu0 %v3603
        %3742 = vmatpush2.bf16.msra.mxu0 %v3602
        %3743 = vmatprep.subr.bf16.mxu0 %v3601
        %3744 = vmatpush2.bf16.msra.mxu0 %v3600
        %3745 = vmatprep.subr.bf16.mxu0 %v3599
        %3746 = vmatpush2.bf16.msra.mxu0 %v3598
        %3747 = vmatprep.subr.bf16.mxu0 %v3597
        %3748 = vmatpush2.bf16.msra.mxu0 %v3596
        %3749 = vmatprep.mubr.bf16.mxu0 %v3279
        %3750 = vmatmul.mubr.bf16.gmra.mxu0 %v3278
        %v3751 = vpop.f32.mrf.mxu0
        %v3752 = vadd.f32 %v3711, %v3751
        %v3753 = vpop.f32.mrf.mxu0
        %v3754 = vadd.f32 %v3713, %v3753
        %v3755 = vpop.f32.mrf.mxu0
        %v3756 = vpop.f32.mrf.mxu0
        %3757 = vdwg.mxu0
        %v3758 = vadd.f32 %v2719, %v3752
        %v3759 = vadd.f32 %v2720, %v3754
        %3760 = vst [vmem:[%s564] sm:$0xff] %v3758
        %3761 = vst [vmem:[%s564 + $0x8] sm:$0xff] %v3759
        %s3762 = sand.u32 %s340, 1
        %s3763 = scalar_lea.sflag [#allocation7], %s3762
        %s3764 = sand.u32 %s340, 1
        %s3765 = smul.addr %s3764, 16
        %s3766 = scalar_lea.vmem [#allocation16], %s3765
        // Predicated region
        $region101: #{tpu_custom_call.1} parent=71 // pred_check
          %p3767 = pneg %p350
        $region102: #{tpu_custom_call.1} parent=71 // pred_check_branch
          %3769 = sbr.rel (%p3767) target = $region104
        $region103: #{tpu_custom_call.1} parent=71 // pred_region
          %s3771 = ssub.s32 256, 256
          %3772 = vsyncadd %s3763, %s3771
          %s3773 = smul.addr %s40, 2
          %s3774 = smul.addr %s39, 4
          %s3775 = sadd.s32 %s3773, %s3774
          %s3776 = smul.addr %s3775, 128
          %s3777 = scalar_lea.hbm %s13, %s3776
          %s3779 = sshll.u32 %s3766, 4
          %s3780 = int_to_ptr.vmem [resolvable:$true] %s3779
          %3782 = dma.vmem_to_hbm [thread:$0]  %s3780, 256, %s3777, %s3763
        $region104: #{tpu_custom_call.1} parent=71 // pred_fallthru
          _
      $region72: #{tpu_custom_call.1} parent=5 // pred_fallthru
        _
      %p3783 = scmp.le.s32.totalorder 2, %s30
      // Predicated region
      $region105: #{tpu_custom_call.1} parent=5 // pred_check
        %p3784 = pneg %p3783
      $region106: #{tpu_custom_call.1} parent=5 // pred_check_branch
        %3786 = sbr.rel (%p3784) target = $region108
      $region107: #{tpu_custom_call.1} parent=5 // pred_region
        %s3787 = ssub.s32 %s30, 2
        // Predicated region
        $region109: #{tpu_custom_call.1} parent=107 // pred_check
          %p3788 = pneg %p356
        $region110: #{tpu_custom_call.1} parent=107 // pred_check_branch
          %3790 = sbr.rel (%p3788) target = $region112
        $region111: #{tpu_custom_call.1} parent=107 // pred_region
          %s3791 = sand.u32 %s341, 1
          %s3792 = scalar_lea.sflag [#allocation7], %s3791
          %s3793 = sand.u32 %s341, 1
          %s3794 = smul.addr %s3793, 16
          %s3795 = scalar_lea.vmem [#allocation16], %s3794
          %3796 = dma.done %s3792, 256
        $region112: #{tpu_custom_call.1} parent=107 // pred_fallthru
          _
      $region108: #{tpu_custom_call.1} parent=5 // pred_fallthru
        _
    $region6: #{tpu_custom_call.1} parent=1 // loop_footer
      %s34 = sadd.s32 1, %s30
    $region7: #{tpu_custom_call.1} parent=1 // loop_footer_branch
      %29 = sbr.rel target = $region3
    $region8: #{tpu_custom_call.1} parent=1 // loop_exit
      _
    %3797 = vsyncpa [#allocation6], 1
    %s3798 = scalar_lea.sflag [#allocation6], 1
    %3799 = vsyncpa %s3798, 1
    %3800 = vsyncpa [#allocation9], 1
    %s3801 = scalar_lea.sflag [#allocation9], 1
    %3802 = vsyncpa %s3801, 1
    %3803 = vsyncpa [#allocation12], 1
    %3804 = vsyncpa [#allocation15], 1
    %3805 = vsyncpa [#allocation7], 1
    %s3806 = scalar_lea.sflag [#allocation7], 1
    %3807 = vsyncpa %s3806, 1

</llo_original>
